<compile_context>
chip_gen: v7x
topology: tpu7x:2x2x1
jax: 0.10.0
libtpu: 0.0.40
codegen_flags: <defaults>
</compile_context>

<pallas_src>
import functools
import math

import numpy as np

import jax
import jax.numpy as jnp
from jax import lax
from jax.experimental import pallas as pl
from jax.experimental.pallas import tpu as pltpu

LANE = 128          # feature-map channel dims padded to the lane width
NHIDDEN = 128       # SPADE hidden width (already lane-aligned)
_EPS = 1e-5


def _ceil_to(n, m):
    return ((n + m - 1) // m) * m


def _top_pad(W):
    # Top/bottom zero-pad rows of the flat row-contiguous conv buffer.
    # Needs >= W+1 rows so every 3x3 tap slice stays in bounds; 8-aligned so
    # the interior store and the dx=1 tap loads are sublane-aligned.
    return _ceil_to(W + 1, 8)


def _blk_bytes(shape, dtype):
    return math.prod(shape) * np.dtype(dtype).itemsize


def _compiler_params(block_bytes, scratch_bytes):
    # Call-specific VMEM budget: 2x (double-buffered) blocks + scratch +
    # headroom for in-kernel temporaries, capped at 3/4 of physical VMEM.
    need = 2 * block_bytes + scratch_bytes + (4 << 20)
    try:
        cap = int(pltpu.get_tpu_info().vmem_capacity_bytes)
    except Exception:
        cap = 128 << 20
    limit = int(min(max(need, 32 << 20), (cap * 3) // 4))
    return pltpu.CompilerParams(
        dimension_semantics=("parallel",),    # batch axis -> 2 TCs on v7x
        vmem_limit_bytes=limit,
    )


# ----------------------------- in-kernel helpers -----------------------------


def _conv3x3_acc(img, pad_ref, w_ref, b_ref, H, W):
    """3x3 SAME conv of img ((H*W, C) f32, row-major rows) as 9 accumulating
    per-tap MXU matmuls (no im2col patch materialization).

    pad_ref : (T + H*W + T, C) f32 scratch.  Rows [0,T) and [T+HW, 2T+HW) are
              zeroed here (cheap: 2*T rows), the interior holds `img`.
    w_ref   : (9*C, Cout) bf16; tap k = dy*3+dx occupies rows [k*C, (k+1)*C).
    b_ref   : (1, Cout) f32.
    returns : (H*W, Cout) f32.
    """
    C = pad_ref.shape[-1]
    Cout = w_ref.shape[-1]
    HW = H * W
    T = _top_pad(W)

    # Zero bands every step (megacore-safe; interior overwritten below).
    pad_ref[pl.ds(0, T), :] = jnp.zeros((T, C), pad_ref.dtype)
    pad_ref[pl.ds(T + HW, T), :] = jnp.zeros((T, C), pad_ref.dtype)
    pad_ref[pl.ds(T, HW), :] = img

    # A horizontal tap that crosses the left/right image edge must contribute
    # zero (the flat row-contiguous layout would otherwise wrap into the
    # neighbouring image row).
    col = lax.broadcasted_iota(jnp.int32, (HW, 1), 0) % W
    not_first = col != 0           # mask for dx == 0 taps
    not_last = col != (W - 1)      # mask for dx == 2 taps

    acc = jnp.zeros((HW, Cout), jnp.float32)
    for dy in range(3):
        for dx in range(3):
            start = T + (dy - 1) * W + (dx - 1)     # static offset
            tap = pad_ref[pl.ds(start, HW), :]      # contiguous slice
            if dx == 0:
                tap = jnp.where(not_first, tap, 0.0)
            elif dx == 2:
                tap = jnp.where(not_last, tap, 0.0)
            acc = acc + jnp.dot(tap.astype(jnp.bfloat16),
                                w_ref[pl.ds((dy * 3 + dx) * C, C), :],
                                preferred_element_type=jnp.float32)
    return acc + b_ref[...]


def _instance_norm(x, HW):
    """Param-free instance norm over the spatial axis of a (HW, C) f32 tile."""
    s1 = jnp.sum(x, axis=0, keepdims=True)
    s2 = jnp.sum(x * x, axis=0, keepdims=True)
    mean = s1 * (1.0 / HW)
    var = jnp.maximum(s2 * (1.0 / HW) - mean * mean, 0.0)   # clamp cancellation
    return (x - mean) * lax.rsqrt(var + _EPS)


# --------------------------------- kernels -----------------------------------


def _mlp_shared_kernel(seg_ref, w_ref, b_ref, o_ref, pad_ref, *, H, W):
    """All SPADE mlp_shared convs fused in one 3x3 conv + ReLU (stacked Cout)."""
    HW = H * W
    Cl = seg_ref.shape[-1]
    Cout = o_ref.shape[-1]
    seg = seg_ref[0].astype(jnp.float32).reshape(HW, Cl)
    acc = _conv3x3_acc(seg, pad_ref, w_ref, b_ref, H, W)
    acc = jnp.maximum(acc, 0.0)                               # ReLU
    o_ref[0] = acc.reshape(H, W, Cout).astype(o_ref.dtype)


def _spade_conv_kernel(*refs, H, W, has_shortcut, has_residual):
    """Fused: gamma|beta conv (from actv) + InstanceNorm + SPADE modulation
    + leaky_relu(0.2) + 3x3 conv + bias (+ residual add)
    (+ optionally the learned-shortcut branch: modulation w/o leaky + 1x1 conv,
       sharing x's HBM read and instance-norm statistics)."""
    x_ref, actv_ref, wgb_ref, bgb_ref, w_ref, b_ref = refs[:6]
    i = 6
    if has_shortcut:
        actvs_ref, wgbs_ref, bgbs_ref, ws_ref = refs[i:i + 4]
        i += 4
    if has_residual:
        res_ref = refs[i]
        i += 1
    out_ref = refs[i]
    i += 1
    if has_shortcut:
        xs_ref = refs[i]
        i += 1
    pad_a_ref, pad_h_ref = refs[i], refs[i + 1]

    C = x_ref.shape[-1]
    Cout = w_ref.shape[-1]
    HW = H * W

    # gamma|beta conv (fused Cout = 2*C) computed entirely in VMEM -- the
    # (N,H,W,2C) "gb" intermediate never touches HBM.
    actv = actv_ref[0].astype(jnp.float32).reshape(HW, actv_ref.shape[-1])
    gb = _conv3x3_acc(actv, pad_a_ref, wgb_ref, bgb_ref, H, W)     # (HW, 2C)

    # Param-free instance norm of x (shared by main + shortcut branches).
    x = x_ref[0].astype(jnp.float32).reshape(HW, C)
    normalized = _instance_norm(x, HW)

    h = normalized * (1.0 + gb[:, :C]) + gb[:, C:]                 # SPADE
    h = jnp.where(h >= 0.0, h, 0.2 * h)                            # leaky 0.2
    acc = _conv3x3_acc(h, pad_h_ref, w_ref, b_ref, H, W)           # main conv
    if has_residual:
        acc = acc + res_ref[0].astype(jnp.float32).reshape(HW, Cout)
    out_ref[0] = acc.reshape(H, W, Cout).astype(out_ref.dtype)

    if has_shortcut:
        actv_s = actvs_ref[0].astype(jnp.float32).reshape(HW, actvs_ref.shape[-1])
        gb_s = _conv3x3_acc(actv_s, pad_a_ref, wgbs_ref, bgbs_ref, H, W)
        h_s = normalized * (1.0 + gb_s[:, :C]) + gb_s[:, C:]       # no leaky
        Cs = ws_ref.shape[-1]
        xs = jnp.dot(h_s.astype(jnp.bfloat16), ws_ref[...],
                     preferred_element_type=jnp.float32)
        xs_ref[0] = xs.reshape(H, W, Cs).astype(xs_ref.dtype)


# ----------------------------- pallas_call wrappers ---------------------------


def mlp_shared_conv(seg, w, b):
    """seg: (N,H,W,Cl) f32, w: (9*Cl, nA*128) bf16, b: (1, nA*128) f32.
    Returns bf16 (N,H,W,nA*128) = ReLU(conv3x3(seg)) for every SPADE norm."""
    N, H, W, Cl = seg.shape
    K, Cout = w.shape
    rows = 2 * _top_pad(W) + H * W
    scratch = pltpu.VMEM((rows, Cl), jnp.float32)
    blk = (_blk_bytes((1, H, W, Cl), jnp.float32)
           + _blk_bytes((K, Cout), jnp.bfloat16)
           + _blk_bytes((1, Cout), jnp.float32)
           + _blk_bytes((1, H, W, Cout), jnp.bfloat16))
    return pl.pallas_call(
        functools.partial(_mlp_shared_kernel, H=H, W=W),
        out_shape=jax.ShapeDtypeStruct((N, H, W, Cout), jnp.bfloat16),
        grid=(N,),
        in_specs=[
            pl.BlockSpec((1, H, W, Cl), lambda n: (n, 0, 0, 0)),
            pl.BlockSpec((K, Cout), lambda n: (0, 0)),
            pl.BlockSpec((1, Cout), lambda n: (0, 0)),
        ],
        out_specs=pl.BlockSpec((1, H, W, Cout), lambda n: (n, 0, 0, 0)),
        scratch_shapes=[scratch],
        compiler_params=_compiler_params(blk, _blk_bytes((rows, Cl), jnp.float32)),
    )(seg, w, b)


def spade_conv(x, actv_all, a_idx, wgb, bgb, w, b, *,
               shortcut=None, residual=None, out_dtype=jnp.float32):
    """One fused SPADE+conv stage (optionally also the learned-shortcut branch).

    x        : (N,H,W,C) f32/bf16       actv_all : (N,H,W,nA*128) bf16
    wgb/bgb  : fused gamma|beta conv weights, (9*128, 2C) bf16 / (1, 2C) f32
    w/b      : main 3x3 conv weights, (9*C, Cout) bf16 / (1, Cout) f32
    shortcut : None or (a_idx_s, wgb_s, bgb_s, w_s[(C, Cs) bf16])
    residual : None or (N,H,W,Cout) f32 added to the main conv output.
    """
    N, H, W, C = x.shape
    Cout = w.shape[-1]
    NH = NHIDDEN
    has_sc = shortcut is not None
    has_res = residual is not None
    rows = 2 * _top_pad(W) + H * W

    args = [x, actv_all, wgb, bgb, w, b]
    in_specs = [
        pl.BlockSpec((1, H, W, C), lambda n: (n, 0, 0, 0)),
        pl.BlockSpec((1, H, W, NH), lambda n, i=a_idx: (n, 0, 0, i)),
        pl.BlockSpec(wgb.shape, lambda n: (0, 0)),
        pl.BlockSpec(bgb.shape, lambda n: (0, 0)),
        pl.BlockSpec(w.shape, lambda n: (0, 0)),
        pl.BlockSpec(b.shape, lambda n: (0, 0)),
    ]
    blk = (_blk_bytes((1, H, W, C), x.dtype)
           + _blk_bytes((1, H, W, NH), jnp.bfloat16)
           + _blk_bytes(wgb.shape, jnp.bfloat16)
           + _blk_bytes(bgb.shape, jnp.float32)
           + _blk_bytes(w.shape, jnp.bfloat16)
           + _blk_bytes(b.shape, jnp.float32)
           + _blk_bytes((1, H, W, Cout), out_dtype))

    if has_sc:
        s_idx, wgb_s, bgb_s, w_s = shortcut
        Cs = w_s.shape[-1]
        args += [actv_all, wgb_s, bgb_s, w_s]
        in_specs += [
            pl.BlockSpec((1, H, W, NH), lambda n, i=s_idx: (n, 0, 0, i)),
            pl.BlockSpec(wgb_s.shape, lambda n: (0, 0)),
            pl.BlockSpec(bgb_s.shape, lambda n: (0, 0)),
            pl.BlockSpec(w_s.shape, lambda n: (0, 0)),
        ]
        blk += (_blk_bytes((1, H, W, NH), jnp.bfloat16)
                + _blk_bytes(wgb_s.shape, jnp.bfloat16)
                + _blk_bytes(bgb_s.shape, jnp.float32)
                + _blk_bytes(w_s.shape, jnp.bfloat16)
                + _blk_bytes((1, H, W, Cs), jnp.float32))
    if has_res:
        args.append(residual)
        in_specs.append(pl.BlockSpec((1, H, W, Cout), lambda n: (n, 0, 0, 0)))
        blk += _blk_bytes((1, H, W, Cout), jnp.float32)

    out_shape = [jax.ShapeDtypeStruct((N, H, W, Cout), out_dtype)]
    out_specs = [pl.BlockSpec((1, H, W, Cout), lambda n: (n, 0, 0, 0))]
    if has_sc:
        out_shape.append(jax.ShapeDtypeStruct((N, H, W, Cs), jnp.float32))
        out_specs.append(pl.BlockSpec((1, H, W, Cs), lambda n: (n, 0, 0, 0)))

    scratch_shapes = [pltpu.VMEM((rows, NH), jnp.float32),
                      pltpu.VMEM((rows, C), jnp.float32)]
    scratch_bytes = (_blk_bytes((rows, NH), jnp.float32)
                     + _blk_bytes((rows, C), jnp.float32))

    kernel = functools.partial(_spade_conv_kernel, H=H, W=W,
                               has_shortcut=has_sc, has_residual=has_res)
    results = pl.pallas_call(
        kernel,
        out_shape=tuple(out_shape),
        grid=(N,),
        in_specs=in_specs,
        out_specs=tuple(out_specs),
        scratch_shapes=scratch_shapes,
        compiler_params=_compiler_params(blk, scratch_bytes),
    )(*args)
    if has_sc:
        return results[0], results[1]
    return results[0]


# ------------------------------ module logic ----------------------------------


def nearest_resize(seg, H, W):
    # Matches PyTorch F.interpolate(mode='nearest'): idx = floor(i * in / out).
    N, Hs, Ws, C = seg.shape
    ih = (jnp.arange(H) * Hs) // H
    iw = (jnp.arange(W) * Ws) // W
    return seg[:, ih][:, :, iw]


def _pad_channels(x, cp):
    c = x.shape[-1]
    if c == cp:
        return x
    return jnp.pad(x, ((0, 0), (0, 0), (0, 0), (0, cp - c)))


def spade_resnet_block(x_nchw, seg_nchw, packed, fout, learned_shortcut):
    """SPADEResnetBlock forward; x/seg are NCHW like the PyTorch module."""
    x = jnp.transpose(x_nchw, (0, 2, 3, 1))
    seg = jnp.transpose(seg_nchw, (0, 2, 3, 1))
    N, H, W, fin = x.shape

    x_p = _pad_channels(x, _ceil_to(fin, LANE)).astype(jnp.float32)
    seg_up = nearest_resize(seg, H, W)
    seg_p = _pad_channels(seg_up, packed["label_p"]).astype(jnp.float32)

    # One call: mlp_shared conv + ReLU for every SPADE norm (stacked Cout).
    actv_all = mlp_shared_conv(seg_p, packed["w_sh_all"], packed["b_sh_all"])

    n0, n1 = packed["norm_0"], packed["norm_1"]
    if learned_shortcut:
        ns = packed["norm_s"]
        h, x_s = spade_conv(
            x_p, actv_all, 0, n0["w_gb"], n0["b_gb"], packed["w0"], packed["b0"],
            shortcut=(2, ns["w_gb"], ns["b_gb"], packed["w_s"]),
            out_dtype=jnp.bfloat16)
    else:
        h = spade_conv(x_p, actv_all, 0, n0["w_gb"], n0["b_gb"],
                       packed["w0"], packed["b0"], out_dtype=jnp.bfloat16)
        x_s = x_p
    out_p = spade_conv(h, actv_all, 1, n1["w_gb"], n1["b_gb"],
                       packed["w1"], packed["b1"],
                       residual=x_s, out_dtype=jnp.float32)

    out = out_p[..., :fout]
    return jnp.transpose(out, (0, 3, 1, 2))


# --------------------------- parameter packing --------------------------------


def _pack_w3(w, b, cin_p, cout_p):
    """(3,3,Cin,Cout) HWIO + (Cout,) -> ((9*Cin_p, Cout_p) bf16, (1,Cout_p) f32)."""
    _, _, cin, cout = w.shape
    w = jnp.pad(w, ((0, 0), (0, 0), (0, cin_p - cin), (0, cout_p - cout)))
    b = jnp.pad(b, ((0, cout_p - cout),))
    return (w.reshape(9 * cin_p, cout_p).astype(jnp.bfloat16),
            b.reshape(1, cout_p).astype(jnp.float32))


def _pack_gamma_beta(p, norm_p):
    """Fuse gamma & beta convs along Cout: [gamma | beta] (fills the 256-wide MXU)."""
    _, _, nh, norm_nc = p["w_g"].shape
    wg = jnp.pad(p["w_g"], ((0, 0), (0, 0), (0, 0), (0, norm_p - norm_nc)))
    wb = jnp.pad(p["w_b"], ((0, 0), (0, 0), (0, 0), (0, norm_p - norm_nc)))
    w_gb = jnp.concatenate([wg, wb], axis=3).reshape(9 * nh, 2 * norm_p)
    bg = jnp.pad(p["b_g"], ((0, norm_p - norm_nc),))
    bb = jnp.pad(p["b_b"], ((0, norm_p - norm_nc),))
    b_gb = jnp.concatenate([bg, bb]).reshape(1, 2 * norm_p)
    return dict(w_gb=w_gb.astype(jnp.bfloat16), b_gb=b_gb.astype(jnp.float32))


def pack_block_params(params, learned_shortcut):
    label_nc = params["norm_0"]["w_sh"].shape[2]
    nhidden = params["norm_0"]["w_sh"].shape[3]
    # Segmap channels padded only to the bf16 packing granularity (16), not 128.
    label_p = _ceil_to(label_nc, 16)
    norm_names = ["norm_0", "norm_1"] + (["norm_s"] if learned_shortcut else [])
    w_sh_list, b_sh_list = [], []
    for name in norm_names:
        p = params[name]
        w_sh_list.append(jnp.pad(p["w_sh"],
                                 ((0, 0), (0, 0), (0, label_p - label_nc), (0, 0))))
        b_sh_list.append(p["b_sh"])
    w_sh_all = jnp.concatenate(w_sh_list, axis=3).reshape(
        9 * label_p, len(norm_names) * nhidden)
    b_sh_all = jnp.concatenate(b_sh_list).reshape(1, len(norm_names) * nhidden)

    fin = params["w0"].shape[2]
    fmid = params["w0"].shape[3]
    fout = params["w1"].shape[3]
    fin_p, fmid_p, fout_p = (_ceil_to(c, LANE) for c in (fin, fmid, fout))

    packed = {
        "label_p": label_p,
        "w_sh_all": w_sh_all.astype(jnp.bfloat16),
        "b_sh_all": b_sh_all.astype(jnp.float32),
        "norm_0": _pack_gamma_beta(params["norm_0"], fin_p),
        "norm_1": _pack_gamma_beta(params["norm_1"], fmid_p),
    }
    packed["w0"], packed["b0"] = _pack_w3(params["w0"], params["b0"], fin_p, fmid_p)
    packed["w1"], packed["b1"] = _pack_w3(params["w1"], params["b1"], fmid_p, fout_p)
    if learned_shortcut:
        packed["norm_s"] = _pack_gamma_beta(params["norm_s"], fin_p)
        ws = params["w_s"]                                  # (fin, fout)
        packed["w_s"] = jnp.pad(
            ws, ((0, fin_p - fin), (0, fout_p - fout))).astype(jnp.bfloat16)
    return packed


# ------------------------------ pure-JAX reference -----------------------------


def _ref_conv3x3(x, w, b):
    y = lax.conv_general_dilated(
        x, w, (1, 1), "SAME",
        dimension_numbers=("NHWC", "HWIO", "NHWC"),
        precision=lax.Precision.HIGHEST)
    return y + b


def _ref_instance_norm(x):
    mean = x.mean(axis=(1, 2), keepdims=True)
    var = ((x - mean) ** 2).mean(axis=(1, 2), keepdims=True)
    return (x - mean) / jnp.sqrt(var + _EPS)


def _ref_spade(x, seg_up, p):
    normalized = _ref_instance_norm(x)
    actv = jnp.maximum(_ref_conv3x3(seg_up, p["w_sh"], p["b_sh"]), 0.0)
    gamma = _ref_conv3x3(actv, p["w_g"], p["b_g"])
    beta = _ref_conv3x3(actv, p["w_b"], p["b_b"])
    return normalized * (1.0 + gamma) + beta


def _ref_block(x_nchw, seg_nchw, params, learned_shortcut):
    x = jnp.transpose(x_nchw, (0, 2, 3, 1))
    seg = jnp.transpose(seg_nchw, (0, 2, 3, 1))
    N, H, W, _ = x.shape
    seg_up = nearest_resize(seg, H, W)
    leaky = lambda z: jnp.where(z >= 0.0, z, 0.2 * z)
    if learned_shortcut:
        x_s = jnp.einsum("nhwc,cd->nhwd",
                         _ref_spade(x, seg_up, params["norm_s"]), params["w_s"],
                         precision=lax.Precision.HIGHEST)
    else:
        x_s = x
    dx = _ref_conv3x3(leaky(_ref_spade(x, seg_up, params["norm_0"])),
                      params["w0"], params["b0"])
    dx = _ref_conv3x3(leaky(_ref_spade(dx, seg_up, params["norm_1"])),
                      params["w1"], params["b1"])
    return jnp.transpose(x_s + dx, (0, 3, 1, 2))


# ------------------------------ param init -------------------------------------


def _init_conv(key, kh, kw, cin, cout, bias=True):
    kw_, kb_ = jax.random.split(key)
    fan_in = kh * kw * cin
    scale = 1.0 / jnp.sqrt(jnp.float32(fan_in))
    w = jax.random.uniform(kw_, (kh, kw, cin, cout), jnp.float32, -scale, scale)
    if bias:
        b = jax.random.uniform(kb_, (cout,), jnp.float32, -scale, scale)
        return w, b
    return w


def _init_spade_params(key, norm_nc, label_nc, nhidden=128):
    k1, k2, k3 = jax.random.split(key, 3)
    w_sh, b_sh = _init_conv(k1, 3, 3, label_nc, nhidden)
    w_g, b_g = _init_conv(k2, 3, 3, nhidden, norm_nc)
    w_b, b_b = _init_conv(k3, 3, 3, nhidden, norm_nc)
    return dict(w_sh=w_sh, b_sh=b_sh, w_g=w_g, b_g=b_g, w_b=w_b, b_b=b_b)


def init_block_params(key, fin, fout, semantic_nc):
    fmiddle = min(fin, fout)
    learned_shortcut = fin != fout
    keys = jax.random.split(key, 6)
    params = {
        "norm_0": _init_spade_params(keys[0], fin, semantic_nc),
        "norm_1": _init_spade_params(keys[1], fmiddle, semantic_nc),
    }
    params["w0"], params["b0"] = _init_conv(keys[2], 3, 3, fin, fmiddle)
    params["w1"], params["b1"] = _init_conv(keys[3], 3, 3, fmiddle, fout)
    if learned_shortcut:
        params["norm_s"] = _init_spade_params(keys[4], fin, semantic_nc)
        w_s = _init_conv(keys[5], 1, 1, fin, fout, bias=False)
        params["w_s"] = w_s.reshape(fin, fout)
    return params, learned_shortcut


# ---------------------------------- main ---------------------------------------


if __name__ == "__main__":
    N, H, W = 2, 16, 16
    semantic_nc = 3
    Hs, Ws = 8, 8                              # segmap at lower resolution

    key = jax.random.PRNGKey(0)
    kx, ks, kp = jax.random.split(key, 3)
    seg = jax.random.normal(ks, (N, semantic_nc, Hs, Ws), jnp.float32)  # NCHW

    # (fin, fout): learned-shortcut path and identity-shortcut path.
    for cfg_i, (fin, fout) in enumerate([(4, 8), (4, 4)]):
        kxi = jax.random.fold_in(kx, cfg_i)
        kpi = jax.random.fold_in(kp, cfg_i)
        x = jax.random.normal(kxi, (N, fin, H, W), jnp.float32)        # NCHW

        params, learned_shortcut = init_block_params(kpi, fin, fout, semantic_nc)
        packed = pack_block_params(params, learned_shortcut)

        out = spade_resnet_block(x, seg, packed, fout, learned_shortcut)
        out = jax.block_until_ready(out)
        ref = jax.block_until_ready(_ref_block(x, seg, params, learned_shortcut))

        assert out.shape == (N, fout, H, W), out.shape
        # bf16 MXU inputs + bf16 chained intermediates vs. an all-f32 HIGHEST ref.
        err = float(jnp.max(jnp.abs(out - ref)))
        assert bool(jnp.allclose(out, ref, atol=5e-2, rtol=5e-2)), (
            f"max abs error {err} (fin={fin}, fout={fout})")

    print("KERNEL_OK")
</pallas_src>

<mosaic_0001>
module attributes {stable_mosaic.version = 11 : i64} {
  func.func @_mlp_shared_kernel(%arg0: i32, %arg1: memref<1x16x16x16xf32, #tpu.memory_space<vmem>>, %arg2: memref<144x384xbf16, #tpu.memory_space<vmem>>, %arg3: memref<1x384xf32, #tpu.memory_space<vmem>>, %arg4: memref<1x16x16x384xbf16, #tpu.memory_space<vmem>>, %arg5: memref<304x16xf32, #tpu.memory_space<vmem>>) attributes {dimension_semantics = [#tpu.dimension_semantics<parallel>], iteration_bounds = array<i64: 2>, scalar_prefetch = 0 : i64, scratch_operands = 1 : i64, tpu.core_type = #tpu.core_type<tc>, window_params = [{transform_indices = @transform_0, window_bounds = array<i64: 1, 16, 16, 16>}, {pipeline_mode = #tpu.pipeline_mode<synchronous>, transform_indices = @transform_1, window_bounds = array<i64: 144, 384>}, {pipeline_mode = #tpu.pipeline_mode<synchronous>, transform_indices = @transform_2, window_bounds = array<i64: 1, 384>}, {transform_indices = @transform_3, window_bounds = array<i64: 1, 16, 16, 384>}]} {
    %c0 = arith.constant 0 : index
    %c0_0 = arith.constant 0 : index
    %c0_1 = arith.constant 0 : index
    %c0_2 = arith.constant 0 : index
    %0 = vector.load %arg1[%c0, %c0_0, %c0_1, %c0_2] : memref<1x16x16x16xf32, #tpu.memory_space<vmem>>, vector<1x16x16x16xf32>
    %1 = vector.shape_cast %0 : vector<1x16x16x16xf32> to vector<16x16x16xf32>
    %2 = vector.shape_cast %1 : vector<16x16x16xf32> to vector<256x16xf32>
    %cst = arith.constant 0.000000e+00 : f32
    %3 = vector.broadcast %cst : f32 to vector<24x16xf32>
    %c0_3 = arith.constant 0 : index
    %c0_4 = arith.constant 0 : index
    %4 = vector.load %arg5[%c0_3, %c0_4] : memref<304x16xf32, #tpu.memory_space<vmem>>, vector<24x16xf32>
    tpu.vector_store %arg5[%c0_3, %c0_4], %3 {strides = array<i32>} : memref<304x16xf32, #tpu.memory_space<vmem>>, vector<24x16xf32>,
    %cst_5 = arith.constant 0.000000e+00 : f32
    %5 = vector.broadcast %cst_5 : f32 to vector<24x16xf32>
    %c280 = arith.constant 280 : index
    %c0_6 = arith.constant 0 : index
    %6 = vector.load %arg5[%c280, %c0_6] : memref<304x16xf32, #tpu.memory_space<vmem>>, vector<24x16xf32>
    tpu.vector_store %arg5[%c280, %c0_6], %5 {strides = array<i32>} : memref<304x16xf32, #tpu.memory_space<vmem>>, vector<24x16xf32>,
    %c24 = arith.constant 24 : index
    %c0_7 = arith.constant 0 : index
    %7 = vector.load %arg5[%c24, %c0_7] : memref<304x16xf32, #tpu.memory_space<vmem>>, vector<256x16xf32>
    tpu.vector_store %arg5[%c24, %c0_7], %2 {strides = array<i32>} : memref<304x16xf32, #tpu.memory_space<vmem>>, vector<256x16xf32>,
    %8 = tpu.iota {dimensions = array<i32: 0>} : vector<256x1xi32>
    %c16_i32 = arith.constant 16 : i32
    %c0_i32 = arith.constant 0 : i32
    %9 = arith.cmpi eq, %c16_i32, %c0_i32 : i32
    %c1_i32 = arith.constant 1 : i32
    %10 = arith.select %9, %c1_i32, %c16_i32 : i32
    %11 = vector.broadcast %10 : i32 to vector<256x1xi32>
    %12 = arith.remsi %8, %11 : vector<256x1xi32>
    %c0_i32_8 = arith.constant 0 : i32
    %13 = vector.broadcast %c0_i32_8 : i32 to vector<256x1xi32>
    %14 = arith.cmpi ne, %12, %13 : vector<256x1xi32>
    %c0_i32_9 = arith.constant 0 : i32
    %15 = vector.broadcast %c0_i32_9 : i32 to vector<256x1xi32>
    %16 = arith.cmpi slt, %12, %15 : vector<256x1xi32>
    %c0_i32_10 = arith.constant 0 : i32
    %17 = arith.cmpi slt, %10, %c0_i32_10 : i32
    %18 = vector.broadcast %17 : i1 to vector<256x1xi1>
    %19 = vector.broadcast %18 : vector<256x1xi1> to vector<256x1xi1>
    %20 = arith.xori %16, %19 : vector<256x1xi1>
    %21 = arith.andi %20, %14 : vector<256x1xi1>
    %22 = vector.broadcast %10 : i32 to vector<256x1xi32>
    %23 = arith.addi %12, %22 : vector<256x1xi32>
    %24 = arith.select %21, %23, %12 : vector<256x1xi1>, vector<256x1xi32>
    %c0_i32_11 = arith.constant 0 : i32
    %25 = vector.broadcast %c0_i32_11 : i32 to vector<256x1xi32>
    %26 = arith.cmpi ne, %24, %25 : vector<256x1xi32>
    %c15_i32 = arith.constant 15 : i32
    %27 = vector.broadcast %c15_i32 : i32 to vector<256x1xi32>
    %28 = arith.cmpi ne, %24, %27 : vector<256x1xi32>
    %cst_12 = arith.constant 0.000000e+00 : f32
    %29 = vector.broadcast %cst_12 : f32 to vector<256x384xf32>
    %c7 = arith.constant 7 : index
    %c0_13 = arith.constant 0 : index
    %30 = vector.load %arg5[%c7, %c0_13] : memref<304x16xf32, #tpu.memory_space<vmem>>, vector<256x16xf32>
    %cst_14 = arith.constant 0.000000e+00 : f32
    %31 = vector.shape_cast %26 : vector<256x1xi1> to vector<256x1xi1>
    %32 = vector.broadcast %31 : vector<256x1xi1> to vector<256x16xi1>
    %33 = vector.broadcast %cst_14 : f32 to vector<256x16xf32>
    %34 = arith.select %32, %30, %33 : vector<256x16xi1>, vector<256x16xf32>
    %35 = arith.truncf %34 : vector<256x16xf32> to vector<256x16xbf16>
    %c0_15 = arith.constant 0 : index
    %c0_16 = arith.constant 0 : index
    %36 = vector.load %arg2[%c0_15, %c0_16] : memref<144x384xbf16, #tpu.memory_space<vmem>>, vector<16x384xbf16>
    %cst_17 = arith.constant dense<0.000000e+00> : vector<256x384xf32>
    %37 = tpu.matmul %35, %36, %cst_17 {dimension_numbers = #tpu.dot_dimension_numbers<[1], [0], [0], [1], [0, 0, 1, 1], [], []>} : vector<256x16xbf16>, vector<16x384xbf16>, vector<256x384xf32> -> vector<256x384xf32>
    %38 = arith.addf %29, %37 : vector<256x384xf32>
    %c8 = arith.constant 8 : index
    %c0_18 = arith.constant 0 : index
    %39 = vector.load %arg5[%c8, %c0_18] : memref<304x16xf32, #tpu.memory_space<vmem>>, vector<256x16xf32>
    %40 = arith.truncf %39 : vector<256x16xf32> to vector<256x16xbf16>
    %c16 = arith.constant 16 : index
    %c0_19 = arith.constant 0 : index
    %41 = vector.load %arg2[%c16, %c0_19] : memref<144x384xbf16, #tpu.memory_space<vmem>>, vector<16x384xbf16>
    %cst_20 = arith.constant dense<0.000000e+00> : vector<256x384xf32>
    %42 = tpu.matmul %40, %41, %cst_20 {dimension_numbers = #tpu.dot_dimension_numbers<[1], [0], [0], [1], [0, 0, 1, 1], [], []>} : vector<256x16xbf16>, vector<16x384xbf16>, vector<256x384xf32> -> vector<256x384xf32>
    %43 = arith.addf %38, %42 : vector<256x384xf32>
    %c9 = arith.constant 9 : index
    %c0_21 = arith.constant 0 : index
    %44 = vector.load %arg5[%c9, %c0_21] : memref<304x16xf32, #tpu.memory_space<vmem>>, vector<256x16xf32>
    %cst_22 = arith.constant 0.000000e+00 : f32
    %45 = vector.shape_cast %28 : vector<256x1xi1> to vector<256x1xi1>
    %46 = vector.broadcast %45 : vector<256x1xi1> to vector<256x16xi1>
    %47 = vector.broadcast %cst_22 : f32 to vector<256x16xf32>
    %48 = arith.select %46, %44, %47 : vector<256x16xi1>, vector<256x16xf32>
    %49 = arith.truncf %48 : vector<256x16xf32> to vector<256x16xbf16>
    %c32 = arith.constant 32 : index
    %c0_23 = arith.constant 0 : index
    %50 = vector.load %arg2[%c32, %c0_23] : memref<144x384xbf16, #tpu.memory_space<vmem>>, vector<16x384xbf16>
    %cst_24 = arith.constant dense<0.000000e+00> : vector<256x384xf32>
    %51 = tpu.matmul %49, %50, %cst_24 {dimension_numbers = #tpu.dot_dimension_numbers<[1], [0], [0], [1], [0, 0, 1, 1], [], []>} : vector<256x16xbf16>, vector<16x384xbf16>, vector<256x384xf32> -> vector<256x384xf32>
    %52 = arith.addf %43, %51 : vector<256x384xf32>
    %c23 = arith.constant 23 : index
    %c0_25 = arith.constant 0 : index
    %53 = vector.load %arg5[%c23, %c0_25] : memref<304x16xf32, #tpu.memory_space<vmem>>, vector<256x16xf32>
    %cst_26 = arith.constant 0.000000e+00 : f32
    %54 = vector.shape_cast %26 : vector<256x1xi1> to vector<256x1xi1>
    %55 = vector.broadcast %54 : vector<256x1xi1> to vector<256x16xi1>
    %56 = vector.broadcast %cst_26 : f32 to vector<256x16xf32>
    %57 = arith.select %55, %53, %56 : vector<256x16xi1>, vector<256x16xf32>
    %58 = arith.truncf %57 : vector<256x16xf32> to vector<256x16xbf16>
    %c48 = arith.constant 48 : index
    %c0_27 = arith.constant 0 : index
    %59 = vector.load %arg2[%c48, %c0_27] : memref<144x384xbf16, #tpu.memory_space<vmem>>, vector<16x384xbf16>
    %cst_28 = arith.constant dense<0.000000e+00> : vector<256x384xf32>
    %60 = tpu.matmul %58, %59, %cst_28 {dimension_numbers = #tpu.dot_dimension_numbers<[1], [0], [0], [1], [0, 0, 1, 1], [], []>} : vector<256x16xbf16>, vector<16x384xbf16>, vector<256x384xf32> -> vector<256x384xf32>
    %61 = arith.addf %52, %60 : vector<256x384xf32>
    %c24_29 = arith.constant 24 : index
    %c0_30 = arith.constant 0 : index
    %62 = vector.load %arg5[%c24_29, %c0_30] : memref<304x16xf32, #tpu.memory_space<vmem>>, vector<256x16xf32>
    %63 = arith.truncf %62 : vector<256x16xf32> to vector<256x16xbf16>
    %c64 = arith.constant 64 : index
    %c0_31 = arith.constant 0 : index
    %64 = vector.load %arg2[%c64, %c0_31] : memref<144x384xbf16, #tpu.memory_space<vmem>>, vector<16x384xbf16>
    %cst_32 = arith.constant dense<0.000000e+00> : vector<256x384xf32>
    %65 = tpu.matmul %63, %64, %cst_32 {dimension_numbers = #tpu.dot_dimension_numbers<[1], [0], [0], [1], [0, 0, 1, 1], [], []>} : vector<256x16xbf16>, vector<16x384xbf16>, vector<256x384xf32> -> vector<256x384xf32>
    %66 = arith.addf %61, %65 : vector<256x384xf32>
    %c25 = arith.constant 25 : index
    %c0_33 = arith.constant 0 : index
    %67 = vector.load %arg5[%c25, %c0_33] : memref<304x16xf32, #tpu.memory_space<vmem>>, vector<256x16xf32>
    %cst_34 = arith.constant 0.000000e+00 : f32
    %68 = vector.shape_cast %28 : vector<256x1xi1> to vector<256x1xi1>
    %69 = vector.broadcast %68 : vector<256x1xi1> to vector<256x16xi1>
    %70 = vector.broadcast %cst_34 : f32 to vector<256x16xf32>
    %71 = arith.select %69, %67, %70 : vector<256x16xi1>, vector<256x16xf32>
    %72 = arith.truncf %71 : vector<256x16xf32> to vector<256x16xbf16>
    %c80 = arith.constant 80 : index
    %c0_35 = arith.constant 0 : index
    %73 = vector.load %arg2[%c80, %c0_35] : memref<144x384xbf16, #tpu.memory_space<vmem>>, vector<16x384xbf16>
    %cst_36 = arith.constant dense<0.000000e+00> : vector<256x384xf32>
    %74 = tpu.matmul %72, %73, %cst_36 {dimension_numbers = #tpu.dot_dimension_numbers<[1], [0], [0], [1], [0, 0, 1, 1], [], []>} : vector<256x16xbf16>, vector<16x384xbf16>, vector<256x384xf32> -> vector<256x384xf32>
    %75 = arith.addf %66, %74 : vector<256x384xf32>
    %c39 = arith.constant 39 : index
    %c0_37 = arith.constant 0 : index
    %76 = vector.load %arg5[%c39, %c0_37] : memref<304x16xf32, #tpu.memory_space<vmem>>, vector<256x16xf32>
    %cst_38 = arith.constant 0.000000e+00 : f32
    %77 = vector.shape_cast %26 : vector<256x1xi1> to vector<256x1xi1>
    %78 = vector.broadcast %77 : vector<256x1xi1> to vector<256x16xi1>
    %79 = vector.broadcast %cst_38 : f32 to vector<256x16xf32>
    %80 = arith.select %78, %76, %79 : vector<256x16xi1>, vector<256x16xf32>
    %81 = arith.truncf %80 : vector<256x16xf32> to vector<256x16xbf16>
    %c96 = arith.constant 96 : index
    %c0_39 = arith.constant 0 : index
    %82 = vector.load %arg2[%c96, %c0_39] : memref<144x384xbf16, #tpu.memory_space<vmem>>, vector<16x384xbf16>
    %cst_40 = arith.constant dense<0.000000e+00> : vector<256x384xf32>
    %83 = tpu.matmul %81, %82, %cst_40 {dimension_numbers = #tpu.dot_dimension_numbers<[1], [0], [0], [1], [0, 0, 1, 1], [], []>} : vector<256x16xbf16>, vector<16x384xbf16>, vector<256x384xf32> -> vector<256x384xf32>
    %84 = arith.addf %75, %83 : vector<256x384xf32>
    %c40 = arith.constant 40 : index
    %c0_41 = arith.constant 0 : index
    %85 = vector.load %arg5[%c40, %c0_41] : memref<304x16xf32, #tpu.memory_space<vmem>>, vector<256x16xf32>
    %86 = arith.truncf %85 : vector<256x16xf32> to vector<256x16xbf16>
    %c112 = arith.constant 112 : index
    %c0_42 = arith.constant 0 : index
    %87 = vector.load %arg2[%c112, %c0_42] : memref<144x384xbf16, #tpu.memory_space<vmem>>, vector<16x384xbf16>
    %cst_43 = arith.constant dense<0.000000e+00> : vector<256x384xf32>
    %88 = tpu.matmul %86, %87, %cst_43 {dimension_numbers = #tpu.dot_dimension_numbers<[1], [0], [0], [1], [0, 0, 1, 1], [], []>} : vector<256x16xbf16>, vector<16x384xbf16>, vector<256x384xf32> -> vector<256x384xf32>
    %89 = arith.addf %84, %88 : vector<256x384xf32>
    %c41 = arith.constant 41 : index
    %c0_44 = arith.constant 0 : index
    %90 = vector.load %arg5[%c41, %c0_44] : memref<304x16xf32, #tpu.memory_space<vmem>>, vector<256x16xf32>
    %cst_45 = arith.constant 0.000000e+00 : f32
    %91 = vector.shape_cast %28 : vector<256x1xi1> to vector<256x1xi1>
    %92 = vector.broadcast %91 : vector<256x1xi1> to vector<256x16xi1>
    %93 = vector.broadcast %cst_45 : f32 to vector<256x16xf32>
    %94 = arith.select %92, %90, %93 : vector<256x16xi1>, vector<256x16xf32>
    %95 = arith.truncf %94 : vector<256x16xf32> to vector<256x16xbf16>
    %c128 = arith.constant 128 : index
    %c0_46 = arith.constant 0 : index
    %96 = vector.load %arg2[%c128, %c0_46] : memref<144x384xbf16, #tpu.memory_space<vmem>>, vector<16x384xbf16>
    %cst_47 = arith.constant dense<0.000000e+00> : vector<256x384xf32>
    %97 = tpu.matmul %95, %96, %cst_47 {dimension_numbers = #tpu.dot_dimension_numbers<[1], [0], [0], [1], [0, 0, 1, 1], [], []>} : vector<256x16xbf16>, vector<16x384xbf16>, vector<256x384xf32> -> vector<256x384xf32>
    %98 = arith.addf %89, %97 : vector<256x384xf32>
    %c0_48 = arith.constant 0 : index
    %c0_49 = arith.constant 0 : index
    %99 = vector.load %arg3[%c0_48, %c0_49] : memref<1x384xf32, #tpu.memory_space<vmem>>, vector<1x384xf32>
    %100 = vector.broadcast %99 : vector<1x384xf32> to vector<256x384xf32>
    %101 = arith.addf %98, %100 : vector<256x384xf32>
    %cst_50 = arith.constant 0.000000e+00 : f32
    %102 = vector.broadcast %cst_50 : f32 to vector<256x384xf32>
    %103 = arith.maximumf %101, %102 : vector<256x384xf32>
    %104 = vector.shape_cast %103 : vector<256x384xf32> to vector<16x16x384xf32>
    %105 = arith.truncf %104 : vector<16x16x384xf32> to vector<16x16x384xbf16>
    %c0_51 = arith.constant 0 : index
    %c0_52 = arith.constant 0 : index
    %c0_53 = arith.constant 0 : index
    %c0_54 = arith.constant 0 : index
    %106 = vector.load %arg4[%c0_51, %c0_52, %c0_53, %c0_54] : memref<1x16x16x384xbf16, #tpu.memory_space<vmem>>, vector<1x16x16x384xbf16>
    %107 = vector.shape_cast %106 : vector<1x16x16x384xbf16> to vector<16x16x384xbf16>
    %108 = vector.shape_cast %105 : vector<16x16x384xbf16> to vector<1x16x16x384xbf16>
    tpu.vector_store %arg4[%c0_51, %c0_52, %c0_53, %c0_54], %108 {strides = array<i32>} : memref<1x16x16x384xbf16, #tpu.memory_space<vmem>>, vector<1x16x16x384xbf16>,
    return
  }
  func.func @transform_0(%arg0: i32) -> (i32, i32, i32, i32) {
    %c0_i32 = arith.constant 0 : i32
    %c0_i32_0 = arith.constant 0 : i32
    %c0_i32_1 = arith.constant 0 : i32
    %c0_i32_2 = arith.constant 0 : i32
    return %arg0, %c0_i32, %c0_i32_0, %c0_i32_1 : i32, i32, i32, i32
  }
  func.func @transform_1(%arg0: i32) -> (i32, i32) {
    %c0_i32 = arith.constant 0 : i32
    %c0_i32_0 = arith.constant 0 : i32
    %c0_i32_1 = arith.constant 0 : i32
    return %c0_i32, %c0_i32_0 : i32, i32
  }
  func.func @transform_2(%arg0: i32) -> (i32, i32) {
    %c0_i32 = arith.constant 0 : i32
    %c0_i32_0 = arith.constant 0 : i32
    %c0_i32_1 = arith.constant 0 : i32
    return %c0_i32, %c0_i32_0 : i32, i32
  }
  func.func @transform_3(%arg0: i32) -> (i32, i32, i32, i32) {
    %c0_i32 = arith.constant 0 : i32
    %c0_i32_0 = arith.constant 0 : i32
    %c0_i32_1 = arith.constant 0 : i32
    %c0_i32_2 = arith.constant 0 : i32
    return %arg0, %c0_i32, %c0_i32_0, %c0_i32_1 : i32, i32, i32, i32
  }
}

</mosaic_0001>

<llo_original>
// kernel: tpu_custom_call.1
$region0: #{tpu_custom_call.1}
  #allocation0 [shape = 'u32[]', space=smem, size = 0x4, offset = 0x4, fixed_abs, tag = 'smem constant byte address 0x4 - core index']
  #allocation1 [shape = 'u32[144,128]{1,0:T(1,128)}', space=vmem, size = 0x12000, scoped, tag = 'internal scratch']
  #allocation2 [shape = 'f32[304,16]{1,0:T(8,128)}', space=vmem, size = 0x26000, scoped, tag = 'scratch operand']
  %s0 = inlined_call_operand.hbm [shape: f32[2,16,16,16], index: 0, kind: input, shape index: {}]
  %s1 = inlined_call_operand.hbm [shape: bf16[144,384], index: 1, kind: input, shape index: {}]
  %s2 = inlined_call_operand.vmem [shape: f32[1,384], index: 2, kind: input, shape index: {}]
  %s3 = inlined_call_operand.hbm [shape: bf16[2,16,16,384], index: 3, kind: output, shape index: {}]
  %s4 = sld [smem:[#allocation0]]
  $region53: #{tpu_custom_call.1} parent=0
    _
  %s6 = ssub.s32 1, %s4
  %s7 = scalar_select 0, %s6, %s4
  $region1: #{tpu_custom_call.1} parent=0
    #allocation3 [shape = 'u8[262144]{0}', space=vmem, size = 0x40000, scoped, tag = 'input window, operand 0']
    #allocation4 [shape = 's32[2]{0}', space=sflag, size = 0x8, scoped, tag = 'scoped memory for tpu_custom_call.1']
    #allocation5 [shape = 's32[2]{0}', space=sflag, size = 0x8, scoped, tag = 'scoped memory for tpu_custom_call.1']
    #allocation6 [shape = 'u8[110592]{0}', space=vmem, size = 0x1b000, scoped, tag = 'input window, operand 1, single buffered']
    #allocation7 [shape = 's32[1]{0}', space=sflag, size = 0x4, scoped, tag = 'scoped memory for tpu_custom_call.1']
    #allocation8 [shape = 'u8[393216]{0}', space=vmem, size = 0x60000, scoped, tag = 'output window, operand 0']
    %8 = vsyncpa [#allocation4], 0
    %s9 = scalar_lea.sflag [#allocation4], 1
    %10 = vsyncpa %s9, 0
    %11 = vsyncpa [#allocation7], 0
    %12 = vsyncpa [#allocation5], 0
    %s13 = scalar_lea.sflag [#allocation5], 1
    %14 = vsyncpa %s13, 0
    loop: start=0, step=1, limit=4
    $region2: #{tpu_custom_call.1} parent=1 // loop_pre_header
      _
    $region3: #{tpu_custom_call.1} parent=1 // loop_header
      %s16 = sphi 0, %s20
      %p17 = scmp.ge.s32.totalorder %s16, 4
      %s26 = sphi 0, %s28
      %s29 = sphi 0, %s26
      %s30 = sphi 0, %s29
      %s46 = sphi 0, %s30
      %s50 = sphi 0, %s50
      %s52 = sphi 0, %s50
      %s53 = sphi 0, %s52
      %s67 = sphi 0, %s53
      %s71 = sphi 0, %s71
      %s73 = sphi 0, %s71
      %s74 = sphi 0, %s73
      %s88 = sphi 0, %s74
      %s94 = sphi 0, %s96
      %s97 = sphi 0, %s94
      %s98 = sphi 0, %s97
      %s114 = sphi 0, %s98
    $region4: #{tpu_custom_call.1} parent=1 // loop_header_branch
      %19 = sbr.rel (%p17) target = $region8
    $region5: #{tpu_custom_call.1} parent=1 // loop_body
      %s21 = ssub.s32 %s16, 1
      %s22 = ssub.s32 %s16, 2
      %s23 = sadd.s32 %s16, 1
      %s24 = ssub.s32 %s16, %s23
      %p25 = scmp.eq.s32.totalorder %s24, 0
      %s27 = sadd.s32 %s26, 1
      %s28 = scalar_select %p25, %s26, %s27
      %p31 = pneg %p25
      %p32 = scmp.eq.s32.totalorder %s16, 1
      %p33 = por %p31, %p32
      %p34 = scmp.ne.s32.totalorder %s26, %s29
      %p35 = scmp.eq.s32.totalorder %s16, 0
      %p36 = por %p34, %p35
      %p37 = scmp.ne.s32.totalorder %s26, %s29
      %p38 = scmp.eq.s32.totalorder %s21, 1
      %p39 = por %p37, %p38
      %p40 = scmp.ne.s32.totalorder %s29, %s30
      %p41 = scmp.eq.s32.totalorder %s21, 0
      %p42 = por %p40, %p41
      %p43 = scmp.ne.s32.totalorder %s29, %s30
      %p44 = scmp.eq.s32.totalorder %s22, 1
      %p45 = por %p43, %p44
      %p47 = scmp.ne.s32.totalorder %s30, %s46
      %p48 = scmp.eq.s32.totalorder %s22, 0
      %p49 = por %p47, %p48
      %s51 = sadd.s32 %s50, 1
      %p54 = scmp.eq.s32.totalorder %s16, 1
      %p55 = scmp.ne.s32.totalorder %s50, %s52
      %p56 = scmp.eq.s32.totalorder %s16, 0
      %p57 = por %p55, %p56
      %p58 = scmp.ne.s32.totalorder %s50, %s52
      %p59 = scmp.eq.s32.totalorder %s21, 1
      %p60 = por %p58, %p59
      %p61 = scmp.ne.s32.totalorder %s52, %s53
      %p62 = scmp.eq.s32.totalorder %s21, 0
      %p63 = por %p61, %p62
      %p64 = scmp.ne.s32.totalorder %s52, %s53
      %p65 = scmp.eq.s32.totalorder %s22, 1
      %p66 = por %p64, %p65
      %p68 = scmp.ne.s32.totalorder %s53, %s67
      %p69 = scmp.eq.s32.totalorder %s22, 0
      %p70 = por %p68, %p69
      %s72 = sadd.s32 %s71, 1
      %p75 = scmp.eq.s32.totalorder %s16, 1
      %p76 = scmp.ne.s32.totalorder %s71, %s73
      %p77 = scmp.eq.s32.totalorder %s16, 0
      %p78 = por %p76, %p77
      %p79 = scmp.ne.s32.totalorder %s71, %s73
      %p80 = scmp.eq.s32.totalorder %s21, 1
      %p81 = por %p79, %p80
      %p82 = scmp.ne.s32.totalorder %s73, %s74
      %p83 = scmp.eq.s32.totalorder %s21, 0
      %p84 = por %p82, %p83
      %p85 = scmp.ne.s32.totalorder %s73, %s74
      %p86 = scmp.eq.s32.totalorder %s22, 1
      %p87 = por %p85, %p86
      %p89 = scmp.ne.s32.totalorder %s74, %s88
      %p90 = scmp.eq.s32.totalorder %s22, 0
      %p91 = por %p89, %p90
      %s92 = ssub.s32 %s16, %s23
      %p93 = scmp.eq.s32.totalorder %s92, 0
      %s95 = sadd.s32 %s94, 1
      %s96 = scalar_select %p93, %s94, %s95
      %p99 = pneg %p93
      %p100 = scmp.eq.s32.totalorder %s16, 1
      %p101 = por %p99, %p100
      %p102 = scmp.ne.s32.totalorder %s94, %s97
      %p103 = scmp.eq.s32.totalorder %s16, 0
      %p104 = por %p102, %p103
      %p105 = scmp.ne.s32.totalorder %s94, %s97
      %p106 = scmp.eq.s32.totalorder %s21, 1
      %p107 = por %p105, %p106
      %p108 = scmp.ne.s32.totalorder %s97, %s98
      %p109 = scmp.eq.s32.totalorder %s21, 0
      %p110 = por %p108, %p109
      %p111 = scmp.ne.s32.totalorder %s97, %s98
      %p112 = scmp.eq.s32.totalorder %s22, 1
      %p113 = por %p111, %p112
      %p115 = scmp.ne.s32.totalorder %s98, %s114
      %p116 = scmp.eq.s32.totalorder %s22, 0
      %p117 = por %p115, %p116
      %p118 = scmp.le.s32.totalorder 1, %s16
      %p119 = scmp.lt.s32.totalorder %s16, 3
      %p120 = pnand %p118, %p119
      %p121 = pneg %p120
      // Predicated region
      $region9: #{tpu_custom_call.1} parent=5 // pred_check
        _
      $region10: #{tpu_custom_call.1} parent=5 // pred_check_branch
        %123 = sbr.rel (%p120) target = $region12
      $region11: #{tpu_custom_call.1} parent=5 // pred_region
        %s124 = ssub.s32 %s16, 1
        // Predicated region
        $region13: #{tpu_custom_call.1} parent=11 // pred_check
          %p125 = pneg %p63
        $region14: #{tpu_custom_call.1} parent=11 // pred_check_branch
          %127 = sbr.rel (%p125) target = $region16
        $region15: #{tpu_custom_call.1} parent=11 // pred_region
          %s129 = ssub.s32 3456, 3456
          %130 = vsyncadd [#allocation7], %s129
          %s131 = sshll.u32 [#allocation6], 4
          %s132 = int_to_ptr.vmem [resolvable:$true] %s131
          %137 = dma.hbm_to_vmem [thread:$0]  %s1, 3456, %s132, [#allocation7], 192, 192, 12
        $region16: #{tpu_custom_call.1} parent=11 // pred_fallthru
          _
        // Predicated region
        $region17: #{tpu_custom_call.1} parent=11 // pred_check
          %p138 = pneg %p84
        $region18: #{tpu_custom_call.1} parent=11 // pred_check_branch
          %140 = sbr.rel (%p138) target = $region20
        $region19: #{tpu_custom_call.1} parent=11 // pred_region
          _
        $region20: #{tpu_custom_call.1} parent=11 // pred_fallthru
          _
      $region12: #{tpu_custom_call.1} parent=5 // pred_fallthru
        _
      %p141 = scmp.lt.s32.totalorder %s16, 2
      // Predicated region
      $region21: #{tpu_custom_call.1} parent=5 // pred_check
        %p142 = pneg %p141
      $region22: #{tpu_custom_call.1} parent=5 // pred_check_branch
        %144 = sbr.rel (%p142) target = $region24
      $region23: #{tpu_custom_call.1} parent=5 // pred_region
        // Predicated region
        $region25: #{tpu_custom_call.1} parent=23 // pred_check
          %p145 = pneg %p36
        $region26: #{tpu_custom_call.1} parent=23 // pred_check_branch
          %147 = sbr.rel (%p145) target = $region28
        $region27: #{tpu_custom_call.1} parent=23 // pred_region
          %s148 = sand.u32 %s26, 1
          %s149 = scalar_lea.sflag [#allocation4], %s148
          %s150 = sand.u32 %s26, 1
          %s151 = smul.addr %s150, 256
          %s152 = scalar_lea.vmem [#allocation3], %s151
          %s154 = ssub.s32 4096, 4096
          %155 = vsyncadd %s149, %s154
          %s156 = smul.addr %s16, 32
          %s157 = smul.addr %s156, 128
          %s158 = scalar_lea.hbm %s0, %s157
          %s159 = sshll.u32 %s152, 4
          %s160 = int_to_ptr.vmem [resolvable:$true] %s159
          %165 = dma.hbm_to_vmem [thread:$0]  %s158, 4096, %s160, %s149, 128, 128, 8
        $region28: #{tpu_custom_call.1} parent=23 // pred_fallthru
          _
      $region24: #{tpu_custom_call.1} parent=5 // pred_fallthru
        _
      %p166 = scmp.le.s32.totalorder 1, %s16
      %p167 = scmp.lt.s32.totalorder %s16, 3
      %p168 = pnand %p166, %p167
      %p169 = pneg %p168
      // Predicated region
      $region29: #{tpu_custom_call.1} parent=5 // pred_check
        _
      $region30: #{tpu_custom_call.1} parent=5 // pred_check_branch
        %171 = sbr.rel (%p168) target = $region32
      $region31: #{tpu_custom_call.1} parent=5 // pred_region
        %s172 = ssub.s32 %s16, 1
        %s173 = sand.u32 %s29, 1
        %s174 = scalar_lea.sflag [#allocation4], %s173
        %s175 = sand.u32 %s29, 1
        %s176 = smul.addr %s175, 256
        %s177 = scalar_lea.vmem [#allocation3], %s176
        // Predicated region
        $region33: #{tpu_custom_call.1} parent=31 // pred_check
          %p178 = pneg %p42
        $region34: #{tpu_custom_call.1} parent=31 // pred_check_branch
          %180 = sbr.rel (%p178) target = $region36
        $region35: #{tpu_custom_call.1} parent=31 // pred_region
          %181 = dma.done %s174, 4096
        $region36: #{tpu_custom_call.1} parent=31 // pred_fallthru
          _
        // Predicated region
        $region37: #{tpu_custom_call.1} parent=31 // pred_check
          %p182 = pneg %p63
        $region38: #{tpu_custom_call.1} parent=31 // pred_check_branch
          %184 = sbr.rel (%p182) target = $region40
        $region39: #{tpu_custom_call.1} parent=31 // pred_region
          %185 = dma.done [#allocation7], 3456
        $region40: #{tpu_custom_call.1} parent=31 // pred_fallthru
          _
        %s186 = sand.u32 %s29, 1
        %s187 = scalar_lea.sflag [#allocation4], %s186
        %s188 = sand.u32 %s29, 1
        %s189 = smul.addr %s188, 256
        %s190 = scalar_lea.vmem [#allocation3], %s189
        %p191 = pneg %p42
        %p192 = pneg %p39
        %p193 = pneg %p63
        %p194 = pneg %p60
        %p195 = pneg %p84
        %p196 = pneg %p81
        %p197 = pneg %p110
        %p198 = pneg %p107
        %s199 = sand.u32 %s97, 1
        %s200 = scalar_lea.sflag [#allocation5], %s199
        %s201 = sand.u32 %s97, 1
        %s202 = smul.addr %s201, 384
        %s203 = scalar_lea.vmem [#allocation8], %s202
        %v205 = vld [vmem:[%s177] sm:$0xff]
        %v206 = vld [vmem:[%s177 + $0x8] sm:$0xff]
        %v207 = vld [vmem:[%s177 + $0x10] sm:$0xff]
        %v208 = vld [vmem:[%s177 + $0x18] sm:$0xff]
        %v209 = vld [vmem:[%s177 + $0x20] sm:$0xff]
        %v210 = vld [vmem:[%s177 + $0x28] sm:$0xff]
        %v211 = vld [vmem:[%s177 + $0x30] sm:$0xff]
        %v212 = vld [vmem:[%s177 + $0x38] sm:$0xff]
        %v213 = vld [vmem:[%s177 + $0x40] sm:$0xff]
        %v214 = vld [vmem:[%s177 + $0x48] sm:$0xff]
        %v215 = vld [vmem:[%s177 + $0x50] sm:$0xff]
        %v216 = vld [vmem:[%s177 + $0x58] sm:$0xff]
        %v217 = vld [vmem:[%s177 + $0x60] sm:$0xff]
        %v218 = vld [vmem:[%s177 + $0x68] sm:$0xff]
        %v219 = vld [vmem:[%s177 + $0x70] sm:$0xff]
        %v220 = vld [vmem:[%s177 + $0x78] sm:$0xff]
        %v221 = vld [vmem:[%s177 + $0x80] sm:$0xff]
        %v222 = vld [vmem:[%s177 + $0x88] sm:$0xff]
        %v223 = vld [vmem:[%s177 + $0x90] sm:$0xff]
        %v224 = vld [vmem:[%s177 + $0x98] sm:$0xff]
        %v225 = vld [vmem:[%s177 + $0xa0] sm:$0xff]
        %v226 = vld [vmem:[%s177 + $0xa8] sm:$0xff]
        %v227 = vld [vmem:[%s177 + $0xb0] sm:$0xff]
        %v228 = vld [vmem:[%s177 + $0xb8] sm:$0xff]
        %v229 = vld [vmem:[%s177 + $0xc0] sm:$0xff]
        %v230 = vld [vmem:[%s177 + $0xc8] sm:$0xff]
        %v231 = vld [vmem:[%s177 + $0xd0] sm:$0xff]
        %v232 = vld [vmem:[%s177 + $0xd8] sm:$0xff]
        %v233 = vld [vmem:[%s177 + $0xe0] sm:$0xff]
        %v234 = vld [vmem:[%s177 + $0xe8] sm:$0xff]
        %v235 = vld [vmem:[%s177 + $0xf0] sm:$0xff]
        %v236 = vld [vmem:[%s177 + $0xf8] sm:$0xff]
        %vm237 = vcmask 130048
        %238 = vst.msk [vmem:[#allocation2] sm:$0xff] %vm237, 0.0
        %239 = vst.msk [vmem:[#allocation2 + $0x8] sm:$0xff] %vm237, 0.0
        %240 = vst.msk [vmem:[#allocation2 + $0x10] sm:$0xff] %vm237, 0.0
        %241 = vst.msk [vmem:[#allocation2 + $0x118] sm:$0xff] %vm237, 0.0
        %242 = vst.msk [vmem:[#allocation2 + $0x120] sm:$0xff] %vm237, 0.0
        %243 = vst.msk [vmem:[#allocation2 + $0x128] sm:$0xff] %vm237, 0.0
        %244 = vst.msk [vmem:[#allocation2 + $0x18] sm:$0xff] %vm237, %v205
        %245 = vst.msk [vmem:[#allocation2 + $0x20] sm:$0xff] %vm237, %v206
        %246 = vst.msk [vmem:[#allocation2 + $0x28] sm:$0xff] %vm237, %v207
        %247 = vst.msk [vmem:[#allocation2 + $0x30] sm:$0xff] %vm237, %v208
        %248 = vst.msk [vmem:[#allocation2 + $0x38] sm:$0xff] %vm237, %v209
        %249 = vst.msk [vmem:[#allocation2 + $0x40] sm:$0xff] %vm237, %v210
        %250 = vst.msk [vmem:[#allocation2 + $0x48] sm:$0xff] %vm237, %v211
        %251 = vst.msk [vmem:[#allocation2 + $0x50] sm:$0xff] %vm237, %v212
        %252 = vst.msk [vmem:[#allocation2 + $0x58] sm:$0xff] %vm237, %v213
        %253 = vst.msk [vmem:[#allocation2 + $0x60] sm:$0xff] %vm237, %v214
        %254 = vst.msk [vmem:[#allocation2 + $0x68] sm:$0xff] %vm237, %v215
        %255 = vst.msk [vmem:[#allocation2 + $0x70] sm:$0xff] %vm237, %v216
        %256 = vst.msk [vmem:[#allocation2 + $0x78] sm:$0xff] %vm237, %v217
        %257 = vst.msk [vmem:[#allocation2 + $0x80] sm:$0xff] %vm237, %v218
        %258 = vst.msk [vmem:[#allocation2 + $0x88] sm:$0xff] %vm237, %v219
        %259 = vst.msk [vmem:[#allocation2 + $0x90] sm:$0xff] %vm237, %v220
        %260 = vst.msk [vmem:[#allocation2 + $0x98] sm:$0xff] %vm237, %v221
        %261 = vst.msk [vmem:[#allocation2 + $0xa0] sm:$0xff] %vm237, %v222
        %262 = vst.msk [vmem:[#allocation2 + $0xa8] sm:$0xff] %vm237, %v223
        %263 = vst.msk [vmem:[#allocation2 + $0xb0] sm:$0xff] %vm237, %v224
        %264 = vst.msk [vmem:[#allocation2 + $0xb8] sm:$0xff] %vm237, %v225
        %265 = vst.msk [vmem:[#allocation2 + $0xc0] sm:$0xff] %vm237, %v226
        %266 = vst.msk [vmem:[#allocation2 + $0xc8] sm:$0xff] %vm237, %v227
        %267 = vst.msk [vmem:[#allocation2 + $0xd0] sm:$0xff] %vm237, %v228
        %268 = vst.msk [vmem:[#allocation2 + $0xd8] sm:$0xff] %vm237, %v229
        %269 = vst.msk [vmem:[#allocation2 + $0xe0] sm:$0xff] %vm237, %v230
        %270 = vst.msk [vmem:[#allocation2 + $0xe8] sm:$0xff] %vm237, %v231
        %271 = vst.msk [vmem:[#allocation2 + $0xf0] sm:$0xff] %vm237, %v232
        %272 = vst.msk [vmem:[#allocation2 + $0xf8] sm:$0xff] %vm237, %v233
        %273 = vst.msk [vmem:[#allocation2 + $0x100] sm:$0xff] %vm237, %v234
        %274 = vst.msk [vmem:[#allocation2 + $0x108] sm:$0xff] %vm237, %v235
        %275 = vst.msk [vmem:[#allocation2 + $0x110] sm:$0xff] %vm237, %v236
        %v276 = vlaneseq
        %v277 = vshrl.u32 %v276, 7
        %v278 = vadd.s32 %v277, 8
        %v279 = vadd.s32 %v277, 16
        %v280 = vadd.s32 %v277, 24
        %v281 = vadd.s32 %v277, 32
        %v282 = vadd.s32 %v277, 40
        %v283 = vadd.s32 %v277, 48
        %v284 = vadd.s32 %v277, 56
        %v285 = vadd.s32 %v277, 64
        %v286 = vadd.s32 %v277, 72
        %v287 = vadd.s32 %v277, 80
        %v288 = vadd.s32 %v277, 88
        %v289 = vadd.s32 %v277, 96
        %v290 = vadd.s32 %v277, 104
        %v291 = vadd.s32 %v277, 112
        %v292 = vadd.s32 %v277, 120
        %v293 = vadd.s32 %v277, 128
        %v294 = vadd.s32 %v277, 136
        %v295 = vadd.s32 %v277, 144
        %v296 = vadd.s32 %v277, 152
        %v297 = vadd.s32 %v277, 160
        %v298 = vadd.s32 %v277, 168
        %v299 = vadd.s32 %v277, 176
        %v300 = vadd.s32 %v277, 184
        %v301 = vadd.s32 %v277, 192
        %v302 = vadd.s32 %v277, 200
        %v303 = vadd.s32 %v277, 208
        %v304 = vadd.s32 %v277, 216
        %v305 = vadd.s32 %v277, 224
        %v306 = vadd.s32 %v277, 232
        %v307 = vadd.s32 %v277, 240
        %v308 = vadd.s32 %v277, 248
        %vm309 = vcmp.lt.s32.totalorder %v277, 0
        %v310 = vsub.s32 0, %v277
        %v311 = vsel %vm309, %v310, %v277
        %v312 = vshrl.u32 %v311, 4
        %v313 = vand.u32 %v311, 15
        %v314 = vsub.s32 0, %v313
        %v315 = vsel %vm309, %v314, %v313
        %vm316 = vcmp.lt.s32.totalorder %v278, 0
        %v317 = vsub.s32 0, %v278
        %v318 = vsel %vm316, %v317, %v278
        %v319 = vshrl.u32 %v318, 4
        %v320 = vand.u32 %v318, 15
        %v321 = vsub.s32 0, %v320
        %v322 = vsel %vm316, %v321, %v320
        %vm323 = vcmp.lt.s32.totalorder %v279, 0
        %v324 = vsub.s32 0, %v279
        %v325 = vsel %vm323, %v324, %v279
        %v326 = vshrl.u32 %v325, 4
        %v327 = vand.u32 %v325, 15
        %v328 = vsub.s32 0, %v327
        %v329 = vsel %vm323, %v328, %v327
        %vm330 = vcmp.lt.s32.totalorder %v280, 0
        %v331 = vsub.s32 0, %v280
        %v332 = vsel %vm330, %v331, %v280
        %v333 = vshrl.u32 %v332, 4
        %v334 = vand.u32 %v332, 15
        %v335 = vsub.s32 0, %v334
        %v336 = vsel %vm330, %v335, %v334
        %vm337 = vcmp.lt.s32.totalorder %v281, 0
        %v338 = vsub.s32 0, %v281
        %v339 = vsel %vm337, %v338, %v281
        %v340 = vshrl.u32 %v339, 4
        %v341 = vand.u32 %v339, 15
        %v342 = vsub.s32 0, %v341
        %v343 = vsel %vm337, %v342, %v341
        %vm344 = vcmp.lt.s32.totalorder %v282, 0
        %v345 = vsub.s32 0, %v282
        %v346 = vsel %vm344, %v345, %v282
        %v347 = vshrl.u32 %v346, 4
        %v348 = vand.u32 %v346, 15
        %v349 = vsub.s32 0, %v348
        %v350 = vsel %vm344, %v349, %v348
        %vm351 = vcmp.lt.s32.totalorder %v283, 0
        %v352 = vsub.s32 0, %v283
        %v353 = vsel %vm351, %v352, %v283
        %v354 = vshrl.u32 %v353, 4
        %v355 = vand.u32 %v353, 15
        %v356 = vsub.s32 0, %v355
        %v357 = vsel %vm351, %v356, %v355
        %vm358 = vcmp.lt.s32.totalorder %v284, 0
        %v359 = vsub.s32 0, %v284
        %v360 = vsel %vm358, %v359, %v284
        %v361 = vshrl.u32 %v360, 4
        %v362 = vand.u32 %v360, 15
        %v363 = vsub.s32 0, %v362
        %v364 = vsel %vm358, %v363, %v362
        %vm365 = vcmp.lt.s32.totalorder %v285, 0
        %v366 = vsub.s32 0, %v285
        %v367 = vsel %vm365, %v366, %v285
        %v368 = vshrl.u32 %v367, 4
        %v369 = vand.u32 %v367, 15
        %v370 = vsub.s32 0, %v369
        %v371 = vsel %vm365, %v370, %v369
        %vm372 = vcmp.lt.s32.totalorder %v286, 0
        %v373 = vsub.s32 0, %v286
        %v374 = vsel %vm372, %v373, %v286
        %v375 = vshrl.u32 %v374, 4
        %v376 = vand.u32 %v374, 15
        %v377 = vsub.s32 0, %v376
        %v378 = vsel %vm372, %v377, %v376
        %vm379 = vcmp.lt.s32.totalorder %v287, 0
        %v380 = vsub.s32 0, %v287
        %v381 = vsel %vm379, %v380, %v287
        %v382 = vshrl.u32 %v381, 4
        %v383 = vand.u32 %v381, 15
        %v384 = vsub.s32 0, %v383
        %v385 = vsel %vm379, %v384, %v383
        %vm386 = vcmp.lt.s32.totalorder %v288, 0
        %v387 = vsub.s32 0, %v288
        %v388 = vsel %vm386, %v387, %v288
        %v389 = vshrl.u32 %v388, 4
        %v390 = vand.u32 %v388, 15
        %v391 = vsub.s32 0, %v390
        %v392 = vsel %vm386, %v391, %v390
        %vm393 = vcmp.lt.s32.totalorder %v289, 0
        %v394 = vsub.s32 0, %v289
        %v395 = vsel %vm393, %v394, %v289
        %v396 = vshrl.u32 %v395, 4
        %v397 = vand.u32 %v395, 15
        %v398 = vsub.s32 0, %v397
        %v399 = vsel %vm393, %v398, %v397
        %vm400 = vcmp.lt.s32.totalorder %v290, 0
        %v401 = vsub.s32 0, %v290
        %v402 = vsel %vm400, %v401, %v290
        %v403 = vshrl.u32 %v402, 4
        %v404 = vand.u32 %v402, 15
        %v405 = vsub.s32 0, %v404
        %v406 = vsel %vm400, %v405, %v404
        %vm407 = vcmp.lt.s32.totalorder %v291, 0
        %v408 = vsub.s32 0, %v291
        %v409 = vsel %vm407, %v408, %v291
        %v410 = vshrl.u32 %v409, 4
        %v411 = vand.u32 %v409, 15
        %v412 = vsub.s32 0, %v411
        %v413 = vsel %vm407, %v412, %v411
        %vm414 = vcmp.lt.s32.totalorder %v292, 0
        %v415 = vsub.s32 0, %v292
        %v416 = vsel %vm414, %v415, %v292
        %v417 = vshrl.u32 %v416, 4
        %v418 = vand.u32 %v416, 15
        %v419 = vsub.s32 0, %v418
        %v420 = vsel %vm414, %v419, %v418
        %vm421 = vcmp.lt.s32.totalorder %v293, 0
        %v422 = vsub.s32 0, %v293
        %v423 = vsel %vm421, %v422, %v293
        %v424 = vshrl.u32 %v423, 4
        %v425 = vand.u32 %v423, 15
        %v426 = vsub.s32 0, %v425
        %v427 = vsel %vm421, %v426, %v425
        %vm428 = vcmp.lt.s32.totalorder %v294, 0
        %v429 = vsub.s32 0, %v294
        %v430 = vsel %vm428, %v429, %v294
        %v431 = vshrl.u32 %v430, 4
        %v432 = vand.u32 %v430, 15
        %v433 = vsub.s32 0, %v432
        %v434 = vsel %vm428, %v433, %v432
        %vm435 = vcmp.lt.s32.totalorder %v295, 0
        %v436 = vsub.s32 0, %v295
        %v437 = vsel %vm435, %v436, %v295
        %v438 = vshrl.u32 %v437, 4
        %v439 = vand.u32 %v437, 15
        %v440 = vsub.s32 0, %v439
        %v441 = vsel %vm435, %v440, %v439
        %vm442 = vcmp.lt.s32.totalorder %v296, 0
        %v443 = vsub.s32 0, %v296
        %v444 = vsel %vm442, %v443, %v296
        %v445 = vshrl.u32 %v444, 4
        %v446 = vand.u32 %v444, 15
        %v447 = vsub.s32 0, %v446
        %v448 = vsel %vm442, %v447, %v446
        %vm449 = vcmp.lt.s32.totalorder %v297, 0
        %v450 = vsub.s32 0, %v297
        %v451 = vsel %vm449, %v450, %v297
        %v452 = vshrl.u32 %v451, 4
        %v453 = vand.u32 %v451, 15
        %v454 = vsub.s32 0, %v453
        %v455 = vsel %vm449, %v454, %v453
        %vm456 = vcmp.lt.s32.totalorder %v298, 0
        %v457 = vsub.s32 0, %v298
        %v458 = vsel %vm456, %v457, %v298
        %v459 = vshrl.u32 %v458, 4
        %v460 = vand.u32 %v458, 15
        %v461 = vsub.s32 0, %v460
        %v462 = vsel %vm456, %v461, %v460
        %vm463 = vcmp.lt.s32.totalorder %v299, 0
        %v464 = vsub.s32 0, %v299
        %v465 = vsel %vm463, %v464, %v299
        %v466 = vshrl.u32 %v465, 4
        %v467 = vand.u32 %v465, 15
        %v468 = vsub.s32 0, %v467
        %v469 = vsel %vm463, %v468, %v467
        %vm470 = vcmp.lt.s32.totalorder %v300, 0
        %v471 = vsub.s32 0, %v300
        %v472 = vsel %vm470, %v471, %v300
        %v473 = vshrl.u32 %v472, 4
        %v474 = vand.u32 %v472, 15
        %v475 = vsub.s32 0, %v474
        %v476 = vsel %vm470, %v475, %v474
        %vm477 = vcmp.lt.s32.totalorder %v301, 0
        %v478 = vsub.s32 0, %v301
        %v479 = vsel %vm477, %v478, %v301
        %v480 = vshrl.u32 %v479, 4
        %v481 = vand.u32 %v479, 15
        %v482 = vsub.s32 0, %v481
        %v483 = vsel %vm477, %v482, %v481
        %vm484 = vcmp.lt.s32.totalorder %v302, 0
        %v485 = vsub.s32 0, %v302
        %v486 = vsel %vm484, %v485, %v302
        %v487 = vshrl.u32 %v486, 4
        %v488 = vand.u32 %v486, 15
        %v489 = vsub.s32 0, %v488
        %v490 = vsel %vm484, %v489, %v488
        %vm491 = vcmp.lt.s32.totalorder %v303, 0
        %v492 = vsub.s32 0, %v303
        %v493 = vsel %vm491, %v492, %v303
        %v494 = vshrl.u32 %v493, 4
        %v495 = vand.u32 %v493, 15
        %v496 = vsub.s32 0, %v495
        %v497 = vsel %vm491, %v496, %v495
        %vm498 = vcmp.lt.s32.totalorder %v304, 0
        %v499 = vsub.s32 0, %v304
        %v500 = vsel %vm498, %v499, %v304
        %v501 = vshrl.u32 %v500, 4
        %v502 = vand.u32 %v500, 15
        %v503 = vsub.s32 0, %v502
        %v504 = vsel %vm498, %v503, %v502
        %vm505 = vcmp.lt.s32.totalorder %v305, 0
        %v506 = vsub.s32 0, %v305
        %v507 = vsel %vm505, %v506, %v305
        %v508 = vshrl.u32 %v507, 4
        %v509 = vand.u32 %v507, 15
        %v510 = vsub.s32 0, %v509
        %v511 = vsel %vm505, %v510, %v509
        %vm512 = vcmp.lt.s32.totalorder %v306, 0
        %v513 = vsub.s32 0, %v306
        %v514 = vsel %vm512, %v513, %v306
        %v515 = vshrl.u32 %v514, 4
        %v516 = vand.u32 %v514, 15
        %v517 = vsub.s32 0, %v516
        %v518 = vsel %vm512, %v517, %v516
        %vm519 = vcmp.lt.s32.totalorder %v307, 0
        %v520 = vsub.s32 0, %v307
        %v521 = vsel %vm519, %v520, %v307
        %v522 = vshrl.u32 %v521, 4
        %v523 = vand.u32 %v521, 15
        %v524 = vsub.s32 0, %v523
        %v525 = vsel %vm519, %v524, %v523
        %vm526 = vcmp.lt.s32.totalorder %v308, 0
        %v527 = vsub.s32 0, %v308
        %v528 = vsel %vm526, %v527, %v308
        %v529 = vshrl.u32 %v528, 4
        %v530 = vand.u32 %v528, 15
        %v531 = vsub.s32 0, %v530
        %v532 = vsel %vm526, %v531, %v530
        %vm533 = vcmp.ne.s32.totalorder %v315, 0
        %vm534 = vcmp.ne.s32.totalorder %v322, 0
        %vm535 = vcmp.ne.s32.totalorder %v329, 0
        %vm536 = vcmp.ne.s32.totalorder %v336, 0
        %vm537 = vcmp.ne.s32.totalorder %v343, 0
        %vm538 = vcmp.ne.s32.totalorder %v350, 0
        %vm539 = vcmp.ne.s32.totalorder %v357, 0
        %vm540 = vcmp.ne.s32.totalorder %v364, 0
        %vm541 = vcmp.ne.s32.totalorder %v371, 0
        %vm542 = vcmp.ne.s32.totalorder %v378, 0
        %vm543 = vcmp.ne.s32.totalorder %v385, 0
        %vm544 = vcmp.ne.s32.totalorder %v392, 0
        %vm545 = vcmp.ne.s32.totalorder %v399, 0
        %vm546 = vcmp.ne.s32.totalorder %v406, 0
        %vm547 = vcmp.ne.s32.totalorder %v413, 0
        %vm548 = vcmp.ne.s32.totalorder %v420, 0
        %vm549 = vcmp.ne.s32.totalorder %v427, 0
        %vm550 = vcmp.ne.s32.totalorder %v434, 0
        %vm551 = vcmp.ne.s32.totalorder %v441, 0
        %vm552 = vcmp.ne.s32.totalorder %v448, 0
        %vm553 = vcmp.ne.s32.totalorder %v455, 0
        %vm554 = vcmp.ne.s32.totalorder %v462, 0
        %vm555 = vcmp.ne.s32.totalorder %v469, 0
        %vm556 = vcmp.ne.s32.totalorder %v476, 0
        %vm557 = vcmp.ne.s32.totalorder %v483, 0
        %vm558 = vcmp.ne.s32.totalorder %v490, 0
        %vm559 = vcmp.ne.s32.totalorder %v497, 0
        %vm560 = vcmp.ne.s32.totalorder %v504, 0
        %vm561 = vcmp.ne.s32.totalorder %v511, 0
        %vm562 = vcmp.ne.s32.totalorder %v518, 0
        %vm563 = vcmp.ne.s32.totalorder %v525, 0
        %vm564 = vcmp.ne.s32.totalorder %v532, 0
        %vm565 = vcmp.lt.s32.totalorder %v315, 0
        %vm566 = vcmp.lt.s32.totalorder %v322, 0
        %vm567 = vcmp.lt.s32.totalorder %v329, 0
        %vm568 = vcmp.lt.s32.totalorder %v336, 0
        %vm569 = vcmp.lt.s32.totalorder %v343, 0
        %vm570 = vcmp.lt.s32.totalorder %v350, 0
        %vm571 = vcmp.lt.s32.totalorder %v357, 0
        %vm572 = vcmp.lt.s32.totalorder %v364, 0
        %vm573 = vcmp.lt.s32.totalorder %v371, 0
        %vm574 = vcmp.lt.s32.totalorder %v378, 0
        %vm575 = vcmp.lt.s32.totalorder %v385, 0
        %vm576 = vcmp.lt.s32.totalorder %v392, 0
        %vm577 = vcmp.lt.s32.totalorder %v399, 0
        %vm578 = vcmp.lt.s32.totalorder %v406, 0
        %vm579 = vcmp.lt.s32.totalorder %v413, 0
        %vm580 = vcmp.lt.s32.totalorder %v420, 0
        %vm581 = vcmp.lt.s32.totalorder %v427, 0
        %vm582 = vcmp.lt.s32.totalorder %v434, 0
        %vm583 = vcmp.lt.s32.totalorder %v441, 0
        %vm584 = vcmp.lt.s32.totalorder %v448, 0
        %vm585 = vcmp.lt.s32.totalorder %v455, 0
        %vm586 = vcmp.lt.s32.totalorder %v462, 0
        %vm587 = vcmp.lt.s32.totalorder %v469, 0
        %vm588 = vcmp.lt.s32.totalorder %v476, 0
        %vm589 = vcmp.lt.s32.totalorder %v483, 0
        %vm590 = vcmp.lt.s32.totalorder %v490, 0
        %vm591 = vcmp.lt.s32.totalorder %v497, 0
        %vm592 = vcmp.lt.s32.totalorder %v504, 0
        %vm593 = vcmp.lt.s32.totalorder %v511, 0
        %vm594 = vcmp.lt.s32.totalorder %v518, 0
        %vm595 = vcmp.lt.s32.totalorder %v525, 0
        %vm596 = vcmp.lt.s32.totalorder %v532, 0
        %vm597 = vmand %vm565, %vm533
        %vm598 = vmand %vm566, %vm534
        %vm599 = vmand %vm567, %vm535
        %vm600 = vmand %vm568, %vm536
        %vm601 = vmand %vm569, %vm537
        %vm602 = vmand %vm570, %vm538
        %vm603 = vmand %vm571, %vm539
        %vm604 = vmand %vm572, %vm540
        %vm605 = vmand %vm573, %vm541
        %vm606 = vmand %vm574, %vm542
        %vm607 = vmand %vm575, %vm543
        %vm608 = vmand %vm576, %vm544
        %vm609 = vmand %vm577, %vm545
        %vm610 = vmand %vm578, %vm546
        %vm611 = vmand %vm579, %vm547
        %vm612 = vmand %vm580, %vm548
        %vm613 = vmand %vm581, %vm549
        %vm614 = vmand %vm582, %vm550
        %vm615 = vmand %vm583, %vm551
        %vm616 = vmand %vm584, %vm552
        %vm617 = vmand %vm585, %vm553
        %vm618 = vmand %vm586, %vm554
        %vm619 = vmand %vm587, %vm555
        %vm620 = vmand %vm588, %vm556
        %vm621 = vmand %vm589, %vm557
        %vm622 = vmand %vm590, %vm558
        %vm623 = vmand %vm591, %vm559
        %vm624 = vmand %vm592, %vm560
        %vm625 = vmand %vm593, %vm561
        %vm626 = vmand %vm594, %vm562
        %vm627 = vmand %vm595, %vm563
        %vm628 = vmand %vm596, %vm564
        %v629 = vadd.s32 %v315, 16
        %v630 = vadd.s32 %v322, 16
        %v631 = vadd.s32 %v329, 16
        %v632 = vadd.s32 %v336, 16
        %v633 = vadd.s32 %v343, 16
        %v634 = vadd.s32 %v350, 16
        %v635 = vadd.s32 %v357, 16
        %v636 = vadd.s32 %v364, 16
        %v637 = vadd.s32 %v371, 16
        %v638 = vadd.s32 %v378, 16
        %v639 = vadd.s32 %v385, 16
        %v640 = vadd.s32 %v392, 16
        %v641 = vadd.s32 %v399, 16
        %v642 = vadd.s32 %v406, 16
        %v643 = vadd.s32 %v413, 16
        %v644 = vadd.s32 %v420, 16
        %v645 = vadd.s32 %v427, 16
        %v646 = vadd.s32 %v434, 16
        %v647 = vadd.s32 %v441, 16
        %v648 = vadd.s32 %v448, 16
        %v649 = vadd.s32 %v455, 16
        %v650 = vadd.s32 %v462, 16
        %v651 = vadd.s32 %v469, 16
        %v652 = vadd.s32 %v476, 16
        %v653 = vadd.s32 %v483, 16
        %v654 = vadd.s32 %v490, 16
        %v655 = vadd.s32 %v497, 16
        %v656 = vadd.s32 %v504, 16
        %v657 = vadd.s32 %v511, 16
        %v658 = vadd.s32 %v518, 16
        %v659 = vadd.s32 %v525, 16
        %v660 = vadd.s32 %v532, 16
        %v661 = vsel %vm597, %v629, %v315
        %v662 = vsel %vm598, %v630, %v322
        %v663 = vsel %vm599, %v631, %v329
        %v664 = vsel %vm600, %v632, %v336
        %v665 = vsel %vm601, %v633, %v343
        %v666 = vsel %vm602, %v634, %v350
        %v667 = vsel %vm603, %v635, %v357
        %v668 = vsel %vm604, %v636, %v364
        %v669 = vsel %vm605, %v637, %v371
        %v670 = vsel %vm606, %v638, %v378
        %v671 = vsel %vm607, %v639, %v385
        %v672 = vsel %vm608, %v640, %v392
        %v673 = vsel %vm609, %v641, %v399
        %v674 = vsel %vm610, %v642, %v406
        %v675 = vsel %vm611, %v643, %v413
        %v676 = vsel %vm612, %v644, %v420
        %v677 = vsel %vm613, %v645, %v427
        %v678 = vsel %vm614, %v646, %v434
        %v679 = vsel %vm615, %v647, %v441
        %v680 = vsel %vm616, %v648, %v448
        %v681 = vsel %vm617, %v649, %v455
        %v682 = vsel %vm618, %v650, %v462
        %v683 = vsel %vm619, %v651, %v469
        %v684 = vsel %vm620, %v652, %v476
        %v685 = vsel %vm621, %v653, %v483
        %v686 = vsel %vm622, %v654, %v490
        %v687 = vsel %vm623, %v655, %v497
        %v688 = vsel %vm624, %v656, %v504
        %v689 = vsel %vm625, %v657, %v511
        %v690 = vsel %vm626, %v658, %v518
        %v691 = vsel %vm627, %v659, %v525
        %v692 = vsel %vm628, %v660, %v532
        %vm693 = vcmp.ne.s32.totalorder %v661, 0
        %vm694 = vcmp.ne.s32.totalorder %v662, 0
        %vm695 = vcmp.ne.s32.totalorder %v663, 0
        %vm696 = vcmp.ne.s32.totalorder %v664, 0
        %vm697 = vcmp.ne.s32.totalorder %v665, 0
        %vm698 = vcmp.ne.s32.totalorder %v666, 0
        %vm699 = vcmp.ne.s32.totalorder %v667, 0
        %vm700 = vcmp.ne.s32.totalorder %v668, 0
        %vm701 = vcmp.ne.s32.totalorder %v669, 0
        %vm702 = vcmp.ne.s32.totalorder %v670, 0
        %vm703 = vcmp.ne.s32.totalorder %v671, 0
        %vm704 = vcmp.ne.s32.totalorder %v672, 0
        %vm705 = vcmp.ne.s32.totalorder %v673, 0
        %vm706 = vcmp.ne.s32.totalorder %v674, 0
        %vm707 = vcmp.ne.s32.totalorder %v675, 0
        %vm708 = vcmp.ne.s32.totalorder %v676, 0
        %vm709 = vcmp.ne.s32.totalorder %v677, 0
        %vm710 = vcmp.ne.s32.totalorder %v678, 0
        %vm711 = vcmp.ne.s32.totalorder %v679, 0
        %vm712 = vcmp.ne.s32.totalorder %v680, 0
        %vm713 = vcmp.ne.s32.totalorder %v681, 0
        %vm714 = vcmp.ne.s32.totalorder %v682, 0
        %vm715 = vcmp.ne.s32.totalorder %v683, 0
        %vm716 = vcmp.ne.s32.totalorder %v684, 0
        %vm717 = vcmp.ne.s32.totalorder %v685, 0
        %vm718 = vcmp.ne.s32.totalorder %v686, 0
        %vm719 = vcmp.ne.s32.totalorder %v687, 0
        %vm720 = vcmp.ne.s32.totalorder %v688, 0
        %vm721 = vcmp.ne.s32.totalorder %v689, 0
        %vm722 = vcmp.ne.s32.totalorder %v690, 0
        %vm723 = vcmp.ne.s32.totalorder %v691, 0
        %vm724 = vcmp.ne.s32.totalorder %v692, 0
        %vm725 = vcmp.ne.s32.totalorder %v661, 15
        %vm726 = vcmp.ne.s32.totalorder %v662, 15
        %vm727 = vcmp.ne.s32.totalorder %v663, 15
        %vm728 = vcmp.ne.s32.totalorder %v664, 15
        %vm729 = vcmp.ne.s32.totalorder %v665, 15
        %vm730 = vcmp.ne.s32.totalorder %v666, 15
        %vm731 = vcmp.ne.s32.totalorder %v667, 15
        %vm732 = vcmp.ne.s32.totalorder %v668, 15
        %vm733 = vcmp.ne.s32.totalorder %v669, 15
        %vm734 = vcmp.ne.s32.totalorder %v670, 15
        %vm735 = vcmp.ne.s32.totalorder %v671, 15
        %vm736 = vcmp.ne.s32.totalorder %v672, 15
        %vm737 = vcmp.ne.s32.totalorder %v673, 15
        %vm738 = vcmp.ne.s32.totalorder %v674, 15
        %vm739 = vcmp.ne.s32.totalorder %v675, 15
        %vm740 = vcmp.ne.s32.totalorder %v676, 15
        %vm741 = vcmp.ne.s32.totalorder %v677, 15
        %vm742 = vcmp.ne.s32.totalorder %v678, 15
        %vm743 = vcmp.ne.s32.totalorder %v679, 15
        %vm744 = vcmp.ne.s32.totalorder %v680, 15
        %vm745 = vcmp.ne.s32.totalorder %v681, 15
        %vm746 = vcmp.ne.s32.totalorder %v682, 15
        %vm747 = vcmp.ne.s32.totalorder %v683, 15
        %vm748 = vcmp.ne.s32.totalorder %v684, 15
        %vm749 = vcmp.ne.s32.totalorder %v685, 15
        %vm750 = vcmp.ne.s32.totalorder %v686, 15
        %vm751 = vcmp.ne.s32.totalorder %v687, 15
        %vm752 = vcmp.ne.s32.totalorder %v688, 15
        %vm753 = vcmp.ne.s32.totalorder %v689, 15
        %vm754 = vcmp.ne.s32.totalorder %v690, 15
        %vm755 = vcmp.ne.s32.totalorder %v691, 15
        %vm756 = vcmp.ne.s32.totalorder %v692, 15
        %v757 = vld [vmem:[#allocation2 + $0x7] sm:$0xff]
        %v758 = vld [vmem:[#allocation2 + $0xf] sm:$0xff]
        %v759 = vld [vmem:[#allocation2 + $0x17] sm:$0xff]
        %v760 = vld [vmem:[#allocation2 + $0x1f] sm:$0xff]
        %v761 = vld [vmem:[#allocation2 + $0x27] sm:$0xff]
        %v762 = vld [vmem:[#allocation2 + $0x2f] sm:$0xff]
        %v763 = vld [vmem:[#allocation2 + $0x37] sm:$0xff]
        %v764 = vld [vmem:[#allocation2 + $0x3f] sm:$0xff]
        %v765 = vld [vmem:[#allocation2 + $0x47] sm:$0xff]
        %v766 = vld [vmem:[#allocation2 + $0x4f] sm:$0xff]
        %v767 = vld [vmem:[#allocation2 + $0x57] sm:$0xff]
        %v768 = vld [vmem:[#allocation2 + $0x5f] sm:$0xff]
        %v769 = vld [vmem:[#allocation2 + $0x67] sm:$0xff]
        %v770 = vld [vmem:[#allocation2 + $0x6f] sm:$0xff]
        %v771 = vld [vmem:[#allocation2 + $0x77] sm:$0xff]
        %v772 = vld [vmem:[#allocation2 + $0x7f] sm:$0xff]
        %v773 = vld [vmem:[#allocation2 + $0x87] sm:$0xff]
        %v774 = vld [vmem:[#allocation2 + $0x8f] sm:$0xff]
        %v775 = vld [vmem:[#allocation2 + $0x97] sm:$0xff]
        %v776 = vld [vmem:[#allocation2 + $0x9f] sm:$0xff]
        %v777 = vld [vmem:[#allocation2 + $0xa7] sm:$0xff]
        %v778 = vld [vmem:[#allocation2 + $0xaf] sm:$0xff]
        %v779 = vld [vmem:[#allocation2 + $0xb7] sm:$0xff]
        %v780 = vld [vmem:[#allocation2 + $0xbf] sm:$0xff]
        %v781 = vld [vmem:[#allocation2 + $0xc7] sm:$0xff]
        %v782 = vld [vmem:[#allocation2 + $0xcf] sm:$0xff]
        %v783 = vld [vmem:[#allocation2 + $0xd7] sm:$0xff]
        %v784 = vld [vmem:[#allocation2 + $0xdf] sm:$0xff]
        %v785 = vld [vmem:[#allocation2 + $0xe7] sm:$0xff]
        %v786 = vld [vmem:[#allocation2 + $0xef] sm:$0xff]
        %v787 = vld [vmem:[#allocation2 + $0xf7] sm:$0xff]
        %v788 = vld [vmem:[#allocation2 + $0xff] sm:$0xff]
        %v789 = vsel %vm693, 1, 0
        %v790 = vsel %vm694, 1, 0
        %v791 = vsel %vm695, 1, 0
        %v792 = vsel %vm696, 1, 0
        %v793 = vsel %vm697, 1, 0
        %v794 = vsel %vm698, 1, 0
        %v795 = vsel %vm699, 1, 0
        %v796 = vsel %vm700, 1, 0
        %v797 = vsel %vm701, 1, 0
        %v798 = vsel %vm702, 1, 0
        %v799 = vsel %vm703, 1, 0
        %v800 = vsel %vm704, 1, 0
        %v801 = vsel %vm705, 1, 0
        %v802 = vsel %vm706, 1, 0
        %v803 = vsel %vm707, 1, 0
        %v804 = vsel %vm708, 1, 0
        %v805 = vsel %vm709, 1, 0
        %v806 = vsel %vm710, 1, 0
        %v807 = vsel %vm711, 1, 0
        %v808 = vsel %vm712, 1, 0
        %v809 = vsel %vm713, 1, 0
        %v810 = vsel %vm714, 1, 0
        %v811 = vsel %vm715, 1, 0
        %v812 = vsel %vm716, 1, 0
        %v813 = vsel %vm717, 1, 0
        %v814 = vsel %vm718, 1, 0
        %v815 = vsel %vm719, 1, 0
        %v816 = vsel %vm720, 1, 0
        %v817 = vsel %vm721, 1, 0
        %v818 = vsel %vm722, 1, 0
        %v819 = vsel %vm723, 1, 0
        %v820 = vsel %vm724, 1, 0
        %vm821 = vcmp.eq.s32.totalorder %v789, 1
        %vm822 = vcmp.eq.s32.totalorder %v790, 1
        %vm823 = vcmp.eq.s32.totalorder %v791, 1
        %vm824 = vcmp.eq.s32.totalorder %v792, 1
        %vm825 = vcmp.eq.s32.totalorder %v793, 1
        %vm826 = vcmp.eq.s32.totalorder %v794, 1
        %vm827 = vcmp.eq.s32.totalorder %v795, 1
        %vm828 = vcmp.eq.s32.totalorder %v796, 1
        %vm829 = vcmp.eq.s32.totalorder %v797, 1
        %vm830 = vcmp.eq.s32.totalorder %v798, 1
        %vm831 = vcmp.eq.s32.totalorder %v799, 1
        %vm832 = vcmp.eq.s32.totalorder %v800, 1
        %vm833 = vcmp.eq.s32.totalorder %v801, 1
        %vm834 = vcmp.eq.s32.totalorder %v802, 1
        %vm835 = vcmp.eq.s32.totalorder %v803, 1
        %vm836 = vcmp.eq.s32.totalorder %v804, 1
        %vm837 = vcmp.eq.s32.totalorder %v805, 1
        %vm838 = vcmp.eq.s32.totalorder %v806, 1
        %vm839 = vcmp.eq.s32.totalorder %v807, 1
        %vm840 = vcmp.eq.s32.totalorder %v808, 1
        %vm841 = vcmp.eq.s32.totalorder %v809, 1
        %vm842 = vcmp.eq.s32.totalorder %v810, 1
        %vm843 = vcmp.eq.s32.totalorder %v811, 1
        %vm844 = vcmp.eq.s32.totalorder %v812, 1
        %vm845 = vcmp.eq.s32.totalorder %v813, 1
        %vm846 = vcmp.eq.s32.totalorder %v814, 1
        %vm847 = vcmp.eq.s32.totalorder %v815, 1
        %vm848 = vcmp.eq.s32.totalorder %v816, 1
        %vm849 = vcmp.eq.s32.totalorder %v817, 1
        %vm850 = vcmp.eq.s32.totalorder %v818, 1
        %vm851 = vcmp.eq.s32.totalorder %v819, 1
        %vm852 = vcmp.eq.s32.totalorder %v820, 1
        %v853 = vsel %vm821, %v757, 0.0
        %v854 = vsel %vm822, %v758, 0.0
        %v855 = vsel %vm823, %v759, 0.0
        %v856 = vsel %vm824, %v760, 0.0
        %v857 = vsel %vm825, %v761, 0.0
        %v858 = vsel %vm826, %v762, 0.0
        %v859 = vsel %vm827, %v763, 0.0
        %v860 = vsel %vm828, %v764, 0.0
        %v861 = vsel %vm829, %v765, 0.0
        %v862 = vsel %vm830, %v766, 0.0
        %v863 = vsel %vm831, %v767, 0.0
        %v864 = vsel %vm832, %v768, 0.0
        %v865 = vsel %vm833, %v769, 0.0
        %v866 = vsel %vm834, %v770, 0.0
        %v867 = vsel %vm835, %v771, 0.0
        %v868 = vsel %vm836, %v772, 0.0
        %v869 = vsel %vm837, %v773, 0.0
        %v870 = vsel %vm838, %v774, 0.0
        %v871 = vsel %vm839, %v775, 0.0
        %v872 = vsel %vm840, %v776, 0.0
        %v873 = vsel %vm841, %v777, 0.0
        %v874 = vsel %vm842, %v778, 0.0
        %v875 = vsel %vm843, %v779, 0.0
        %v876 = vsel %vm844, %v780, 0.0
        %v877 = vsel %vm845, %v781, 0.0
        %v878 = vsel %vm846, %v782, 0.0
        %v879 = vsel %vm847, %v783, 0.0
        %v880 = vsel %vm848, %v784, 0.0
        %v881 = vsel %vm849, %v785, 0.0
        %v882 = vsel %vm850, %v786, 0.0
        %v883 = vsel %vm851, %v787, 0.0
        %v884 = vsel %vm852, %v788, 0.0
        %v885 = vpack.c.bf16 %v854, %v853
        %v886 = vpack.c.bf16 %v856, %v855
        %v887 = vpack.c.bf16 %v858, %v857
        %v888 = vpack.c.bf16 %v860, %v859
        %v889 = vpack.c.bf16 %v862, %v861
        %v890 = vpack.c.bf16 %v864, %v863
        %v891 = vpack.c.bf16 %v866, %v865
        %v892 = vpack.c.bf16 %v868, %v867
        %v893 = vpack.c.bf16 %v870, %v869
        %v894 = vpack.c.bf16 %v872, %v871
        %v895 = vpack.c.bf16 %v874, %v873
        %v896 = vpack.c.bf16 %v876, %v875
        %v897 = vpack.c.bf16 %v878, %v877
        %v898 = vpack.c.bf16 %v880, %v879
        %v899 = vpack.c.bf16 %v882, %v881
        %v900 = vpack.c.bf16 %v884, %v883
        %v901 = vld [vmem:[#allocation6] sm:$0xff]
        %v902 = vld [vmem:[#allocation6 + $0x8] sm:$0xf]
        %v903 = vld [vmem:[#allocation6 + $0xc] sm:$0xff]
        %v904 = vld [vmem:[#allocation6 + $0x14] sm:$0xf]
        %v905 = vld [vmem:[#allocation2 + $0x8] sm:$0xff]
        %v906 = vld [vmem:[#allocation2 + $0x10] sm:$0xff]
        %v907 = vld [vmem:[#allocation2 + $0x18] sm:$0xff]
        %v908 = vld [vmem:[#allocation2 + $0x20] sm:$0xff]
        %v909 = vld [vmem:[#allocation2 + $0x28] sm:$0xff]
        %v910 = vld [vmem:[#allocation2 + $0x30] sm:$0xff]
        %v911 = vld [vmem:[#allocation2 + $0x38] sm:$0xff]
        %v912 = vld [vmem:[#allocation2 + $0x40] sm:$0xff]
        %v913 = vld [vmem:[#allocation2 + $0x48] sm:$0xff]
        %v914 = vld [vmem:[#allocation2 + $0x50] sm:$0xff]
        %v915 = vld [vmem:[#allocation2 + $0x58] sm:$0xff]
        %v916 = vld [vmem:[#allocation2 + $0x60] sm:$0xff]
        %v917 = vld [vmem:[#allocation2 + $0x68] sm:$0xff]
        %v918 = vld [vmem:[#allocation2 + $0x70] sm:$0xff]
        %v919 = vld [vmem:[#allocation2 + $0x78] sm:$0xff]
        %v920 = vld [vmem:[#allocation2 + $0x80] sm:$0xff]
        %v921 = vld [vmem:[#allocation2 + $0x88] sm:$0xff]
        %v922 = vld [vmem:[#allocation2 + $0x90] sm:$0xff]
        %v923 = vld [vmem:[#allocation2 + $0x98] sm:$0xff]
        %v924 = vld [vmem:[#allocation2 + $0xa0] sm:$0xff]
        %v925 = vld [vmem:[#allocation2 + $0xa8] sm:$0xff]
        %v926 = vld [vmem:[#allocation2 + $0xb0] sm:$0xff]
        %v927 = vld [vmem:[#allocation2 + $0xb8] sm:$0xff]
        %v928 = vld [vmem:[#allocation2 + $0xc0] sm:$0xff]
        %v929 = vld [vmem:[#allocation2 + $0xc8] sm:$0xff]
        %v930 = vld [vmem:[#allocation2 + $0xd0] sm:$0xff]
        %v931 = vld [vmem:[#allocation2 + $0xd8] sm:$0xff]
        %v932 = vld [vmem:[#allocation2 + $0xe0] sm:$0xff]
        %v933 = vld [vmem:[#allocation2 + $0xe8] sm:$0xff]
        %v934 = vld [vmem:[#allocation2 + $0xf0] sm:$0xff]
        %v935 = vld [vmem:[#allocation2 + $0xf8] sm:$0xff]
        %v936 = vld [vmem:[#allocation2 + $0x100] sm:$0xff]
        %v937 = vpack.c.bf16 %v906, %v905
        %v938 = vpack.c.bf16 %v908, %v907
        %v939 = vpack.c.bf16 %v910, %v909
        %v940 = vpack.c.bf16 %v912, %v911
        %v941 = vpack.c.bf16 %v914, %v913
        %v942 = vpack.c.bf16 %v916, %v915
        %v943 = vpack.c.bf16 %v918, %v917
        %v944 = vpack.c.bf16 %v920, %v919
        %v945 = vpack.c.bf16 %v922, %v921
        %v946 = vpack.c.bf16 %v924, %v923
        %v947 = vpack.c.bf16 %v926, %v925
        %v948 = vpack.c.bf16 %v928, %v927
        %v949 = vpack.c.bf16 %v930, %v929
        %v950 = vpack.c.bf16 %v932, %v931
        %v951 = vpack.c.bf16 %v934, %v933
        %v952 = vpack.c.bf16 %v936, %v935
        %v953 = vld [vmem:[#allocation6 + $0x18] sm:$0xff]
        %v954 = vld [vmem:[#allocation6 + $0x20] sm:$0xf]
        %v955 = vld [vmem:[#allocation6 + $0x24] sm:$0xff]
        %v956 = vld [vmem:[#allocation6 + $0x2c] sm:$0xf]
        %v961 = vunpack.c.l.b16 %v953
        %v962 = vunpack.c.h.b16 %v953
        %v963 = vunpack.c.l.b16 %v954
        %v964 = vunpack.c.l.b16 %v955
        %v965 = vunpack.c.h.b16 %v955
        %v966 = vunpack.c.l.b16 %v956
        %v967 = vpack.c.b16 %v964, %v961
        %v968 = vpack.c.b16 %v965, %v962
        %v969 = vpack.c.b16 %v966, %v963
        %v974 = vsel %vm237, %v937, 0
        %v977 = vsel %vm237, %v938, 0
        %v980 = vsel %vm237, %v939, 0
        %v983 = vsel %vm237, %v940, 0
        %v986 = vsel %vm237, %v941, 0
        %v989 = vsel %vm237, %v942, 0
        %v992 = vsel %vm237, %v943, 0
        %v995 = vsel %vm237, %v944, 0
        %v998 = vsel %vm237, %v945, 0
        %v1001 = vsel %vm237, %v946, 0
        %v1004 = vsel %vm237, %v947, 0
        %v1007 = vsel %vm237, %v948, 0
        %v1010 = vsel %vm237, %v949, 0
        %v1013 = vsel %vm237, %v950, 0
        %v1016 = vsel %vm237, %v951, 0
        %v1019 = vsel %vm237, %v952, 0
        %1021 = vmatprep.subr.bf16.mxu0 %v968
        %1022 = vmatpush1.bf16.msra.mxu0 %v967
        %1023 = vmatprep.subr.bf16.mxu0 0
        %1024 = vmatpush1.bf16.msra.mxu0 0
        %1025 = vmatprep.subr.bf16.mxu0 0
        %1026 = vmatpush1.bf16.msra.mxu0 0
        %1027 = vmatprep.subr.bf16.mxu0 0
        %1028 = vmatpush1.bf16.msra.mxu0 0
        %1029 = vmatprep.subr.bf16.mxu0 0
        %1030 = vmatpush1.bf16.msra.mxu0 0
        %1031 = vmatprep.subr.bf16.mxu0 0
        %1032 = vmatpush1.bf16.msra.mxu0 0
        %1033 = vmatprep.subr.bf16.mxu0 0
        %1034 = vmatpush1.bf16.msra.mxu0 0
        %1035 = vmatprep.subr.bf16.mxu0 0
        %1036 = vmatpush1.bf16.msra.mxu0 0
        %1037 = vmatprep.subr.bf16.mxu0 0
        %1038 = vmatpush1.bf16.msra.mxu0 0
        %1039 = vmatprep.subr.bf16.mxu0 0
        %1040 = vmatpush1.bf16.msra.mxu0 0
        %1041 = vmatprep.subr.bf16.mxu0 0
        %1042 = vmatpush1.bf16.msra.mxu0 0
        %1043 = vmatprep.subr.bf16.mxu0 0
        %1044 = vmatpush1.bf16.msra.mxu0 0
        %1045 = vmatprep.subr.bf16.mxu0 0
        %1046 = vmatpush1.bf16.msra.mxu0 0
        %1047 = vmatprep.subr.bf16.mxu0 0
        %1048 = vmatpush1.bf16.msra.mxu0 0
        %1049 = vmatprep.subr.bf16.mxu0 0
        %1050 = vmatpush1.bf16.msra.mxu0 0
        %1051 = vmatprep.subr.bf16.mxu0 0
        %1052 = vmatpush1.bf16.msra.mxu0 0
        %1053 = vmatprep.mubr.bf16.mxu0 0
        %1054 = vmatmul.mubr.bf16.gmra.mrb[0].mxu0 %v974
        %v1055 = vpop.f32.mrb[0].mxu0
        %v1056 = vadd.f32 0.0, %v1055
        %v1057 = vpop.f32.mrb[0].mxu0
        %v1058 = vadd.f32 0.0, %v1057
        %v1059 = vpop.f32.mrb[0].mxu0
        %v1060 = vadd.f32 0.0, %v1059
        %v1061 = vpop.f32.mrb[0].mxu0
        %v1062 = vadd.f32 0.0, %v1061
        %1063 = vmatprep.mubr.bf16.mxu0 0
        %1064 = vmatmul.mubr.bf16.gmra.mrb[0].mxu0 %v977
        %v1065 = vpop.f32.mrb[0].mxu0
        %v1066 = vadd.f32 0.0, %v1065
        %v1067 = vpop.f32.mrb[0].mxu0
        %v1068 = vadd.f32 0.0, %v1067
        %v1069 = vpop.f32.mrb[0].mxu0
        %v1070 = vadd.f32 0.0, %v1069
        %v1071 = vpop.f32.mrb[0].mxu0
        %v1072 = vadd.f32 0.0, %v1071
        %1073 = vmatprep.mubr.bf16.mxu0 0
        %1074 = vmatmul.mubr.bf16.gmra.mrb[0].mxu0 %v980
        %v1075 = vpop.f32.mrb[0].mxu0
        %v1076 = vadd.f32 0.0, %v1075
        %v1077 = vpop.f32.mrb[0].mxu0
        %v1078 = vadd.f32 0.0, %v1077
        %v1079 = vpop.f32.mrb[0].mxu0
        %v1080 = vadd.f32 0.0, %v1079
        %v1081 = vpop.f32.mrb[0].mxu0
        %v1082 = vadd.f32 0.0, %v1081
        %1083 = vmatprep.mubr.bf16.mxu0 0
        %1084 = vmatmul.mubr.bf16.gmra.mrb[0].mxu0 %v983
        %v1085 = vpop.f32.mrb[0].mxu0
        %v1086 = vadd.f32 0.0, %v1085
        %v1087 = vpop.f32.mrb[0].mxu0
        %v1088 = vadd.f32 0.0, %v1087
        %v1089 = vpop.f32.mrb[0].mxu0
        %v1090 = vadd.f32 0.0, %v1089
        %v1091 = vpop.f32.mrb[0].mxu0
        %v1092 = vadd.f32 0.0, %v1091
        %1093 = vmatprep.mubr.bf16.mxu0 0
        %1094 = vmatmul.mubr.bf16.gmra.mrb[0].mxu0 %v986
        %v1095 = vpop.f32.mrb[0].mxu0
        %v1096 = vadd.f32 0.0, %v1095
        %v1097 = vpop.f32.mrb[0].mxu0
        %v1098 = vadd.f32 0.0, %v1097
        %v1099 = vpop.f32.mrb[0].mxu0
        %v1100 = vadd.f32 0.0, %v1099
        %v1101 = vpop.f32.mrb[0].mxu0
        %v1102 = vadd.f32 0.0, %v1101
        %1103 = vmatprep.mubr.bf16.mxu0 0
        %1104 = vmatmul.mubr.bf16.gmra.mrb[0].mxu0 %v989
        %v1105 = vpop.f32.mrb[0].mxu0
        %v1106 = vadd.f32 0.0, %v1105
        %v1107 = vpop.f32.mrb[0].mxu0
        %v1108 = vadd.f32 0.0, %v1107
        %v1109 = vpop.f32.mrb[0].mxu0
        %v1110 = vadd.f32 0.0, %v1109
        %v1111 = vpop.f32.mrb[0].mxu0
        %v1112 = vadd.f32 0.0, %v1111
        %1113 = vmatprep.mubr.bf16.mxu0 0
        %1114 = vmatmul.mubr.bf16.gmra.mrb[0].mxu0 %v992
        %v1115 = vpop.f32.mrb[0].mxu0
        %v1116 = vadd.f32 0.0, %v1115
        %v1117 = vpop.f32.mrb[0].mxu0
        %v1118 = vadd.f32 0.0, %v1117
        %v1119 = vpop.f32.mrb[0].mxu0
        %v1120 = vadd.f32 0.0, %v1119
        %v1121 = vpop.f32.mrb[0].mxu0
        %v1122 = vadd.f32 0.0, %v1121
        %1123 = vmatprep.mubr.bf16.mxu0 0
        %1124 = vmatmul.mubr.bf16.gmra.mrb[0].mxu0 %v995
        %v1125 = vpop.f32.mrb[0].mxu0
        %v1126 = vadd.f32 0.0, %v1125
        %v1127 = vpop.f32.mrb[0].mxu0
        %v1128 = vadd.f32 0.0, %v1127
        %v1129 = vpop.f32.mrb[0].mxu0
        %v1130 = vadd.f32 0.0, %v1129
        %v1131 = vpop.f32.mrb[0].mxu0
        %v1132 = vadd.f32 0.0, %v1131
        %1133 = vmatprep.mubr.bf16.mxu0 0
        %1134 = vmatmul.mubr.bf16.gmra.mrb[0].mxu0 %v998
        %v1135 = vpop.f32.mrb[0].mxu0
        %v1136 = vadd.f32 0.0, %v1135
        %v1137 = vpop.f32.mrb[0].mxu0
        %v1138 = vadd.f32 0.0, %v1137
        %v1139 = vpop.f32.mrb[0].mxu0
        %v1140 = vadd.f32 0.0, %v1139
        %v1141 = vpop.f32.mrb[0].mxu0
        %v1142 = vadd.f32 0.0, %v1141
        %1143 = vmatprep.mubr.bf16.mxu0 0
        %1144 = vmatmul.mubr.bf16.gmra.mrb[0].mxu0 %v1001
        %v1145 = vpop.f32.mrb[0].mxu0
        %v1146 = vadd.f32 0.0, %v1145
        %v1147 = vpop.f32.mrb[0].mxu0
        %v1148 = vadd.f32 0.0, %v1147
        %v1149 = vpop.f32.mrb[0].mxu0
        %v1150 = vadd.f32 0.0, %v1149
        %v1151 = vpop.f32.mrb[0].mxu0
        %v1152 = vadd.f32 0.0, %v1151
        %1153 = vmatprep.mubr.bf16.mxu0 0
        %1154 = vmatmul.mubr.bf16.gmra.mrb[0].mxu0 %v1004
        %v1155 = vpop.f32.mrb[0].mxu0
        %v1156 = vadd.f32 0.0, %v1155
        %v1157 = vpop.f32.mrb[0].mxu0
        %v1158 = vadd.f32 0.0, %v1157
        %v1159 = vpop.f32.mrb[0].mxu0
        %v1160 = vadd.f32 0.0, %v1159
        %v1161 = vpop.f32.mrb[0].mxu0
        %v1162 = vadd.f32 0.0, %v1161
        %1163 = vmatprep.mubr.bf16.mxu0 0
        %1164 = vmatmul.mubr.bf16.gmra.mrb[0].mxu0 %v1007
        %v1165 = vpop.f32.mrb[0].mxu0
        %v1166 = vadd.f32 0.0, %v1165
        %v1167 = vpop.f32.mrb[0].mxu0
        %v1168 = vadd.f32 0.0, %v1167
        %v1169 = vpop.f32.mrb[0].mxu0
        %v1170 = vadd.f32 0.0, %v1169
        %v1171 = vpop.f32.mrb[0].mxu0
        %v1172 = vadd.f32 0.0, %v1171
        %1173 = vmatprep.mubr.bf16.mxu0 0
        %1174 = vmatmul.mubr.bf16.gmra.mrb[0].mxu0 %v1010
        %v1175 = vpop.f32.mrb[0].mxu0
        %v1176 = vadd.f32 0.0, %v1175
        %v1177 = vpop.f32.mrb[0].mxu0
        %v1178 = vadd.f32 0.0, %v1177
        %v1179 = vpop.f32.mrb[0].mxu0
        %v1180 = vadd.f32 0.0, %v1179
        %v1181 = vpop.f32.mrb[0].mxu0
        %v1182 = vadd.f32 0.0, %v1181
        %1183 = vmatprep.mubr.bf16.mxu0 0
        %1184 = vmatmul.mubr.bf16.gmra.mrb[0].mxu0 %v1013
        %v1185 = vpop.f32.mrb[0].mxu0
        %v1186 = vadd.f32 0.0, %v1185
        %v1187 = vpop.f32.mrb[0].mxu0
        %v1188 = vadd.f32 0.0, %v1187
        %v1189 = vpop.f32.mrb[0].mxu0
        %v1190 = vadd.f32 0.0, %v1189
        %v1191 = vpop.f32.mrb[0].mxu0
        %v1192 = vadd.f32 0.0, %v1191
        %1193 = vmatprep.mubr.bf16.mxu0 0
        %1194 = vmatmul.mubr.bf16.gmra.mrb[0].mxu0 %v1016
        %v1195 = vpop.f32.mrb[0].mxu0
        %v1196 = vadd.f32 0.0, %v1195
        %v1197 = vpop.f32.mrb[0].mxu0
        %v1198 = vadd.f32 0.0, %v1197
        %v1199 = vpop.f32.mrb[0].mxu0
        %v1200 = vadd.f32 0.0, %v1199
        %v1201 = vpop.f32.mrb[0].mxu0
        %v1202 = vadd.f32 0.0, %v1201
        %1203 = vmatprep.mubr.bf16.mxu0 0
        %1204 = vmatmul.mubr.bf16.gmra.mrb[0].mxu0 %v1019
        %v1205 = vpop.f32.mrb[0].mxu0
        %v1206 = vadd.f32 0.0, %v1205
        %v1207 = vpop.f32.mrb[0].mxu0
        %v1208 = vadd.f32 0.0, %v1207
        %v1209 = vpop.f32.mrb[0].mxu0
        %v1210 = vadd.f32 0.0, %v1209
        %v1211 = vpop.f32.mrb[0].mxu0
        %v1212 = vadd.f32 0.0, %v1211
        %1213 = vdwg.mxu0
        %1214 = vmatprep.subr.bf16.mxu0 0
        %1215 = vmatpush1.bf16.msra.mxu0 %v969
        %1216 = vmatprep.subr.bf16.mxu0 0
        %1217 = vmatpush1.bf16.msra.mxu0 0
        %1218 = vmatprep.subr.bf16.mxu0 0
        %1219 = vmatpush1.bf16.msra.mxu0 0
        %1220 = vmatprep.subr.bf16.mxu0 0
        %1221 = vmatpush1.bf16.msra.mxu0 0
        %1222 = vmatprep.subr.bf16.mxu0 0
        %1223 = vmatpush1.bf16.msra.mxu0 0
        %1224 = vmatprep.subr.bf16.mxu0 0
        %1225 = vmatpush1.bf16.msra.mxu0 0
        %1226 = vmatprep.subr.bf16.mxu0 0
        %1227 = vmatpush1.bf16.msra.mxu0 0
        %1228 = vmatprep.subr.bf16.mxu0 0
        %1229 = vmatpush1.bf16.msra.mxu0 0
        %1230 = vmatprep.subr.bf16.mxu0 0
        %1231 = vmatpush1.bf16.msra.mxu0 0
        %1232 = vmatprep.subr.bf16.mxu0 0
        %1233 = vmatpush1.bf16.msra.mxu0 0
        %1234 = vmatprep.subr.bf16.mxu0 0
        %1235 = vmatpush1.bf16.msra.mxu0 0
        %1236 = vmatprep.subr.bf16.mxu0 0
        %1237 = vmatpush1.bf16.msra.mxu0 0
        %1238 = vmatprep.subr.bf16.mxu0 0
        %1239 = vmatpush1.bf16.msra.mxu0 0
        %1240 = vmatprep.subr.bf16.mxu0 0
        %1241 = vmatpush1.bf16.msra.mxu0 0
        %1242 = vmatprep.subr.bf16.mxu0 0
        %1243 = vmatpush1.bf16.msra.mxu0 0
        %1244 = vmatprep.subr.bf16.mxu0 0
        %1245 = vmatpush1.bf16.msra.mxu0 0
        %1246 = vmatprep.mubr.bf16.mxu0 0
        %1247 = vmatmul.mubr.bf16.gmra.mrb[0].mxu0 %v974
        %v1248 = vpop.f32.mrb[0].mxu0
        %v1249 = vadd.f32 0.0, %v1248
        %v1250 = vpop.f32.mrb[0].mxu0
        %v1251 = vpop.f32.mrb[0].mxu0
        %v1252 = vadd.f32 0.0, %v1251
        %v1253 = vpop.f32.mrb[0].mxu0
        %1254 = vmatprep.mubr.bf16.mxu0 0
        %1255 = vmatmul.mubr.bf16.gmra.mrb[0].mxu0 %v977
        %v1256 = vpop.f32.mrb[0].mxu0
        %v1257 = vadd.f32 0.0, %v1256
        %v1258 = vpop.f32.mrb[0].mxu0
        %v1259 = vpop.f32.mrb[0].mxu0
        %v1260 = vadd.f32 0.0, %v1259
        %v1261 = vpop.f32.mrb[0].mxu0
        %1262 = vmatprep.mubr.bf16.mxu0 0
        %1263 = vmatmul.mubr.bf16.gmra.mrb[0].mxu0 %v980
        %v1264 = vpop.f32.mrb[0].mxu0
        %v1265 = vadd.f32 0.0, %v1264
        %v1266 = vpop.f32.mrb[0].mxu0
        %v1267 = vpop.f32.mrb[0].mxu0
        %v1268 = vadd.f32 0.0, %v1267
        %v1269 = vpop.f32.mrb[0].mxu0
        %1270 = vmatprep.mubr.bf16.mxu0 0
        %1271 = vmatmul.mubr.bf16.gmra.mrb[0].mxu0 %v983
        %v1272 = vpop.f32.mrb[0].mxu0
        %v1273 = vadd.f32 0.0, %v1272
        %v1274 = vpop.f32.mrb[0].mxu0
        %v1275 = vpop.f32.mrb[0].mxu0
        %v1276 = vadd.f32 0.0, %v1275
        %v1277 = vpop.f32.mrb[0].mxu0
        %1278 = vmatprep.mubr.bf16.mxu0 0
        %1279 = vmatmul.mubr.bf16.gmra.mrb[0].mxu0 %v986
        %v1280 = vpop.f32.mrb[0].mxu0
        %v1281 = vadd.f32 0.0, %v1280
        %v1282 = vpop.f32.mrb[0].mxu0
        %v1283 = vpop.f32.mrb[0].mxu0
        %v1284 = vadd.f32 0.0, %v1283
        %v1285 = vpop.f32.mrb[0].mxu0
        %1286 = vmatprep.mubr.bf16.mxu0 0
        %1287 = vmatmul.mubr.bf16.gmra.mrb[0].mxu0 %v989
        %v1288 = vpop.f32.mrb[0].mxu0
        %v1289 = vadd.f32 0.0, %v1288
        %v1290 = vpop.f32.mrb[0].mxu0
        %v1291 = vpop.f32.mrb[0].mxu0
        %v1292 = vadd.f32 0.0, %v1291
        %v1293 = vpop.f32.mrb[0].mxu0
        %1294 = vmatprep.mubr.bf16.mxu0 0
        %1295 = vmatmul.mubr.bf16.gmra.mrb[0].mxu0 %v992
        %v1296 = vpop.f32.mrb[0].mxu0
        %v1297 = vadd.f32 0.0, %v1296
        %v1298 = vpop.f32.mrb[0].mxu0
        %v1299 = vpop.f32.mrb[0].mxu0
        %v1300 = vadd.f32 0.0, %v1299
        %v1301 = vpop.f32.mrb[0].mxu0
        %1302 = vmatprep.mubr.bf16.mxu0 0
        %1303 = vmatmul.mubr.bf16.gmra.mrb[0].mxu0 %v995
        %v1304 = vpop.f32.mrb[0].mxu0
        %v1305 = vadd.f32 0.0, %v1304
        %v1306 = vpop.f32.mrb[0].mxu0
        %v1307 = vpop.f32.mrb[0].mxu0
        %v1308 = vadd.f32 0.0, %v1307
        %v1309 = vpop.f32.mrb[0].mxu0
        %1310 = vmatprep.mubr.bf16.mxu0 0
        %1311 = vmatmul.mubr.bf16.gmra.mrb[0].mxu0 %v998
        %v1312 = vpop.f32.mrb[0].mxu0
        %v1313 = vadd.f32 0.0, %v1312
        %v1314 = vpop.f32.mrb[0].mxu0
        %v1315 = vpop.f32.mrb[0].mxu0
        %v1316 = vadd.f32 0.0, %v1315
        %v1317 = vpop.f32.mrb[0].mxu0
        %1318 = vmatprep.mubr.bf16.mxu0 0
        %1319 = vmatmul.mubr.bf16.gmra.mrb[0].mxu0 %v1001
        %v1320 = vpop.f32.mrb[0].mxu0
        %v1321 = vadd.f32 0.0, %v1320
        %v1322 = vpop.f32.mrb[0].mxu0
        %v1323 = vpop.f32.mrb[0].mxu0
        %v1324 = vadd.f32 0.0, %v1323
        %v1325 = vpop.f32.mrb[0].mxu0
        %1326 = vmatprep.mubr.bf16.mxu0 0
        %1327 = vmatmul.mubr.bf16.gmra.mrb[0].mxu0 %v1004
        %v1328 = vpop.f32.mrb[0].mxu0
        %v1329 = vadd.f32 0.0, %v1328
        %v1330 = vpop.f32.mrb[0].mxu0
        %v1331 = vpop.f32.mrb[0].mxu0
        %v1332 = vadd.f32 0.0, %v1331
        %v1333 = vpop.f32.mrb[0].mxu0
        %1334 = vmatprep.mubr.bf16.mxu0 0
        %1335 = vmatmul.mubr.bf16.gmra.mrb[0].mxu0 %v1007
        %v1336 = vpop.f32.mrb[0].mxu0
        %v1337 = vadd.f32 0.0, %v1336
        %v1338 = vpop.f32.mrb[0].mxu0
        %v1339 = vpop.f32.mrb[0].mxu0
        %v1340 = vadd.f32 0.0, %v1339
        %v1341 = vpop.f32.mrb[0].mxu0
        %1342 = vmatprep.mubr.bf16.mxu0 0
        %1343 = vmatmul.mubr.bf16.gmra.mrb[0].mxu0 %v1010
        %v1344 = vpop.f32.mrb[0].mxu0
        %v1345 = vadd.f32 0.0, %v1344
        %v1346 = vpop.f32.mrb[0].mxu0
        %v1347 = vpop.f32.mrb[0].mxu0
        %v1348 = vadd.f32 0.0, %v1347
        %v1349 = vpop.f32.mrb[0].mxu0
        %1350 = vmatprep.mubr.bf16.mxu0 0
        %1351 = vmatmul.mubr.bf16.gmra.mrb[0].mxu0 %v1013
        %v1352 = vpop.f32.mrb[0].mxu0
        %v1353 = vadd.f32 0.0, %v1352
        %v1354 = vpop.f32.mrb[0].mxu0
        %v1355 = vpop.f32.mrb[0].mxu0
        %v1356 = vadd.f32 0.0, %v1355
        %v1357 = vpop.f32.mrb[0].mxu0
        %1358 = vmatprep.mubr.bf16.mxu0 0
        %1359 = vmatmul.mubr.bf16.gmra.mrb[0].mxu0 %v1016
        %v1360 = vpop.f32.mrb[0].mxu0
        %v1361 = vadd.f32 0.0, %v1360
        %v1362 = vpop.f32.mrb[0].mxu0
        %v1363 = vpop.f32.mrb[0].mxu0
        %v1364 = vadd.f32 0.0, %v1363
        %v1365 = vpop.f32.mrb[0].mxu0
        %1366 = vmatprep.mubr.bf16.mxu0 0
        %1367 = vmatmul.mubr.bf16.gmra.mrb[0].mxu0 %v1019
        %v1368 = vpop.f32.mrb[0].mxu0
        %v1369 = vadd.f32 0.0, %v1368
        %v1370 = vpop.f32.mrb[0].mxu0
        %v1371 = vpop.f32.mrb[0].mxu0
        %v1372 = vadd.f32 0.0, %v1371
        %v1373 = vpop.f32.mrb[0].mxu0
        %1374 = vdwg.mxu0
        %v1379 = vunpack.c.l.b16 %v901
        %v1380 = vunpack.c.h.b16 %v901
        %v1381 = vunpack.c.l.b16 %v902
        %v1382 = vunpack.c.l.b16 %v903
        %v1383 = vunpack.c.h.b16 %v903
        %v1384 = vunpack.c.l.b16 %v904
        %v1385 = vpack.c.b16 %v1382, %v1379
        %v1386 = vpack.c.b16 %v1383, %v1380
        %v1387 = vpack.c.b16 %v1384, %v1381
        %v1392 = vsel %vm237, %v885, 0
        %v1395 = vsel %vm237, %v886, 0
        %v1398 = vsel %vm237, %v887, 0
        %v1401 = vsel %vm237, %v888, 0
        %v1404 = vsel %vm237, %v889, 0
        %v1407 = vsel %vm237, %v890, 0
        %v1410 = vsel %vm237, %v891, 0
        %v1413 = vsel %vm237, %v892, 0
        %v1416 = vsel %vm237, %v893, 0
        %v1419 = vsel %vm237, %v894, 0
        %v1422 = vsel %vm237, %v895, 0
        %v1425 = vsel %vm237, %v896, 0
        %v1428 = vsel %vm237, %v897, 0
        %v1431 = vsel %vm237, %v898, 0
        %v1434 = vsel %vm237, %v899, 0
        %v1437 = vsel %vm237, %v900, 0
        %1439 = vmatprep.subr.bf16.mxu0 %v1386
        %1440 = vmatpush1.bf16.msra.mxu0 %v1385
        %1441 = vmatprep.subr.bf16.mxu0 0
        %1442 = vmatpush1.bf16.msra.mxu0 0
        %1443 = vmatprep.subr.bf16.mxu0 0
        %1444 = vmatpush1.bf16.msra.mxu0 0
        %1445 = vmatprep.subr.bf16.mxu0 0
        %1446 = vmatpush1.bf16.msra.mxu0 0
        %1447 = vmatprep.subr.bf16.mxu0 0
        %1448 = vmatpush1.bf16.msra.mxu0 0
        %1449 = vmatprep.subr.bf16.mxu0 0
        %1450 = vmatpush1.bf16.msra.mxu0 0
        %1451 = vmatprep.subr.bf16.mxu0 0
        %1452 = vmatpush1.bf16.msra.mxu0 0
        %1453 = vmatprep.subr.bf16.mxu0 0
        %1454 = vmatpush1.bf16.msra.mxu0 0
        %1455 = vmatprep.subr.bf16.mxu0 0
        %1456 = vmatpush1.bf16.msra.mxu0 0
        %1457 = vmatprep.subr.bf16.mxu0 0
        %1458 = vmatpush1.bf16.msra.mxu0 0
        %1459 = vmatprep.subr.bf16.mxu0 0
        %1460 = vmatpush1.bf16.msra.mxu0 0
        %1461 = vmatprep.subr.bf16.mxu0 0
        %1462 = vmatpush1.bf16.msra.mxu0 0
        %1463 = vmatprep.subr.bf16.mxu0 0
        %1464 = vmatpush1.bf16.msra.mxu0 0
        %1465 = vmatprep.subr.bf16.mxu0 0
        %1466 = vmatpush1.bf16.msra.mxu0 0
        %1467 = vmatprep.subr.bf16.mxu0 0
        %1468 = vmatpush1.bf16.msra.mxu0 0
        %1469 = vmatprep.subr.bf16.mxu0 0
        %1470 = vmatpush1.bf16.msra.mxu0 0
        %1471 = vmatprep.mubr.bf16.mxu0 0
        %1472 = vmatmul.mubr.bf16.gmra.mrb[0].mxu0 %v1392
        %v1473 = vpop.f32.mrb[0].mxu0
        %v1474 = vadd.f32 %v1056, %v1473
        %v1475 = vpop.f32.mrb[0].mxu0
        %v1476 = vadd.f32 %v1058, %v1475
        %v1477 = vpop.f32.mrb[0].mxu0
        %v1478 = vadd.f32 %v1060, %v1477
        %v1479 = vpop.f32.mrb[0].mxu0
        %v1480 = vadd.f32 %v1062, %v1479
        %1481 = vmatprep.mubr.bf16.mxu0 0
        %1482 = vmatmul.mubr.bf16.gmra.mrb[0].mxu0 %v1395
        %v1483 = vpop.f32.mrb[0].mxu0
        %v1484 = vadd.f32 %v1066, %v1483
        %v1485 = vpop.f32.mrb[0].mxu0
        %v1486 = vadd.f32 %v1068, %v1485
        %v1487 = vpop.f32.mrb[0].mxu0
        %v1488 = vadd.f32 %v1070, %v1487
        %v1489 = vpop.f32.mrb[0].mxu0
        %v1490 = vadd.f32 %v1072, %v1489
        %1491 = vmatprep.mubr.bf16.mxu0 0
        %1492 = vmatmul.mubr.bf16.gmra.mrb[0].mxu0 %v1398
        %v1493 = vpop.f32.mrb[0].mxu0
        %v1494 = vadd.f32 %v1076, %v1493
        %v1495 = vpop.f32.mrb[0].mxu0
        %v1496 = vadd.f32 %v1078, %v1495
        %v1497 = vpop.f32.mrb[0].mxu0
        %v1498 = vadd.f32 %v1080, %v1497
        %v1499 = vpop.f32.mrb[0].mxu0
        %v1500 = vadd.f32 %v1082, %v1499
        %1501 = vmatprep.mubr.bf16.mxu0 0
        %1502 = vmatmul.mubr.bf16.gmra.mrb[0].mxu0 %v1401
        %v1503 = vpop.f32.mrb[0].mxu0
        %v1504 = vadd.f32 %v1086, %v1503
        %v1505 = vpop.f32.mrb[0].mxu0
        %v1506 = vadd.f32 %v1088, %v1505
        %v1507 = vpop.f32.mrb[0].mxu0
        %v1508 = vadd.f32 %v1090, %v1507
        %v1509 = vpop.f32.mrb[0].mxu0
        %v1510 = vadd.f32 %v1092, %v1509
        %1511 = vmatprep.mubr.bf16.mxu0 0
        %1512 = vmatmul.mubr.bf16.gmra.mrb[0].mxu0 %v1404
        %v1513 = vpop.f32.mrb[0].mxu0
        %v1514 = vadd.f32 %v1096, %v1513
        %v1515 = vpop.f32.mrb[0].mxu0
        %v1516 = vadd.f32 %v1098, %v1515
        %v1517 = vpop.f32.mrb[0].mxu0
        %v1518 = vadd.f32 %v1100, %v1517
        %v1519 = vpop.f32.mrb[0].mxu0
        %v1520 = vadd.f32 %v1102, %v1519
        %1521 = vmatprep.mubr.bf16.mxu0 0
        %1522 = vmatmul.mubr.bf16.gmra.mrb[0].mxu0 %v1407
        %v1523 = vpop.f32.mrb[0].mxu0
        %v1524 = vadd.f32 %v1106, %v1523
        %v1525 = vpop.f32.mrb[0].mxu0
        %v1526 = vadd.f32 %v1108, %v1525
        %v1527 = vpop.f32.mrb[0].mxu0
        %v1528 = vadd.f32 %v1110, %v1527
        %v1529 = vpop.f32.mrb[0].mxu0
        %v1530 = vadd.f32 %v1112, %v1529
        %1531 = vmatprep.mubr.bf16.mxu0 0
        %1532 = vmatmul.mubr.bf16.gmra.mrb[0].mxu0 %v1410
        %v1533 = vpop.f32.mrb[0].mxu0
        %v1534 = vadd.f32 %v1116, %v1533
        %v1535 = vpop.f32.mrb[0].mxu0
        %v1536 = vadd.f32 %v1118, %v1535
        %v1537 = vpop.f32.mrb[0].mxu0
        %v1538 = vadd.f32 %v1120, %v1537
        %v1539 = vpop.f32.mrb[0].mxu0
        %v1540 = vadd.f32 %v1122, %v1539
        %1541 = vmatprep.mubr.bf16.mxu0 0
        %1542 = vmatmul.mubr.bf16.gmra.mrb[0].mxu0 %v1413
        %v1543 = vpop.f32.mrb[0].mxu0
        %v1544 = vadd.f32 %v1126, %v1543
        %v1545 = vpop.f32.mrb[0].mxu0
        %v1546 = vadd.f32 %v1128, %v1545
        %v1547 = vpop.f32.mrb[0].mxu0
        %v1548 = vadd.f32 %v1130, %v1547
        %v1549 = vpop.f32.mrb[0].mxu0
        %v1550 = vadd.f32 %v1132, %v1549
        %1551 = vmatprep.mubr.bf16.mxu0 0
        %1552 = vmatmul.mubr.bf16.gmra.mrb[0].mxu0 %v1416
        %v1553 = vpop.f32.mrb[0].mxu0
        %v1554 = vadd.f32 %v1136, %v1553
        %v1555 = vpop.f32.mrb[0].mxu0
        %v1556 = vadd.f32 %v1138, %v1555
        %v1557 = vpop.f32.mrb[0].mxu0
        %v1558 = vadd.f32 %v1140, %v1557
        %v1559 = vpop.f32.mrb[0].mxu0
        %v1560 = vadd.f32 %v1142, %v1559
        %1561 = vmatprep.mubr.bf16.mxu0 0
        %1562 = vmatmul.mubr.bf16.gmra.mrb[0].mxu0 %v1419
        %v1563 = vpop.f32.mrb[0].mxu0
        %v1564 = vadd.f32 %v1146, %v1563
        %v1565 = vpop.f32.mrb[0].mxu0
        %v1566 = vadd.f32 %v1148, %v1565
        %v1567 = vpop.f32.mrb[0].mxu0
        %v1568 = vadd.f32 %v1150, %v1567
        %v1569 = vpop.f32.mrb[0].mxu0
        %v1570 = vadd.f32 %v1152, %v1569
        %1571 = vmatprep.mubr.bf16.mxu0 0
        %1572 = vmatmul.mubr.bf16.gmra.mrb[0].mxu0 %v1422
        %v1573 = vpop.f32.mrb[0].mxu0
        %v1574 = vadd.f32 %v1156, %v1573
        %v1575 = vpop.f32.mrb[0].mxu0
        %v1576 = vadd.f32 %v1158, %v1575
        %v1577 = vpop.f32.mrb[0].mxu0
        %v1578 = vadd.f32 %v1160, %v1577
        %v1579 = vpop.f32.mrb[0].mxu0
        %v1580 = vadd.f32 %v1162, %v1579
        %1581 = vmatprep.mubr.bf16.mxu0 0
        %1582 = vmatmul.mubr.bf16.gmra.mrb[0].mxu0 %v1425
        %v1583 = vpop.f32.mrb[0].mxu0
        %v1584 = vadd.f32 %v1166, %v1583
        %v1585 = vpop.f32.mrb[0].mxu0
        %v1586 = vadd.f32 %v1168, %v1585
        %v1587 = vpop.f32.mrb[0].mxu0
        %v1588 = vadd.f32 %v1170, %v1587
        %v1589 = vpop.f32.mrb[0].mxu0
        %v1590 = vadd.f32 %v1172, %v1589
        %1591 = vmatprep.mubr.bf16.mxu0 0
        %1592 = vmatmul.mubr.bf16.gmra.mrb[0].mxu0 %v1428
        %v1593 = vpop.f32.mrb[0].mxu0
        %v1594 = vadd.f32 %v1176, %v1593
        %v1595 = vpop.f32.mrb[0].mxu0
        %v1596 = vadd.f32 %v1178, %v1595
        %v1597 = vpop.f32.mrb[0].mxu0
        %v1598 = vadd.f32 %v1180, %v1597
        %v1599 = vpop.f32.mrb[0].mxu0
        %v1600 = vadd.f32 %v1182, %v1599
        %1601 = vmatprep.mubr.bf16.mxu0 0
        %1602 = vmatmul.mubr.bf16.gmra.mrb[0].mxu0 %v1431
        %v1603 = vpop.f32.mrb[0].mxu0
        %v1604 = vadd.f32 %v1186, %v1603
        %v1605 = vpop.f32.mrb[0].mxu0
        %v1606 = vadd.f32 %v1188, %v1605
        %v1607 = vpop.f32.mrb[0].mxu0
        %v1608 = vadd.f32 %v1190, %v1607
        %v1609 = vpop.f32.mrb[0].mxu0
        %v1610 = vadd.f32 %v1192, %v1609
        %1611 = vmatprep.mubr.bf16.mxu0 0
        %1612 = vmatmul.mubr.bf16.gmra.mrb[0].mxu0 %v1434
        %v1613 = vpop.f32.mrb[0].mxu0
        %v1614 = vadd.f32 %v1196, %v1613
        %v1615 = vpop.f32.mrb[0].mxu0
        %v1616 = vadd.f32 %v1198, %v1615
        %v1617 = vpop.f32.mrb[0].mxu0
        %v1618 = vadd.f32 %v1200, %v1617
        %v1619 = vpop.f32.mrb[0].mxu0
        %v1620 = vadd.f32 %v1202, %v1619
        %1621 = vmatprep.mubr.bf16.mxu0 0
        %1622 = vmatmul.mubr.bf16.gmra.mrb[0].mxu0 %v1437
        %v1623 = vpop.f32.mrb[0].mxu0
        %v1624 = vadd.f32 %v1206, %v1623
        %v1625 = vpop.f32.mrb[0].mxu0
        %v1626 = vadd.f32 %v1208, %v1625
        %v1627 = vpop.f32.mrb[0].mxu0
        %v1628 = vadd.f32 %v1210, %v1627
        %v1629 = vpop.f32.mrb[0].mxu0
        %v1630 = vadd.f32 %v1212, %v1629
        %1631 = vdwg.mxu0
        %1632 = vmatprep.subr.bf16.mxu0 0
        %1633 = vmatpush1.bf16.msra.mxu0 %v1387
        %1634 = vmatprep.subr.bf16.mxu0 0
        %1635 = vmatpush1.bf16.msra.mxu0 0
        %1636 = vmatprep.subr.bf16.mxu0 0
        %1637 = vmatpush1.bf16.msra.mxu0 0
        %1638 = vmatprep.subr.bf16.mxu0 0
        %1639 = vmatpush1.bf16.msra.mxu0 0
        %1640 = vmatprep.subr.bf16.mxu0 0
        %1641 = vmatpush1.bf16.msra.mxu0 0
        %1642 = vmatprep.subr.bf16.mxu0 0
        %1643 = vmatpush1.bf16.msra.mxu0 0
        %1644 = vmatprep.subr.bf16.mxu0 0
        %1645 = vmatpush1.bf16.msra.mxu0 0
        %1646 = vmatprep.subr.bf16.mxu0 0
        %1647 = vmatpush1.bf16.msra.mxu0 0
        %1648 = vmatprep.subr.bf16.mxu0 0
        %1649 = vmatpush1.bf16.msra.mxu0 0
        %1650 = vmatprep.subr.bf16.mxu0 0
        %1651 = vmatpush1.bf16.msra.mxu0 0
        %1652 = vmatprep.subr.bf16.mxu0 0
        %1653 = vmatpush1.bf16.msra.mxu0 0
        %1654 = vmatprep.subr.bf16.mxu0 0
        %1655 = vmatpush1.bf16.msra.mxu0 0
        %1656 = vmatprep.subr.bf16.mxu0 0
        %1657 = vmatpush1.bf16.msra.mxu0 0
        %1658 = vmatprep.subr.bf16.mxu0 0
        %1659 = vmatpush1.bf16.msra.mxu0 0
        %1660 = vmatprep.subr.bf16.mxu0 0
        %1661 = vmatpush1.bf16.msra.mxu0 0
        %1662 = vmatprep.subr.bf16.mxu0 0
        %1663 = vmatpush1.bf16.msra.mxu0 0
        %1664 = vmatprep.mubr.bf16.mxu0 0
        %1665 = vmatmul.mubr.bf16.gmra.mrb[0].mxu0 %v1392
        %v1666 = vpop.f32.mrb[0].mxu0
        %v1667 = vadd.f32 %v1249, %v1666
        %v1668 = vpop.f32.mrb[0].mxu0
        %v1669 = vpop.f32.mrb[0].mxu0
        %v1670 = vadd.f32 %v1252, %v1669
        %v1671 = vpop.f32.mrb[0].mxu0
        %1672 = vmatprep.mubr.bf16.mxu0 0
        %1673 = vmatmul.mubr.bf16.gmra.mrb[0].mxu0 %v1395
        %v1674 = vpop.f32.mrb[0].mxu0
        %v1675 = vadd.f32 %v1257, %v1674
        %v1676 = vpop.f32.mrb[0].mxu0
        %v1677 = vpop.f32.mrb[0].mxu0
        %v1678 = vadd.f32 %v1260, %v1677
        %v1679 = vpop.f32.mrb[0].mxu0
        %1680 = vmatprep.mubr.bf16.mxu0 0
        %1681 = vmatmul.mubr.bf16.gmra.mrb[0].mxu0 %v1398
        %v1682 = vpop.f32.mrb[0].mxu0
        %v1683 = vadd.f32 %v1265, %v1682
        %v1684 = vpop.f32.mrb[0].mxu0
        %v1685 = vpop.f32.mrb[0].mxu0
        %v1686 = vadd.f32 %v1268, %v1685
        %v1687 = vpop.f32.mrb[0].mxu0
        %1688 = vmatprep.mubr.bf16.mxu0 0
        %1689 = vmatmul.mubr.bf16.gmra.mrb[0].mxu0 %v1401
        %v1690 = vpop.f32.mrb[0].mxu0
        %v1691 = vadd.f32 %v1273, %v1690
        %v1692 = vpop.f32.mrb[0].mxu0
        %v1693 = vpop.f32.mrb[0].mxu0
        %v1694 = vadd.f32 %v1276, %v1693
        %v1695 = vpop.f32.mrb[0].mxu0
        %1696 = vmatprep.mubr.bf16.mxu0 0
        %1697 = vmatmul.mubr.bf16.gmra.mrb[0].mxu0 %v1404
        %v1698 = vpop.f32.mrb[0].mxu0
        %v1699 = vadd.f32 %v1281, %v1698
        %v1700 = vpop.f32.mrb[0].mxu0
        %v1701 = vpop.f32.mrb[0].mxu0
        %v1702 = vadd.f32 %v1284, %v1701
        %v1703 = vpop.f32.mrb[0].mxu0
        %1704 = vmatprep.mubr.bf16.mxu0 0
        %1705 = vmatmul.mubr.bf16.gmra.mrb[0].mxu0 %v1407
        %v1706 = vpop.f32.mrb[0].mxu0
        %v1707 = vadd.f32 %v1289, %v1706
        %v1708 = vpop.f32.mrb[0].mxu0
        %v1709 = vpop.f32.mrb[0].mxu0
        %v1710 = vadd.f32 %v1292, %v1709
        %v1711 = vpop.f32.mrb[0].mxu0
        %1712 = vmatprep.mubr.bf16.mxu0 0
        %1713 = vmatmul.mubr.bf16.gmra.mrb[0].mxu0 %v1410
        %v1714 = vpop.f32.mrb[0].mxu0
        %v1715 = vadd.f32 %v1297, %v1714
        %v1716 = vpop.f32.mrb[0].mxu0
        %v1717 = vpop.f32.mrb[0].mxu0
        %v1718 = vadd.f32 %v1300, %v1717
        %v1719 = vpop.f32.mrb[0].mxu0
        %1720 = vmatprep.mubr.bf16.mxu0 0
        %1721 = vmatmul.mubr.bf16.gmra.mrb[0].mxu0 %v1413
        %v1722 = vpop.f32.mrb[0].mxu0
        %v1723 = vadd.f32 %v1305, %v1722
        %v1724 = vpop.f32.mrb[0].mxu0
        %v1725 = vpop.f32.mrb[0].mxu0
        %v1726 = vadd.f32 %v1308, %v1725
        %v1727 = vpop.f32.mrb[0].mxu0
        %1728 = vmatprep.mubr.bf16.mxu0 0
        %1729 = vmatmul.mubr.bf16.gmra.mrb[0].mxu0 %v1416
        %v1730 = vpop.f32.mrb[0].mxu0
        %v1731 = vadd.f32 %v1313, %v1730
        %v1732 = vpop.f32.mrb[0].mxu0
        %v1733 = vpop.f32.mrb[0].mxu0
        %v1734 = vadd.f32 %v1316, %v1733
        %v1735 = vpop.f32.mrb[0].mxu0
        %1736 = vmatprep.mubr.bf16.mxu0 0
        %1737 = vmatmul.mubr.bf16.gmra.mrb[0].mxu0 %v1419
        %v1738 = vpop.f32.mrb[0].mxu0
        %v1739 = vadd.f32 %v1321, %v1738
        %v1740 = vpop.f32.mrb[0].mxu0
        %v1741 = vpop.f32.mrb[0].mxu0
        %v1742 = vadd.f32 %v1324, %v1741
        %v1743 = vpop.f32.mrb[0].mxu0
        %1744 = vmatprep.mubr.bf16.mxu0 0
        %1745 = vmatmul.mubr.bf16.gmra.mrb[0].mxu0 %v1422
        %v1746 = vpop.f32.mrb[0].mxu0
        %v1747 = vadd.f32 %v1329, %v1746
        %v1748 = vpop.f32.mrb[0].mxu0
        %v1749 = vpop.f32.mrb[0].mxu0
        %v1750 = vadd.f32 %v1332, %v1749
        %v1751 = vpop.f32.mrb[0].mxu0
        %1752 = vmatprep.mubr.bf16.mxu0 0
        %1753 = vmatmul.mubr.bf16.gmra.mrb[0].mxu0 %v1425
        %v1754 = vpop.f32.mrb[0].mxu0
        %v1755 = vadd.f32 %v1337, %v1754
        %v1756 = vpop.f32.mrb[0].mxu0
        %v1757 = vpop.f32.mrb[0].mxu0
        %v1758 = vadd.f32 %v1340, %v1757
        %v1759 = vpop.f32.mrb[0].mxu0
        %1760 = vmatprep.mubr.bf16.mxu0 0
        %1761 = vmatmul.mubr.bf16.gmra.mrb[0].mxu0 %v1428
        %v1762 = vpop.f32.mrb[0].mxu0
        %v1763 = vadd.f32 %v1345, %v1762
        %v1764 = vpop.f32.mrb[0].mxu0
        %v1765 = vpop.f32.mrb[0].mxu0
        %v1766 = vadd.f32 %v1348, %v1765
        %v1767 = vpop.f32.mrb[0].mxu0
        %1768 = vmatprep.mubr.bf16.mxu0 0
        %1769 = vmatmul.mubr.bf16.gmra.mrb[0].mxu0 %v1431
        %v1770 = vpop.f32.mrb[0].mxu0
        %v1771 = vadd.f32 %v1353, %v1770
        %v1772 = vpop.f32.mrb[0].mxu0
        %v1773 = vpop.f32.mrb[0].mxu0
        %v1774 = vadd.f32 %v1356, %v1773
        %v1775 = vpop.f32.mrb[0].mxu0
        %1776 = vmatprep.mubr.bf16.mxu0 0
        %1777 = vmatmul.mubr.bf16.gmra.mrb[0].mxu0 %v1434
        %v1778 = vpop.f32.mrb[0].mxu0
        %v1779 = vadd.f32 %v1361, %v1778
        %v1780 = vpop.f32.mrb[0].mxu0
        %v1781 = vpop.f32.mrb[0].mxu0
        %v1782 = vadd.f32 %v1364, %v1781
        %v1783 = vpop.f32.mrb[0].mxu0
        %1784 = vmatprep.mubr.bf16.mxu0 0
        %1785 = vmatmul.mubr.bf16.gmra.mrb[0].mxu0 %v1437
        %v1786 = vpop.f32.mrb[0].mxu0
        %v1787 = vadd.f32 %v1369, %v1786
        %v1788 = vpop.f32.mrb[0].mxu0
        %v1789 = vpop.f32.mrb[0].mxu0
        %v1790 = vadd.f32 %v1372, %v1789
        %v1791 = vpop.f32.mrb[0].mxu0
        %1792 = vdwg.mxu0
        %v1793 = vld [vmem:[#allocation2 + $0x9] sm:$0xff]
        %v1794 = vld [vmem:[#allocation2 + $0x11] sm:$0xff]
        %v1795 = vld [vmem:[#allocation2 + $0x19] sm:$0xff]
        %v1796 = vld [vmem:[#allocation2 + $0x21] sm:$0xff]
        %v1797 = vld [vmem:[#allocation2 + $0x29] sm:$0xff]
        %v1798 = vld [vmem:[#allocation2 + $0x31] sm:$0xff]
        %v1799 = vld [vmem:[#allocation2 + $0x39] sm:$0xff]
        %v1800 = vld [vmem:[#allocation2 + $0x41] sm:$0xff]
        %v1801 = vld [vmem:[#allocation2 + $0x49] sm:$0xff]
        %v1802 = vld [vmem:[#allocation2 + $0x51] sm:$0xff]
        %v1803 = vld [vmem:[#allocation2 + $0x59] sm:$0xff]
        %v1804 = vld [vmem:[#allocation2 + $0x61] sm:$0xff]
        %v1805 = vld [vmem:[#allocation2 + $0x69] sm:$0xff]
        %v1806 = vld [vmem:[#allocation2 + $0x71] sm:$0xff]
        %v1807 = vld [vmem:[#allocation2 + $0x79] sm:$0xff]
        %v1808 = vld [vmem:[#allocation2 + $0x81] sm:$0xff]
        %v1809 = vld [vmem:[#allocation2 + $0x89] sm:$0xff]
        %v1810 = vld [vmem:[#allocation2 + $0x91] sm:$0xff]
        %v1811 = vld [vmem:[#allocation2 + $0x99] sm:$0xff]
        %v1812 = vld [vmem:[#allocation2 + $0xa1] sm:$0xff]
        %v1813 = vld [vmem:[#allocation2 + $0xa9] sm:$0xff]
        %v1814 = vld [vmem:[#allocation2 + $0xb1] sm:$0xff]
        %v1815 = vld [vmem:[#allocation2 + $0xb9] sm:$0xff]
        %v1816 = vld [vmem:[#allocation2 + $0xc1] sm:$0xff]
        %v1817 = vld [vmem:[#allocation2 + $0xc9] sm:$0xff]
        %v1818 = vld [vmem:[#allocation2 + $0xd1] sm:$0xff]
        %v1819 = vld [vmem:[#allocation2 + $0xd9] sm:$0xff]
        %v1820 = vld [vmem:[#allocation2 + $0xe1] sm:$0xff]
        %v1821 = vld [vmem:[#allocation2 + $0xe9] sm:$0xff]
        %v1822 = vld [vmem:[#allocation2 + $0xf1] sm:$0xff]
        %v1823 = vld [vmem:[#allocation2 + $0xf9] sm:$0xff]
        %v1824 = vld [vmem:[#allocation2 + $0x101] sm:$0xff]
        %v1825 = vsel %vm725, 1, 0
        %v1826 = vsel %vm726, 1, 0
        %v1827 = vsel %vm727, 1, 0
        %v1828 = vsel %vm728, 1, 0
        %v1829 = vsel %vm729, 1, 0
        %v1830 = vsel %vm730, 1, 0
        %v1831 = vsel %vm731, 1, 0
        %v1832 = vsel %vm732, 1, 0
        %v1833 = vsel %vm733, 1, 0
        %v1834 = vsel %vm734, 1, 0
        %v1835 = vsel %vm735, 1, 0
        %v1836 = vsel %vm736, 1, 0
        %v1837 = vsel %vm737, 1, 0
        %v1838 = vsel %vm738, 1, 0
        %v1839 = vsel %vm739, 1, 0
        %v1840 = vsel %vm740, 1, 0
        %v1841 = vsel %vm741, 1, 0
        %v1842 = vsel %vm742, 1, 0
        %v1843 = vsel %vm743, 1, 0
        %v1844 = vsel %vm744, 1, 0
        %v1845 = vsel %vm745, 1, 0
        %v1846 = vsel %vm746, 1, 0
        %v1847 = vsel %vm747, 1, 0
        %v1848 = vsel %vm748, 1, 0
        %v1849 = vsel %vm749, 1, 0
        %v1850 = vsel %vm750, 1, 0
        %v1851 = vsel %vm751, 1, 0
        %v1852 = vsel %vm752, 1, 0
        %v1853 = vsel %vm753, 1, 0
        %v1854 = vsel %vm754, 1, 0
        %v1855 = vsel %vm755, 1, 0
        %v1856 = vsel %vm756, 1, 0
        %vm1857 = vcmp.eq.s32.totalorder %v1825, 1
        %vm1858 = vcmp.eq.s32.totalorder %v1826, 1
        %vm1859 = vcmp.eq.s32.totalorder %v1827, 1
        %vm1860 = vcmp.eq.s32.totalorder %v1828, 1
        %vm1861 = vcmp.eq.s32.totalorder %v1829, 1
        %vm1862 = vcmp.eq.s32.totalorder %v1830, 1
        %vm1863 = vcmp.eq.s32.totalorder %v1831, 1
        %vm1864 = vcmp.eq.s32.totalorder %v1832, 1
        %vm1865 = vcmp.eq.s32.totalorder %v1833, 1
        %vm1866 = vcmp.eq.s32.totalorder %v1834, 1
        %vm1867 = vcmp.eq.s32.totalorder %v1835, 1
        %vm1868 = vcmp.eq.s32.totalorder %v1836, 1
        %vm1869 = vcmp.eq.s32.totalorder %v1837, 1
        %vm1870 = vcmp.eq.s32.totalorder %v1838, 1
        %vm1871 = vcmp.eq.s32.totalorder %v1839, 1
        %vm1872 = vcmp.eq.s32.totalorder %v1840, 1
        %vm1873 = vcmp.eq.s32.totalorder %v1841, 1
        %vm1874 = vcmp.eq.s32.totalorder %v1842, 1
        %vm1875 = vcmp.eq.s32.totalorder %v1843, 1
        %vm1876 = vcmp.eq.s32.totalorder %v1844, 1
        %vm1877 = vcmp.eq.s32.totalorder %v1845, 1
        %vm1878 = vcmp.eq.s32.totalorder %v1846, 1
        %vm1879 = vcmp.eq.s32.totalorder %v1847, 1
        %vm1880 = vcmp.eq.s32.totalorder %v1848, 1
        %vm1881 = vcmp.eq.s32.totalorder %v1849, 1
        %vm1882 = vcmp.eq.s32.totalorder %v1850, 1
        %vm1883 = vcmp.eq.s32.totalorder %v1851, 1
        %vm1884 = vcmp.eq.s32.totalorder %v1852, 1
        %vm1885 = vcmp.eq.s32.totalorder %v1853, 1
        %vm1886 = vcmp.eq.s32.totalorder %v1854, 1
        %vm1887 = vcmp.eq.s32.totalorder %v1855, 1
        %vm1888 = vcmp.eq.s32.totalorder %v1856, 1
        %v1889 = vsel %vm1857, %v1793, 0.0
        %v1890 = vsel %vm1858, %v1794, 0.0
        %v1891 = vsel %vm1859, %v1795, 0.0
        %v1892 = vsel %vm1860, %v1796, 0.0
        %v1893 = vsel %vm1861, %v1797, 0.0
        %v1894 = vsel %vm1862, %v1798, 0.0
        %v1895 = vsel %vm1863, %v1799, 0.0
        %v1896 = vsel %vm1864, %v1800, 0.0
        %v1897 = vsel %vm1865, %v1801, 0.0
        %v1898 = vsel %vm1866, %v1802, 0.0
        %v1899 = vsel %vm1867, %v1803, 0.0
        %v1900 = vsel %vm1868, %v1804, 0.0
        %v1901 = vsel %vm1869, %v1805, 0.0
        %v1902 = vsel %vm1870, %v1806, 0.0
        %v1903 = vsel %vm1871, %v1807, 0.0
        %v1904 = vsel %vm1872, %v1808, 0.0
        %v1905 = vsel %vm1873, %v1809, 0.0
        %v1906 = vsel %vm1874, %v1810, 0.0
        %v1907 = vsel %vm1875, %v1811, 0.0
        %v1908 = vsel %vm1876, %v1812, 0.0
        %v1909 = vsel %vm1877, %v1813, 0.0
        %v1910 = vsel %vm1878, %v1814, 0.0
        %v1911 = vsel %vm1879, %v1815, 0.0
        %v1912 = vsel %vm1880, %v1816, 0.0
        %v1913 = vsel %vm1881, %v1817, 0.0
        %v1914 = vsel %vm1882, %v1818, 0.0
        %v1915 = vsel %vm1883, %v1819, 0.0
        %v1916 = vsel %vm1884, %v1820, 0.0
        %v1917 = vsel %vm1885, %v1821, 0.0
        %v1918 = vsel %vm1886, %v1822, 0.0
        %v1919 = vsel %vm1887, %v1823, 0.0
        %v1920 = vsel %vm1888, %v1824, 0.0
        %v1921 = vpack.c.bf16 %v1890, %v1889
        %v1922 = vpack.c.bf16 %v1892, %v1891
        %v1923 = vpack.c.bf16 %v1894, %v1893
        %v1924 = vpack.c.bf16 %v1896, %v1895
        %v1925 = vpack.c.bf16 %v1898, %v1897
        %v1926 = vpack.c.bf16 %v1900, %v1899
        %v1927 = vpack.c.bf16 %v1902, %v1901
        %v1928 = vpack.c.bf16 %v1904, %v1903
        %v1929 = vpack.c.bf16 %v1906, %v1905
        %v1930 = vpack.c.bf16 %v1908, %v1907
        %v1931 = vpack.c.bf16 %v1910, %v1909
        %v1932 = vpack.c.bf16 %v1912, %v1911
        %v1933 = vpack.c.bf16 %v1914, %v1913
        %v1934 = vpack.c.bf16 %v1916, %v1915
        %v1935 = vpack.c.bf16 %v1918, %v1917
        %v1936 = vpack.c.bf16 %v1920, %v1919
        %v1937 = vld [vmem:[#allocation6 + $0x30] sm:$0xff]
        %v1938 = vld [vmem:[#allocation6 + $0x38] sm:$0xf]
        %v1939 = vld [vmem:[#allocation6 + $0x3c] sm:$0xff]
        %v1940 = vld [vmem:[#allocation6 + $0x44] sm:$0xf]
        %v1945 = vunpack.c.l.b16 %v1937
        %v1946 = vunpack.c.h.b16 %v1937
        %v1947 = vunpack.c.l.b16 %v1938
        %v1948 = vunpack.c.l.b16 %v1939
        %v1949 = vunpack.c.h.b16 %v1939
        %v1950 = vunpack.c.l.b16 %v1940
        %v1951 = vpack.c.b16 %v1948, %v1945
        %v1952 = vpack.c.b16 %v1949, %v1946
        %v1953 = vpack.c.b16 %v1950, %v1947
        %v1958 = vsel %vm237, %v1921, 0
        %v1961 = vsel %vm237, %v1922, 0
        %v1964 = vsel %vm237, %v1923, 0
        %v1967 = vsel %vm237, %v1924, 0
        %v1970 = vsel %vm237, %v1925, 0
        %v1973 = vsel %vm237, %v1926, 0
        %v1976 = vsel %vm237, %v1927, 0
        %v1979 = vsel %vm237, %v1928, 0
        %v1982 = vsel %vm237, %v1929, 0
        %v1985 = vsel %vm237, %v1930, 0
        %v1988 = vsel %vm237, %v1931, 0
        %v1991 = vsel %vm237, %v1932, 0
        %v1994 = vsel %vm237, %v1933, 0
        %v1997 = vsel %vm237, %v1934, 0
        %v2000 = vsel %vm237, %v1935, 0
        %v2003 = vsel %vm237, %v1936, 0
        %2005 = vmatprep.subr.bf16.mxu0 %v1952
        %2006 = vmatpush1.bf16.msra.mxu0 %v1951
        %2007 = vmatprep.subr.bf16.mxu0 0
        %2008 = vmatpush1.bf16.msra.mxu0 0
        %2009 = vmatprep.subr.bf16.mxu0 0
        %2010 = vmatpush1.bf16.msra.mxu0 0
        %2011 = vmatprep.subr.bf16.mxu0 0
        %2012 = vmatpush1.bf16.msra.mxu0 0
        %2013 = vmatprep.subr.bf16.mxu0 0
        %2014 = vmatpush1.bf16.msra.mxu0 0
        %2015 = vmatprep.subr.bf16.mxu0 0
        %2016 = vmatpush1.bf16.msra.mxu0 0
        %2017 = vmatprep.subr.bf16.mxu0 0
        %2018 = vmatpush1.bf16.msra.mxu0 0
        %2019 = vmatprep.subr.bf16.mxu0 0
        %2020 = vmatpush1.bf16.msra.mxu0 0
        %2021 = vmatprep.subr.bf16.mxu0 0
        %2022 = vmatpush1.bf16.msra.mxu0 0
        %2023 = vmatprep.subr.bf16.mxu0 0
        %2024 = vmatpush1.bf16.msra.mxu0 0
        %2025 = vmatprep.subr.bf16.mxu0 0
        %2026 = vmatpush1.bf16.msra.mxu0 0
        %2027 = vmatprep.subr.bf16.mxu0 0
        %2028 = vmatpush1.bf16.msra.mxu0 0
        %2029 = vmatprep.subr.bf16.mxu0 0
        %2030 = vmatpush1.bf16.msra.mxu0 0
        %2031 = vmatprep.subr.bf16.mxu0 0
        %2032 = vmatpush1.bf16.msra.mxu0 0
        %2033 = vmatprep.subr.bf16.mxu0 0
        %2034 = vmatpush1.bf16.msra.mxu0 0
        %2035 = vmatprep.subr.bf16.mxu0 0
        %2036 = vmatpush1.bf16.msra.mxu0 0
        %2037 = vmatprep.mubr.bf16.mxu0 0
        %2038 = vmatmul.mubr.bf16.gmra.mrb[0].mxu0 %v1958
        %v2039 = vpop.f32.mrb[0].mxu0
        %v2040 = vadd.f32 0.0, %v2039
        %v2041 = vpop.f32.mrb[0].mxu0
        %v2042 = vadd.f32 0.0, %v2041
        %v2043 = vpop.f32.mrb[0].mxu0
        %v2044 = vadd.f32 0.0, %v2043
        %v2045 = vpop.f32.mrb[0].mxu0
        %v2046 = vadd.f32 0.0, %v2045
        %2047 = vmatprep.mubr.bf16.mxu0 0
        %2048 = vmatmul.mubr.bf16.gmra.mrb[0].mxu0 %v1961
        %v2049 = vpop.f32.mrb[0].mxu0
        %v2050 = vadd.f32 0.0, %v2049
        %v2051 = vpop.f32.mrb[0].mxu0
        %v2052 = vadd.f32 0.0, %v2051
        %v2053 = vpop.f32.mrb[0].mxu0
        %v2054 = vadd.f32 0.0, %v2053
        %v2055 = vpop.f32.mrb[0].mxu0
        %v2056 = vadd.f32 0.0, %v2055
        %2057 = vmatprep.mubr.bf16.mxu0 0
        %2058 = vmatmul.mubr.bf16.gmra.mrb[0].mxu0 %v1964
        %v2059 = vpop.f32.mrb[0].mxu0
        %v2060 = vadd.f32 0.0, %v2059
        %v2061 = vpop.f32.mrb[0].mxu0
        %v2062 = vadd.f32 0.0, %v2061
        %v2063 = vpop.f32.mrb[0].mxu0
        %v2064 = vadd.f32 0.0, %v2063
        %v2065 = vpop.f32.mrb[0].mxu0
        %v2066 = vadd.f32 0.0, %v2065
        %2067 = vmatprep.mubr.bf16.mxu0 0
        %2068 = vmatmul.mubr.bf16.gmra.mrb[0].mxu0 %v1967
        %v2069 = vpop.f32.mrb[0].mxu0
        %v2070 = vadd.f32 0.0, %v2069
        %v2071 = vpop.f32.mrb[0].mxu0
        %v2072 = vadd.f32 0.0, %v2071
        %v2073 = vpop.f32.mrb[0].mxu0
        %v2074 = vadd.f32 0.0, %v2073
        %v2075 = vpop.f32.mrb[0].mxu0
        %v2076 = vadd.f32 0.0, %v2075
        %2077 = vmatprep.mubr.bf16.mxu0 0
        %2078 = vmatmul.mubr.bf16.gmra.mrb[0].mxu0 %v1970
        %v2079 = vpop.f32.mrb[0].mxu0
        %v2080 = vadd.f32 0.0, %v2079
        %v2081 = vpop.f32.mrb[0].mxu0
        %v2082 = vadd.f32 0.0, %v2081
        %v2083 = vpop.f32.mrb[0].mxu0
        %v2084 = vadd.f32 0.0, %v2083
        %v2085 = vpop.f32.mrb[0].mxu0
        %v2086 = vadd.f32 0.0, %v2085
        %2087 = vmatprep.mubr.bf16.mxu0 0
        %2088 = vmatmul.mubr.bf16.gmra.mrb[0].mxu0 %v1973
        %v2089 = vpop.f32.mrb[0].mxu0
        %v2090 = vadd.f32 0.0, %v2089
        %v2091 = vpop.f32.mrb[0].mxu0
        %v2092 = vadd.f32 0.0, %v2091
        %v2093 = vpop.f32.mrb[0].mxu0
        %v2094 = vadd.f32 0.0, %v2093
        %v2095 = vpop.f32.mrb[0].mxu0
        %v2096 = vadd.f32 0.0, %v2095
        %2097 = vmatprep.mubr.bf16.mxu0 0
        %2098 = vmatmul.mubr.bf16.gmra.mrb[0].mxu0 %v1976
        %v2099 = vpop.f32.mrb[0].mxu0
        %v2100 = vadd.f32 0.0, %v2099
        %v2101 = vpop.f32.mrb[0].mxu0
        %v2102 = vadd.f32 0.0, %v2101
        %v2103 = vpop.f32.mrb[0].mxu0
        %v2104 = vadd.f32 0.0, %v2103
        %v2105 = vpop.f32.mrb[0].mxu0
        %v2106 = vadd.f32 0.0, %v2105
        %2107 = vmatprep.mubr.bf16.mxu0 0
        %2108 = vmatmul.mubr.bf16.gmra.mrb[0].mxu0 %v1979
        %v2109 = vpop.f32.mrb[0].mxu0
        %v2110 = vadd.f32 0.0, %v2109
        %v2111 = vpop.f32.mrb[0].mxu0
        %v2112 = vadd.f32 0.0, %v2111
        %v2113 = vpop.f32.mrb[0].mxu0
        %v2114 = vadd.f32 0.0, %v2113
        %v2115 = vpop.f32.mrb[0].mxu0
        %v2116 = vadd.f32 0.0, %v2115
        %2117 = vmatprep.mubr.bf16.mxu0 0
        %2118 = vmatmul.mubr.bf16.gmra.mrb[0].mxu0 %v1982
        %v2119 = vpop.f32.mrb[0].mxu0
        %v2120 = vadd.f32 0.0, %v2119
        %v2121 = vpop.f32.mrb[0].mxu0
        %v2122 = vadd.f32 0.0, %v2121
        %v2123 = vpop.f32.mrb[0].mxu0
        %v2124 = vadd.f32 0.0, %v2123
        %v2125 = vpop.f32.mrb[0].mxu0
        %v2126 = vadd.f32 0.0, %v2125
        %2127 = vmatprep.mubr.bf16.mxu0 0
        %2128 = vmatmul.mubr.bf16.gmra.mrb[0].mxu0 %v1985
        %v2129 = vpop.f32.mrb[0].mxu0
        %v2130 = vadd.f32 0.0, %v2129
        %v2131 = vpop.f32.mrb[0].mxu0
        %v2132 = vadd.f32 0.0, %v2131
        %v2133 = vpop.f32.mrb[0].mxu0
        %v2134 = vadd.f32 0.0, %v2133
        %v2135 = vpop.f32.mrb[0].mxu0
        %v2136 = vadd.f32 0.0, %v2135
        %2137 = vmatprep.mubr.bf16.mxu0 0
        %2138 = vmatmul.mubr.bf16.gmra.mrb[0].mxu0 %v1988
        %v2139 = vpop.f32.mrb[0].mxu0
        %v2140 = vadd.f32 0.0, %v2139
        %v2141 = vpop.f32.mrb[0].mxu0
        %v2142 = vadd.f32 0.0, %v2141
        %v2143 = vpop.f32.mrb[0].mxu0
        %v2144 = vadd.f32 0.0, %v2143
        %v2145 = vpop.f32.mrb[0].mxu0
        %v2146 = vadd.f32 0.0, %v2145
        %2147 = vmatprep.mubr.bf16.mxu0 0
        %2148 = vmatmul.mubr.bf16.gmra.mrb[0].mxu0 %v1991
        %v2149 = vpop.f32.mrb[0].mxu0
        %v2150 = vadd.f32 0.0, %v2149
        %v2151 = vpop.f32.mrb[0].mxu0
        %v2152 = vadd.f32 0.0, %v2151
        %v2153 = vpop.f32.mrb[0].mxu0
        %v2154 = vadd.f32 0.0, %v2153
        %v2155 = vpop.f32.mrb[0].mxu0
        %v2156 = vadd.f32 0.0, %v2155
        %2157 = vmatprep.mubr.bf16.mxu0 0
        %2158 = vmatmul.mubr.bf16.gmra.mrb[0].mxu0 %v1994
        %v2159 = vpop.f32.mrb[0].mxu0
        %v2160 = vadd.f32 0.0, %v2159
        %v2161 = vpop.f32.mrb[0].mxu0
        %v2162 = vadd.f32 0.0, %v2161
        %v2163 = vpop.f32.mrb[0].mxu0
        %v2164 = vadd.f32 0.0, %v2163
        %v2165 = vpop.f32.mrb[0].mxu0
        %v2166 = vadd.f32 0.0, %v2165
        %2167 = vmatprep.mubr.bf16.mxu0 0
        %2168 = vmatmul.mubr.bf16.gmra.mrb[0].mxu0 %v1997
        %v2169 = vpop.f32.mrb[0].mxu0
        %v2170 = vadd.f32 0.0, %v2169
        %v2171 = vpop.f32.mrb[0].mxu0
        %v2172 = vadd.f32 0.0, %v2171
        %v2173 = vpop.f32.mrb[0].mxu0
        %v2174 = vadd.f32 0.0, %v2173
        %v2175 = vpop.f32.mrb[0].mxu0
        %v2176 = vadd.f32 0.0, %v2175
        %2177 = vmatprep.mubr.bf16.mxu0 0
        %2178 = vmatmul.mubr.bf16.gmra.mrb[0].mxu0 %v2000
        %v2179 = vpop.f32.mrb[0].mxu0
        %v2180 = vadd.f32 0.0, %v2179
        %v2181 = vpop.f32.mrb[0].mxu0
        %v2182 = vadd.f32 0.0, %v2181
        %v2183 = vpop.f32.mrb[0].mxu0
        %v2184 = vadd.f32 0.0, %v2183
        %v2185 = vpop.f32.mrb[0].mxu0
        %v2186 = vadd.f32 0.0, %v2185
        %2187 = vmatprep.mubr.bf16.mxu0 0
        %2188 = vmatmul.mubr.bf16.gmra.mrb[0].mxu0 %v2003
        %v2189 = vpop.f32.mrb[0].mxu0
        %v2190 = vadd.f32 0.0, %v2189
        %v2191 = vpop.f32.mrb[0].mxu0
        %v2192 = vadd.f32 0.0, %v2191
        %v2193 = vpop.f32.mrb[0].mxu0
        %v2194 = vadd.f32 0.0, %v2193
        %v2195 = vpop.f32.mrb[0].mxu0
        %v2196 = vadd.f32 0.0, %v2195
        %2197 = vdwg.mxu0
        %2198 = vmatprep.subr.bf16.mxu0 0
        %2199 = vmatpush1.bf16.msra.mxu0 %v1953
        %2200 = vmatprep.subr.bf16.mxu0 0
        %2201 = vmatpush1.bf16.msra.mxu0 0
        %2202 = vmatprep.subr.bf16.mxu0 0
        %2203 = vmatpush1.bf16.msra.mxu0 0
        %2204 = vmatprep.subr.bf16.mxu0 0
        %2205 = vmatpush1.bf16.msra.mxu0 0
        %2206 = vmatprep.subr.bf16.mxu0 0
        %2207 = vmatpush1.bf16.msra.mxu0 0
        %2208 = vmatprep.subr.bf16.mxu0 0
        %2209 = vmatpush1.bf16.msra.mxu0 0
        %2210 = vmatprep.subr.bf16.mxu0 0
        %2211 = vmatpush1.bf16.msra.mxu0 0
        %2212 = vmatprep.subr.bf16.mxu0 0
        %2213 = vmatpush1.bf16.msra.mxu0 0
        %2214 = vmatprep.subr.bf16.mxu0 0
        %2215 = vmatpush1.bf16.msra.mxu0 0
        %2216 = vmatprep.subr.bf16.mxu0 0
        %2217 = vmatpush1.bf16.msra.mxu0 0
        %2218 = vmatprep.subr.bf16.mxu0 0
        %2219 = vmatpush1.bf16.msra.mxu0 0
        %2220 = vmatprep.subr.bf16.mxu0 0
        %2221 = vmatpush1.bf16.msra.mxu0 0
        %2222 = vmatprep.subr.bf16.mxu0 0
        %2223 = vmatpush1.bf16.msra.mxu0 0
        %2224 = vmatprep.subr.bf16.mxu0 0
        %2225 = vmatpush1.bf16.msra.mxu0 0
        %2226 = vmatprep.subr.bf16.mxu0 0
        %2227 = vmatpush1.bf16.msra.mxu0 0
        %2228 = vmatprep.subr.bf16.mxu0 0
        %2229 = vmatpush1.bf16.msra.mxu0 0
        %2230 = vmatprep.mubr.bf16.mxu0 0
        %2231 = vmatmul.mubr.bf16.gmra.mrb[0].mxu0 %v1958
        %v2232 = vpop.f32.mrb[0].mxu0
        %v2233 = vadd.f32 0.0, %v2232
        %v2234 = vpop.f32.mrb[0].mxu0
        %v2235 = vpop.f32.mrb[0].mxu0
        %v2236 = vadd.f32 0.0, %v2235
        %v2237 = vpop.f32.mrb[0].mxu0
        %2238 = vmatprep.mubr.bf16.mxu0 0
        %2239 = vmatmul.mubr.bf16.gmra.mrb[0].mxu0 %v1961
        %v2240 = vpop.f32.mrb[0].mxu0
        %v2241 = vadd.f32 0.0, %v2240
        %v2242 = vpop.f32.mrb[0].mxu0
        %v2243 = vpop.f32.mrb[0].mxu0
        %v2244 = vadd.f32 0.0, %v2243
        %v2245 = vpop.f32.mrb[0].mxu0
        %2246 = vmatprep.mubr.bf16.mxu0 0
        %2247 = vmatmul.mubr.bf16.gmra.mrb[0].mxu0 %v1964
        %v2248 = vpop.f32.mrb[0].mxu0
        %v2249 = vadd.f32 0.0, %v2248
        %v2250 = vpop.f32.mrb[0].mxu0
        %v2251 = vpop.f32.mrb[0].mxu0
        %v2252 = vadd.f32 0.0, %v2251
        %v2253 = vpop.f32.mrb[0].mxu0
        %2254 = vmatprep.mubr.bf16.mxu0 0
        %2255 = vmatmul.mubr.bf16.gmra.mrb[0].mxu0 %v1967
        %v2256 = vpop.f32.mrb[0].mxu0
        %v2257 = vadd.f32 0.0, %v2256
        %v2258 = vpop.f32.mrb[0].mxu0
        %v2259 = vpop.f32.mrb[0].mxu0
        %v2260 = vadd.f32 0.0, %v2259
        %v2261 = vpop.f32.mrb[0].mxu0
        %2262 = vmatprep.mubr.bf16.mxu0 0
        %2263 = vmatmul.mubr.bf16.gmra.mrb[0].mxu0 %v1970
        %v2264 = vpop.f32.mrb[0].mxu0
        %v2265 = vadd.f32 0.0, %v2264
        %v2266 = vpop.f32.mrb[0].mxu0
        %v2267 = vpop.f32.mrb[0].mxu0
        %v2268 = vadd.f32 0.0, %v2267
        %v2269 = vpop.f32.mrb[0].mxu0
        %2270 = vmatprep.mubr.bf16.mxu0 0
        %2271 = vmatmul.mubr.bf16.gmra.mrb[0].mxu0 %v1973
        %v2272 = vpop.f32.mrb[0].mxu0
        %v2273 = vadd.f32 0.0, %v2272
        %v2274 = vpop.f32.mrb[0].mxu0
        %v2275 = vpop.f32.mrb[0].mxu0
        %v2276 = vadd.f32 0.0, %v2275
        %v2277 = vpop.f32.mrb[0].mxu0
        %2278 = vmatprep.mubr.bf16.mxu0 0
        %2279 = vmatmul.mubr.bf16.gmra.mrb[0].mxu0 %v1976
        %v2280 = vpop.f32.mrb[0].mxu0
        %v2281 = vadd.f32 0.0, %v2280
        %v2282 = vpop.f32.mrb[0].mxu0
        %v2283 = vpop.f32.mrb[0].mxu0
        %v2284 = vadd.f32 0.0, %v2283
        %v2285 = vpop.f32.mrb[0].mxu0
        %2286 = vmatprep.mubr.bf16.mxu0 0
        %2287 = vmatmul.mubr.bf16.gmra.mrb[0].mxu0 %v1979
        %v2288 = vpop.f32.mrb[0].mxu0
        %v2289 = vadd.f32 0.0, %v2288
        %v2290 = vpop.f32.mrb[0].mxu0
        %v2291 = vpop.f32.mrb[0].mxu0
        %v2292 = vadd.f32 0.0, %v2291
        %v2293 = vpop.f32.mrb[0].mxu0
        %2294 = vmatprep.mubr.bf16.mxu0 0
        %2295 = vmatmul.mubr.bf16.gmra.mrb[0].mxu0 %v1982
        %v2296 = vpop.f32.mrb[0].mxu0
        %v2297 = vadd.f32 0.0, %v2296
        %v2298 = vpop.f32.mrb[0].mxu0
        %v2299 = vpop.f32.mrb[0].mxu0
        %v2300 = vadd.f32 0.0, %v2299
        %v2301 = vpop.f32.mrb[0].mxu0
        %2302 = vmatprep.mubr.bf16.mxu0 0
        %2303 = vmatmul.mubr.bf16.gmra.mrb[0].mxu0 %v1985
        %v2304 = vpop.f32.mrb[0].mxu0
        %v2305 = vadd.f32 0.0, %v2304
        %v2306 = vpop.f32.mrb[0].mxu0
        %v2307 = vpop.f32.mrb[0].mxu0
        %v2308 = vadd.f32 0.0, %v2307
        %v2309 = vpop.f32.mrb[0].mxu0
        %2310 = vmatprep.mubr.bf16.mxu0 0
        %2311 = vmatmul.mubr.bf16.gmra.mrb[0].mxu0 %v1988
        %v2312 = vpop.f32.mrb[0].mxu0
        %v2313 = vadd.f32 0.0, %v2312
        %v2314 = vpop.f32.mrb[0].mxu0
        %v2315 = vpop.f32.mrb[0].mxu0
        %v2316 = vadd.f32 0.0, %v2315
        %v2317 = vpop.f32.mrb[0].mxu0
        %2318 = vmatprep.mubr.bf16.mxu0 0
        %2319 = vmatmul.mubr.bf16.gmra.mrb[0].mxu0 %v1991
        %v2320 = vpop.f32.mrb[0].mxu0
        %v2321 = vadd.f32 0.0, %v2320
        %v2322 = vpop.f32.mrb[0].mxu0
        %v2323 = vpop.f32.mrb[0].mxu0
        %v2324 = vadd.f32 0.0, %v2323
        %v2325 = vpop.f32.mrb[0].mxu0
        %2326 = vmatprep.mubr.bf16.mxu0 0
        %2327 = vmatmul.mubr.bf16.gmra.mrb[0].mxu0 %v1994
        %v2328 = vpop.f32.mrb[0].mxu0
        %v2329 = vadd.f32 0.0, %v2328
        %v2330 = vpop.f32.mrb[0].mxu0
        %v2331 = vpop.f32.mrb[0].mxu0
        %v2332 = vadd.f32 0.0, %v2331
        %v2333 = vpop.f32.mrb[0].mxu0
        %2334 = vmatprep.mubr.bf16.mxu0 0
        %2335 = vmatmul.mubr.bf16.gmra.mrb[0].mxu0 %v1997
        %v2336 = vpop.f32.mrb[0].mxu0
        %v2337 = vadd.f32 0.0, %v2336
        %v2338 = vpop.f32.mrb[0].mxu0
        %v2339 = vpop.f32.mrb[0].mxu0
        %v2340 = vadd.f32 0.0, %v2339
        %v2341 = vpop.f32.mrb[0].mxu0
        %2342 = vmatprep.mubr.bf16.mxu0 0
        %2343 = vmatmul.mubr.bf16.gmra.mrb[0].mxu0 %v2000
        %v2344 = vpop.f32.mrb[0].mxu0
        %v2345 = vadd.f32 0.0, %v2344
        %v2346 = vpop.f32.mrb[0].mxu0
        %v2347 = vpop.f32.mrb[0].mxu0
        %v2348 = vadd.f32 0.0, %v2347
        %v2349 = vpop.f32.mrb[0].mxu0
        %2350 = vmatprep.mubr.bf16.mxu0 0
        %2351 = vmatmul.mubr.bf16.gmra.mrb[0].mxu0 %v2003
        %v2352 = vpop.f32.mrb[0].mxu0
        %v2353 = vadd.f32 0.0, %v2352
        %v2354 = vpop.f32.mrb[0].mxu0
        %v2355 = vpop.f32.mrb[0].mxu0
        %v2356 = vadd.f32 0.0, %v2355
        %v2357 = vpop.f32.mrb[0].mxu0
        %2358 = vdwg.mxu0
        %v2359 = vadd.f32 %v1474, %v2040
        %v2360 = vadd.f32 %v1476, %v2042
        %v2361 = vadd.f32 %v1667, %v2233
        %v2362 = vadd.f32 %v1478, %v2044
        %v2363 = vadd.f32 %v1480, %v2046
        %v2364 = vadd.f32 %v1670, %v2236
        %v2365 = vadd.f32 %v1484, %v2050
        %v2366 = vadd.f32 %v1486, %v2052
        %v2367 = vadd.f32 %v1675, %v2241
        %v2368 = vadd.f32 %v1488, %v2054
        %v2369 = vadd.f32 %v1490, %v2056
        %v2370 = vadd.f32 %v1678, %v2244
        %v2371 = vadd.f32 %v1494, %v2060
        %v2372 = vadd.f32 %v1496, %v2062
        %v2373 = vadd.f32 %v1683, %v2249
        %v2374 = vadd.f32 %v1498, %v2064
        %v2375 = vadd.f32 %v1500, %v2066
        %v2376 = vadd.f32 %v1686, %v2252
        %v2377 = vadd.f32 %v1504, %v2070
        %v2378 = vadd.f32 %v1506, %v2072
        %v2379 = vadd.f32 %v1691, %v2257
        %v2380 = vadd.f32 %v1508, %v2074
        %v2381 = vadd.f32 %v1510, %v2076
        %v2382 = vadd.f32 %v1694, %v2260
        %v2383 = vadd.f32 %v1514, %v2080
        %v2384 = vadd.f32 %v1516, %v2082
        %v2385 = vadd.f32 %v1699, %v2265
        %v2386 = vadd.f32 %v1518, %v2084
        %v2387 = vadd.f32 %v1520, %v2086
        %v2388 = vadd.f32 %v1702, %v2268
        %v2389 = vadd.f32 %v1524, %v2090
        %v2390 = vadd.f32 %v1526, %v2092
        %v2391 = vadd.f32 %v1707, %v2273
        %v2392 = vadd.f32 %v1528, %v2094
        %v2393 = vadd.f32 %v1530, %v2096
        %v2394 = vadd.f32 %v1710, %v2276
        %v2395 = vadd.f32 %v1534, %v2100
        %v2396 = vadd.f32 %v1536, %v2102
        %v2397 = vadd.f32 %v1715, %v2281
        %v2398 = vadd.f32 %v1538, %v2104
        %v2399 = vadd.f32 %v1540, %v2106
        %v2400 = vadd.f32 %v1718, %v2284
        %v2401 = vadd.f32 %v1544, %v2110
        %v2402 = vadd.f32 %v1546, %v2112
        %v2403 = vadd.f32 %v1723, %v2289
        %v2404 = vadd.f32 %v1548, %v2114
        %v2405 = vadd.f32 %v1550, %v2116
        %v2406 = vadd.f32 %v1726, %v2292
        %v2407 = vadd.f32 %v1554, %v2120
        %v2408 = vadd.f32 %v1556, %v2122
        %v2409 = vadd.f32 %v1731, %v2297
        %v2410 = vadd.f32 %v1558, %v2124
        %v2411 = vadd.f32 %v1560, %v2126
        %v2412 = vadd.f32 %v1734, %v2300
        %v2413 = vadd.f32 %v1564, %v2130
        %v2414 = vadd.f32 %v1566, %v2132
        %v2415 = vadd.f32 %v1739, %v2305
        %v2416 = vadd.f32 %v1568, %v2134
        %v2417 = vadd.f32 %v1570, %v2136
        %v2418 = vadd.f32 %v1742, %v2308
        %v2419 = vadd.f32 %v1574, %v2140
        %v2420 = vadd.f32 %v1576, %v2142
        %v2421 = vadd.f32 %v1747, %v2313
        %v2422 = vadd.f32 %v1578, %v2144
        %v2423 = vadd.f32 %v1580, %v2146
        %v2424 = vadd.f32 %v1750, %v2316
        %v2425 = vadd.f32 %v1584, %v2150
        %v2426 = vadd.f32 %v1586, %v2152
        %v2427 = vadd.f32 %v1755, %v2321
        %v2428 = vadd.f32 %v1588, %v2154
        %v2429 = vadd.f32 %v1590, %v2156
        %v2430 = vadd.f32 %v1758, %v2324
        %v2431 = vadd.f32 %v1594, %v2160
        %v2432 = vadd.f32 %v1596, %v2162
        %v2433 = vadd.f32 %v1763, %v2329
        %v2434 = vadd.f32 %v1598, %v2164
        %v2435 = vadd.f32 %v1600, %v2166
        %v2436 = vadd.f32 %v1766, %v2332
        %v2437 = vadd.f32 %v1604, %v2170
        %v2438 = vadd.f32 %v1606, %v2172
        %v2439 = vadd.f32 %v1771, %v2337
        %v2440 = vadd.f32 %v1608, %v2174
        %v2441 = vadd.f32 %v1610, %v2176
        %v2442 = vadd.f32 %v1774, %v2340
        %v2443 = vadd.f32 %v1614, %v2180
        %v2444 = vadd.f32 %v1616, %v2182
        %v2445 = vadd.f32 %v1779, %v2345
        %v2446 = vadd.f32 %v1618, %v2184
        %v2447 = vadd.f32 %v1620, %v2186
        %v2448 = vadd.f32 %v1782, %v2348
        %v2449 = vadd.f32 %v1624, %v2190
        %v2450 = vadd.f32 %v1626, %v2192
        %v2451 = vadd.f32 %v1787, %v2353
        %v2452 = vadd.f32 %v1628, %v2194
        %v2453 = vadd.f32 %v1630, %v2196
        %v2454 = vadd.f32 %v1790, %v2356
        %v2455 = vld [vmem:[#allocation2 + $0x17] sm:$0xff]
        %v2456 = vld [vmem:[#allocation2 + $0x1f] sm:$0xff]
        %v2457 = vld [vmem:[#allocation2 + $0x27] sm:$0xff]
        %v2458 = vld [vmem:[#allocation2 + $0x2f] sm:$0xff]
        %v2459 = vld [vmem:[#allocation2 + $0x37] sm:$0xff]
        %v2460 = vld [vmem:[#allocation2 + $0x3f] sm:$0xff]
        %v2461 = vld [vmem:[#allocation2 + $0x47] sm:$0xff]
        %v2462 = vld [vmem:[#allocation2 + $0x4f] sm:$0xff]
        %v2463 = vld [vmem:[#allocation2 + $0x57] sm:$0xff]
        %v2464 = vld [vmem:[#allocation2 + $0x5f] sm:$0xff]
        %v2465 = vld [vmem:[#allocation2 + $0x67] sm:$0xff]
        %v2466 = vld [vmem:[#allocation2 + $0x6f] sm:$0xff]
        %v2467 = vld [vmem:[#allocation2 + $0x77] sm:$0xff]
        %v2468 = vld [vmem:[#allocation2 + $0x7f] sm:$0xff]
        %v2469 = vld [vmem:[#allocation2 + $0x87] sm:$0xff]
        %v2470 = vld [vmem:[#allocation2 + $0x8f] sm:$0xff]
        %v2471 = vld [vmem:[#allocation2 + $0x97] sm:$0xff]
        %v2472 = vld [vmem:[#allocation2 + $0x9f] sm:$0xff]
        %v2473 = vld [vmem:[#allocation2 + $0xa7] sm:$0xff]
        %v2474 = vld [vmem:[#allocation2 + $0xaf] sm:$0xff]
        %v2475 = vld [vmem:[#allocation2 + $0xb7] sm:$0xff]
        %v2476 = vld [vmem:[#allocation2 + $0xbf] sm:$0xff]
        %v2477 = vld [vmem:[#allocation2 + $0xc7] sm:$0xff]
        %v2478 = vld [vmem:[#allocation2 + $0xcf] sm:$0xff]
        %v2479 = vld [vmem:[#allocation2 + $0xd7] sm:$0xff]
        %v2480 = vld [vmem:[#allocation2 + $0xdf] sm:$0xff]
        %v2481 = vld [vmem:[#allocation2 + $0xe7] sm:$0xff]
        %v2482 = vld [vmem:[#allocation2 + $0xef] sm:$0xff]
        %v2483 = vld [vmem:[#allocation2 + $0xf7] sm:$0xff]
        %v2484 = vld [vmem:[#allocation2 + $0xff] sm:$0xff]
        %v2485 = vld [vmem:[#allocation2 + $0x107] sm:$0xff]
        %v2486 = vld [vmem:[#allocation2 + $0x10f] sm:$0xff]
        %v2487 = vsel %vm821, %v2455, 0.0
        %v2488 = vsel %vm822, %v2456, 0.0
        %v2489 = vsel %vm823, %v2457, 0.0
        %v2490 = vsel %vm824, %v2458, 0.0
        %v2491 = vsel %vm825, %v2459, 0.0
        %v2492 = vsel %vm826, %v2460, 0.0
        %v2493 = vsel %vm827, %v2461, 0.0
        %v2494 = vsel %vm828, %v2462, 0.0
        %v2495 = vsel %vm829, %v2463, 0.0
        %v2496 = vsel %vm830, %v2464, 0.0
        %v2497 = vsel %vm831, %v2465, 0.0
        %v2498 = vsel %vm832, %v2466, 0.0
        %v2499 = vsel %vm833, %v2467, 0.0
        %v2500 = vsel %vm834, %v2468, 0.0
        %v2501 = vsel %vm835, %v2469, 0.0
        %v2502 = vsel %vm836, %v2470, 0.0
        %v2503 = vsel %vm837, %v2471, 0.0
        %v2504 = vsel %vm838, %v2472, 0.0
        %v2505 = vsel %vm839, %v2473, 0.0
        %v2506 = vsel %vm840, %v2474, 0.0
        %v2507 = vsel %vm841, %v2475, 0.0
        %v2508 = vsel %vm842, %v2476, 0.0
        %v2509 = vsel %vm843, %v2477, 0.0
        %v2510 = vsel %vm844, %v2478, 0.0
        %v2511 = vsel %vm845, %v2479, 0.0
        %v2512 = vsel %vm846, %v2480, 0.0
        %v2513 = vsel %vm847, %v2481, 0.0
        %v2514 = vsel %vm848, %v2482, 0.0
        %v2515 = vsel %vm849, %v2483, 0.0
        %v2516 = vsel %vm850, %v2484, 0.0
        %v2517 = vsel %vm851, %v2485, 0.0
        %v2518 = vsel %vm852, %v2486, 0.0
        %v2519 = vpack.c.bf16 %v2488, %v2487
        %v2520 = vpack.c.bf16 %v2490, %v2489
        %v2521 = vpack.c.bf16 %v2492, %v2491
        %v2522 = vpack.c.bf16 %v2494, %v2493
        %v2523 = vpack.c.bf16 %v2496, %v2495
        %v2524 = vpack.c.bf16 %v2498, %v2497
        %v2525 = vpack.c.bf16 %v2500, %v2499
        %v2526 = vpack.c.bf16 %v2502, %v2501
        %v2527 = vpack.c.bf16 %v2504, %v2503
        %v2528 = vpack.c.bf16 %v2506, %v2505
        %v2529 = vpack.c.bf16 %v2508, %v2507
        %v2530 = vpack.c.bf16 %v2510, %v2509
        %v2531 = vpack.c.bf16 %v2512, %v2511
        %v2532 = vpack.c.bf16 %v2514, %v2513
        %v2533 = vpack.c.bf16 %v2516, %v2515
        %v2534 = vpack.c.bf16 %v2518, %v2517
        %v2535 = vld [vmem:[#allocation6 + $0x48] sm:$0xff]
        %v2536 = vld [vmem:[#allocation6 + $0x50] sm:$0xf]
        %v2537 = vld [vmem:[#allocation6 + $0x54] sm:$0xff]
        %v2538 = vld [vmem:[#allocation6 + $0x5c] sm:$0xf]
        %v2543 = vunpack.c.l.b16 %v2535
        %v2544 = vunpack.c.h.b16 %v2535
        %v2545 = vunpack.c.l.b16 %v2536
        %v2546 = vunpack.c.l.b16 %v2537
        %v2547 = vunpack.c.h.b16 %v2537
        %v2548 = vunpack.c.l.b16 %v2538
        %v2549 = vpack.c.b16 %v2546, %v2543
        %v2550 = vpack.c.b16 %v2547, %v2544
        %v2551 = vpack.c.b16 %v2548, %v2545
        %v2556 = vsel %vm237, %v2519, 0
        %v2559 = vsel %vm237, %v2520, 0
        %v2562 = vsel %vm237, %v2521, 0
        %v2565 = vsel %vm237, %v2522, 0
        %v2568 = vsel %vm237, %v2523, 0
        %v2571 = vsel %vm237, %v2524, 0
        %v2574 = vsel %vm237, %v2525, 0
        %v2577 = vsel %vm237, %v2526, 0
        %v2580 = vsel %vm237, %v2527, 0
        %v2583 = vsel %vm237, %v2528, 0
        %v2586 = vsel %vm237, %v2529, 0
        %v2589 = vsel %vm237, %v2530, 0
        %v2592 = vsel %vm237, %v2531, 0
        %v2595 = vsel %vm237, %v2532, 0
        %v2598 = vsel %vm237, %v2533, 0
        %v2601 = vsel %vm237, %v2534, 0
        %2603 = vmatprep.subr.bf16.mxu0 %v2550
        %2604 = vmatpush1.bf16.msra.mxu0 %v2549
        %2605 = vmatprep.subr.bf16.mxu0 0
        %2606 = vmatpush1.bf16.msra.mxu0 0
        %2607 = vmatprep.subr.bf16.mxu0 0
        %2608 = vmatpush1.bf16.msra.mxu0 0
        %2609 = vmatprep.subr.bf16.mxu0 0
        %2610 = vmatpush1.bf16.msra.mxu0 0
        %2611 = vmatprep.subr.bf16.mxu0 0
        %2612 = vmatpush1.bf16.msra.mxu0 0
        %2613 = vmatprep.subr.bf16.mxu0 0
        %2614 = vmatpush1.bf16.msra.mxu0 0
        %2615 = vmatprep.subr.bf16.mxu0 0
        %2616 = vmatpush1.bf16.msra.mxu0 0
        %2617 = vmatprep.subr.bf16.mxu0 0
        %2618 = vmatpush1.bf16.msra.mxu0 0
        %2619 = vmatprep.subr.bf16.mxu0 0
        %2620 = vmatpush1.bf16.msra.mxu0 0
        %2621 = vmatprep.subr.bf16.mxu0 0
        %2622 = vmatpush1.bf16.msra.mxu0 0
        %2623 = vmatprep.subr.bf16.mxu0 0
        %2624 = vmatpush1.bf16.msra.mxu0 0
        %2625 = vmatprep.subr.bf16.mxu0 0
        %2626 = vmatpush1.bf16.msra.mxu0 0
        %2627 = vmatprep.subr.bf16.mxu0 0
        %2628 = vmatpush1.bf16.msra.mxu0 0
        %2629 = vmatprep.subr.bf16.mxu0 0
        %2630 = vmatpush1.bf16.msra.mxu0 0
        %2631 = vmatprep.subr.bf16.mxu0 0
        %2632 = vmatpush1.bf16.msra.mxu0 0
        %2633 = vmatprep.subr.bf16.mxu0 0
        %2634 = vmatpush1.bf16.msra.mxu0 0
        %2635 = vmatprep.mubr.bf16.mxu0 0
        %2636 = vmatmul.mubr.bf16.gmra.mrb[0].mxu0 %v2556
        %v2637 = vpop.f32.mrb[0].mxu0
        %v2638 = vadd.f32 0.0, %v2637
        %v2639 = vpop.f32.mrb[0].mxu0
        %v2640 = vadd.f32 0.0, %v2639
        %v2641 = vpop.f32.mrb[0].mxu0
        %v2642 = vadd.f32 0.0, %v2641
        %v2643 = vpop.f32.mrb[0].mxu0
        %v2644 = vadd.f32 0.0, %v2643
        %2645 = vmatprep.mubr.bf16.mxu0 0
        %2646 = vmatmul.mubr.bf16.gmra.mrb[0].mxu0 %v2559
        %v2647 = vpop.f32.mrb[0].mxu0
        %v2648 = vadd.f32 0.0, %v2647
        %v2649 = vpop.f32.mrb[0].mxu0
        %v2650 = vadd.f32 0.0, %v2649
        %v2651 = vpop.f32.mrb[0].mxu0
        %v2652 = vadd.f32 0.0, %v2651
        %v2653 = vpop.f32.mrb[0].mxu0
        %v2654 = vadd.f32 0.0, %v2653
        %2655 = vmatprep.mubr.bf16.mxu0 0
        %2656 = vmatmul.mubr.bf16.gmra.mrb[0].mxu0 %v2562
        %v2657 = vpop.f32.mrb[0].mxu0
        %v2658 = vadd.f32 0.0, %v2657
        %v2659 = vpop.f32.mrb[0].mxu0
        %v2660 = vadd.f32 0.0, %v2659
        %v2661 = vpop.f32.mrb[0].mxu0
        %v2662 = vadd.f32 0.0, %v2661
        %v2663 = vpop.f32.mrb[0].mxu0
        %v2664 = vadd.f32 0.0, %v2663
        %2665 = vmatprep.mubr.bf16.mxu0 0
        %2666 = vmatmul.mubr.bf16.gmra.mrb[0].mxu0 %v2565
        %v2667 = vpop.f32.mrb[0].mxu0
        %v2668 = vadd.f32 0.0, %v2667
        %v2669 = vpop.f32.mrb[0].mxu0
        %v2670 = vadd.f32 0.0, %v2669
        %v2671 = vpop.f32.mrb[0].mxu0
        %v2672 = vadd.f32 0.0, %v2671
        %v2673 = vpop.f32.mrb[0].mxu0
        %v2674 = vadd.f32 0.0, %v2673
        %2675 = vmatprep.mubr.bf16.mxu0 0
        %2676 = vmatmul.mubr.bf16.gmra.mrb[0].mxu0 %v2568
        %v2677 = vpop.f32.mrb[0].mxu0
        %v2678 = vadd.f32 0.0, %v2677
        %v2679 = vpop.f32.mrb[0].mxu0
        %v2680 = vadd.f32 0.0, %v2679
        %v2681 = vpop.f32.mrb[0].mxu0
        %v2682 = vadd.f32 0.0, %v2681
        %v2683 = vpop.f32.mrb[0].mxu0
        %v2684 = vadd.f32 0.0, %v2683
        %2685 = vmatprep.mubr.bf16.mxu0 0
        %2686 = vmatmul.mubr.bf16.gmra.mrb[0].mxu0 %v2571
        %v2687 = vpop.f32.mrb[0].mxu0
        %v2688 = vadd.f32 0.0, %v2687
        %v2689 = vpop.f32.mrb[0].mxu0
        %v2690 = vadd.f32 0.0, %v2689
        %v2691 = vpop.f32.mrb[0].mxu0
        %v2692 = vadd.f32 0.0, %v2691
        %v2693 = vpop.f32.mrb[0].mxu0
        %v2694 = vadd.f32 0.0, %v2693
        %2695 = vmatprep.mubr.bf16.mxu0 0
        %2696 = vmatmul.mubr.bf16.gmra.mrb[0].mxu0 %v2574
        %v2697 = vpop.f32.mrb[0].mxu0
        %v2698 = vadd.f32 0.0, %v2697
        %v2699 = vpop.f32.mrb[0].mxu0
        %v2700 = vadd.f32 0.0, %v2699
        %v2701 = vpop.f32.mrb[0].mxu0
        %v2702 = vadd.f32 0.0, %v2701
        %v2703 = vpop.f32.mrb[0].mxu0
        %v2704 = vadd.f32 0.0, %v2703
        %2705 = vmatprep.mubr.bf16.mxu0 0
        %2706 = vmatmul.mubr.bf16.gmra.mrb[0].mxu0 %v2577
        %v2707 = vpop.f32.mrb[0].mxu0
        %v2708 = vadd.f32 0.0, %v2707
        %v2709 = vpop.f32.mrb[0].mxu0
        %v2710 = vadd.f32 0.0, %v2709
        %v2711 = vpop.f32.mrb[0].mxu0
        %v2712 = vadd.f32 0.0, %v2711
        %v2713 = vpop.f32.mrb[0].mxu0
        %v2714 = vadd.f32 0.0, %v2713
        %2715 = vmatprep.mubr.bf16.mxu0 0
        %2716 = vmatmul.mubr.bf16.gmra.mrb[0].mxu0 %v2580
        %v2717 = vpop.f32.mrb[0].mxu0
        %v2718 = vadd.f32 0.0, %v2717
        %v2719 = vpop.f32.mrb[0].mxu0
        %v2720 = vadd.f32 0.0, %v2719
        %v2721 = vpop.f32.mrb[0].mxu0
        %v2722 = vadd.f32 0.0, %v2721
        %v2723 = vpop.f32.mrb[0].mxu0
        %v2724 = vadd.f32 0.0, %v2723
        %2725 = vmatprep.mubr.bf16.mxu0 0
        %2726 = vmatmul.mubr.bf16.gmra.mrb[0].mxu0 %v2583
        %v2727 = vpop.f32.mrb[0].mxu0
        %v2728 = vadd.f32 0.0, %v2727
        %v2729 = vpop.f32.mrb[0].mxu0
        %v2730 = vadd.f32 0.0, %v2729
        %v2731 = vpop.f32.mrb[0].mxu0
        %v2732 = vadd.f32 0.0, %v2731
        %v2733 = vpop.f32.mrb[0].mxu0
        %v2734 = vadd.f32 0.0, %v2733
        %2735 = vmatprep.mubr.bf16.mxu0 0
        %2736 = vmatmul.mubr.bf16.gmra.mrb[0].mxu0 %v2586
        %v2737 = vpop.f32.mrb[0].mxu0
        %v2738 = vadd.f32 0.0, %v2737
        %v2739 = vpop.f32.mrb[0].mxu0
        %v2740 = vadd.f32 0.0, %v2739
        %v2741 = vpop.f32.mrb[0].mxu0
        %v2742 = vadd.f32 0.0, %v2741
        %v2743 = vpop.f32.mrb[0].mxu0
        %v2744 = vadd.f32 0.0, %v2743
        %2745 = vmatprep.mubr.bf16.mxu0 0
        %2746 = vmatmul.mubr.bf16.gmra.mrb[0].mxu0 %v2589
        %v2747 = vpop.f32.mrb[0].mxu0
        %v2748 = vadd.f32 0.0, %v2747
        %v2749 = vpop.f32.mrb[0].mxu0
        %v2750 = vadd.f32 0.0, %v2749
        %v2751 = vpop.f32.mrb[0].mxu0
        %v2752 = vadd.f32 0.0, %v2751
        %v2753 = vpop.f32.mrb[0].mxu0
        %v2754 = vadd.f32 0.0, %v2753
        %2755 = vmatprep.mubr.bf16.mxu0 0
        %2756 = vmatmul.mubr.bf16.gmra.mrb[0].mxu0 %v2592
        %v2757 = vpop.f32.mrb[0].mxu0
        %v2758 = vadd.f32 0.0, %v2757
        %v2759 = vpop.f32.mrb[0].mxu0
        %v2760 = vadd.f32 0.0, %v2759
        %v2761 = vpop.f32.mrb[0].mxu0
        %v2762 = vadd.f32 0.0, %v2761
        %v2763 = vpop.f32.mrb[0].mxu0
        %v2764 = vadd.f32 0.0, %v2763
        %2765 = vmatprep.mubr.bf16.mxu0 0
        %2766 = vmatmul.mubr.bf16.gmra.mrb[0].mxu0 %v2595
        %v2767 = vpop.f32.mrb[0].mxu0
        %v2768 = vadd.f32 0.0, %v2767
        %v2769 = vpop.f32.mrb[0].mxu0
        %v2770 = vadd.f32 0.0, %v2769
        %v2771 = vpop.f32.mrb[0].mxu0
        %v2772 = vadd.f32 0.0, %v2771
        %v2773 = vpop.f32.mrb[0].mxu0
        %v2774 = vadd.f32 0.0, %v2773
        %2775 = vmatprep.mubr.bf16.mxu0 0
        %2776 = vmatmul.mubr.bf16.gmra.mrb[0].mxu0 %v2598
        %v2777 = vpop.f32.mrb[0].mxu0
        %v2778 = vadd.f32 0.0, %v2777
        %v2779 = vpop.f32.mrb[0].mxu0
        %v2780 = vadd.f32 0.0, %v2779
        %v2781 = vpop.f32.mrb[0].mxu0
        %v2782 = vadd.f32 0.0, %v2781
        %v2783 = vpop.f32.mrb[0].mxu0
        %v2784 = vadd.f32 0.0, %v2783
        %2785 = vmatprep.mubr.bf16.mxu0 0
        %2786 = vmatmul.mubr.bf16.gmra.mrb[0].mxu0 %v2601
        %v2787 = vpop.f32.mrb[0].mxu0
        %v2788 = vadd.f32 0.0, %v2787
        %v2789 = vpop.f32.mrb[0].mxu0
        %v2790 = vadd.f32 0.0, %v2789
        %v2791 = vpop.f32.mrb[0].mxu0
        %v2792 = vadd.f32 0.0, %v2791
        %v2793 = vpop.f32.mrb[0].mxu0
        %v2794 = vadd.f32 0.0, %v2793
        %2795 = vdwg.mxu0
        %2796 = vmatprep.subr.bf16.mxu0 0
        %2797 = vmatpush1.bf16.msra.mxu0 %v2551
        %2798 = vmatprep.subr.bf16.mxu0 0
        %2799 = vmatpush1.bf16.msra.mxu0 0
        %2800 = vmatprep.subr.bf16.mxu0 0
        %2801 = vmatpush1.bf16.msra.mxu0 0
        %2802 = vmatprep.subr.bf16.mxu0 0
        %2803 = vmatpush1.bf16.msra.mxu0 0
        %2804 = vmatprep.subr.bf16.mxu0 0
        %2805 = vmatpush1.bf16.msra.mxu0 0
        %2806 = vmatprep.subr.bf16.mxu0 0
        %2807 = vmatpush1.bf16.msra.mxu0 0
        %2808 = vmatprep.subr.bf16.mxu0 0
        %2809 = vmatpush1.bf16.msra.mxu0 0
        %2810 = vmatprep.subr.bf16.mxu0 0
        %2811 = vmatpush1.bf16.msra.mxu0 0
        %2812 = vmatprep.subr.bf16.mxu0 0
        %2813 = vmatpush1.bf16.msra.mxu0 0
        %2814 = vmatprep.subr.bf16.mxu0 0
        %2815 = vmatpush1.bf16.msra.mxu0 0
        %2816 = vmatprep.subr.bf16.mxu0 0
        %2817 = vmatpush1.bf16.msra.mxu0 0
        %2818 = vmatprep.subr.bf16.mxu0 0
        %2819 = vmatpush1.bf16.msra.mxu0 0
        %2820 = vmatprep.subr.bf16.mxu0 0
        %2821 = vmatpush1.bf16.msra.mxu0 0
        %2822 = vmatprep.subr.bf16.mxu0 0
        %2823 = vmatpush1.bf16.msra.mxu0 0
        %2824 = vmatprep.subr.bf16.mxu0 0
        %2825 = vmatpush1.bf16.msra.mxu0 0
        %2826 = vmatprep.subr.bf16.mxu0 0
        %2827 = vmatpush1.bf16.msra.mxu0 0
        %2828 = vmatprep.mubr.bf16.mxu0 0
        %2829 = vmatmul.mubr.bf16.gmra.mrb[0].mxu0 %v2556
        %v2830 = vpop.f32.mrb[0].mxu0
        %v2831 = vadd.f32 0.0, %v2830
        %v2832 = vpop.f32.mrb[0].mxu0
        %v2833 = vpop.f32.mrb[0].mxu0
        %v2834 = vadd.f32 0.0, %v2833
        %v2835 = vpop.f32.mrb[0].mxu0
        %2836 = vmatprep.mubr.bf16.mxu0 0
        %2837 = vmatmul.mubr.bf16.gmra.mrb[0].mxu0 %v2559
        %v2838 = vpop.f32.mrb[0].mxu0
        %v2839 = vadd.f32 0.0, %v2838
        %v2840 = vpop.f32.mrb[0].mxu0
        %v2841 = vpop.f32.mrb[0].mxu0
        %v2842 = vadd.f32 0.0, %v2841
        %v2843 = vpop.f32.mrb[0].mxu0
        %2844 = vmatprep.mubr.bf16.mxu0 0
        %2845 = vmatmul.mubr.bf16.gmra.mrb[0].mxu0 %v2562
        %v2846 = vpop.f32.mrb[0].mxu0
        %v2847 = vadd.f32 0.0, %v2846
        %v2848 = vpop.f32.mrb[0].mxu0
        %v2849 = vpop.f32.mrb[0].mxu0
        %v2850 = vadd.f32 0.0, %v2849
        %v2851 = vpop.f32.mrb[0].mxu0
        %2852 = vmatprep.mubr.bf16.mxu0 0
        %2853 = vmatmul.mubr.bf16.gmra.mrb[0].mxu0 %v2565
        %v2854 = vpop.f32.mrb[0].mxu0
        %v2855 = vadd.f32 0.0, %v2854
        %v2856 = vpop.f32.mrb[0].mxu0
        %v2857 = vpop.f32.mrb[0].mxu0
        %v2858 = vadd.f32 0.0, %v2857
        %v2859 = vpop.f32.mrb[0].mxu0
        %2860 = vmatprep.mubr.bf16.mxu0 0
        %2861 = vmatmul.mubr.bf16.gmra.mrb[0].mxu0 %v2568
        %v2862 = vpop.f32.mrb[0].mxu0
        %v2863 = vadd.f32 0.0, %v2862
        %v2864 = vpop.f32.mrb[0].mxu0
        %v2865 = vpop.f32.mrb[0].mxu0
        %v2866 = vadd.f32 0.0, %v2865
        %v2867 = vpop.f32.mrb[0].mxu0
        %2868 = vmatprep.mubr.bf16.mxu0 0
        %2869 = vmatmul.mubr.bf16.gmra.mrb[0].mxu0 %v2571
        %v2870 = vpop.f32.mrb[0].mxu0
        %v2871 = vadd.f32 0.0, %v2870
        %v2872 = vpop.f32.mrb[0].mxu0
        %v2873 = vpop.f32.mrb[0].mxu0
        %v2874 = vadd.f32 0.0, %v2873
        %v2875 = vpop.f32.mrb[0].mxu0
        %2876 = vmatprep.mubr.bf16.mxu0 0
        %2877 = vmatmul.mubr.bf16.gmra.mrb[0].mxu0 %v2574
        %v2878 = vpop.f32.mrb[0].mxu0
        %v2879 = vadd.f32 0.0, %v2878
        %v2880 = vpop.f32.mrb[0].mxu0
        %v2881 = vpop.f32.mrb[0].mxu0
        %v2882 = vadd.f32 0.0, %v2881
        %v2883 = vpop.f32.mrb[0].mxu0
        %2884 = vmatprep.mubr.bf16.mxu0 0
        %2885 = vmatmul.mubr.bf16.gmra.mrb[0].mxu0 %v2577
        %v2886 = vpop.f32.mrb[0].mxu0
        %v2887 = vadd.f32 0.0, %v2886
        %v2888 = vpop.f32.mrb[0].mxu0
        %v2889 = vpop.f32.mrb[0].mxu0
        %v2890 = vadd.f32 0.0, %v2889
        %v2891 = vpop.f32.mrb[0].mxu0
        %2892 = vmatprep.mubr.bf16.mxu0 0
        %2893 = vmatmul.mubr.bf16.gmra.mrb[0].mxu0 %v2580
        %v2894 = vpop.f32.mrb[0].mxu0
        %v2895 = vadd.f32 0.0, %v2894
        %v2896 = vpop.f32.mrb[0].mxu0
        %v2897 = vpop.f32.mrb[0].mxu0
        %v2898 = vadd.f32 0.0, %v2897
        %v2899 = vpop.f32.mrb[0].mxu0
        %2900 = vmatprep.mubr.bf16.mxu0 0
        %2901 = vmatmul.mubr.bf16.gmra.mrb[0].mxu0 %v2583
        %v2902 = vpop.f32.mrb[0].mxu0
        %v2903 = vadd.f32 0.0, %v2902
        %v2904 = vpop.f32.mrb[0].mxu0
        %v2905 = vpop.f32.mrb[0].mxu0
        %v2906 = vadd.f32 0.0, %v2905
        %v2907 = vpop.f32.mrb[0].mxu0
        %2908 = vmatprep.mubr.bf16.mxu0 0
        %2909 = vmatmul.mubr.bf16.gmra.mrb[0].mxu0 %v2586
        %v2910 = vpop.f32.mrb[0].mxu0
        %v2911 = vadd.f32 0.0, %v2910
        %v2912 = vpop.f32.mrb[0].mxu0
        %v2913 = vpop.f32.mrb[0].mxu0
        %v2914 = vadd.f32 0.0, %v2913
        %v2915 = vpop.f32.mrb[0].mxu0
        %2916 = vmatprep.mubr.bf16.mxu0 0
        %2917 = vmatmul.mubr.bf16.gmra.mrb[0].mxu0 %v2589
        %v2918 = vpop.f32.mrb[0].mxu0
        %v2919 = vadd.f32 0.0, %v2918
        %v2920 = vpop.f32.mrb[0].mxu0
        %v2921 = vpop.f32.mrb[0].mxu0
        %v2922 = vadd.f32 0.0, %v2921
        %v2923 = vpop.f32.mrb[0].mxu0
        %2924 = vmatprep.mubr.bf16.mxu0 0
        %2925 = vmatmul.mubr.bf16.gmra.mrb[0].mxu0 %v2592
        %v2926 = vpop.f32.mrb[0].mxu0
        %v2927 = vadd.f32 0.0, %v2926
        %v2928 = vpop.f32.mrb[0].mxu0
        %v2929 = vpop.f32.mrb[0].mxu0
        %v2930 = vadd.f32 0.0, %v2929
        %v2931 = vpop.f32.mrb[0].mxu0
        %2932 = vmatprep.mubr.bf16.mxu0 0
        %2933 = vmatmul.mubr.bf16.gmra.mrb[0].mxu0 %v2595
        %v2934 = vpop.f32.mrb[0].mxu0
        %v2935 = vadd.f32 0.0, %v2934
        %v2936 = vpop.f32.mrb[0].mxu0
        %v2937 = vpop.f32.mrb[0].mxu0
        %v2938 = vadd.f32 0.0, %v2937
        %v2939 = vpop.f32.mrb[0].mxu0
        %2940 = vmatprep.mubr.bf16.mxu0 0
        %2941 = vmatmul.mubr.bf16.gmra.mrb[0].mxu0 %v2598
        %v2942 = vpop.f32.mrb[0].mxu0
        %v2943 = vadd.f32 0.0, %v2942
        %v2944 = vpop.f32.mrb[0].mxu0
        %v2945 = vpop.f32.mrb[0].mxu0
        %v2946 = vadd.f32 0.0, %v2945
        %v2947 = vpop.f32.mrb[0].mxu0
        %2948 = vmatprep.mubr.bf16.mxu0 0
        %2949 = vmatmul.mubr.bf16.gmra.mrb[0].mxu0 %v2601
        %v2950 = vpop.f32.mrb[0].mxu0
        %v2951 = vadd.f32 0.0, %v2950
        %v2952 = vpop.f32.mrb[0].mxu0
        %v2953 = vpop.f32.mrb[0].mxu0
        %v2954 = vadd.f32 0.0, %v2953
        %v2955 = vpop.f32.mrb[0].mxu0
        %2956 = vdwg.mxu0
        %v2957 = vadd.f32 %v2359, %v2638
        %v2958 = vadd.f32 %v2360, %v2640
        %v2959 = vadd.f32 %v2361, %v2831
        %v2960 = vadd.f32 %v2362, %v2642
        %v2961 = vadd.f32 %v2363, %v2644
        %v2962 = vadd.f32 %v2364, %v2834
        %v2963 = vadd.f32 %v2365, %v2648
        %v2964 = vadd.f32 %v2366, %v2650
        %v2965 = vadd.f32 %v2367, %v2839
        %v2966 = vadd.f32 %v2368, %v2652
        %v2967 = vadd.f32 %v2369, %v2654
        %v2968 = vadd.f32 %v2370, %v2842
        %v2969 = vadd.f32 %v2371, %v2658
        %v2970 = vadd.f32 %v2372, %v2660
        %v2971 = vadd.f32 %v2373, %v2847
        %v2972 = vadd.f32 %v2374, %v2662
        %v2973 = vadd.f32 %v2375, %v2664
        %v2974 = vadd.f32 %v2376, %v2850
        %v2975 = vadd.f32 %v2377, %v2668
        %v2976 = vadd.f32 %v2378, %v2670
        %v2977 = vadd.f32 %v2379, %v2855
        %v2978 = vadd.f32 %v2380, %v2672
        %v2979 = vadd.f32 %v2381, %v2674
        %v2980 = vadd.f32 %v2382, %v2858
        %v2981 = vadd.f32 %v2383, %v2678
        %v2982 = vadd.f32 %v2384, %v2680
        %v2983 = vadd.f32 %v2385, %v2863
        %v2984 = vadd.f32 %v2386, %v2682
        %v2985 = vadd.f32 %v2387, %v2684
        %v2986 = vadd.f32 %v2388, %v2866
        %v2987 = vadd.f32 %v2389, %v2688
        %v2988 = vadd.f32 %v2390, %v2690
        %v2989 = vadd.f32 %v2391, %v2871
        %v2990 = vadd.f32 %v2392, %v2692
        %v2991 = vadd.f32 %v2393, %v2694
        %v2992 = vadd.f32 %v2394, %v2874
        %v2993 = vadd.f32 %v2395, %v2698
        %v2994 = vadd.f32 %v2396, %v2700
        %v2995 = vadd.f32 %v2397, %v2879
        %v2996 = vadd.f32 %v2398, %v2702
        %v2997 = vadd.f32 %v2399, %v2704
        %v2998 = vadd.f32 %v2400, %v2882
        %v2999 = vadd.f32 %v2401, %v2708
        %v3000 = vadd.f32 %v2402, %v2710
        %v3001 = vadd.f32 %v2403, %v2887
        %v3002 = vadd.f32 %v2404, %v2712
        %v3003 = vadd.f32 %v2405, %v2714
        %v3004 = vadd.f32 %v2406, %v2890
        %v3005 = vadd.f32 %v2407, %v2718
        %v3006 = vadd.f32 %v2408, %v2720
        %v3007 = vadd.f32 %v2409, %v2895
        %v3008 = vadd.f32 %v2410, %v2722
        %v3009 = vadd.f32 %v2411, %v2724
        %v3010 = vadd.f32 %v2412, %v2898
        %v3011 = vadd.f32 %v2413, %v2728
        %v3012 = vadd.f32 %v2414, %v2730
        %v3013 = vadd.f32 %v2415, %v2903
        %v3014 = vadd.f32 %v2416, %v2732
        %v3015 = vadd.f32 %v2417, %v2734
        %v3016 = vadd.f32 %v2418, %v2906
        %v3017 = vadd.f32 %v2419, %v2738
        %v3018 = vadd.f32 %v2420, %v2740
        %v3019 = vadd.f32 %v2421, %v2911
        %v3020 = vadd.f32 %v2422, %v2742
        %v3021 = vadd.f32 %v2423, %v2744
        %v3022 = vadd.f32 %v2424, %v2914
        %v3023 = vadd.f32 %v2425, %v2748
        %v3024 = vadd.f32 %v2426, %v2750
        %v3025 = vadd.f32 %v2427, %v2919
        %v3026 = vadd.f32 %v2428, %v2752
        %v3027 = vadd.f32 %v2429, %v2754
        %v3028 = vadd.f32 %v2430, %v2922
        %v3029 = vadd.f32 %v2431, %v2758
        %v3030 = vadd.f32 %v2432, %v2760
        %v3031 = vadd.f32 %v2433, %v2927
        %v3032 = vadd.f32 %v2434, %v2762
        %v3033 = vadd.f32 %v2435, %v2764
        %v3034 = vadd.f32 %v2436, %v2930
        %v3035 = vadd.f32 %v2437, %v2768
        %v3036 = vadd.f32 %v2438, %v2770
        %v3037 = vadd.f32 %v2439, %v2935
        %v3038 = vadd.f32 %v2440, %v2772
        %v3039 = vadd.f32 %v2441, %v2774
        %v3040 = vadd.f32 %v2442, %v2938
        %v3041 = vadd.f32 %v2443, %v2778
        %v3042 = vadd.f32 %v2444, %v2780
        %v3043 = vadd.f32 %v2445, %v2943
        %v3044 = vadd.f32 %v2446, %v2782
        %v3045 = vadd.f32 %v2447, %v2784
        %v3046 = vadd.f32 %v2448, %v2946
        %v3047 = vadd.f32 %v2449, %v2788
        %v3048 = vadd.f32 %v2450, %v2790
        %v3049 = vadd.f32 %v2451, %v2951
        %v3050 = vadd.f32 %v2452, %v2792
        %v3051 = vadd.f32 %v2453, %v2794
        %v3052 = vadd.f32 %v2454, %v2954
        %v3053 = vld [vmem:[#allocation2 + $0x18] sm:$0xff]
        %v3054 = vld [vmem:[#allocation2 + $0x20] sm:$0xff]
        %v3055 = vld [vmem:[#allocation2 + $0x28] sm:$0xff]
        %v3056 = vld [vmem:[#allocation2 + $0x30] sm:$0xff]
        %v3057 = vld [vmem:[#allocation2 + $0x38] sm:$0xff]
        %v3058 = vld [vmem:[#allocation2 + $0x40] sm:$0xff]
        %v3059 = vld [vmem:[#allocation2 + $0x48] sm:$0xff]
        %v3060 = vld [vmem:[#allocation2 + $0x50] sm:$0xff]
        %v3061 = vld [vmem:[#allocation2 + $0x58] sm:$0xff]
        %v3062 = vld [vmem:[#allocation2 + $0x60] sm:$0xff]
        %v3063 = vld [vmem:[#allocation2 + $0x68] sm:$0xff]
        %v3064 = vld [vmem:[#allocation2 + $0x70] sm:$0xff]
        %v3065 = vld [vmem:[#allocation2 + $0x78] sm:$0xff]
        %v3066 = vld [vmem:[#allocation2 + $0x80] sm:$0xff]
        %v3067 = vld [vmem:[#allocation2 + $0x88] sm:$0xff]
        %v3068 = vld [vmem:[#allocation2 + $0x90] sm:$0xff]
        %v3069 = vld [vmem:[#allocation2 + $0x98] sm:$0xff]
        %v3070 = vld [vmem:[#allocation2 + $0xa0] sm:$0xff]
        %v3071 = vld [vmem:[#allocation2 + $0xa8] sm:$0xff]
        %v3072 = vld [vmem:[#allocation2 + $0xb0] sm:$0xff]
        %v3073 = vld [vmem:[#allocation2 + $0xb8] sm:$0xff]
        %v3074 = vld [vmem:[#allocation2 + $0xc0] sm:$0xff]
        %v3075 = vld [vmem:[#allocation2 + $0xc8] sm:$0xff]
        %v3076 = vld [vmem:[#allocation2 + $0xd0] sm:$0xff]
        %v3077 = vld [vmem:[#allocation2 + $0xd8] sm:$0xff]
        %v3078 = vld [vmem:[#allocation2 + $0xe0] sm:$0xff]
        %v3079 = vld [vmem:[#allocation2 + $0xe8] sm:$0xff]
        %v3080 = vld [vmem:[#allocation2 + $0xf0] sm:$0xff]
        %v3081 = vld [vmem:[#allocation2 + $0xf8] sm:$0xff]
        %v3082 = vld [vmem:[#allocation2 + $0x100] sm:$0xff]
        %v3083 = vld [vmem:[#allocation2 + $0x108] sm:$0xff]
        %v3084 = vld [vmem:[#allocation2 + $0x110] sm:$0xff]
        %v3085 = vpack.c.bf16 %v3054, %v3053
        %v3086 = vpack.c.bf16 %v3056, %v3055
        %v3087 = vpack.c.bf16 %v3058, %v3057
        %v3088 = vpack.c.bf16 %v3060, %v3059
        %v3089 = vpack.c.bf16 %v3062, %v3061
        %v3090 = vpack.c.bf16 %v3064, %v3063
        %v3091 = vpack.c.bf16 %v3066, %v3065
        %v3092 = vpack.c.bf16 %v3068, %v3067
        %v3093 = vpack.c.bf16 %v3070, %v3069
        %v3094 = vpack.c.bf16 %v3072, %v3071
        %v3095 = vpack.c.bf16 %v3074, %v3073
        %v3096 = vpack.c.bf16 %v3076, %v3075
        %v3097 = vpack.c.bf16 %v3078, %v3077
        %v3098 = vpack.c.bf16 %v3080, %v3079
        %v3099 = vpack.c.bf16 %v3082, %v3081
        %v3100 = vpack.c.bf16 %v3084, %v3083
        %v3101 = vld [vmem:[#allocation6 + $0x60] sm:$0xff]
        %v3102 = vld [vmem:[#allocation6 + $0x68] sm:$0xf]
        %v3103 = vld [vmem:[#allocation6 + $0x6c] sm:$0xff]
        %v3104 = vld [vmem:[#allocation6 + $0x74] sm:$0xf]
        %v3109 = vunpack.c.l.b16 %v3101
        %v3110 = vunpack.c.h.b16 %v3101
        %v3111 = vunpack.c.l.b16 %v3102
        %v3112 = vunpack.c.l.b16 %v3103
        %v3113 = vunpack.c.h.b16 %v3103
        %v3114 = vunpack.c.l.b16 %v3104
        %v3115 = vpack.c.b16 %v3112, %v3109
        %v3116 = vpack.c.b16 %v3113, %v3110
        %v3117 = vpack.c.b16 %v3114, %v3111
        %v3122 = vsel %vm237, %v3085, 0
        %v3125 = vsel %vm237, %v3086, 0
        %v3128 = vsel %vm237, %v3087, 0
        %v3131 = vsel %vm237, %v3088, 0
        %v3134 = vsel %vm237, %v3089, 0
        %v3137 = vsel %vm237, %v3090, 0
        %v3140 = vsel %vm237, %v3091, 0
        %v3143 = vsel %vm237, %v3092, 0
        %v3146 = vsel %vm237, %v3093, 0
        %v3149 = vsel %vm237, %v3094, 0
        %v3152 = vsel %vm237, %v3095, 0
        %v3155 = vsel %vm237, %v3096, 0
        %v3158 = vsel %vm237, %v3097, 0
        %v3161 = vsel %vm237, %v3098, 0
        %v3164 = vsel %vm237, %v3099, 0
        %v3167 = vsel %vm237, %v3100, 0
        %3169 = vmatprep.subr.bf16.mxu0 %v3116
        %3170 = vmatpush1.bf16.msra.mxu0 %v3115
        %3171 = vmatprep.subr.bf16.mxu0 0
        %3172 = vmatpush1.bf16.msra.mxu0 0
        %3173 = vmatprep.subr.bf16.mxu0 0
        %3174 = vmatpush1.bf16.msra.mxu0 0
        %3175 = vmatprep.subr.bf16.mxu0 0
        %3176 = vmatpush1.bf16.msra.mxu0 0
        %3177 = vmatprep.subr.bf16.mxu0 0
        %3178 = vmatpush1.bf16.msra.mxu0 0
        %3179 = vmatprep.subr.bf16.mxu0 0
        %3180 = vmatpush1.bf16.msra.mxu0 0
        %3181 = vmatprep.subr.bf16.mxu0 0
        %3182 = vmatpush1.bf16.msra.mxu0 0
        %3183 = vmatprep.subr.bf16.mxu0 0
        %3184 = vmatpush1.bf16.msra.mxu0 0
        %3185 = vmatprep.subr.bf16.mxu0 0
        %3186 = vmatpush1.bf16.msra.mxu0 0
        %3187 = vmatprep.subr.bf16.mxu0 0
        %3188 = vmatpush1.bf16.msra.mxu0 0
        %3189 = vmatprep.subr.bf16.mxu0 0
        %3190 = vmatpush1.bf16.msra.mxu0 0
        %3191 = vmatprep.subr.bf16.mxu0 0
        %3192 = vmatpush1.bf16.msra.mxu0 0
        %3193 = vmatprep.subr.bf16.mxu0 0
        %3194 = vmatpush1.bf16.msra.mxu0 0
        %3195 = vmatprep.subr.bf16.mxu0 0
        %3196 = vmatpush1.bf16.msra.mxu0 0
        %3197 = vmatprep.subr.bf16.mxu0 0
        %3198 = vmatpush1.bf16.msra.mxu0 0
        %3199 = vmatprep.subr.bf16.mxu0 0
        %3200 = vmatpush1.bf16.msra.mxu0 0
        %3201 = vmatprep.mubr.bf16.mxu0 0
        %3202 = vmatmul.mubr.bf16.gmra.mrb[0].mxu0 %v3122
        %v3203 = vpop.f32.mrb[0].mxu0
        %v3204 = vadd.f32 0.0, %v3203
        %v3205 = vpop.f32.mrb[0].mxu0
        %v3206 = vadd.f32 0.0, %v3205
        %v3207 = vpop.f32.mrb[0].mxu0
        %v3208 = vadd.f32 0.0, %v3207
        %v3209 = vpop.f32.mrb[0].mxu0
        %v3210 = vadd.f32 0.0, %v3209
        %3211 = vmatprep.mubr.bf16.mxu0 0
        %3212 = vmatmul.mubr.bf16.gmra.mrb[0].mxu0 %v3125
        %v3213 = vpop.f32.mrb[0].mxu0
        %v3214 = vadd.f32 0.0, %v3213
        %v3215 = vpop.f32.mrb[0].mxu0
        %v3216 = vadd.f32 0.0, %v3215
        %v3217 = vpop.f32.mrb[0].mxu0
        %v3218 = vadd.f32 0.0, %v3217
        %v3219 = vpop.f32.mrb[0].mxu0
        %v3220 = vadd.f32 0.0, %v3219
        %3221 = vmatprep.mubr.bf16.mxu0 0
        %3222 = vmatmul.mubr.bf16.gmra.mrb[0].mxu0 %v3128
        %v3223 = vpop.f32.mrb[0].mxu0
        %v3224 = vadd.f32 0.0, %v3223
        %v3225 = vpop.f32.mrb[0].mxu0
        %v3226 = vadd.f32 0.0, %v3225
        %v3227 = vpop.f32.mrb[0].mxu0
        %v3228 = vadd.f32 0.0, %v3227
        %v3229 = vpop.f32.mrb[0].mxu0
        %v3230 = vadd.f32 0.0, %v3229
        %3231 = vmatprep.mubr.bf16.mxu0 0
        %3232 = vmatmul.mubr.bf16.gmra.mrb[0].mxu0 %v3131
        %v3233 = vpop.f32.mrb[0].mxu0
        %v3234 = vadd.f32 0.0, %v3233
        %v3235 = vpop.f32.mrb[0].mxu0
        %v3236 = vadd.f32 0.0, %v3235
        %v3237 = vpop.f32.mrb[0].mxu0
        %v3238 = vadd.f32 0.0, %v3237
        %v3239 = vpop.f32.mrb[0].mxu0
        %v3240 = vadd.f32 0.0, %v3239
        %3241 = vmatprep.mubr.bf16.mxu0 0
        %3242 = vmatmul.mubr.bf16.gmra.mrb[0].mxu0 %v3134
        %v3243 = vpop.f32.mrb[0].mxu0
        %v3244 = vadd.f32 0.0, %v3243
        %v3245 = vpop.f32.mrb[0].mxu0
        %v3246 = vadd.f32 0.0, %v3245
        %v3247 = vpop.f32.mrb[0].mxu0
        %v3248 = vadd.f32 0.0, %v3247
        %v3249 = vpop.f32.mrb[0].mxu0
        %v3250 = vadd.f32 0.0, %v3249
        %3251 = vmatprep.mubr.bf16.mxu0 0
        %3252 = vmatmul.mubr.bf16.gmra.mrb[0].mxu0 %v3137
        %v3253 = vpop.f32.mrb[0].mxu0
        %v3254 = vadd.f32 0.0, %v3253
        %v3255 = vpop.f32.mrb[0].mxu0
        %v3256 = vadd.f32 0.0, %v3255
        %v3257 = vpop.f32.mrb[0].mxu0
        %v3258 = vadd.f32 0.0, %v3257
        %v3259 = vpop.f32.mrb[0].mxu0
        %v3260 = vadd.f32 0.0, %v3259
        %3261 = vmatprep.mubr.bf16.mxu0 0
        %3262 = vmatmul.mubr.bf16.gmra.mrb[0].mxu0 %v3140
        %v3263 = vpop.f32.mrb[0].mxu0
        %v3264 = vadd.f32 0.0, %v3263
        %v3265 = vpop.f32.mrb[0].mxu0
        %v3266 = vadd.f32 0.0, %v3265
        %v3267 = vpop.f32.mrb[0].mxu0
        %v3268 = vadd.f32 0.0, %v3267
        %v3269 = vpop.f32.mrb[0].mxu0
        %v3270 = vadd.f32 0.0, %v3269
        %3271 = vmatprep.mubr.bf16.mxu0 0
        %3272 = vmatmul.mubr.bf16.gmra.mrb[0].mxu0 %v3143
        %v3273 = vpop.f32.mrb[0].mxu0
        %v3274 = vadd.f32 0.0, %v3273
        %v3275 = vpop.f32.mrb[0].mxu0
        %v3276 = vadd.f32 0.0, %v3275
        %v3277 = vpop.f32.mrb[0].mxu0
        %v3278 = vadd.f32 0.0, %v3277
        %v3279 = vpop.f32.mrb[0].mxu0
        %v3280 = vadd.f32 0.0, %v3279
        %3281 = vmatprep.mubr.bf16.mxu0 0
        %3282 = vmatmul.mubr.bf16.gmra.mrb[0].mxu0 %v3146
        %v3283 = vpop.f32.mrb[0].mxu0
        %v3284 = vadd.f32 0.0, %v3283
        %v3285 = vpop.f32.mrb[0].mxu0
        %v3286 = vadd.f32 0.0, %v3285
        %v3287 = vpop.f32.mrb[0].mxu0
        %v3288 = vadd.f32 0.0, %v3287
        %v3289 = vpop.f32.mrb[0].mxu0
        %v3290 = vadd.f32 0.0, %v3289
        %3291 = vmatprep.mubr.bf16.mxu0 0
        %3292 = vmatmul.mubr.bf16.gmra.mrb[0].mxu0 %v3149
        %v3293 = vpop.f32.mrb[0].mxu0
        %v3294 = vadd.f32 0.0, %v3293
        %v3295 = vpop.f32.mrb[0].mxu0
        %v3296 = vadd.f32 0.0, %v3295
        %v3297 = vpop.f32.mrb[0].mxu0
        %v3298 = vadd.f32 0.0, %v3297
        %v3299 = vpop.f32.mrb[0].mxu0
        %v3300 = vadd.f32 0.0, %v3299
        %3301 = vmatprep.mubr.bf16.mxu0 0
        %3302 = vmatmul.mubr.bf16.gmra.mrb[0].mxu0 %v3152
        %v3303 = vpop.f32.mrb[0].mxu0
        %v3304 = vadd.f32 0.0, %v3303
        %v3305 = vpop.f32.mrb[0].mxu0
        %v3306 = vadd.f32 0.0, %v3305
        %v3307 = vpop.f32.mrb[0].mxu0
        %v3308 = vadd.f32 0.0, %v3307
        %v3309 = vpop.f32.mrb[0].mxu0
        %v3310 = vadd.f32 0.0, %v3309
        %3311 = vmatprep.mubr.bf16.mxu0 0
        %3312 = vmatmul.mubr.bf16.gmra.mrb[0].mxu0 %v3155
        %v3313 = vpop.f32.mrb[0].mxu0
        %v3314 = vadd.f32 0.0, %v3313
        %v3315 = vpop.f32.mrb[0].mxu0
        %v3316 = vadd.f32 0.0, %v3315
        %v3317 = vpop.f32.mrb[0].mxu0
        %v3318 = vadd.f32 0.0, %v3317
        %v3319 = vpop.f32.mrb[0].mxu0
        %v3320 = vadd.f32 0.0, %v3319
        %3321 = vmatprep.mubr.bf16.mxu0 0
        %3322 = vmatmul.mubr.bf16.gmra.mrb[0].mxu0 %v3158
        %v3323 = vpop.f32.mrb[0].mxu0
        %v3324 = vadd.f32 0.0, %v3323
        %v3325 = vpop.f32.mrb[0].mxu0
        %v3326 = vadd.f32 0.0, %v3325
        %v3327 = vpop.f32.mrb[0].mxu0
        %v3328 = vadd.f32 0.0, %v3327
        %v3329 = vpop.f32.mrb[0].mxu0
        %v3330 = vadd.f32 0.0, %v3329
        %3331 = vmatprep.mubr.bf16.mxu0 0
        %3332 = vmatmul.mubr.bf16.gmra.mrb[0].mxu0 %v3161
        %v3333 = vpop.f32.mrb[0].mxu0
        %v3334 = vadd.f32 0.0, %v3333
        %v3335 = vpop.f32.mrb[0].mxu0
        %v3336 = vadd.f32 0.0, %v3335
        %v3337 = vpop.f32.mrb[0].mxu0
        %v3338 = vadd.f32 0.0, %v3337
        %v3339 = vpop.f32.mrb[0].mxu0
        %v3340 = vadd.f32 0.0, %v3339
        %3341 = vmatprep.mubr.bf16.mxu0 0
        %3342 = vmatmul.mubr.bf16.gmra.mrb[0].mxu0 %v3164
        %v3343 = vpop.f32.mrb[0].mxu0
        %v3344 = vadd.f32 0.0, %v3343
        %v3345 = vpop.f32.mrb[0].mxu0
        %v3346 = vadd.f32 0.0, %v3345
        %v3347 = vpop.f32.mrb[0].mxu0
        %v3348 = vadd.f32 0.0, %v3347
        %v3349 = vpop.f32.mrb[0].mxu0
        %v3350 = vadd.f32 0.0, %v3349
        %3351 = vmatprep.mubr.bf16.mxu0 0
        %3352 = vmatmul.mubr.bf16.gmra.mrb[0].mxu0 %v3167
        %v3353 = vpop.f32.mrb[0].mxu0
        %v3354 = vadd.f32 0.0, %v3353
        %v3355 = vpop.f32.mrb[0].mxu0
        %v3356 = vadd.f32 0.0, %v3355
        %v3357 = vpop.f32.mrb[0].mxu0
        %v3358 = vadd.f32 0.0, %v3357
        %v3359 = vpop.f32.mrb[0].mxu0
        %v3360 = vadd.f32 0.0, %v3359
        %3361 = vdwg.mxu0
        %3362 = vmatprep.subr.bf16.mxu0 0
        %3363 = vmatpush1.bf16.msra.mxu0 %v3117
        %3364 = vmatprep.subr.bf16.mxu0 0
        %3365 = vmatpush1.bf16.msra.mxu0 0
        %3366 = vmatprep.subr.bf16.mxu0 0
        %3367 = vmatpush1.bf16.msra.mxu0 0
        %3368 = vmatprep.subr.bf16.mxu0 0
        %3369 = vmatpush1.bf16.msra.mxu0 0
        %3370 = vmatprep.subr.bf16.mxu0 0
        %3371 = vmatpush1.bf16.msra.mxu0 0
        %3372 = vmatprep.subr.bf16.mxu0 0
        %3373 = vmatpush1.bf16.msra.mxu0 0
        %3374 = vmatprep.subr.bf16.mxu0 0
        %3375 = vmatpush1.bf16.msra.mxu0 0
        %3376 = vmatprep.subr.bf16.mxu0 0
        %3377 = vmatpush1.bf16.msra.mxu0 0
        %3378 = vmatprep.subr.bf16.mxu0 0
        %3379 = vmatpush1.bf16.msra.mxu0 0
        %3380 = vmatprep.subr.bf16.mxu0 0
        %3381 = vmatpush1.bf16.msra.mxu0 0
        %3382 = vmatprep.subr.bf16.mxu0 0
        %3383 = vmatpush1.bf16.msra.mxu0 0
        %3384 = vmatprep.subr.bf16.mxu0 0
        %3385 = vmatpush1.bf16.msra.mxu0 0
        %3386 = vmatprep.subr.bf16.mxu0 0
        %3387 = vmatpush1.bf16.msra.mxu0 0
        %3388 = vmatprep.subr.bf16.mxu0 0
        %3389 = vmatpush1.bf16.msra.mxu0 0
        %3390 = vmatprep.subr.bf16.mxu0 0
        %3391 = vmatpush1.bf16.msra.mxu0 0
        %3392 = vmatprep.subr.bf16.mxu0 0
        %3393 = vmatpush1.bf16.msra.mxu0 0
        %3394 = vmatprep.mubr.bf16.mxu0 0
        %3395 = vmatmul.mubr.bf16.gmra.mrb[0].mxu0 %v3122
        %v3396 = vpop.f32.mrb[0].mxu0
        %v3397 = vadd.f32 0.0, %v3396
        %v3398 = vpop.f32.mrb[0].mxu0
        %v3399 = vpop.f32.mrb[0].mxu0
        %v3400 = vadd.f32 0.0, %v3399
        %v3401 = vpop.f32.mrb[0].mxu0
        %3402 = vmatprep.mubr.bf16.mxu0 0
        %3403 = vmatmul.mubr.bf16.gmra.mrb[0].mxu0 %v3125
        %v3404 = vpop.f32.mrb[0].mxu0
        %v3405 = vadd.f32 0.0, %v3404
        %v3406 = vpop.f32.mrb[0].mxu0
        %v3407 = vpop.f32.mrb[0].mxu0
        %v3408 = vadd.f32 0.0, %v3407
        %v3409 = vpop.f32.mrb[0].mxu0
        %3410 = vmatprep.mubr.bf16.mxu0 0
        %3411 = vmatmul.mubr.bf16.gmra.mrb[0].mxu0 %v3128
        %v3412 = vpop.f32.mrb[0].mxu0
        %v3413 = vadd.f32 0.0, %v3412
        %v3414 = vpop.f32.mrb[0].mxu0
        %v3415 = vpop.f32.mrb[0].mxu0
        %v3416 = vadd.f32 0.0, %v3415
        %v3417 = vpop.f32.mrb[0].mxu0
        %3418 = vmatprep.mubr.bf16.mxu0 0
        %3419 = vmatmul.mubr.bf16.gmra.mrb[0].mxu0 %v3131
        %v3420 = vpop.f32.mrb[0].mxu0
        %v3421 = vadd.f32 0.0, %v3420
        %v3422 = vpop.f32.mrb[0].mxu0
        %v3423 = vpop.f32.mrb[0].mxu0
        %v3424 = vadd.f32 0.0, %v3423
        %v3425 = vpop.f32.mrb[0].mxu0
        %3426 = vmatprep.mubr.bf16.mxu0 0
        %3427 = vmatmul.mubr.bf16.gmra.mrb[0].mxu0 %v3134
        %v3428 = vpop.f32.mrb[0].mxu0
        %v3429 = vadd.f32 0.0, %v3428
        %v3430 = vpop.f32.mrb[0].mxu0
        %v3431 = vpop.f32.mrb[0].mxu0
        %v3432 = vadd.f32 0.0, %v3431
        %v3433 = vpop.f32.mrb[0].mxu0
        %3434 = vmatprep.mubr.bf16.mxu0 0
        %3435 = vmatmul.mubr.bf16.gmra.mrb[0].mxu0 %v3137
        %v3436 = vpop.f32.mrb[0].mxu0
        %v3437 = vadd.f32 0.0, %v3436
        %v3438 = vpop.f32.mrb[0].mxu0
        %v3439 = vpop.f32.mrb[0].mxu0
        %v3440 = vadd.f32 0.0, %v3439
        %v3441 = vpop.f32.mrb[0].mxu0
        %3442 = vmatprep.mubr.bf16.mxu0 0
        %3443 = vmatmul.mubr.bf16.gmra.mrb[0].mxu0 %v3140
        %v3444 = vpop.f32.mrb[0].mxu0
        %v3445 = vadd.f32 0.0, %v3444
        %v3446 = vpop.f32.mrb[0].mxu0
        %v3447 = vpop.f32.mrb[0].mxu0
        %v3448 = vadd.f32 0.0, %v3447
        %v3449 = vpop.f32.mrb[0].mxu0
        %3450 = vmatprep.mubr.bf16.mxu0 0
        %3451 = vmatmul.mubr.bf16.gmra.mrb[0].mxu0 %v3143
        %v3452 = vpop.f32.mrb[0].mxu0
        %v3453 = vadd.f32 0.0, %v3452
        %v3454 = vpop.f32.mrb[0].mxu0
        %v3455 = vpop.f32.mrb[0].mxu0
        %v3456 = vadd.f32 0.0, %v3455
        %v3457 = vpop.f32.mrb[0].mxu0
        %3458 = vmatprep.mubr.bf16.mxu0 0
        %3459 = vmatmul.mubr.bf16.gmra.mrb[0].mxu0 %v3146
        %v3460 = vpop.f32.mrb[0].mxu0
        %v3461 = vadd.f32 0.0, %v3460
        %v3462 = vpop.f32.mrb[0].mxu0
        %v3463 = vpop.f32.mrb[0].mxu0
        %v3464 = vadd.f32 0.0, %v3463
        %v3465 = vpop.f32.mrb[0].mxu0
        %3466 = vmatprep.mubr.bf16.mxu0 0
        %3467 = vmatmul.mubr.bf16.gmra.mrb[0].mxu0 %v3149
        %v3468 = vpop.f32.mrb[0].mxu0
        %v3469 = vadd.f32 0.0, %v3468
        %v3470 = vpop.f32.mrb[0].mxu0
        %v3471 = vpop.f32.mrb[0].mxu0
        %v3472 = vadd.f32 0.0, %v3471
        %v3473 = vpop.f32.mrb[0].mxu0
        %3474 = vmatprep.mubr.bf16.mxu0 0
        %3475 = vmatmul.mubr.bf16.gmra.mrb[0].mxu0 %v3152
        %v3476 = vpop.f32.mrb[0].mxu0
        %v3477 = vadd.f32 0.0, %v3476
        %v3478 = vpop.f32.mrb[0].mxu0
        %v3479 = vpop.f32.mrb[0].mxu0
        %v3480 = vadd.f32 0.0, %v3479
        %v3481 = vpop.f32.mrb[0].mxu0
        %3482 = vmatprep.mubr.bf16.mxu0 0
        %3483 = vmatmul.mubr.bf16.gmra.mrb[0].mxu0 %v3155
        %v3484 = vpop.f32.mrb[0].mxu0
        %v3485 = vadd.f32 0.0, %v3484
        %v3486 = vpop.f32.mrb[0].mxu0
        %v3487 = vpop.f32.mrb[0].mxu0
        %v3488 = vadd.f32 0.0, %v3487
        %v3489 = vpop.f32.mrb[0].mxu0
        %3490 = vmatprep.mubr.bf16.mxu0 0
        %3491 = vmatmul.mubr.bf16.gmra.mrb[0].mxu0 %v3158
        %v3492 = vpop.f32.mrb[0].mxu0
        %v3493 = vadd.f32 0.0, %v3492
        %v3494 = vpop.f32.mrb[0].mxu0
        %v3495 = vpop.f32.mrb[0].mxu0
        %v3496 = vadd.f32 0.0, %v3495
        %v3497 = vpop.f32.mrb[0].mxu0
        %3498 = vmatprep.mubr.bf16.mxu0 0
        %3499 = vmatmul.mubr.bf16.gmra.mrb[0].mxu0 %v3161
        %v3500 = vpop.f32.mrb[0].mxu0
        %v3501 = vadd.f32 0.0, %v3500
        %v3502 = vpop.f32.mrb[0].mxu0
        %v3503 = vpop.f32.mrb[0].mxu0
        %v3504 = vadd.f32 0.0, %v3503
        %v3505 = vpop.f32.mrb[0].mxu0
        %3506 = vmatprep.mubr.bf16.mxu0 0
        %3507 = vmatmul.mubr.bf16.gmra.mrb[0].mxu0 %v3164
        %v3508 = vpop.f32.mrb[0].mxu0
        %v3509 = vadd.f32 0.0, %v3508
        %v3510 = vpop.f32.mrb[0].mxu0
        %v3511 = vpop.f32.mrb[0].mxu0
        %v3512 = vadd.f32 0.0, %v3511
        %v3513 = vpop.f32.mrb[0].mxu0
        %3514 = vmatprep.mubr.bf16.mxu0 0
        %3515 = vmatmul.mubr.bf16.gmra.mrb[0].mxu0 %v3167
        %v3516 = vpop.f32.mrb[0].mxu0
        %v3517 = vadd.f32 0.0, %v3516
        %v3518 = vpop.f32.mrb[0].mxu0
        %v3519 = vpop.f32.mrb[0].mxu0
        %v3520 = vadd.f32 0.0, %v3519
        %v3521 = vpop.f32.mrb[0].mxu0
        %3522 = vdwg.mxu0
        %v3523 = vadd.f32 %v2957, %v3204
        %v3524 = vadd.f32 %v2958, %v3206
        %v3525 = vadd.f32 %v2959, %v3397
        %v3526 = vadd.f32 %v2960, %v3208
        %v3527 = vadd.f32 %v2961, %v3210
        %v3528 = vadd.f32 %v2962, %v3400
        %v3529 = vadd.f32 %v2963, %v3214
        %v3530 = vadd.f32 %v2964, %v3216
        %v3531 = vadd.f32 %v2965, %v3405
        %v3532 = vadd.f32 %v2966, %v3218
        %v3533 = vadd.f32 %v2967, %v3220
        %v3534 = vadd.f32 %v2968, %v3408
        %v3535 = vadd.f32 %v2969, %v3224
        %v3536 = vadd.f32 %v2970, %v3226
        %v3537 = vadd.f32 %v2971, %v3413
        %v3538 = vadd.f32 %v2972, %v3228
        %v3539 = vadd.f32 %v2973, %v3230
        %v3540 = vadd.f32 %v2974, %v3416
        %v3541 = vadd.f32 %v2975, %v3234
        %v3542 = vadd.f32 %v2976, %v3236
        %v3543 = vadd.f32 %v2977, %v3421
        %v3544 = vadd.f32 %v2978, %v3238
        %v3545 = vadd.f32 %v2979, %v3240
        %v3546 = vadd.f32 %v2980, %v3424
        %v3547 = vadd.f32 %v2981, %v3244
        %v3548 = vadd.f32 %v2982, %v3246
        %v3549 = vadd.f32 %v2983, %v3429
        %v3550 = vadd.f32 %v2984, %v3248
        %v3551 = vadd.f32 %v2985, %v3250
        %v3552 = vadd.f32 %v2986, %v3432
        %v3553 = vadd.f32 %v2987, %v3254
        %v3554 = vadd.f32 %v2988, %v3256
        %v3555 = vadd.f32 %v2989, %v3437
        %v3556 = vadd.f32 %v2990, %v3258
        %v3557 = vadd.f32 %v2991, %v3260
        %v3558 = vadd.f32 %v2992, %v3440
        %v3559 = vadd.f32 %v2993, %v3264
        %v3560 = vadd.f32 %v2994, %v3266
        %v3561 = vadd.f32 %v2995, %v3445
        %v3562 = vadd.f32 %v2996, %v3268
        %v3563 = vadd.f32 %v2997, %v3270
        %v3564 = vadd.f32 %v2998, %v3448
        %v3565 = vadd.f32 %v2999, %v3274
        %v3566 = vadd.f32 %v3000, %v3276
        %v3567 = vadd.f32 %v3001, %v3453
        %v3568 = vadd.f32 %v3002, %v3278
        %v3569 = vadd.f32 %v3003, %v3280
        %v3570 = vadd.f32 %v3004, %v3456
        %v3571 = vadd.f32 %v3005, %v3284
        %v3572 = vadd.f32 %v3006, %v3286
        %v3573 = vadd.f32 %v3007, %v3461
        %v3574 = vadd.f32 %v3008, %v3288
        %v3575 = vadd.f32 %v3009, %v3290
        %v3576 = vadd.f32 %v3010, %v3464
        %v3577 = vadd.f32 %v3011, %v3294
        %v3578 = vadd.f32 %v3012, %v3296
        %v3579 = vadd.f32 %v3013, %v3469
        %v3580 = vadd.f32 %v3014, %v3298
        %v3581 = vadd.f32 %v3015, %v3300
        %v3582 = vadd.f32 %v3016, %v3472
        %v3583 = vadd.f32 %v3017, %v3304
        %v3584 = vadd.f32 %v3018, %v3306
        %v3585 = vadd.f32 %v3019, %v3477
        %v3586 = vadd.f32 %v3020, %v3308
        %v3587 = vadd.f32 %v3021, %v3310
        %v3588 = vadd.f32 %v3022, %v3480
        %v3589 = vadd.f32 %v3023, %v3314
        %v3590 = vadd.f32 %v3024, %v3316
        %v3591 = vadd.f32 %v3025, %v3485
        %v3592 = vadd.f32 %v3026, %v3318
        %v3593 = vadd.f32 %v3027, %v3320
        %v3594 = vadd.f32 %v3028, %v3488
        %v3595 = vadd.f32 %v3029, %v3324
        %v3596 = vadd.f32 %v3030, %v3326
        %v3597 = vadd.f32 %v3031, %v3493
        %v3598 = vadd.f32 %v3032, %v3328
        %v3599 = vadd.f32 %v3033, %v3330
        %v3600 = vadd.f32 %v3034, %v3496
        %v3601 = vadd.f32 %v3035, %v3334
        %v3602 = vadd.f32 %v3036, %v3336
        %v3603 = vadd.f32 %v3037, %v3501
        %v3604 = vadd.f32 %v3038, %v3338
        %v3605 = vadd.f32 %v3039, %v3340
        %v3606 = vadd.f32 %v3040, %v3504
        %v3607 = vadd.f32 %v3041, %v3344
        %v3608 = vadd.f32 %v3042, %v3346
        %v3609 = vadd.f32 %v3043, %v3509
        %v3610 = vadd.f32 %v3044, %v3348
        %v3611 = vadd.f32 %v3045, %v3350
        %v3612 = vadd.f32 %v3046, %v3512
        %v3613 = vadd.f32 %v3047, %v3354
        %v3614 = vadd.f32 %v3048, %v3356
        %v3615 = vadd.f32 %v3049, %v3517
        %v3616 = vadd.f32 %v3050, %v3358
        %v3617 = vadd.f32 %v3051, %v3360
        %v3618 = vadd.f32 %v3052, %v3520
        %v3619 = vld [vmem:[#allocation2 + $0x19] sm:$0xff]
        %v3620 = vld [vmem:[#allocation2 + $0x21] sm:$0xff]
        %v3621 = vld [vmem:[#allocation2 + $0x29] sm:$0xff]
        %v3622 = vld [vmem:[#allocation2 + $0x31] sm:$0xff]
        %v3623 = vld [vmem:[#allocation2 + $0x39] sm:$0xff]
        %v3624 = vld [vmem:[#allocation2 + $0x41] sm:$0xff]
        %v3625 = vld [vmem:[#allocation2 + $0x49] sm:$0xff]
        %v3626 = vld [vmem:[#allocation2 + $0x51] sm:$0xff]
        %v3627 = vld [vmem:[#allocation2 + $0x59] sm:$0xff]
        %v3628 = vld [vmem:[#allocation2 + $0x61] sm:$0xff]
        %v3629 = vld [vmem:[#allocation2 + $0x69] sm:$0xff]
        %v3630 = vld [vmem:[#allocation2 + $0x71] sm:$0xff]
        %v3631 = vld [vmem:[#allocation2 + $0x79] sm:$0xff]
        %v3632 = vld [vmem:[#allocation2 + $0x81] sm:$0xff]
        %v3633 = vld [vmem:[#allocation2 + $0x89] sm:$0xff]
        %v3634 = vld [vmem:[#allocation2 + $0x91] sm:$0xff]
        %v3635 = vld [vmem:[#allocation2 + $0x99] sm:$0xff]
        %v3636 = vld [vmem:[#allocation2 + $0xa1] sm:$0xff]
        %v3637 = vld [vmem:[#allocation2 + $0xa9] sm:$0xff]
        %v3638 = vld [vmem:[#allocation2 + $0xb1] sm:$0xff]
        %v3639 = vld [vmem:[#allocation2 + $0xb9] sm:$0xff]
        %v3640 = vld [vmem:[#allocation2 + $0xc1] sm:$0xff]
        %v3641 = vld [vmem:[#allocation2 + $0xc9] sm:$0xff]
        %v3642 = vld [vmem:[#allocation2 + $0xd1] sm:$0xff]
        %v3643 = vld [vmem:[#allocation2 + $0xd9] sm:$0xff]
        %v3644 = vld [vmem:[#allocation2 + $0xe1] sm:$0xff]
        %v3645 = vld [vmem:[#allocation2 + $0xe9] sm:$0xff]
        %v3646 = vld [vmem:[#allocation2 + $0xf1] sm:$0xff]
        %v3647 = vld [vmem:[#allocation2 + $0xf9] sm:$0xff]
        %v3648 = vld [vmem:[#allocation2 + $0x101] sm:$0xff]
        %v3649 = vld [vmem:[#allocation2 + $0x109] sm:$0xff]
        %v3650 = vld [vmem:[#allocation2 + $0x111] sm:$0xff]
        %v3651 = vsel %vm1857, %v3619, 0.0
        %v3652 = vsel %vm1858, %v3620, 0.0
        %v3653 = vsel %vm1859, %v3621, 0.0
        %v3654 = vsel %vm1860, %v3622, 0.0
        %v3655 = vsel %vm1861, %v3623, 0.0
        %v3656 = vsel %vm1862, %v3624, 0.0
        %v3657 = vsel %vm1863, %v3625, 0.0
        %v3658 = vsel %vm1864, %v3626, 0.0
        %v3659 = vsel %vm1865, %v3627, 0.0
        %v3660 = vsel %vm1866, %v3628, 0.0
        %v3661 = vsel %vm1867, %v3629, 0.0
        %v3662 = vsel %vm1868, %v3630, 0.0
        %v3663 = vsel %vm1869, %v3631, 0.0
        %v3664 = vsel %vm1870, %v3632, 0.0
        %v3665 = vsel %vm1871, %v3633, 0.0
        %v3666 = vsel %vm1872, %v3634, 0.0
        %v3667 = vsel %vm1873, %v3635, 0.0
        %v3668 = vsel %vm1874, %v3636, 0.0
        %v3669 = vsel %vm1875, %v3637, 0.0
        %v3670 = vsel %vm1876, %v3638, 0.0
        %v3671 = vsel %vm1877, %v3639, 0.0
        %v3672 = vsel %vm1878, %v3640, 0.0
        %v3673 = vsel %vm1879, %v3641, 0.0
        %v3674 = vsel %vm1880, %v3642, 0.0
        %v3675 = vsel %vm1881, %v3643, 0.0
        %v3676 = vsel %vm1882, %v3644, 0.0
        %v3677 = vsel %vm1883, %v3645, 0.0
        %v3678 = vsel %vm1884, %v3646, 0.0
        %v3679 = vsel %vm1885, %v3647, 0.0
        %v3680 = vsel %vm1886, %v3648, 0.0
        %v3681 = vsel %vm1887, %v3649, 0.0
        %v3682 = vsel %vm1888, %v3650, 0.0
        %v3683 = vpack.c.bf16 %v3652, %v3651
        %v3684 = vpack.c.bf16 %v3654, %v3653
        %v3685 = vpack.c.bf16 %v3656, %v3655
        %v3686 = vpack.c.bf16 %v3658, %v3657
        %v3687 = vpack.c.bf16 %v3660, %v3659
        %v3688 = vpack.c.bf16 %v3662, %v3661
        %v3689 = vpack.c.bf16 %v3664, %v3663
        %v3690 = vpack.c.bf16 %v3666, %v3665
        %v3691 = vpack.c.bf16 %v3668, %v3667
        %v3692 = vpack.c.bf16 %v3670, %v3669
        %v3693 = vpack.c.bf16 %v3672, %v3671
        %v3694 = vpack.c.bf16 %v3674, %v3673
        %v3695 = vpack.c.bf16 %v3676, %v3675
        %v3696 = vpack.c.bf16 %v3678, %v3677
        %v3697 = vpack.c.bf16 %v3680, %v3679
        %v3698 = vpack.c.bf16 %v3682, %v3681
        %v3699 = vld [vmem:[#allocation6 + $0x78] sm:$0xff]
        %v3700 = vld [vmem:[#allocation6 + $0x80] sm:$0xf]
        %v3701 = vld [vmem:[#allocation6 + $0x84] sm:$0xff]
        %v3702 = vld [vmem:[#allocation6 + $0x8c] sm:$0xf]
        %v3707 = vunpack.c.l.b16 %v3699
        %v3708 = vunpack.c.h.b16 %v3699
        %v3709 = vunpack.c.l.b16 %v3700
        %v3710 = vunpack.c.l.b16 %v3701
        %v3711 = vunpack.c.h.b16 %v3701
        %v3712 = vunpack.c.l.b16 %v3702
        %v3713 = vpack.c.b16 %v3710, %v3707
        %v3714 = vpack.c.b16 %v3711, %v3708
        %v3715 = vpack.c.b16 %v3712, %v3709
        %v3720 = vsel %vm237, %v3683, 0
        %v3723 = vsel %vm237, %v3684, 0
        %v3726 = vsel %vm237, %v3685, 0
        %v3729 = vsel %vm237, %v3686, 0
        %v3732 = vsel %vm237, %v3687, 0
        %v3735 = vsel %vm237, %v3688, 0
        %v3738 = vsel %vm237, %v3689, 0
        %v3741 = vsel %vm237, %v3690, 0
        %v3744 = vsel %vm237, %v3691, 0
        %v3747 = vsel %vm237, %v3692, 0
        %v3750 = vsel %vm237, %v3693, 0
        %v3753 = vsel %vm237, %v3694, 0
        %v3756 = vsel %vm237, %v3695, 0
        %v3759 = vsel %vm237, %v3696, 0
        %v3762 = vsel %vm237, %v3697, 0
        %v3765 = vsel %vm237, %v3698, 0
        %3767 = vmatprep.subr.bf16.mxu0 %v3714
        %3768 = vmatpush1.bf16.msra.mxu0 %v3713
        %3769 = vmatprep.subr.bf16.mxu0 0
        %3770 = vmatpush1.bf16.msra.mxu0 0
        %3771 = vmatprep.subr.bf16.mxu0 0
        %3772 = vmatpush1.bf16.msra.mxu0 0
        %3773 = vmatprep.subr.bf16.mxu0 0
        %3774 = vmatpush1.bf16.msra.mxu0 0
        %3775 = vmatprep.subr.bf16.mxu0 0
        %3776 = vmatpush1.bf16.msra.mxu0 0
        %3777 = vmatprep.subr.bf16.mxu0 0
        %3778 = vmatpush1.bf16.msra.mxu0 0
        %3779 = vmatprep.subr.bf16.mxu0 0
        %3780 = vmatpush1.bf16.msra.mxu0 0
        %3781 = vmatprep.subr.bf16.mxu0 0
        %3782 = vmatpush1.bf16.msra.mxu0 0
        %3783 = vmatprep.subr.bf16.mxu0 0
        %3784 = vmatpush1.bf16.msra.mxu0 0
        %3785 = vmatprep.subr.bf16.mxu0 0
        %3786 = vmatpush1.bf16.msra.mxu0 0
        %3787 = vmatprep.subr.bf16.mxu0 0
        %3788 = vmatpush1.bf16.msra.mxu0 0
        %3789 = vmatprep.subr.bf16.mxu0 0
        %3790 = vmatpush1.bf16.msra.mxu0 0
        %3791 = vmatprep.subr.bf16.mxu0 0
        %3792 = vmatpush1.bf16.msra.mxu0 0
        %3793 = vmatprep.subr.bf16.mxu0 0
        %3794 = vmatpush1.bf16.msra.mxu0 0
        %3795 = vmatprep.subr.bf16.mxu0 0
        %3796 = vmatpush1.bf16.msra.mxu0 0
        %3797 = vmatprep.subr.bf16.mxu0 0
        %3798 = vmatpush1.bf16.msra.mxu0 0
        %3799 = vmatprep.mubr.bf16.mxu0 0
        %3800 = vmatmul.mubr.bf16.gmra.mrb[0].mxu0 %v3720
        %v3801 = vpop.f32.mrb[0].mxu0
        %v3802 = vadd.f32 0.0, %v3801
        %v3803 = vpop.f32.mrb[0].mxu0
        %v3804 = vadd.f32 0.0, %v3803
        %v3805 = vpop.f32.mrb[0].mxu0
        %v3806 = vadd.f32 0.0, %v3805
        %v3807 = vpop.f32.mrb[0].mxu0
        %v3808 = vadd.f32 0.0, %v3807
        %3809 = vmatprep.mubr.bf16.mxu0 0
        %3810 = vmatmul.mubr.bf16.gmra.mrb[0].mxu0 %v3723
        %v3811 = vpop.f32.mrb[0].mxu0
        %v3812 = vadd.f32 0.0, %v3811
        %v3813 = vpop.f32.mrb[0].mxu0
        %v3814 = vadd.f32 0.0, %v3813
        %v3815 = vpop.f32.mrb[0].mxu0
        %v3816 = vadd.f32 0.0, %v3815
        %v3817 = vpop.f32.mrb[0].mxu0
        %v3818 = vadd.f32 0.0, %v3817
        %3819 = vmatprep.mubr.bf16.mxu0 0
        %3820 = vmatmul.mubr.bf16.gmra.mrb[0].mxu0 %v3726
        %v3821 = vpop.f32.mrb[0].mxu0
        %v3822 = vadd.f32 0.0, %v3821
        %v3823 = vpop.f32.mrb[0].mxu0
        %v3824 = vadd.f32 0.0, %v3823
        %v3825 = vpop.f32.mrb[0].mxu0
        %v3826 = vadd.f32 0.0, %v3825
        %v3827 = vpop.f32.mrb[0].mxu0
        %v3828 = vadd.f32 0.0, %v3827
        %3829 = vmatprep.mubr.bf16.mxu0 0
        %3830 = vmatmul.mubr.bf16.gmra.mrb[0].mxu0 %v3729
        %v3831 = vpop.f32.mrb[0].mxu0
        %v3832 = vadd.f32 0.0, %v3831
        %v3833 = vpop.f32.mrb[0].mxu0
        %v3834 = vadd.f32 0.0, %v3833
        %v3835 = vpop.f32.mrb[0].mxu0
        %v3836 = vadd.f32 0.0, %v3835
        %v3837 = vpop.f32.mrb[0].mxu0
        %v3838 = vadd.f32 0.0, %v3837
        %3839 = vmatprep.mubr.bf16.mxu0 0
        %3840 = vmatmul.mubr.bf16.gmra.mrb[0].mxu0 %v3732
        %v3841 = vpop.f32.mrb[0].mxu0
        %v3842 = vadd.f32 0.0, %v3841
        %v3843 = vpop.f32.mrb[0].mxu0
        %v3844 = vadd.f32 0.0, %v3843
        %v3845 = vpop.f32.mrb[0].mxu0
        %v3846 = vadd.f32 0.0, %v3845
        %v3847 = vpop.f32.mrb[0].mxu0
        %v3848 = vadd.f32 0.0, %v3847
        %3849 = vmatprep.mubr.bf16.mxu0 0
        %3850 = vmatmul.mubr.bf16.gmra.mrb[0].mxu0 %v3735
        %v3851 = vpop.f32.mrb[0].mxu0
        %v3852 = vadd.f32 0.0, %v3851
        %v3853 = vpop.f32.mrb[0].mxu0
        %v3854 = vadd.f32 0.0, %v3853
        %v3855 = vpop.f32.mrb[0].mxu0
        %v3856 = vadd.f32 0.0, %v3855
        %v3857 = vpop.f32.mrb[0].mxu0
        %v3858 = vadd.f32 0.0, %v3857
        %3859 = vmatprep.mubr.bf16.mxu0 0
        %3860 = vmatmul.mubr.bf16.gmra.mrb[0].mxu0 %v3738
        %v3861 = vpop.f32.mrb[0].mxu0
        %v3862 = vadd.f32 0.0, %v3861
        %v3863 = vpop.f32.mrb[0].mxu0
        %v3864 = vadd.f32 0.0, %v3863
        %v3865 = vpop.f32.mrb[0].mxu0
        %v3866 = vadd.f32 0.0, %v3865
        %v3867 = vpop.f32.mrb[0].mxu0
        %v3868 = vadd.f32 0.0, %v3867
        %3869 = vmatprep.mubr.bf16.mxu0 0
        %3870 = vmatmul.mubr.bf16.gmra.mrb[0].mxu0 %v3741
        %v3871 = vpop.f32.mrb[0].mxu0
        %v3872 = vadd.f32 0.0, %v3871
        %v3873 = vpop.f32.mrb[0].mxu0
        %v3874 = vadd.f32 0.0, %v3873
        %v3875 = vpop.f32.mrb[0].mxu0
        %v3876 = vadd.f32 0.0, %v3875
        %v3877 = vpop.f32.mrb[0].mxu0
        %v3878 = vadd.f32 0.0, %v3877
        %3879 = vmatprep.mubr.bf16.mxu0 0
        %3880 = vmatmul.mubr.bf16.gmra.mrb[0].mxu0 %v3744
        %v3881 = vpop.f32.mrb[0].mxu0
        %v3882 = vadd.f32 0.0, %v3881
        %v3883 = vpop.f32.mrb[0].mxu0
        %v3884 = vadd.f32 0.0, %v3883
        %v3885 = vpop.f32.mrb[0].mxu0
        %v3886 = vadd.f32 0.0, %v3885
        %v3887 = vpop.f32.mrb[0].mxu0
        %v3888 = vadd.f32 0.0, %v3887
        %3889 = vmatprep.mubr.bf16.mxu0 0
        %3890 = vmatmul.mubr.bf16.gmra.mrb[0].mxu0 %v3747
        %v3891 = vpop.f32.mrb[0].mxu0
        %v3892 = vadd.f32 0.0, %v3891
        %v3893 = vpop.f32.mrb[0].mxu0
        %v3894 = vadd.f32 0.0, %v3893
        %v3895 = vpop.f32.mrb[0].mxu0
        %v3896 = vadd.f32 0.0, %v3895
        %v3897 = vpop.f32.mrb[0].mxu0
        %v3898 = vadd.f32 0.0, %v3897
        %3899 = vmatprep.mubr.bf16.mxu0 0
        %3900 = vmatmul.mubr.bf16.gmra.mrb[0].mxu0 %v3750
        %v3901 = vpop.f32.mrb[0].mxu0
        %v3902 = vadd.f32 0.0, %v3901
        %v3903 = vpop.f32.mrb[0].mxu0
        %v3904 = vadd.f32 0.0, %v3903
        %v3905 = vpop.f32.mrb[0].mxu0
        %v3906 = vadd.f32 0.0, %v3905
        %v3907 = vpop.f32.mrb[0].mxu0
        %v3908 = vadd.f32 0.0, %v3907
        %3909 = vmatprep.mubr.bf16.mxu0 0
        %3910 = vmatmul.mubr.bf16.gmra.mrb[0].mxu0 %v3753
        %v3911 = vpop.f32.mrb[0].mxu0
        %v3912 = vadd.f32 0.0, %v3911
        %v3913 = vpop.f32.mrb[0].mxu0
        %v3914 = vadd.f32 0.0, %v3913
        %v3915 = vpop.f32.mrb[0].mxu0
        %v3916 = vadd.f32 0.0, %v3915
        %v3917 = vpop.f32.mrb[0].mxu0
        %v3918 = vadd.f32 0.0, %v3917
        %3919 = vmatprep.mubr.bf16.mxu0 0
        %3920 = vmatmul.mubr.bf16.gmra.mrb[0].mxu0 %v3756
        %v3921 = vpop.f32.mrb[0].mxu0
        %v3922 = vadd.f32 0.0, %v3921
        %v3923 = vpop.f32.mrb[0].mxu0
        %v3924 = vadd.f32 0.0, %v3923
        %v3925 = vpop.f32.mrb[0].mxu0
        %v3926 = vadd.f32 0.0, %v3925
        %v3927 = vpop.f32.mrb[0].mxu0
        %v3928 = vadd.f32 0.0, %v3927
        %3929 = vmatprep.mubr.bf16.mxu0 0
        %3930 = vmatmul.mubr.bf16.gmra.mrb[0].mxu0 %v3759
        %v3931 = vpop.f32.mrb[0].mxu0
        %v3932 = vadd.f32 0.0, %v3931
        %v3933 = vpop.f32.mrb[0].mxu0
        %v3934 = vadd.f32 0.0, %v3933
        %v3935 = vpop.f32.mrb[0].mxu0
        %v3936 = vadd.f32 0.0, %v3935
        %v3937 = vpop.f32.mrb[0].mxu0
        %v3938 = vadd.f32 0.0, %v3937
        %3939 = vmatprep.mubr.bf16.mxu0 0
        %3940 = vmatmul.mubr.bf16.gmra.mrb[0].mxu0 %v3762
        %v3941 = vpop.f32.mrb[0].mxu0
        %v3942 = vadd.f32 0.0, %v3941
        %v3943 = vpop.f32.mrb[0].mxu0
        %v3944 = vadd.f32 0.0, %v3943
        %v3945 = vpop.f32.mrb[0].mxu0
        %v3946 = vadd.f32 0.0, %v3945
        %v3947 = vpop.f32.mrb[0].mxu0
        %v3948 = vadd.f32 0.0, %v3947
        %3949 = vmatprep.mubr.bf16.mxu0 0
        %3950 = vmatmul.mubr.bf16.gmra.mrb[0].mxu0 %v3765
        %v3951 = vpop.f32.mrb[0].mxu0
        %v3952 = vadd.f32 0.0, %v3951
        %v3953 = vpop.f32.mrb[0].mxu0
        %v3954 = vadd.f32 0.0, %v3953
        %v3955 = vpop.f32.mrb[0].mxu0
        %v3956 = vadd.f32 0.0, %v3955
        %v3957 = vpop.f32.mrb[0].mxu0
        %v3958 = vadd.f32 0.0, %v3957
        %3959 = vdwg.mxu0
        %3960 = vmatprep.subr.bf16.mxu0 0
        %3961 = vmatpush1.bf16.msra.mxu0 %v3715
        %3962 = vmatprep.subr.bf16.mxu0 0
        %3963 = vmatpush1.bf16.msra.mxu0 0
        %3964 = vmatprep.subr.bf16.mxu0 0
        %3965 = vmatpush1.bf16.msra.mxu0 0
        %3966 = vmatprep.subr.bf16.mxu0 0
        %3967 = vmatpush1.bf16.msra.mxu0 0
        %3968 = vmatprep.subr.bf16.mxu0 0
        %3969 = vmatpush1.bf16.msra.mxu0 0
        %3970 = vmatprep.subr.bf16.mxu0 0
        %3971 = vmatpush1.bf16.msra.mxu0 0
        %3972 = vmatprep.subr.bf16.mxu0 0
        %3973 = vmatpush1.bf16.msra.mxu0 0
        %3974 = vmatprep.subr.bf16.mxu0 0
        %3975 = vmatpush1.bf16.msra.mxu0 0
        %3976 = vmatprep.subr.bf16.mxu0 0
        %3977 = vmatpush1.bf16.msra.mxu0 0
        %3978 = vmatprep.subr.bf16.mxu0 0
        %3979 = vmatpush1.bf16.msra.mxu0 0
        %3980 = vmatprep.subr.bf16.mxu0 0
        %3981 = vmatpush1.bf16.msra.mxu0 0
        %3982 = vmatprep.subr.bf16.mxu0 0
        %3983 = vmatpush1.bf16.msra.mxu0 0
        %3984 = vmatprep.subr.bf16.mxu0 0
        %3985 = vmatpush1.bf16.msra.mxu0 0
        %3986 = vmatprep.subr.bf16.mxu0 0
        %3987 = vmatpush1.bf16.msra.mxu0 0
        %3988 = vmatprep.subr.bf16.mxu0 0
        %3989 = vmatpush1.bf16.msra.mxu0 0
        %3990 = vmatprep.subr.bf16.mxu0 0
        %3991 = vmatpush1.bf16.msra.mxu0 0
        %3992 = vmatprep.mubr.bf16.mxu0 0
        %3993 = vmatmul.mubr.bf16.gmra.mrb[0].mxu0 %v3720
        %v3994 = vpop.f32.mrb[0].mxu0
        %v3995 = vadd.f32 0.0, %v3994
        %v3996 = vpop.f32.mrb[0].mxu0
        %v3997 = vpop.f32.mrb[0].mxu0
        %v3998 = vadd.f32 0.0, %v3997
        %v3999 = vpop.f32.mrb[0].mxu0
        %4000 = vmatprep.mubr.bf16.mxu0 0
        %4001 = vmatmul.mubr.bf16.gmra.mrb[0].mxu0 %v3723
        %v4002 = vpop.f32.mrb[0].mxu0
        %v4003 = vadd.f32 0.0, %v4002
        %v4004 = vpop.f32.mrb[0].mxu0
        %v4005 = vpop.f32.mrb[0].mxu0
        %v4006 = vadd.f32 0.0, %v4005
        %v4007 = vpop.f32.mrb[0].mxu0
        %4008 = vmatprep.mubr.bf16.mxu0 0
        %4009 = vmatmul.mubr.bf16.gmra.mrb[0].mxu0 %v3726
        %v4010 = vpop.f32.mrb[0].mxu0
        %v4011 = vadd.f32 0.0, %v4010
        %v4012 = vpop.f32.mrb[0].mxu0
        %v4013 = vpop.f32.mrb[0].mxu0
        %v4014 = vadd.f32 0.0, %v4013
        %v4015 = vpop.f32.mrb[0].mxu0
        %4016 = vmatprep.mubr.bf16.mxu0 0
        %4017 = vmatmul.mubr.bf16.gmra.mrb[0].mxu0 %v3729
        %v4018 = vpop.f32.mrb[0].mxu0
        %v4019 = vadd.f32 0.0, %v4018
        %v4020 = vpop.f32.mrb[0].mxu0
        %v4021 = vpop.f32.mrb[0].mxu0
        %v4022 = vadd.f32 0.0, %v4021
        %v4023 = vpop.f32.mrb[0].mxu0
        %4024 = vmatprep.mubr.bf16.mxu0 0
        %4025 = vmatmul.mubr.bf16.gmra.mrb[0].mxu0 %v3732
        %v4026 = vpop.f32.mrb[0].mxu0
        %v4027 = vadd.f32 0.0, %v4026
        %v4028 = vpop.f32.mrb[0].mxu0
        %v4029 = vpop.f32.mrb[0].mxu0
        %v4030 = vadd.f32 0.0, %v4029
        %v4031 = vpop.f32.mrb[0].mxu0
        %4032 = vmatprep.mubr.bf16.mxu0 0
        %4033 = vmatmul.mubr.bf16.gmra.mrb[0].mxu0 %v3735
        %v4034 = vpop.f32.mrb[0].mxu0
        %v4035 = vadd.f32 0.0, %v4034
        %v4036 = vpop.f32.mrb[0].mxu0
        %v4037 = vpop.f32.mrb[0].mxu0
        %v4038 = vadd.f32 0.0, %v4037
        %v4039 = vpop.f32.mrb[0].mxu0
        %4040 = vmatprep.mubr.bf16.mxu0 0
        %4041 = vmatmul.mubr.bf16.gmra.mrb[0].mxu0 %v3738
        %v4042 = vpop.f32.mrb[0].mxu0
        %v4043 = vadd.f32 0.0, %v4042
        %v4044 = vpop.f32.mrb[0].mxu0
        %v4045 = vpop.f32.mrb[0].mxu0
        %v4046 = vadd.f32 0.0, %v4045
        %v4047 = vpop.f32.mrb[0].mxu0
        %4048 = vmatprep.mubr.bf16.mxu0 0
        %4049 = vmatmul.mubr.bf16.gmra.mrb[0].mxu0 %v3741
        %v4050 = vpop.f32.mrb[0].mxu0
        %v4051 = vadd.f32 0.0, %v4050
        %v4052 = vpop.f32.mrb[0].mxu0
        %v4053 = vpop.f32.mrb[0].mxu0
        %v4054 = vadd.f32 0.0, %v4053
        %v4055 = vpop.f32.mrb[0].mxu0
        %4056 = vmatprep.mubr.bf16.mxu0 0
        %4057 = vmatmul.mubr.bf16.gmra.mrb[0].mxu0 %v3744
        %v4058 = vpop.f32.mrb[0].mxu0
        %v4059 = vadd.f32 0.0, %v4058
        %v4060 = vpop.f32.mrb[0].mxu0
        %v4061 = vpop.f32.mrb[0].mxu0
        %v4062 = vadd.f32 0.0, %v4061
        %v4063 = vpop.f32.mrb[0].mxu0
        %4064 = vmatprep.mubr.bf16.mxu0 0
        %4065 = vmatmul.mubr.bf16.gmra.mrb[0].mxu0 %v3747
        %v4066 = vpop.f32.mrb[0].mxu0
        %v4067 = vadd.f32 0.0, %v4066
        %v4068 = vpop.f32.mrb[0].mxu0
        %v4069 = vpop.f32.mrb[0].mxu0
        %v4070 = vadd.f32 0.0, %v4069
        %v4071 = vpop.f32.mrb[0].mxu0
        %4072 = vmatprep.mubr.bf16.mxu0 0
        %4073 = vmatmul.mubr.bf16.gmra.mrb[0].mxu0 %v3750
        %v4074 = vpop.f32.mrb[0].mxu0
        %v4075 = vadd.f32 0.0, %v4074
        %v4076 = vpop.f32.mrb[0].mxu0
        %v4077 = vpop.f32.mrb[0].mxu0
        %v4078 = vadd.f32 0.0, %v4077
        %v4079 = vpop.f32.mrb[0].mxu0
        %4080 = vmatprep.mubr.bf16.mxu0 0
        %4081 = vmatmul.mubr.bf16.gmra.mrb[0].mxu0 %v3753
        %v4082 = vpop.f32.mrb[0].mxu0
        %v4083 = vadd.f32 0.0, %v4082
        %v4084 = vpop.f32.mrb[0].mxu0
        %v4085 = vpop.f32.mrb[0].mxu0
        %v4086 = vadd.f32 0.0, %v4085
        %v4087 = vpop.f32.mrb[0].mxu0
        %4088 = vmatprep.mubr.bf16.mxu0 0
        %4089 = vmatmul.mubr.bf16.gmra.mrb[0].mxu0 %v3756
        %v4090 = vpop.f32.mrb[0].mxu0
        %v4091 = vadd.f32 0.0, %v4090
        %v4092 = vpop.f32.mrb[0].mxu0
        %v4093 = vpop.f32.mrb[0].mxu0
        %v4094 = vadd.f32 0.0, %v4093
        %v4095 = vpop.f32.mrb[0].mxu0
        %4096 = vmatprep.mubr.bf16.mxu0 0
        %4097 = vmatmul.mubr.bf16.gmra.mrb[0].mxu0 %v3759
        %v4098 = vpop.f32.mrb[0].mxu0
        %v4099 = vadd.f32 0.0, %v4098
        %v4100 = vpop.f32.mrb[0].mxu0
        %v4101 = vpop.f32.mrb[0].mxu0
        %v4102 = vadd.f32 0.0, %v4101
        %v4103 = vpop.f32.mrb[0].mxu0
        %4104 = vmatprep.mubr.bf16.mxu0 0
        %4105 = vmatmul.mubr.bf16.gmra.mrb[0].mxu0 %v3762
        %v4106 = vpop.f32.mrb[0].mxu0
        %v4107 = vadd.f32 0.0, %v4106
        %v4108 = vpop.f32.mrb[0].mxu0
        %v4109 = vpop.f32.mrb[0].mxu0
        %v4110 = vadd.f32 0.0, %v4109
        %v4111 = vpop.f32.mrb[0].mxu0
        %4112 = vmatprep.mubr.bf16.mxu0 0
        %4113 = vmatmul.mubr.bf16.gmra.mrb[0].mxu0 %v3765
        %v4114 = vpop.f32.mrb[0].mxu0
        %v4115 = vadd.f32 0.0, %v4114
        %v4116 = vpop.f32.mrb[0].mxu0
        %v4117 = vpop.f32.mrb[0].mxu0
        %v4118 = vadd.f32 0.0, %v4117
        %v4119 = vpop.f32.mrb[0].mxu0
        %4120 = vdwg.mxu0
        %v4121 = vadd.f32 %v3523, %v3802
        %v4122 = vadd.f32 %v3524, %v3804
        %v4123 = vadd.f32 %v3525, %v3995
        %v4124 = vadd.f32 %v3526, %v3806
        %v4125 = vadd.f32 %v3527, %v3808
        %v4126 = vadd.f32 %v3528, %v3998
        %v4127 = vadd.f32 %v3529, %v3812
        %v4128 = vadd.f32 %v3530, %v3814
        %v4129 = vadd.f32 %v3531, %v4003
        %v4130 = vadd.f32 %v3532, %v3816
        %v4131 = vadd.f32 %v3533, %v3818
        %v4132 = vadd.f32 %v3534, %v4006
        %v4133 = vadd.f32 %v3535, %v3822
        %v4134 = vadd.f32 %v3536, %v3824
        %v4135 = vadd.f32 %v3537, %v4011
        %v4136 = vadd.f32 %v3538, %v3826
        %v4137 = vadd.f32 %v3539, %v3828
        %v4138 = vadd.f32 %v3540, %v4014
        %v4139 = vadd.f32 %v3541, %v3832
        %v4140 = vadd.f32 %v3542, %v3834
        %v4141 = vadd.f32 %v3543, %v4019
        %v4142 = vadd.f32 %v3544, %v3836
        %v4143 = vadd.f32 %v3545, %v3838
        %v4144 = vadd.f32 %v3546, %v4022
        %v4145 = vadd.f32 %v3547, %v3842
        %v4146 = vadd.f32 %v3548, %v3844
        %v4147 = vadd.f32 %v3549, %v4027
        %v4148 = vadd.f32 %v3550, %v3846
        %v4149 = vadd.f32 %v3551, %v3848
        %v4150 = vadd.f32 %v3552, %v4030
        %v4151 = vadd.f32 %v3553, %v3852
        %v4152 = vadd.f32 %v3554, %v3854
        %v4153 = vadd.f32 %v3555, %v4035
        %v4154 = vadd.f32 %v3556, %v3856
        %v4155 = vadd.f32 %v3557, %v3858
        %v4156 = vadd.f32 %v3558, %v4038
        %v4157 = vadd.f32 %v3559, %v3862
        %v4158 = vadd.f32 %v3560, %v3864
        %v4159 = vadd.f32 %v3561, %v4043
        %v4160 = vadd.f32 %v3562, %v3866
        %v4161 = vadd.f32 %v3563, %v3868
        %v4162 = vadd.f32 %v3564, %v4046
        %v4163 = vadd.f32 %v3565, %v3872
        %v4164 = vadd.f32 %v3566, %v3874
        %v4165 = vadd.f32 %v3567, %v4051
        %v4166 = vadd.f32 %v3568, %v3876
        %v4167 = vadd.f32 %v3569, %v3878
        %v4168 = vadd.f32 %v3570, %v4054
        %v4169 = vadd.f32 %v3571, %v3882
        %v4170 = vadd.f32 %v3572, %v3884
        %v4171 = vadd.f32 %v3573, %v4059
        %v4172 = vadd.f32 %v3574, %v3886
        %v4173 = vadd.f32 %v3575, %v3888
        %v4174 = vadd.f32 %v3576, %v4062
        %v4175 = vadd.f32 %v3577, %v3892
        %v4176 = vadd.f32 %v3578, %v3894
        %v4177 = vadd.f32 %v3579, %v4067
        %v4178 = vadd.f32 %v3580, %v3896
        %v4179 = vadd.f32 %v3581, %v3898
        %v4180 = vadd.f32 %v3582, %v4070
        %v4181 = vadd.f32 %v3583, %v3902
        %v4182 = vadd.f32 %v3584, %v3904
        %v4183 = vadd.f32 %v3585, %v4075
        %v4184 = vadd.f32 %v3586, %v3906
        %v4185 = vadd.f32 %v3587, %v3908
        %v4186 = vadd.f32 %v3588, %v4078
        %v4187 = vadd.f32 %v3589, %v3912
        %v4188 = vadd.f32 %v3590, %v3914
        %v4189 = vadd.f32 %v3591, %v4083
        %v4190 = vadd.f32 %v3592, %v3916
        %v4191 = vadd.f32 %v3593, %v3918
        %v4192 = vadd.f32 %v3594, %v4086
        %v4193 = vadd.f32 %v3595, %v3922
        %v4194 = vadd.f32 %v3596, %v3924
        %v4195 = vadd.f32 %v3597, %v4091
        %v4196 = vadd.f32 %v3598, %v3926
        %v4197 = vadd.f32 %v3599, %v3928
        %v4198 = vadd.f32 %v3600, %v4094
        %v4199 = vadd.f32 %v3601, %v3932
        %v4200 = vadd.f32 %v3602, %v3934
        %v4201 = vadd.f32 %v3603, %v4099
        %v4202 = vadd.f32 %v3604, %v3936
        %v4203 = vadd.f32 %v3605, %v3938
        %v4204 = vadd.f32 %v3606, %v4102
        %v4205 = vadd.f32 %v3607, %v3942
        %v4206 = vadd.f32 %v3608, %v3944
        %v4207 = vadd.f32 %v3609, %v4107
        %v4208 = vadd.f32 %v3610, %v3946
        %v4209 = vadd.f32 %v3611, %v3948
        %v4210 = vadd.f32 %v3612, %v4110
        %v4211 = vadd.f32 %v3613, %v3952
        %v4212 = vadd.f32 %v3614, %v3954
        %v4213 = vadd.f32 %v3615, %v4115
        %v4214 = vadd.f32 %v3616, %v3956
        %v4215 = vadd.f32 %v3617, %v3958
        %v4216 = vadd.f32 %v3618, %v4118
        %v4217 = vld [vmem:[#allocation2 + $0x27] sm:$0xff]
        %v4218 = vld [vmem:[#allocation2 + $0x2f] sm:$0xff]
        %v4219 = vld [vmem:[#allocation2 + $0x37] sm:$0xff]
        %v4220 = vld [vmem:[#allocation2 + $0x3f] sm:$0xff]
        %v4221 = vld [vmem:[#allocation2 + $0x47] sm:$0xff]
        %v4222 = vld [vmem:[#allocation2 + $0x4f] sm:$0xff]
        %v4223 = vld [vmem:[#allocation2 + $0x57] sm:$0xff]
        %v4224 = vld [vmem:[#allocation2 + $0x5f] sm:$0xff]
        %v4225 = vld [vmem:[#allocation2 + $0x67] sm:$0xff]
        %v4226 = vld [vmem:[#allocation2 + $0x6f] sm:$0xff]
        %v4227 = vld [vmem:[#allocation2 + $0x77] sm:$0xff]
        %v4228 = vld [vmem:[#allocation2 + $0x7f] sm:$0xff]
        %v4229 = vld [vmem:[#allocation2 + $0x87] sm:$0xff]
        %v4230 = vld [vmem:[#allocation2 + $0x8f] sm:$0xff]
        %v4231 = vld [vmem:[#allocation2 + $0x97] sm:$0xff]
        %v4232 = vld [vmem:[#allocation2 + $0x9f] sm:$0xff]
        %v4233 = vld [vmem:[#allocation2 + $0xa7] sm:$0xff]
        %v4234 = vld [vmem:[#allocation2 + $0xaf] sm:$0xff]
        %v4235 = vld [vmem:[#allocation2 + $0xb7] sm:$0xff]
        %v4236 = vld [vmem:[#allocation2 + $0xbf] sm:$0xff]
        %v4237 = vld [vmem:[#allocation2 + $0xc7] sm:$0xff]
        %v4238 = vld [vmem:[#allocation2 + $0xcf] sm:$0xff]
        %v4239 = vld [vmem:[#allocation2 + $0xd7] sm:$0xff]
        %v4240 = vld [vmem:[#allocation2 + $0xdf] sm:$0xff]
        %v4241 = vld [vmem:[#allocation2 + $0xe7] sm:$0xff]
        %v4242 = vld [vmem:[#allocation2 + $0xef] sm:$0xff]
        %v4243 = vld [vmem:[#allocation2 + $0xf7] sm:$0xff]
        %v4244 = vld [vmem:[#allocation2 + $0xff] sm:$0xff]
        %v4245 = vld [vmem:[#allocation2 + $0x107] sm:$0xff]
        %v4246 = vld [vmem:[#allocation2 + $0x10f] sm:$0xff]
        %v4247 = vld [vmem:[#allocation2 + $0x117] sm:$0xff]
        %v4248 = vld [vmem:[#allocation2 + $0x11f] sm:$0xff]
        %v4249 = vsel %vm821, %v4217, 0.0
        %v4250 = vsel %vm822, %v4218, 0.0
        %v4251 = vsel %vm823, %v4219, 0.0
        %v4252 = vsel %vm824, %v4220, 0.0
        %v4253 = vsel %vm825, %v4221, 0.0
        %v4254 = vsel %vm826, %v4222, 0.0
        %v4255 = vsel %vm827, %v4223, 0.0
        %v4256 = vsel %vm828, %v4224, 0.0
        %v4257 = vsel %vm829, %v4225, 0.0
        %v4258 = vsel %vm830, %v4226, 0.0
        %v4259 = vsel %vm831, %v4227, 0.0
        %v4260 = vsel %vm832, %v4228, 0.0
        %v4261 = vsel %vm833, %v4229, 0.0
        %v4262 = vsel %vm834, %v4230, 0.0
        %v4263 = vsel %vm835, %v4231, 0.0
        %v4264 = vsel %vm836, %v4232, 0.0
        %v4265 = vsel %vm837, %v4233, 0.0
        %v4266 = vsel %vm838, %v4234, 0.0
        %v4267 = vsel %vm839, %v4235, 0.0
        %v4268 = vsel %vm840, %v4236, 0.0
        %v4269 = vsel %vm841, %v4237, 0.0
        %v4270 = vsel %vm842, %v4238, 0.0
        %v4271 = vsel %vm843, %v4239, 0.0
        %v4272 = vsel %vm844, %v4240, 0.0
        %v4273 = vsel %vm845, %v4241, 0.0
        %v4274 = vsel %vm846, %v4242, 0.0
        %v4275 = vsel %vm847, %v4243, 0.0
        %v4276 = vsel %vm848, %v4244, 0.0
        %v4277 = vsel %vm849, %v4245, 0.0
        %v4278 = vsel %vm850, %v4246, 0.0
        %v4279 = vsel %vm851, %v4247, 0.0
        %v4280 = vsel %vm852, %v4248, 0.0
        %v4281 = vpack.c.bf16 %v4250, %v4249
        %v4282 = vpack.c.bf16 %v4252, %v4251
        %v4283 = vpack.c.bf16 %v4254, %v4253
        %v4284 = vpack.c.bf16 %v4256, %v4255
        %v4285 = vpack.c.bf16 %v4258, %v4257
        %v4286 = vpack.c.bf16 %v4260, %v4259
        %v4287 = vpack.c.bf16 %v4262, %v4261
        %v4288 = vpack.c.bf16 %v4264, %v4263
        %v4289 = vpack.c.bf16 %v4266, %v4265
        %v4290 = vpack.c.bf16 %v4268, %v4267
        %v4291 = vpack.c.bf16 %v4270, %v4269
        %v4292 = vpack.c.bf16 %v4272, %v4271
        %v4293 = vpack.c.bf16 %v4274, %v4273
        %v4294 = vpack.c.bf16 %v4276, %v4275
        %v4295 = vpack.c.bf16 %v4278, %v4277
        %v4296 = vpack.c.bf16 %v4280, %v4279
        %v4297 = vld [vmem:[#allocation6 + $0x90] sm:$0xff]
        %v4298 = vld [vmem:[#allocation6 + $0x98] sm:$0xf]
        %v4299 = vld [vmem:[#allocation6 + $0x9c] sm:$0xff]
        %v4300 = vld [vmem:[#allocation6 + $0xa4] sm:$0xf]
        %v4305 = vunpack.c.l.b16 %v4297
        %v4306 = vunpack.c.h.b16 %v4297
        %v4307 = vunpack.c.l.b16 %v4298
        %v4308 = vunpack.c.l.b16 %v4299
        %v4309 = vunpack.c.h.b16 %v4299
        %v4310 = vunpack.c.l.b16 %v4300
        %v4311 = vpack.c.b16 %v4308, %v4305
        %v4312 = vpack.c.b16 %v4309, %v4306
        %v4313 = vpack.c.b16 %v4310, %v4307
        %v4318 = vsel %vm237, %v4281, 0
        %v4321 = vsel %vm237, %v4282, 0
        %v4324 = vsel %vm237, %v4283, 0
        %v4327 = vsel %vm237, %v4284, 0
        %v4330 = vsel %vm237, %v4285, 0
        %v4333 = vsel %vm237, %v4286, 0
        %v4336 = vsel %vm237, %v4287, 0
        %v4339 = vsel %vm237, %v4288, 0
        %v4342 = vsel %vm237, %v4289, 0
        %v4345 = vsel %vm237, %v4290, 0
        %v4348 = vsel %vm237, %v4291, 0
        %v4351 = vsel %vm237, %v4292, 0
        %v4354 = vsel %vm237, %v4293, 0
        %v4357 = vsel %vm237, %v4294, 0
        %v4360 = vsel %vm237, %v4295, 0
        %v4363 = vsel %vm237, %v4296, 0
        %4365 = vmatprep.subr.bf16.mxu0 %v4312
        %4366 = vmatpush1.bf16.msra.mxu0 %v4311
        %4367 = vmatprep.subr.bf16.mxu0 0
        %4368 = vmatpush1.bf16.msra.mxu0 0
        %4369 = vmatprep.subr.bf16.mxu0 0
        %4370 = vmatpush1.bf16.msra.mxu0 0
        %4371 = vmatprep.subr.bf16.mxu0 0
        %4372 = vmatpush1.bf16.msra.mxu0 0
        %4373 = vmatprep.subr.bf16.mxu0 0
        %4374 = vmatpush1.bf16.msra.mxu0 0
        %4375 = vmatprep.subr.bf16.mxu0 0
        %4376 = vmatpush1.bf16.msra.mxu0 0
        %4377 = vmatprep.subr.bf16.mxu0 0
        %4378 = vmatpush1.bf16.msra.mxu0 0
        %4379 = vmatprep.subr.bf16.mxu0 0
        %4380 = vmatpush1.bf16.msra.mxu0 0
        %4381 = vmatprep.subr.bf16.mxu0 0
        %4382 = vmatpush1.bf16.msra.mxu0 0
        %4383 = vmatprep.subr.bf16.mxu0 0
        %4384 = vmatpush1.bf16.msra.mxu0 0
        %4385 = vmatprep.subr.bf16.mxu0 0
        %4386 = vmatpush1.bf16.msra.mxu0 0
        %4387 = vmatprep.subr.bf16.mxu0 0
        %4388 = vmatpush1.bf16.msra.mxu0 0
        %4389 = vmatprep.subr.bf16.mxu0 0
        %4390 = vmatpush1.bf16.msra.mxu0 0
        %4391 = vmatprep.subr.bf16.mxu0 0
        %4392 = vmatpush1.bf16.msra.mxu0 0
        %4393 = vmatprep.subr.bf16.mxu0 0
        %4394 = vmatpush1.bf16.msra.mxu0 0
        %4395 = vmatprep.subr.bf16.mxu0 0
        %4396 = vmatpush1.bf16.msra.mxu0 0
        %4397 = vmatprep.mubr.bf16.mxu0 0
        %4398 = vmatmul.mubr.bf16.gmra.mrb[0].mxu0 %v4318
        %v4399 = vpop.f32.mrb[0].mxu0
        %v4400 = vadd.f32 0.0, %v4399
        %v4401 = vpop.f32.mrb[0].mxu0
        %v4402 = vadd.f32 0.0, %v4401
        %v4403 = vpop.f32.mrb[0].mxu0
        %v4404 = vadd.f32 0.0, %v4403
        %v4405 = vpop.f32.mrb[0].mxu0
        %v4406 = vadd.f32 0.0, %v4405
        %4407 = vmatprep.mubr.bf16.mxu0 0
        %4408 = vmatmul.mubr.bf16.gmra.mrb[0].mxu0 %v4321
        %v4409 = vpop.f32.mrb[0].mxu0
        %v4410 = vadd.f32 0.0, %v4409
        %v4411 = vpop.f32.mrb[0].mxu0
        %v4412 = vadd.f32 0.0, %v4411
        %v4413 = vpop.f32.mrb[0].mxu0
        %v4414 = vadd.f32 0.0, %v4413
        %v4415 = vpop.f32.mrb[0].mxu0
        %v4416 = vadd.f32 0.0, %v4415
        %4417 = vmatprep.mubr.bf16.mxu0 0
        %4418 = vmatmul.mubr.bf16.gmra.mrb[0].mxu0 %v4324
        %v4419 = vpop.f32.mrb[0].mxu0
        %v4420 = vadd.f32 0.0, %v4419
        %v4421 = vpop.f32.mrb[0].mxu0
        %v4422 = vadd.f32 0.0, %v4421
        %v4423 = vpop.f32.mrb[0].mxu0
        %v4424 = vadd.f32 0.0, %v4423
        %v4425 = vpop.f32.mrb[0].mxu0
        %v4426 = vadd.f32 0.0, %v4425
        %4427 = vmatprep.mubr.bf16.mxu0 0
        %4428 = vmatmul.mubr.bf16.gmra.mrb[0].mxu0 %v4327
        %v4429 = vpop.f32.mrb[0].mxu0
        %v4430 = vadd.f32 0.0, %v4429
        %v4431 = vpop.f32.mrb[0].mxu0
        %v4432 = vadd.f32 0.0, %v4431
        %v4433 = vpop.f32.mrb[0].mxu0
        %v4434 = vadd.f32 0.0, %v4433
        %v4435 = vpop.f32.mrb[0].mxu0
        %v4436 = vadd.f32 0.0, %v4435
        %4437 = vmatprep.mubr.bf16.mxu0 0
        %4438 = vmatmul.mubr.bf16.gmra.mrb[0].mxu0 %v4330
        %v4439 = vpop.f32.mrb[0].mxu0
        %v4440 = vadd.f32 0.0, %v4439
        %v4441 = vpop.f32.mrb[0].mxu0
        %v4442 = vadd.f32 0.0, %v4441
        %v4443 = vpop.f32.mrb[0].mxu0
        %v4444 = vadd.f32 0.0, %v4443
        %v4445 = vpop.f32.mrb[0].mxu0
        %v4446 = vadd.f32 0.0, %v4445
        %4447 = vmatprep.mubr.bf16.mxu0 0
        %4448 = vmatmul.mubr.bf16.gmra.mrb[0].mxu0 %v4333
        %v4449 = vpop.f32.mrb[0].mxu0
        %v4450 = vadd.f32 0.0, %v4449
        %v4451 = vpop.f32.mrb[0].mxu0
        %v4452 = vadd.f32 0.0, %v4451
        %v4453 = vpop.f32.mrb[0].mxu0
        %v4454 = vadd.f32 0.0, %v4453
        %v4455 = vpop.f32.mrb[0].mxu0
        %v4456 = vadd.f32 0.0, %v4455
        %4457 = vmatprep.mubr.bf16.mxu0 0
        %4458 = vmatmul.mubr.bf16.gmra.mrb[0].mxu0 %v4336
        %v4459 = vpop.f32.mrb[0].mxu0
        %v4460 = vadd.f32 0.0, %v4459
        %v4461 = vpop.f32.mrb[0].mxu0
        %v4462 = vadd.f32 0.0, %v4461
        %v4463 = vpop.f32.mrb[0].mxu0
        %v4464 = vadd.f32 0.0, %v4463
        %v4465 = vpop.f32.mrb[0].mxu0
        %v4466 = vadd.f32 0.0, %v4465
        %4467 = vmatprep.mubr.bf16.mxu0 0
        %4468 = vmatmul.mubr.bf16.gmra.mrb[0].mxu0 %v4339
        %v4469 = vpop.f32.mrb[0].mxu0
        %v4470 = vadd.f32 0.0, %v4469
        %v4471 = vpop.f32.mrb[0].mxu0
        %v4472 = vadd.f32 0.0, %v4471
        %v4473 = vpop.f32.mrb[0].mxu0
        %v4474 = vadd.f32 0.0, %v4473
        %v4475 = vpop.f32.mrb[0].mxu0
        %v4476 = vadd.f32 0.0, %v4475
        %4477 = vmatprep.mubr.bf16.mxu0 0
        %4478 = vmatmul.mubr.bf16.gmra.mrb[0].mxu0 %v4342
        %v4479 = vpop.f32.mrb[0].mxu0
        %v4480 = vadd.f32 0.0, %v4479
        %v4481 = vpop.f32.mrb[0].mxu0
        %v4482 = vadd.f32 0.0, %v4481
        %v4483 = vpop.f32.mrb[0].mxu0
        %v4484 = vadd.f32 0.0, %v4483
        %v4485 = vpop.f32.mrb[0].mxu0
        %v4486 = vadd.f32 0.0, %v4485
        %4487 = vmatprep.mubr.bf16.mxu0 0
        %4488 = vmatmul.mubr.bf16.gmra.mrb[0].mxu0 %v4345
        %v4489 = vpop.f32.mrb[0].mxu0
        %v4490 = vadd.f32 0.0, %v4489
        %v4491 = vpop.f32.mrb[0].mxu0
        %v4492 = vadd.f32 0.0, %v4491
        %v4493 = vpop.f32.mrb[0].mxu0
        %v4494 = vadd.f32 0.0, %v4493
        %v4495 = vpop.f32.mrb[0].mxu0
        %v4496 = vadd.f32 0.0, %v4495
        %4497 = vmatprep.mubr.bf16.mxu0 0
        %4498 = vmatmul.mubr.bf16.gmra.mrb[0].mxu0 %v4348
        %v4499 = vpop.f32.mrb[0].mxu0
        %v4500 = vadd.f32 0.0, %v4499
        %v4501 = vpop.f32.mrb[0].mxu0
        %v4502 = vadd.f32 0.0, %v4501
        %v4503 = vpop.f32.mrb[0].mxu0
        %v4504 = vadd.f32 0.0, %v4503
        %v4505 = vpop.f32.mrb[0].mxu0
        %v4506 = vadd.f32 0.0, %v4505
        %4507 = vmatprep.mubr.bf16.mxu0 0
        %4508 = vmatmul.mubr.bf16.gmra.mrb[0].mxu0 %v4351
        %v4509 = vpop.f32.mrb[0].mxu0
        %v4510 = vadd.f32 0.0, %v4509
        %v4511 = vpop.f32.mrb[0].mxu0
        %v4512 = vadd.f32 0.0, %v4511
        %v4513 = vpop.f32.mrb[0].mxu0
        %v4514 = vadd.f32 0.0, %v4513
        %v4515 = vpop.f32.mrb[0].mxu0
        %v4516 = vadd.f32 0.0, %v4515
        %4517 = vmatprep.mubr.bf16.mxu0 0
        %4518 = vmatmul.mubr.bf16.gmra.mrb[0].mxu0 %v4354
        %v4519 = vpop.f32.mrb[0].mxu0
        %v4520 = vadd.f32 0.0, %v4519
        %v4521 = vpop.f32.mrb[0].mxu0
        %v4522 = vadd.f32 0.0, %v4521
        %v4523 = vpop.f32.mrb[0].mxu0
        %v4524 = vadd.f32 0.0, %v4523
        %v4525 = vpop.f32.mrb[0].mxu0
        %v4526 = vadd.f32 0.0, %v4525
        %4527 = vmatprep.mubr.bf16.mxu0 0
        %4528 = vmatmul.mubr.bf16.gmra.mrb[0].mxu0 %v4357
        %v4529 = vpop.f32.mrb[0].mxu0
        %v4530 = vadd.f32 0.0, %v4529
        %v4531 = vpop.f32.mrb[0].mxu0
        %v4532 = vadd.f32 0.0, %v4531
        %v4533 = vpop.f32.mrb[0].mxu0
        %v4534 = vadd.f32 0.0, %v4533
        %v4535 = vpop.f32.mrb[0].mxu0
        %v4536 = vadd.f32 0.0, %v4535
        %4537 = vmatprep.mubr.bf16.mxu0 0
        %4538 = vmatmul.mubr.bf16.gmra.mrb[0].mxu0 %v4360
        %v4539 = vpop.f32.mrb[0].mxu0
        %v4540 = vadd.f32 0.0, %v4539
        %v4541 = vpop.f32.mrb[0].mxu0
        %v4542 = vadd.f32 0.0, %v4541
        %v4543 = vpop.f32.mrb[0].mxu0
        %v4544 = vadd.f32 0.0, %v4543
        %v4545 = vpop.f32.mrb[0].mxu0
        %v4546 = vadd.f32 0.0, %v4545
        %4547 = vmatprep.mubr.bf16.mxu0 0
        %4548 = vmatmul.mubr.bf16.gmra.mrb[0].mxu0 %v4363
        %v4549 = vpop.f32.mrb[0].mxu0
        %v4550 = vadd.f32 0.0, %v4549
        %v4551 = vpop.f32.mrb[0].mxu0
        %v4552 = vadd.f32 0.0, %v4551
        %v4553 = vpop.f32.mrb[0].mxu0
        %v4554 = vadd.f32 0.0, %v4553
        %v4555 = vpop.f32.mrb[0].mxu0
        %v4556 = vadd.f32 0.0, %v4555
        %4557 = vdwg.mxu0
        %4558 = vmatprep.subr.bf16.mxu0 0
        %4559 = vmatpush1.bf16.msra.mxu0 %v4313
        %4560 = vmatprep.subr.bf16.mxu0 0
        %4561 = vmatpush1.bf16.msra.mxu0 0
        %4562 = vmatprep.subr.bf16.mxu0 0
        %4563 = vmatpush1.bf16.msra.mxu0 0
        %4564 = vmatprep.subr.bf16.mxu0 0
        %4565 = vmatpush1.bf16.msra.mxu0 0
        %4566 = vmatprep.subr.bf16.mxu0 0
        %4567 = vmatpush1.bf16.msra.mxu0 0
        %4568 = vmatprep.subr.bf16.mxu0 0
        %4569 = vmatpush1.bf16.msra.mxu0 0
        %4570 = vmatprep.subr.bf16.mxu0 0
        %4571 = vmatpush1.bf16.msra.mxu0 0
        %4572 = vmatprep.subr.bf16.mxu0 0
        %4573 = vmatpush1.bf16.msra.mxu0 0
        %4574 = vmatprep.subr.bf16.mxu0 0
        %4575 = vmatpush1.bf16.msra.mxu0 0
        %4576 = vmatprep.subr.bf16.mxu0 0
        %4577 = vmatpush1.bf16.msra.mxu0 0
        %4578 = vmatprep.subr.bf16.mxu0 0
        %4579 = vmatpush1.bf16.msra.mxu0 0
        %4580 = vmatprep.subr.bf16.mxu0 0
        %4581 = vmatpush1.bf16.msra.mxu0 0
        %4582 = vmatprep.subr.bf16.mxu0 0
        %4583 = vmatpush1.bf16.msra.mxu0 0
        %4584 = vmatprep.subr.bf16.mxu0 0
        %4585 = vmatpush1.bf16.msra.mxu0 0
        %4586 = vmatprep.subr.bf16.mxu0 0
        %4587 = vmatpush1.bf16.msra.mxu0 0
        %4588 = vmatprep.subr.bf16.mxu0 0
        %4589 = vmatpush1.bf16.msra.mxu0 0
        %4590 = vmatprep.mubr.bf16.mxu0 0
        %4591 = vmatmul.mubr.bf16.gmra.mrb[0].mxu0 %v4318
        %v4592 = vpop.f32.mrb[0].mxu0
        %v4593 = vadd.f32 0.0, %v4592
        %v4594 = vpop.f32.mrb[0].mxu0
        %v4595 = vpop.f32.mrb[0].mxu0
        %v4596 = vadd.f32 0.0, %v4595
        %v4597 = vpop.f32.mrb[0].mxu0
        %4598 = vmatprep.mubr.bf16.mxu0 0
        %4599 = vmatmul.mubr.bf16.gmra.mrb[0].mxu0 %v4321
        %v4600 = vpop.f32.mrb[0].mxu0
        %v4601 = vadd.f32 0.0, %v4600
        %v4602 = vpop.f32.mrb[0].mxu0
        %v4603 = vpop.f32.mrb[0].mxu0
        %v4604 = vadd.f32 0.0, %v4603
        %v4605 = vpop.f32.mrb[0].mxu0
        %4606 = vmatprep.mubr.bf16.mxu0 0
        %4607 = vmatmul.mubr.bf16.gmra.mrb[0].mxu0 %v4324
        %v4608 = vpop.f32.mrb[0].mxu0
        %v4609 = vadd.f32 0.0, %v4608
        %v4610 = vpop.f32.mrb[0].mxu0
        %v4611 = vpop.f32.mrb[0].mxu0
        %v4612 = vadd.f32 0.0, %v4611
        %v4613 = vpop.f32.mrb[0].mxu0
        %4614 = vmatprep.mubr.bf16.mxu0 0
        %4615 = vmatmul.mubr.bf16.gmra.mrb[0].mxu0 %v4327
        %v4616 = vpop.f32.mrb[0].mxu0
        %v4617 = vadd.f32 0.0, %v4616
        %v4618 = vpop.f32.mrb[0].mxu0
        %v4619 = vpop.f32.mrb[0].mxu0
        %v4620 = vadd.f32 0.0, %v4619
        %v4621 = vpop.f32.mrb[0].mxu0
        %4622 = vmatprep.mubr.bf16.mxu0 0
        %4623 = vmatmul.mubr.bf16.gmra.mrb[0].mxu0 %v4330
        %v4624 = vpop.f32.mrb[0].mxu0
        %v4625 = vadd.f32 0.0, %v4624
        %v4626 = vpop.f32.mrb[0].mxu0
        %v4627 = vpop.f32.mrb[0].mxu0
        %v4628 = vadd.f32 0.0, %v4627
        %v4629 = vpop.f32.mrb[0].mxu0
        %4630 = vmatprep.mubr.bf16.mxu0 0
        %4631 = vmatmul.mubr.bf16.gmra.mrb[0].mxu0 %v4333
        %v4632 = vpop.f32.mrb[0].mxu0
        %v4633 = vadd.f32 0.0, %v4632
        %v4634 = vpop.f32.mrb[0].mxu0
        %v4635 = vpop.f32.mrb[0].mxu0
        %v4636 = vadd.f32 0.0, %v4635
        %v4637 = vpop.f32.mrb[0].mxu0
        %4638 = vmatprep.mubr.bf16.mxu0 0
        %4639 = vmatmul.mubr.bf16.gmra.mrb[0].mxu0 %v4336
        %v4640 = vpop.f32.mrb[0].mxu0
        %v4641 = vadd.f32 0.0, %v4640
        %v4642 = vpop.f32.mrb[0].mxu0
        %v4643 = vpop.f32.mrb[0].mxu0
        %v4644 = vadd.f32 0.0, %v4643
        %v4645 = vpop.f32.mrb[0].mxu0
        %4646 = vmatprep.mubr.bf16.mxu0 0
        %4647 = vmatmul.mubr.bf16.gmra.mrb[0].mxu0 %v4339
        %v4648 = vpop.f32.mrb[0].mxu0
        %v4649 = vadd.f32 0.0, %v4648
        %v4650 = vpop.f32.mrb[0].mxu0
        %v4651 = vpop.f32.mrb[0].mxu0
        %v4652 = vadd.f32 0.0, %v4651
        %v4653 = vpop.f32.mrb[0].mxu0
        %4654 = vmatprep.mubr.bf16.mxu0 0
        %4655 = vmatmul.mubr.bf16.gmra.mrb[0].mxu0 %v4342
        %v4656 = vpop.f32.mrb[0].mxu0
        %v4657 = vadd.f32 0.0, %v4656
        %v4658 = vpop.f32.mrb[0].mxu0
        %v4659 = vpop.f32.mrb[0].mxu0
        %v4660 = vadd.f32 0.0, %v4659
        %v4661 = vpop.f32.mrb[0].mxu0
        %4662 = vmatprep.mubr.bf16.mxu0 0
        %4663 = vmatmul.mubr.bf16.gmra.mrb[0].mxu0 %v4345
        %v4664 = vpop.f32.mrb[0].mxu0
        %v4665 = vadd.f32 0.0, %v4664
        %v4666 = vpop.f32.mrb[0].mxu0
        %v4667 = vpop.f32.mrb[0].mxu0
        %v4668 = vadd.f32 0.0, %v4667
        %v4669 = vpop.f32.mrb[0].mxu0
        %4670 = vmatprep.mubr.bf16.mxu0 0
        %4671 = vmatmul.mubr.bf16.gmra.mrb[0].mxu0 %v4348
        %v4672 = vpop.f32.mrb[0].mxu0
        %v4673 = vadd.f32 0.0, %v4672
        %v4674 = vpop.f32.mrb[0].mxu0
        %v4675 = vpop.f32.mrb[0].mxu0
        %v4676 = vadd.f32 0.0, %v4675
        %v4677 = vpop.f32.mrb[0].mxu0
        %4678 = vmatprep.mubr.bf16.mxu0 0
        %4679 = vmatmul.mubr.bf16.gmra.mrb[0].mxu0 %v4351
        %v4680 = vpop.f32.mrb[0].mxu0
        %v4681 = vadd.f32 0.0, %v4680
        %v4682 = vpop.f32.mrb[0].mxu0
        %v4683 = vpop.f32.mrb[0].mxu0
        %v4684 = vadd.f32 0.0, %v4683
        %v4685 = vpop.f32.mrb[0].mxu0
        %4686 = vmatprep.mubr.bf16.mxu0 0
        %4687 = vmatmul.mubr.bf16.gmra.mrb[0].mxu0 %v4354
        %v4688 = vpop.f32.mrb[0].mxu0
        %v4689 = vadd.f32 0.0, %v4688
        %v4690 = vpop.f32.mrb[0].mxu0
        %v4691 = vpop.f32.mrb[0].mxu0
        %v4692 = vadd.f32 0.0, %v4691
        %v4693 = vpop.f32.mrb[0].mxu0
        %4694 = vmatprep.mubr.bf16.mxu0 0
        %4695 = vmatmul.mubr.bf16.gmra.mrb[0].mxu0 %v4357
        %v4696 = vpop.f32.mrb[0].mxu0
        %v4697 = vadd.f32 0.0, %v4696
        %v4698 = vpop.f32.mrb[0].mxu0
        %v4699 = vpop.f32.mrb[0].mxu0
        %v4700 = vadd.f32 0.0, %v4699
        %v4701 = vpop.f32.mrb[0].mxu0
        %4702 = vmatprep.mubr.bf16.mxu0 0
        %4703 = vmatmul.mubr.bf16.gmra.mrb[0].mxu0 %v4360
        %v4704 = vpop.f32.mrb[0].mxu0
        %v4705 = vadd.f32 0.0, %v4704
        %v4706 = vpop.f32.mrb[0].mxu0
        %v4707 = vpop.f32.mrb[0].mxu0
        %v4708 = vadd.f32 0.0, %v4707
        %v4709 = vpop.f32.mrb[0].mxu0
        %4710 = vmatprep.mubr.bf16.mxu0 0
        %4711 = vmatmul.mubr.bf16.gmra.mrb[0].mxu0 %v4363
        %v4712 = vpop.f32.mrb[0].mxu0
        %v4713 = vadd.f32 0.0, %v4712
        %v4714 = vpop.f32.mrb[0].mxu0
        %v4715 = vpop.f32.mrb[0].mxu0
        %v4716 = vadd.f32 0.0, %v4715
        %v4717 = vpop.f32.mrb[0].mxu0
        %4718 = vdwg.mxu0
        %v4719 = vadd.f32 %v4121, %v4400
        %v4720 = vadd.f32 %v4122, %v4402
        %v4721 = vadd.f32 %v4123, %v4593
        %v4722 = vadd.f32 %v4124, %v4404
        %v4723 = vadd.f32 %v4125, %v4406
        %v4724 = vadd.f32 %v4126, %v4596
        %v4725 = vadd.f32 %v4127, %v4410
        %v4726 = vadd.f32 %v4128, %v4412
        %v4727 = vadd.f32 %v4129, %v4601
        %v4728 = vadd.f32 %v4130, %v4414
        %v4729 = vadd.f32 %v4131, %v4416
        %v4730 = vadd.f32 %v4132, %v4604
        %v4731 = vadd.f32 %v4133, %v4420
        %v4732 = vadd.f32 %v4134, %v4422
        %v4733 = vadd.f32 %v4135, %v4609
        %v4734 = vadd.f32 %v4136, %v4424
        %v4735 = vadd.f32 %v4137, %v4426
        %v4736 = vadd.f32 %v4138, %v4612
        %v4737 = vadd.f32 %v4139, %v4430
        %v4738 = vadd.f32 %v4140, %v4432
        %v4739 = vadd.f32 %v4141, %v4617
        %v4740 = vadd.f32 %v4142, %v4434
        %v4741 = vadd.f32 %v4143, %v4436
        %v4742 = vadd.f32 %v4144, %v4620
        %v4743 = vadd.f32 %v4145, %v4440
        %v4744 = vadd.f32 %v4146, %v4442
        %v4745 = vadd.f32 %v4147, %v4625
        %v4746 = vadd.f32 %v4148, %v4444
        %v4747 = vadd.f32 %v4149, %v4446
        %v4748 = vadd.f32 %v4150, %v4628
        %v4749 = vadd.f32 %v4151, %v4450
        %v4750 = vadd.f32 %v4152, %v4452
        %v4751 = vadd.f32 %v4153, %v4633
        %v4752 = vadd.f32 %v4154, %v4454
        %v4753 = vadd.f32 %v4155, %v4456
        %v4754 = vadd.f32 %v4156, %v4636
        %v4755 = vadd.f32 %v4157, %v4460
        %v4756 = vadd.f32 %v4158, %v4462
        %v4757 = vadd.f32 %v4159, %v4641
        %v4758 = vadd.f32 %v4160, %v4464
        %v4759 = vadd.f32 %v4161, %v4466
        %v4760 = vadd.f32 %v4162, %v4644
        %v4761 = vadd.f32 %v4163, %v4470
        %v4762 = vadd.f32 %v4164, %v4472
        %v4763 = vadd.f32 %v4165, %v4649
        %v4764 = vadd.f32 %v4166, %v4474
        %v4765 = vadd.f32 %v4167, %v4476
        %v4766 = vadd.f32 %v4168, %v4652
        %v4767 = vadd.f32 %v4169, %v4480
        %v4768 = vadd.f32 %v4170, %v4482
        %v4769 = vadd.f32 %v4171, %v4657
        %v4770 = vadd.f32 %v4172, %v4484
        %v4771 = vadd.f32 %v4173, %v4486
        %v4772 = vadd.f32 %v4174, %v4660
        %v4773 = vadd.f32 %v4175, %v4490
        %v4774 = vadd.f32 %v4176, %v4492
        %v4775 = vadd.f32 %v4177, %v4665
        %v4776 = vadd.f32 %v4178, %v4494
        %v4777 = vadd.f32 %v4179, %v4496
        %v4778 = vadd.f32 %v4180, %v4668
        %v4779 = vadd.f32 %v4181, %v4500
        %v4780 = vadd.f32 %v4182, %v4502
        %v4781 = vadd.f32 %v4183, %v4673
        %v4782 = vadd.f32 %v4184, %v4504
        %v4783 = vadd.f32 %v4185, %v4506
        %v4784 = vadd.f32 %v4186, %v4676
        %v4785 = vadd.f32 %v4187, %v4510
        %v4786 = vadd.f32 %v4188, %v4512
        %v4787 = vadd.f32 %v4189, %v4681
        %v4788 = vadd.f32 %v4190, %v4514
        %v4789 = vadd.f32 %v4191, %v4516
        %v4790 = vadd.f32 %v4192, %v4684
        %v4791 = vadd.f32 %v4193, %v4520
        %v4792 = vadd.f32 %v4194, %v4522
        %v4793 = vadd.f32 %v4195, %v4689
        %v4794 = vadd.f32 %v4196, %v4524
        %v4795 = vadd.f32 %v4197, %v4526
        %v4796 = vadd.f32 %v4198, %v4692
        %v4797 = vadd.f32 %v4199, %v4530
        %v4798 = vadd.f32 %v4200, %v4532
        %v4799 = vadd.f32 %v4201, %v4697
        %v4800 = vadd.f32 %v4202, %v4534
        %v4801 = vadd.f32 %v4203, %v4536
        %v4802 = vadd.f32 %v4204, %v4700
        %v4803 = vadd.f32 %v4205, %v4540
        %v4804 = vadd.f32 %v4206, %v4542
        %v4805 = vadd.f32 %v4207, %v4705
        %v4806 = vadd.f32 %v4208, %v4544
        %v4807 = vadd.f32 %v4209, %v4546
        %v4808 = vadd.f32 %v4210, %v4708
        %v4809 = vadd.f32 %v4211, %v4550
        %v4810 = vadd.f32 %v4212, %v4552
        %v4811 = vadd.f32 %v4213, %v4713
        %v4812 = vadd.f32 %v4214, %v4554
        %v4813 = vadd.f32 %v4215, %v4556
        %v4814 = vadd.f32 %v4216, %v4716
        %v4815 = vld [vmem:[#allocation2 + $0x28] sm:$0xff]
        %v4816 = vld [vmem:[#allocation2 + $0x30] sm:$0xff]
        %v4817 = vld [vmem:[#allocation2 + $0x38] sm:$0xff]
        %v4818 = vld [vmem:[#allocation2 + $0x40] sm:$0xff]
        %v4819 = vld [vmem:[#allocation2 + $0x48] sm:$0xff]
        %v4820 = vld [vmem:[#allocation2 + $0x50] sm:$0xff]
        %v4821 = vld [vmem:[#allocation2 + $0x58] sm:$0xff]
        %v4822 = vld [vmem:[#allocation2 + $0x60] sm:$0xff]
        %v4823 = vld [vmem:[#allocation2 + $0x68] sm:$0xff]
        %v4824 = vld [vmem:[#allocation2 + $0x70] sm:$0xff]
        %v4825 = vld [vmem:[#allocation2 + $0x78] sm:$0xff]
        %v4826 = vld [vmem:[#allocation2 + $0x80] sm:$0xff]
        %v4827 = vld [vmem:[#allocation2 + $0x88] sm:$0xff]
        %v4828 = vld [vmem:[#allocation2 + $0x90] sm:$0xff]
        %v4829 = vld [vmem:[#allocation2 + $0x98] sm:$0xff]
        %v4830 = vld [vmem:[#allocation2 + $0xa0] sm:$0xff]
        %v4831 = vld [vmem:[#allocation2 + $0xa8] sm:$0xff]
        %v4832 = vld [vmem:[#allocation2 + $0xb0] sm:$0xff]
        %v4833 = vld [vmem:[#allocation2 + $0xb8] sm:$0xff]
        %v4834 = vld [vmem:[#allocation2 + $0xc0] sm:$0xff]
        %v4835 = vld [vmem:[#allocation2 + $0xc8] sm:$0xff]
        %v4836 = vld [vmem:[#allocation2 + $0xd0] sm:$0xff]
        %v4837 = vld [vmem:[#allocation2 + $0xd8] sm:$0xff]
        %v4838 = vld [vmem:[#allocation2 + $0xe0] sm:$0xff]
        %v4839 = vld [vmem:[#allocation2 + $0xe8] sm:$0xff]
        %v4840 = vld [vmem:[#allocation2 + $0xf0] sm:$0xff]
        %v4841 = vld [vmem:[#allocation2 + $0xf8] sm:$0xff]
        %v4842 = vld [vmem:[#allocation2 + $0x100] sm:$0xff]
        %v4843 = vld [vmem:[#allocation2 + $0x108] sm:$0xff]
        %v4844 = vld [vmem:[#allocation2 + $0x110] sm:$0xff]
        %v4845 = vld [vmem:[#allocation2 + $0x118] sm:$0xff]
        %v4846 = vld [vmem:[#allocation2 + $0x120] sm:$0xff]
        %v4847 = vpack.c.bf16 %v4816, %v4815
        %v4848 = vpack.c.bf16 %v4818, %v4817
        %v4849 = vpack.c.bf16 %v4820, %v4819
        %v4850 = vpack.c.bf16 %v4822, %v4821
        %v4851 = vpack.c.bf16 %v4824, %v4823
        %v4852 = vpack.c.bf16 %v4826, %v4825
        %v4853 = vpack.c.bf16 %v4828, %v4827
        %v4854 = vpack.c.bf16 %v4830, %v4829
        %v4855 = vpack.c.bf16 %v4832, %v4831
        %v4856 = vpack.c.bf16 %v4834, %v4833
        %v4857 = vpack.c.bf16 %v4836, %v4835
        %v4858 = vpack.c.bf16 %v4838, %v4837
        %v4859 = vpack.c.bf16 %v4840, %v4839
        %v4860 = vpack.c.bf16 %v4842, %v4841
        %v4861 = vpack.c.bf16 %v4844, %v4843
        %v4862 = vpack.c.bf16 %v4846, %v4845
        %v4863 = vld [vmem:[#allocation6 + $0xa8] sm:$0xff]
        %v4864 = vld [vmem:[#allocation6 + $0xb0] sm:$0xf]
        %v4865 = vld [vmem:[#allocation6 + $0xb4] sm:$0xff]
        %v4866 = vld [vmem:[#allocation6 + $0xbc] sm:$0xf]
        %v4871 = vunpack.c.l.b16 %v4863
        %v4872 = vunpack.c.h.b16 %v4863
        %v4873 = vunpack.c.l.b16 %v4864
        %v4874 = vunpack.c.l.b16 %v4865
        %v4875 = vunpack.c.h.b16 %v4865
        %v4876 = vunpack.c.l.b16 %v4866
        %v4877 = vpack.c.b16 %v4874, %v4871
        %v4878 = vpack.c.b16 %v4875, %v4872
        %v4879 = vpack.c.b16 %v4876, %v4873
        %v4884 = vsel %vm237, %v4847, 0
        %v4887 = vsel %vm237, %v4848, 0
        %v4890 = vsel %vm237, %v4849, 0
        %v4893 = vsel %vm237, %v4850, 0
        %v4896 = vsel %vm237, %v4851, 0
        %v4899 = vsel %vm237, %v4852, 0
        %v4902 = vsel %vm237, %v4853, 0
        %v4905 = vsel %vm237, %v4854, 0
        %v4908 = vsel %vm237, %v4855, 0
        %v4911 = vsel %vm237, %v4856, 0
        %v4914 = vsel %vm237, %v4857, 0
        %v4917 = vsel %vm237, %v4858, 0
        %v4920 = vsel %vm237, %v4859, 0
        %v4923 = vsel %vm237, %v4860, 0
        %v4926 = vsel %vm237, %v4861, 0
        %v4929 = vsel %vm237, %v4862, 0
        %4931 = vmatprep.subr.bf16.mxu0 %v4878
        %4932 = vmatpush1.bf16.msra.mxu0 %v4877
        %4933 = vmatprep.subr.bf16.mxu0 0
        %4934 = vmatpush1.bf16.msra.mxu0 0
        %4935 = vmatprep.subr.bf16.mxu0 0
        %4936 = vmatpush1.bf16.msra.mxu0 0
        %4937 = vmatprep.subr.bf16.mxu0 0
        %4938 = vmatpush1.bf16.msra.mxu0 0
        %4939 = vmatprep.subr.bf16.mxu0 0
        %4940 = vmatpush1.bf16.msra.mxu0 0
        %4941 = vmatprep.subr.bf16.mxu0 0
        %4942 = vmatpush1.bf16.msra.mxu0 0
        %4943 = vmatprep.subr.bf16.mxu0 0
        %4944 = vmatpush1.bf16.msra.mxu0 0
        %4945 = vmatprep.subr.bf16.mxu0 0
        %4946 = vmatpush1.bf16.msra.mxu0 0
        %4947 = vmatprep.subr.bf16.mxu0 0
        %4948 = vmatpush1.bf16.msra.mxu0 0
        %4949 = vmatprep.subr.bf16.mxu0 0
        %4950 = vmatpush1.bf16.msra.mxu0 0
        %4951 = vmatprep.subr.bf16.mxu0 0
        %4952 = vmatpush1.bf16.msra.mxu0 0
        %4953 = vmatprep.subr.bf16.mxu0 0
        %4954 = vmatpush1.bf16.msra.mxu0 0
        %4955 = vmatprep.subr.bf16.mxu0 0
        %4956 = vmatpush1.bf16.msra.mxu0 0
        %4957 = vmatprep.subr.bf16.mxu0 0
        %4958 = vmatpush1.bf16.msra.mxu0 0
        %4959 = vmatprep.subr.bf16.mxu0 0
        %4960 = vmatpush1.bf16.msra.mxu0 0
        %4961 = vmatprep.subr.bf16.mxu0 0
        %4962 = vmatpush1.bf16.msra.mxu0 0
        %4963 = vmatprep.mubr.bf16.mxu0 0
        %4964 = vmatmul.mubr.bf16.gmra.mrb[0].mxu0 %v4884
        %v4965 = vpop.f32.mrb[0].mxu0
        %v4966 = vadd.f32 0.0, %v4965
        %v4967 = vpop.f32.mrb[0].mxu0
        %v4968 = vadd.f32 0.0, %v4967
        %v4969 = vpop.f32.mrb[0].mxu0
        %v4970 = vadd.f32 0.0, %v4969
        %v4971 = vpop.f32.mrb[0].mxu0
        %v4972 = vadd.f32 0.0, %v4971
        %4973 = vmatprep.mubr.bf16.mxu0 0
        %4974 = vmatmul.mubr.bf16.gmra.mrb[0].mxu0 %v4887
        %v4975 = vpop.f32.mrb[0].mxu0
        %v4976 = vadd.f32 0.0, %v4975
        %v4977 = vpop.f32.mrb[0].mxu0
        %v4978 = vadd.f32 0.0, %v4977
        %v4979 = vpop.f32.mrb[0].mxu0
        %v4980 = vadd.f32 0.0, %v4979
        %v4981 = vpop.f32.mrb[0].mxu0
        %v4982 = vadd.f32 0.0, %v4981
        %4983 = vmatprep.mubr.bf16.mxu0 0
        %4984 = vmatmul.mubr.bf16.gmra.mrb[0].mxu0 %v4890
        %v4985 = vpop.f32.mrb[0].mxu0
        %v4986 = vadd.f32 0.0, %v4985
        %v4987 = vpop.f32.mrb[0].mxu0
        %v4988 = vadd.f32 0.0, %v4987
        %v4989 = vpop.f32.mrb[0].mxu0
        %v4990 = vadd.f32 0.0, %v4989
        %v4991 = vpop.f32.mrb[0].mxu0
        %v4992 = vadd.f32 0.0, %v4991
        %4993 = vmatprep.mubr.bf16.mxu0 0
        %4994 = vmatmul.mubr.bf16.gmra.mrb[0].mxu0 %v4893
        %v4995 = vpop.f32.mrb[0].mxu0
        %v4996 = vadd.f32 0.0, %v4995
        %v4997 = vpop.f32.mrb[0].mxu0
        %v4998 = vadd.f32 0.0, %v4997
        %v4999 = vpop.f32.mrb[0].mxu0
        %v5000 = vadd.f32 0.0, %v4999
        %v5001 = vpop.f32.mrb[0].mxu0
        %v5002 = vadd.f32 0.0, %v5001
        %5003 = vmatprep.mubr.bf16.mxu0 0
        %5004 = vmatmul.mubr.bf16.gmra.mrb[0].mxu0 %v4896
        %v5005 = vpop.f32.mrb[0].mxu0
        %v5006 = vadd.f32 0.0, %v5005
        %v5007 = vpop.f32.mrb[0].mxu0
        %v5008 = vadd.f32 0.0, %v5007
        %v5009 = vpop.f32.mrb[0].mxu0
        %v5010 = vadd.f32 0.0, %v5009
        %v5011 = vpop.f32.mrb[0].mxu0
        %v5012 = vadd.f32 0.0, %v5011
        %5013 = vmatprep.mubr.bf16.mxu0 0
        %5014 = vmatmul.mubr.bf16.gmra.mrb[0].mxu0 %v4899
        %v5015 = vpop.f32.mrb[0].mxu0
        %v5016 = vadd.f32 0.0, %v5015
        %v5017 = vpop.f32.mrb[0].mxu0
        %v5018 = vadd.f32 0.0, %v5017
        %v5019 = vpop.f32.mrb[0].mxu0
        %v5020 = vadd.f32 0.0, %v5019
        %v5021 = vpop.f32.mrb[0].mxu0
        %v5022 = vadd.f32 0.0, %v5021
        %5023 = vmatprep.mubr.bf16.mxu0 0
        %5024 = vmatmul.mubr.bf16.gmra.mrb[0].mxu0 %v4902
        %v5025 = vpop.f32.mrb[0].mxu0
        %v5026 = vadd.f32 0.0, %v5025
        %v5027 = vpop.f32.mrb[0].mxu0
        %v5028 = vadd.f32 0.0, %v5027
        %v5029 = vpop.f32.mrb[0].mxu0
        %v5030 = vadd.f32 0.0, %v5029
        %v5031 = vpop.f32.mrb[0].mxu0
        %v5032 = vadd.f32 0.0, %v5031
        %5033 = vmatprep.mubr.bf16.mxu0 0
        %5034 = vmatmul.mubr.bf16.gmra.mrb[0].mxu0 %v4905
        %v5035 = vpop.f32.mrb[0].mxu0
        %v5036 = vadd.f32 0.0, %v5035
        %v5037 = vpop.f32.mrb[0].mxu0
        %v5038 = vadd.f32 0.0, %v5037
        %v5039 = vpop.f32.mrb[0].mxu0
        %v5040 = vadd.f32 0.0, %v5039
        %v5041 = vpop.f32.mrb[0].mxu0
        %v5042 = vadd.f32 0.0, %v5041
        %5043 = vmatprep.mubr.bf16.mxu0 0
        %5044 = vmatmul.mubr.bf16.gmra.mrb[0].mxu0 %v4908
        %v5045 = vpop.f32.mrb[0].mxu0
        %v5046 = vadd.f32 0.0, %v5045
        %v5047 = vpop.f32.mrb[0].mxu0
        %v5048 = vadd.f32 0.0, %v5047
        %v5049 = vpop.f32.mrb[0].mxu0
        %v5050 = vadd.f32 0.0, %v5049
        %v5051 = vpop.f32.mrb[0].mxu0
        %v5052 = vadd.f32 0.0, %v5051
        %5053 = vmatprep.mubr.bf16.mxu0 0
        %5054 = vmatmul.mubr.bf16.gmra.mrb[0].mxu0 %v4911
        %v5055 = vpop.f32.mrb[0].mxu0
        %v5056 = vadd.f32 0.0, %v5055
        %v5057 = vpop.f32.mrb[0].mxu0
        %v5058 = vadd.f32 0.0, %v5057
        %v5059 = vpop.f32.mrb[0].mxu0
        %v5060 = vadd.f32 0.0, %v5059
        %v5061 = vpop.f32.mrb[0].mxu0
        %v5062 = vadd.f32 0.0, %v5061
        %5063 = vmatprep.mubr.bf16.mxu0 0
        %5064 = vmatmul.mubr.bf16.gmra.mrb[0].mxu0 %v4914
        %v5065 = vpop.f32.mrb[0].mxu0
        %v5066 = vadd.f32 0.0, %v5065
        %v5067 = vpop.f32.mrb[0].mxu0
        %v5068 = vadd.f32 0.0, %v5067
        %v5069 = vpop.f32.mrb[0].mxu0
        %v5070 = vadd.f32 0.0, %v5069
        %v5071 = vpop.f32.mrb[0].mxu0
        %v5072 = vadd.f32 0.0, %v5071
        %5073 = vmatprep.mubr.bf16.mxu0 0
        %5074 = vmatmul.mubr.bf16.gmra.mrb[0].mxu0 %v4917
        %v5075 = vpop.f32.mrb[0].mxu0
        %v5076 = vadd.f32 0.0, %v5075
        %v5077 = vpop.f32.mrb[0].mxu0
        %v5078 = vadd.f32 0.0, %v5077
        %v5079 = vpop.f32.mrb[0].mxu0
        %v5080 = vadd.f32 0.0, %v5079
        %v5081 = vpop.f32.mrb[0].mxu0
        %v5082 = vadd.f32 0.0, %v5081
        %5083 = vmatprep.mubr.bf16.mxu0 0
        %5084 = vmatmul.mubr.bf16.gmra.mrb[0].mxu0 %v4920
        %v5085 = vpop.f32.mrb[0].mxu0
        %v5086 = vadd.f32 0.0, %v5085
        %v5087 = vpop.f32.mrb[0].mxu0
        %v5088 = vadd.f32 0.0, %v5087
        %v5089 = vpop.f32.mrb[0].mxu0
        %v5090 = vadd.f32 0.0, %v5089
        %v5091 = vpop.f32.mrb[0].mxu0
        %v5092 = vadd.f32 0.0, %v5091
        %5093 = vmatprep.mubr.bf16.mxu0 0
        %5094 = vmatmul.mubr.bf16.gmra.mrb[0].mxu0 %v4923
        %v5095 = vpop.f32.mrb[0].mxu0
        %v5096 = vadd.f32 0.0, %v5095
        %v5097 = vpop.f32.mrb[0].mxu0
        %v5098 = vadd.f32 0.0, %v5097
        %v5099 = vpop.f32.mrb[0].mxu0
        %v5100 = vadd.f32 0.0, %v5099
        %v5101 = vpop.f32.mrb[0].mxu0
        %v5102 = vadd.f32 0.0, %v5101
        %5103 = vmatprep.mubr.bf16.mxu0 0
        %5104 = vmatmul.mubr.bf16.gmra.mrb[0].mxu0 %v4926
        %v5105 = vpop.f32.mrb[0].mxu0
        %v5106 = vadd.f32 0.0, %v5105
        %v5107 = vpop.f32.mrb[0].mxu0
        %v5108 = vadd.f32 0.0, %v5107
        %v5109 = vpop.f32.mrb[0].mxu0
        %v5110 = vadd.f32 0.0, %v5109
        %v5111 = vpop.f32.mrb[0].mxu0
        %v5112 = vadd.f32 0.0, %v5111
        %5113 = vmatprep.mubr.bf16.mxu0 0
        %5114 = vmatmul.mubr.bf16.gmra.mrb[0].mxu0 %v4929
        %v5115 = vpop.f32.mrb[0].mxu0
        %v5116 = vadd.f32 0.0, %v5115
        %v5117 = vpop.f32.mrb[0].mxu0
        %v5118 = vadd.f32 0.0, %v5117
        %v5119 = vpop.f32.mrb[0].mxu0
        %v5120 = vadd.f32 0.0, %v5119
        %v5121 = vpop.f32.mrb[0].mxu0
        %v5122 = vadd.f32 0.0, %v5121
        %5123 = vdwg.mxu0
        %5124 = vmatprep.subr.bf16.mxu0 0
        %5125 = vmatpush1.bf16.msra.mxu0 %v4879
        %5126 = vmatprep.subr.bf16.mxu0 0
        %5127 = vmatpush1.bf16.msra.mxu0 0
        %5128 = vmatprep.subr.bf16.mxu0 0
        %5129 = vmatpush1.bf16.msra.mxu0 0
        %5130 = vmatprep.subr.bf16.mxu0 0
        %5131 = vmatpush1.bf16.msra.mxu0 0
        %5132 = vmatprep.subr.bf16.mxu0 0
        %5133 = vmatpush1.bf16.msra.mxu0 0
        %5134 = vmatprep.subr.bf16.mxu0 0
        %5135 = vmatpush1.bf16.msra.mxu0 0
        %5136 = vmatprep.subr.bf16.mxu0 0
        %5137 = vmatpush1.bf16.msra.mxu0 0
        %5138 = vmatprep.subr.bf16.mxu0 0
        %5139 = vmatpush1.bf16.msra.mxu0 0
        %5140 = vmatprep.subr.bf16.mxu0 0
        %5141 = vmatpush1.bf16.msra.mxu0 0
        %5142 = vmatprep.subr.bf16.mxu0 0
        %5143 = vmatpush1.bf16.msra.mxu0 0
        %5144 = vmatprep.subr.bf16.mxu0 0
        %5145 = vmatpush1.bf16.msra.mxu0 0
        %5146 = vmatprep.subr.bf16.mxu0 0
        %5147 = vmatpush1.bf16.msra.mxu0 0
        %5148 = vmatprep.subr.bf16.mxu0 0
        %5149 = vmatpush1.bf16.msra.mxu0 0
        %5150 = vmatprep.subr.bf16.mxu0 0
        %5151 = vmatpush1.bf16.msra.mxu0 0
        %5152 = vmatprep.subr.bf16.mxu0 0
        %5153 = vmatpush1.bf16.msra.mxu0 0
        %5154 = vmatprep.subr.bf16.mxu0 0
        %5155 = vmatpush1.bf16.msra.mxu0 0
        %5156 = vmatprep.mubr.bf16.mxu0 0
        %5157 = vmatmul.mubr.bf16.gmra.mrb[0].mxu0 %v4884
        %v5158 = vpop.f32.mrb[0].mxu0
        %v5159 = vadd.f32 0.0, %v5158
        %v5160 = vpop.f32.mrb[0].mxu0
        %v5161 = vpop.f32.mrb[0].mxu0
        %v5162 = vadd.f32 0.0, %v5161
        %v5163 = vpop.f32.mrb[0].mxu0
        %5164 = vmatprep.mubr.bf16.mxu0 0
        %5165 = vmatmul.mubr.bf16.gmra.mrb[0].mxu0 %v4887
        %v5166 = vpop.f32.mrb[0].mxu0
        %v5167 = vadd.f32 0.0, %v5166
        %v5168 = vpop.f32.mrb[0].mxu0
        %v5169 = vpop.f32.mrb[0].mxu0
        %v5170 = vadd.f32 0.0, %v5169
        %v5171 = vpop.f32.mrb[0].mxu0
        %5172 = vmatprep.mubr.bf16.mxu0 0
        %5173 = vmatmul.mubr.bf16.gmra.mrb[0].mxu0 %v4890
        %v5174 = vpop.f32.mrb[0].mxu0
        %v5175 = vadd.f32 0.0, %v5174
        %v5176 = vpop.f32.mrb[0].mxu0
        %v5177 = vpop.f32.mrb[0].mxu0
        %v5178 = vadd.f32 0.0, %v5177
        %v5179 = vpop.f32.mrb[0].mxu0
        %5180 = vmatprep.mubr.bf16.mxu0 0
        %5181 = vmatmul.mubr.bf16.gmra.mrb[0].mxu0 %v4893
        %v5182 = vpop.f32.mrb[0].mxu0
        %v5183 = vadd.f32 0.0, %v5182
        %v5184 = vpop.f32.mrb[0].mxu0
        %v5185 = vpop.f32.mrb[0].mxu0
        %v5186 = vadd.f32 0.0, %v5185
        %v5187 = vpop.f32.mrb[0].mxu0
        %5188 = vmatprep.mubr.bf16.mxu0 0
        %5189 = vmatmul.mubr.bf16.gmra.mrb[0].mxu0 %v4896
        %v5190 = vpop.f32.mrb[0].mxu0
        %v5191 = vadd.f32 0.0, %v5190
        %v5192 = vpop.f32.mrb[0].mxu0
        %v5193 = vpop.f32.mrb[0].mxu0
        %v5194 = vadd.f32 0.0, %v5193
        %v5195 = vpop.f32.mrb[0].mxu0
        %5196 = vmatprep.mubr.bf16.mxu0 0
        %5197 = vmatmul.mubr.bf16.gmra.mrb[0].mxu0 %v4899
        %v5198 = vpop.f32.mrb[0].mxu0
        %v5199 = vadd.f32 0.0, %v5198
        %v5200 = vpop.f32.mrb[0].mxu0
        %v5201 = vpop.f32.mrb[0].mxu0
        %v5202 = vadd.f32 0.0, %v5201
        %v5203 = vpop.f32.mrb[0].mxu0
        %5204 = vmatprep.mubr.bf16.mxu0 0
        %5205 = vmatmul.mubr.bf16.gmra.mrb[0].mxu0 %v4902
        %v5206 = vpop.f32.mrb[0].mxu0
        %v5207 = vadd.f32 0.0, %v5206
        %v5208 = vpop.f32.mrb[0].mxu0
        %v5209 = vpop.f32.mrb[0].mxu0
        %v5210 = vadd.f32 0.0, %v5209
        %v5211 = vpop.f32.mrb[0].mxu0
        %5212 = vmatprep.mubr.bf16.mxu0 0
        %5213 = vmatmul.mubr.bf16.gmra.mrb[0].mxu0 %v4905
        %v5214 = vpop.f32.mrb[0].mxu0
        %v5215 = vadd.f32 0.0, %v5214
        %v5216 = vpop.f32.mrb[0].mxu0
        %v5217 = vpop.f32.mrb[0].mxu0
        %v5218 = vadd.f32 0.0, %v5217
        %v5219 = vpop.f32.mrb[0].mxu0
        %5220 = vmatprep.mubr.bf16.mxu0 0
        %5221 = vmatmul.mubr.bf16.gmra.mrb[0].mxu0 %v4908
        %v5222 = vpop.f32.mrb[0].mxu0
        %v5223 = vadd.f32 0.0, %v5222
        %v5224 = vpop.f32.mrb[0].mxu0
        %v5225 = vpop.f32.mrb[0].mxu0
        %v5226 = vadd.f32 0.0, %v5225
        %v5227 = vpop.f32.mrb[0].mxu0
        %5228 = vmatprep.mubr.bf16.mxu0 0
        %5229 = vmatmul.mubr.bf16.gmra.mrb[0].mxu0 %v4911
        %v5230 = vpop.f32.mrb[0].mxu0
        %v5231 = vadd.f32 0.0, %v5230
        %v5232 = vpop.f32.mrb[0].mxu0
        %v5233 = vpop.f32.mrb[0].mxu0
        %v5234 = vadd.f32 0.0, %v5233
        %v5235 = vpop.f32.mrb[0].mxu0
        %5236 = vmatprep.mubr.bf16.mxu0 0
        %5237 = vmatmul.mubr.bf16.gmra.mrb[0].mxu0 %v4914
        %v5238 = vpop.f32.mrb[0].mxu0
        %v5239 = vadd.f32 0.0, %v5238
        %v5240 = vpop.f32.mrb[0].mxu0
        %v5241 = vpop.f32.mrb[0].mxu0
        %v5242 = vadd.f32 0.0, %v5241
        %v5243 = vpop.f32.mrb[0].mxu0
        %5244 = vmatprep.mubr.bf16.mxu0 0
        %5245 = vmatmul.mubr.bf16.gmra.mrb[0].mxu0 %v4917
        %v5246 = vpop.f32.mrb[0].mxu0
        %v5247 = vadd.f32 0.0, %v5246
        %v5248 = vpop.f32.mrb[0].mxu0
        %v5249 = vpop.f32.mrb[0].mxu0
        %v5250 = vadd.f32 0.0, %v5249
        %v5251 = vpop.f32.mrb[0].mxu0
        %5252 = vmatprep.mubr.bf16.mxu0 0
        %5253 = vmatmul.mubr.bf16.gmra.mrb[0].mxu0 %v4920
        %v5254 = vpop.f32.mrb[0].mxu0
        %v5255 = vadd.f32 0.0, %v5254
        %v5256 = vpop.f32.mrb[0].mxu0
        %v5257 = vpop.f32.mrb[0].mxu0
        %v5258 = vadd.f32 0.0, %v5257
        %v5259 = vpop.f32.mrb[0].mxu0
        %5260 = vmatprep.mubr.bf16.mxu0 0
        %5261 = vmatmul.mubr.bf16.gmra.mrb[0].mxu0 %v4923
        %v5262 = vpop.f32.mrb[0].mxu0
        %v5263 = vadd.f32 0.0, %v5262
        %v5264 = vpop.f32.mrb[0].mxu0
        %v5265 = vpop.f32.mrb[0].mxu0
        %v5266 = vadd.f32 0.0, %v5265
        %v5267 = vpop.f32.mrb[0].mxu0
        %5268 = vmatprep.mubr.bf16.mxu0 0
        %5269 = vmatmul.mubr.bf16.gmra.mrb[0].mxu0 %v4926
        %v5270 = vpop.f32.mrb[0].mxu0
        %v5271 = vadd.f32 0.0, %v5270
        %v5272 = vpop.f32.mrb[0].mxu0
        %v5273 = vpop.f32.mrb[0].mxu0
        %v5274 = vadd.f32 0.0, %v5273
        %v5275 = vpop.f32.mrb[0].mxu0
        %5276 = vmatprep.mubr.bf16.mxu0 0
        %5277 = vmatmul.mubr.bf16.gmra.mrb[0].mxu0 %v4929
        %v5278 = vpop.f32.mrb[0].mxu0
        %v5279 = vadd.f32 0.0, %v5278
        %v5280 = vpop.f32.mrb[0].mxu0
        %v5281 = vpop.f32.mrb[0].mxu0
        %v5282 = vadd.f32 0.0, %v5281
        %v5283 = vpop.f32.mrb[0].mxu0
        %5284 = vdwg.mxu0
        %v5285 = vadd.f32 %v4719, %v4966
        %v5286 = vadd.f32 %v4720, %v4968
        %v5287 = vadd.f32 %v4721, %v5159
        %v5288 = vadd.f32 %v4722, %v4970
        %v5289 = vadd.f32 %v4723, %v4972
        %v5290 = vadd.f32 %v4724, %v5162
        %v5291 = vadd.f32 %v4725, %v4976
        %v5292 = vadd.f32 %v4726, %v4978
        %v5293 = vadd.f32 %v4727, %v5167
        %v5294 = vadd.f32 %v4728, %v4980
        %v5295 = vadd.f32 %v4729, %v4982
        %v5296 = vadd.f32 %v4730, %v5170
        %v5297 = vadd.f32 %v4731, %v4986
        %v5298 = vadd.f32 %v4732, %v4988
        %v5299 = vadd.f32 %v4733, %v5175
        %v5300 = vadd.f32 %v4734, %v4990
        %v5301 = vadd.f32 %v4735, %v4992
        %v5302 = vadd.f32 %v4736, %v5178
        %v5303 = vadd.f32 %v4737, %v4996
        %v5304 = vadd.f32 %v4738, %v4998
        %v5305 = vadd.f32 %v4739, %v5183
        %v5306 = vadd.f32 %v4740, %v5000
        %v5307 = vadd.f32 %v4741, %v5002
        %v5308 = vadd.f32 %v4742, %v5186
        %v5309 = vadd.f32 %v4743, %v5006
        %v5310 = vadd.f32 %v4744, %v5008
        %v5311 = vadd.f32 %v4745, %v5191
        %v5312 = vadd.f32 %v4746, %v5010
        %v5313 = vadd.f32 %v4747, %v5012
        %v5314 = vadd.f32 %v4748, %v5194
        %v5315 = vadd.f32 %v4749, %v5016
        %v5316 = vadd.f32 %v4750, %v5018
        %v5317 = vadd.f32 %v4751, %v5199
        %v5318 = vadd.f32 %v4752, %v5020
        %v5319 = vadd.f32 %v4753, %v5022
        %v5320 = vadd.f32 %v4754, %v5202
        %v5321 = vadd.f32 %v4755, %v5026
        %v5322 = vadd.f32 %v4756, %v5028
        %v5323 = vadd.f32 %v4757, %v5207
        %v5324 = vadd.f32 %v4758, %v5030
        %v5325 = vadd.f32 %v4759, %v5032
        %v5326 = vadd.f32 %v4760, %v5210
        %v5327 = vadd.f32 %v4761, %v5036
        %v5328 = vadd.f32 %v4762, %v5038
        %v5329 = vadd.f32 %v4763, %v5215
        %v5330 = vadd.f32 %v4764, %v5040
        %v5331 = vadd.f32 %v4765, %v5042
        %v5332 = vadd.f32 %v4766, %v5218
        %v5333 = vadd.f32 %v4767, %v5046
        %v5334 = vadd.f32 %v4768, %v5048
        %v5335 = vadd.f32 %v4769, %v5223
        %v5336 = vadd.f32 %v4770, %v5050
        %v5337 = vadd.f32 %v4771, %v5052
        %v5338 = vadd.f32 %v4772, %v5226
        %v5339 = vadd.f32 %v4773, %v5056
        %v5340 = vadd.f32 %v4774, %v5058
        %v5341 = vadd.f32 %v4775, %v5231
        %v5342 = vadd.f32 %v4776, %v5060
        %v5343 = vadd.f32 %v4777, %v5062
        %v5344 = vadd.f32 %v4778, %v5234
        %v5345 = vadd.f32 %v4779, %v5066
        %v5346 = vadd.f32 %v4780, %v5068
        %v5347 = vadd.f32 %v4781, %v5239
        %v5348 = vadd.f32 %v4782, %v5070
        %v5349 = vadd.f32 %v4783, %v5072
        %v5350 = vadd.f32 %v4784, %v5242
        %v5351 = vadd.f32 %v4785, %v5076
        %v5352 = vadd.f32 %v4786, %v5078
        %v5353 = vadd.f32 %v4787, %v5247
        %v5354 = vadd.f32 %v4788, %v5080
        %v5355 = vadd.f32 %v4789, %v5082
        %v5356 = vadd.f32 %v4790, %v5250
        %v5357 = vadd.f32 %v4791, %v5086
        %v5358 = vadd.f32 %v4792, %v5088
        %v5359 = vadd.f32 %v4793, %v5255
        %v5360 = vadd.f32 %v4794, %v5090
        %v5361 = vadd.f32 %v4795, %v5092
        %v5362 = vadd.f32 %v4796, %v5258
        %v5363 = vadd.f32 %v4797, %v5096
        %v5364 = vadd.f32 %v4798, %v5098
        %v5365 = vadd.f32 %v4799, %v5263
        %v5366 = vadd.f32 %v4800, %v5100
        %v5367 = vadd.f32 %v4801, %v5102
        %v5368 = vadd.f32 %v4802, %v5266
        %v5369 = vadd.f32 %v4803, %v5106
        %v5370 = vadd.f32 %v4804, %v5108
        %v5371 = vadd.f32 %v4805, %v5271
        %v5372 = vadd.f32 %v4806, %v5110
        %v5373 = vadd.f32 %v4807, %v5112
        %v5374 = vadd.f32 %v4808, %v5274
        %v5375 = vadd.f32 %v4809, %v5116
        %v5376 = vadd.f32 %v4810, %v5118
        %v5377 = vadd.f32 %v4811, %v5279
        %v5378 = vadd.f32 %v4812, %v5120
        %v5379 = vadd.f32 %v4813, %v5122
        %v5380 = vadd.f32 %v4814, %v5282
        %v5381 = vld [vmem:[#allocation2 + $0x29] sm:$0xff]
        %v5382 = vld [vmem:[#allocation2 + $0x31] sm:$0xff]
        %v5383 = vld [vmem:[#allocation2 + $0x39] sm:$0xff]
        %v5384 = vld [vmem:[#allocation2 + $0x41] sm:$0xff]
        %v5385 = vld [vmem:[#allocation2 + $0x49] sm:$0xff]
        %v5386 = vld [vmem:[#allocation2 + $0x51] sm:$0xff]
        %v5387 = vld [vmem:[#allocation2 + $0x59] sm:$0xff]
        %v5388 = vld [vmem:[#allocation2 + $0x61] sm:$0xff]
        %v5389 = vld [vmem:[#allocation2 + $0x69] sm:$0xff]
        %v5390 = vld [vmem:[#allocation2 + $0x71] sm:$0xff]
        %v5391 = vld [vmem:[#allocation2 + $0x79] sm:$0xff]
        %v5392 = vld [vmem:[#allocation2 + $0x81] sm:$0xff]
        %v5393 = vld [vmem:[#allocation2 + $0x89] sm:$0xff]
        %v5394 = vld [vmem:[#allocation2 + $0x91] sm:$0xff]
        %v5395 = vld [vmem:[#allocation2 + $0x99] sm:$0xff]
        %v5396 = vld [vmem:[#allocation2 + $0xa1] sm:$0xff]
        %v5397 = vld [vmem:[#allocation2 + $0xa9] sm:$0xff]
        %v5398 = vld [vmem:[#allocation2 + $0xb1] sm:$0xff]
        %v5399 = vld [vmem:[#allocation2 + $0xb9] sm:$0xff]
        %v5400 = vld [vmem:[#allocation2 + $0xc1] sm:$0xff]
        %v5401 = vld [vmem:[#allocation2 + $0xc9] sm:$0xff]
        %v5402 = vld [vmem:[#allocation2 + $0xd1] sm:$0xff]
        %v5403 = vld [vmem:[#allocation2 + $0xd9] sm:$0xff]
        %v5404 = vld [vmem:[#allocation2 + $0xe1] sm:$0xff]
        %v5405 = vld [vmem:[#allocation2 + $0xe9] sm:$0xff]
        %v5406 = vld [vmem:[#allocation2 + $0xf1] sm:$0xff]
        %v5407 = vld [vmem:[#allocation2 + $0xf9] sm:$0xff]
        %v5408 = vld [vmem:[#allocation2 + $0x101] sm:$0xff]
        %v5409 = vld [vmem:[#allocation2 + $0x109] sm:$0xff]
        %v5410 = vld [vmem:[#allocation2 + $0x111] sm:$0xff]
        %v5411 = vld [vmem:[#allocation2 + $0x119] sm:$0xff]
        %v5412 = vld [vmem:[#allocation2 + $0x121] sm:$0xff]
        %v5413 = vsel %vm1857, %v5381, 0.0
        %v5414 = vsel %vm1858, %v5382, 0.0
        %v5415 = vsel %vm1859, %v5383, 0.0
        %v5416 = vsel %vm1860, %v5384, 0.0
        %v5417 = vsel %vm1861, %v5385, 0.0
        %v5418 = vsel %vm1862, %v5386, 0.0
        %v5419 = vsel %vm1863, %v5387, 0.0
        %v5420 = vsel %vm1864, %v5388, 0.0
        %v5421 = vsel %vm1865, %v5389, 0.0
        %v5422 = vsel %vm1866, %v5390, 0.0
        %v5423 = vsel %vm1867, %v5391, 0.0
        %v5424 = vsel %vm1868, %v5392, 0.0
        %v5425 = vsel %vm1869, %v5393, 0.0
        %v5426 = vsel %vm1870, %v5394, 0.0
        %v5427 = vsel %vm1871, %v5395, 0.0
        %v5428 = vsel %vm1872, %v5396, 0.0
        %v5429 = vsel %vm1873, %v5397, 0.0
        %v5430 = vsel %vm1874, %v5398, 0.0
        %v5431 = vsel %vm1875, %v5399, 0.0
        %v5432 = vsel %vm1876, %v5400, 0.0
        %v5433 = vsel %vm1877, %v5401, 0.0
        %v5434 = vsel %vm1878, %v5402, 0.0
        %v5435 = vsel %vm1879, %v5403, 0.0
        %v5436 = vsel %vm1880, %v5404, 0.0
        %v5437 = vsel %vm1881, %v5405, 0.0
        %v5438 = vsel %vm1882, %v5406, 0.0
        %v5439 = vsel %vm1883, %v5407, 0.0
        %v5440 = vsel %vm1884, %v5408, 0.0
        %v5441 = vsel %vm1885, %v5409, 0.0
        %v5442 = vsel %vm1886, %v5410, 0.0
        %v5443 = vsel %vm1887, %v5411, 0.0
        %v5444 = vsel %vm1888, %v5412, 0.0
        %v5445 = vpack.c.bf16 %v5414, %v5413
        %v5446 = vpack.c.bf16 %v5416, %v5415
        %v5447 = vpack.c.bf16 %v5418, %v5417
        %v5448 = vpack.c.bf16 %v5420, %v5419
        %v5449 = vpack.c.bf16 %v5422, %v5421
        %v5450 = vpack.c.bf16 %v5424, %v5423
        %v5451 = vpack.c.bf16 %v5426, %v5425
        %v5452 = vpack.c.bf16 %v5428, %v5427
        %v5453 = vpack.c.bf16 %v5430, %v5429
        %v5454 = vpack.c.bf16 %v5432, %v5431
        %v5455 = vpack.c.bf16 %v5434, %v5433
        %v5456 = vpack.c.bf16 %v5436, %v5435
        %v5457 = vpack.c.bf16 %v5438, %v5437
        %v5458 = vpack.c.bf16 %v5440, %v5439
        %v5459 = vpack.c.bf16 %v5442, %v5441
        %v5460 = vpack.c.bf16 %v5444, %v5443
        %v5461 = vld [vmem:[#allocation6 + $0xc0] sm:$0xff]
        %v5462 = vld [vmem:[#allocation6 + $0xc8] sm:$0xf]
        %v5463 = vld [vmem:[#allocation6 + $0xcc] sm:$0xff]
        %v5464 = vld [vmem:[#allocation6 + $0xd4] sm:$0xf]
        %v5469 = vunpack.c.l.b16 %v5461
        %v5470 = vunpack.c.h.b16 %v5461
        %v5471 = vunpack.c.l.b16 %v5462
        %v5472 = vunpack.c.l.b16 %v5463
        %v5473 = vunpack.c.h.b16 %v5463
        %v5474 = vunpack.c.l.b16 %v5464
        %v5475 = vpack.c.b16 %v5472, %v5469
        %v5476 = vpack.c.b16 %v5473, %v5470
        %v5477 = vpack.c.b16 %v5474, %v5471
        %v5482 = vsel %vm237, %v5445, 0
        %v5485 = vsel %vm237, %v5446, 0
        %v5488 = vsel %vm237, %v5447, 0
        %v5491 = vsel %vm237, %v5448, 0
        %v5494 = vsel %vm237, %v5449, 0
        %v5497 = vsel %vm237, %v5450, 0
        %v5500 = vsel %vm237, %v5451, 0
        %v5503 = vsel %vm237, %v5452, 0
        %v5506 = vsel %vm237, %v5453, 0
        %v5509 = vsel %vm237, %v5454, 0
        %v5512 = vsel %vm237, %v5455, 0
        %v5515 = vsel %vm237, %v5456, 0
        %v5518 = vsel %vm237, %v5457, 0
        %v5521 = vsel %vm237, %v5458, 0
        %v5524 = vsel %vm237, %v5459, 0
        %v5527 = vsel %vm237, %v5460, 0
        %5529 = vmatprep.subr.bf16.mxu0 %v5476
        %5530 = vmatpush1.bf16.msra.mxu0 %v5475
        %5531 = vmatprep.subr.bf16.mxu0 0
        %5532 = vmatpush1.bf16.msra.mxu0 0
        %5533 = vmatprep.subr.bf16.mxu0 0
        %5534 = vmatpush1.bf16.msra.mxu0 0
        %5535 = vmatprep.subr.bf16.mxu0 0
        %5536 = vmatpush1.bf16.msra.mxu0 0
        %5537 = vmatprep.subr.bf16.mxu0 0
        %5538 = vmatpush1.bf16.msra.mxu0 0
        %5539 = vmatprep.subr.bf16.mxu0 0
        %5540 = vmatpush1.bf16.msra.mxu0 0
        %5541 = vmatprep.subr.bf16.mxu0 0
        %5542 = vmatpush1.bf16.msra.mxu0 0
        %5543 = vmatprep.subr.bf16.mxu0 0
        %5544 = vmatpush1.bf16.msra.mxu0 0
        %5545 = vmatprep.subr.bf16.mxu0 0
        %5546 = vmatpush1.bf16.msra.mxu0 0
        %5547 = vmatprep.subr.bf16.mxu0 0
        %5548 = vmatpush1.bf16.msra.mxu0 0
        %5549 = vmatprep.subr.bf16.mxu0 0
        %5550 = vmatpush1.bf16.msra.mxu0 0
        %5551 = vmatprep.subr.bf16.mxu0 0
        %5552 = vmatpush1.bf16.msra.mxu0 0
        %5553 = vmatprep.subr.bf16.mxu0 0
        %5554 = vmatpush1.bf16.msra.mxu0 0
        %5555 = vmatprep.subr.bf16.mxu0 0
        %5556 = vmatpush1.bf16.msra.mxu0 0
        %5557 = vmatprep.subr.bf16.mxu0 0
        %5558 = vmatpush1.bf16.msra.mxu0 0
        %5559 = vmatprep.subr.bf16.mxu0 0
        %5560 = vmatpush1.bf16.msra.mxu0 0
        %5561 = vmatprep.mubr.bf16.mxu0 0
        %5562 = vmatmul.mubr.bf16.gmra.mrb[0].mxu0 %v5482
        %v5563 = vpop.f32.mrb[0].mxu0
        %v5564 = vadd.f32 0.0, %v5563
        %v5565 = vpop.f32.mrb[0].mxu0
        %v5566 = vadd.f32 0.0, %v5565
        %v5567 = vpop.f32.mrb[0].mxu0
        %v5568 = vadd.f32 0.0, %v5567
        %v5569 = vpop.f32.mrb[0].mxu0
        %v5570 = vadd.f32 0.0, %v5569
        %5571 = vmatprep.mubr.bf16.mxu0 0
        %5572 = vmatmul.mubr.bf16.gmra.mrb[0].mxu0 %v5485
        %v5573 = vpop.f32.mrb[0].mxu0
        %v5574 = vadd.f32 0.0, %v5573
        %v5575 = vpop.f32.mrb[0].mxu0
        %v5576 = vadd.f32 0.0, %v5575
        %v5577 = vpop.f32.mrb[0].mxu0
        %v5578 = vadd.f32 0.0, %v5577
        %v5579 = vpop.f32.mrb[0].mxu0
        %v5580 = vadd.f32 0.0, %v5579
        %5581 = vmatprep.mubr.bf16.mxu0 0
        %5582 = vmatmul.mubr.bf16.gmra.mrb[0].mxu0 %v5488
        %v5583 = vpop.f32.mrb[0].mxu0
        %v5584 = vadd.f32 0.0, %v5583
        %v5585 = vpop.f32.mrb[0].mxu0
        %v5586 = vadd.f32 0.0, %v5585
        %v5587 = vpop.f32.mrb[0].mxu0
        %v5588 = vadd.f32 0.0, %v5587
        %v5589 = vpop.f32.mrb[0].mxu0
        %v5590 = vadd.f32 0.0, %v5589
        %5591 = vmatprep.mubr.bf16.mxu0 0
        %5592 = vmatmul.mubr.bf16.gmra.mrb[0].mxu0 %v5491
        %v5593 = vpop.f32.mrb[0].mxu0
        %v5594 = vadd.f32 0.0, %v5593
        %v5595 = vpop.f32.mrb[0].mxu0
        %v5596 = vadd.f32 0.0, %v5595
        %v5597 = vpop.f32.mrb[0].mxu0
        %v5598 = vadd.f32 0.0, %v5597
        %v5599 = vpop.f32.mrb[0].mxu0
        %v5600 = vadd.f32 0.0, %v5599
        %5601 = vmatprep.mubr.bf16.mxu0 0
        %5602 = vmatmul.mubr.bf16.gmra.mrb[0].mxu0 %v5494
        %v5603 = vpop.f32.mrb[0].mxu0
        %v5604 = vadd.f32 0.0, %v5603
        %v5605 = vpop.f32.mrb[0].mxu0
        %v5606 = vadd.f32 0.0, %v5605
        %v5607 = vpop.f32.mrb[0].mxu0
        %v5608 = vadd.f32 0.0, %v5607
        %v5609 = vpop.f32.mrb[0].mxu0
        %v5610 = vadd.f32 0.0, %v5609
        %5611 = vmatprep.mubr.bf16.mxu0 0
        %5612 = vmatmul.mubr.bf16.gmra.mrb[0].mxu0 %v5497
        %v5613 = vpop.f32.mrb[0].mxu0
        %v5614 = vadd.f32 0.0, %v5613
        %v5615 = vpop.f32.mrb[0].mxu0
        %v5616 = vadd.f32 0.0, %v5615
        %v5617 = vpop.f32.mrb[0].mxu0
        %v5618 = vadd.f32 0.0, %v5617
        %v5619 = vpop.f32.mrb[0].mxu0
        %v5620 = vadd.f32 0.0, %v5619
        %5621 = vmatprep.mubr.bf16.mxu0 0
        %5622 = vmatmul.mubr.bf16.gmra.mrb[0].mxu0 %v5500
        %v5623 = vpop.f32.mrb[0].mxu0
        %v5624 = vadd.f32 0.0, %v5623
        %v5625 = vpop.f32.mrb[0].mxu0
        %v5626 = vadd.f32 0.0, %v5625
        %v5627 = vpop.f32.mrb[0].mxu0
        %v5628 = vadd.f32 0.0, %v5627
        %v5629 = vpop.f32.mrb[0].mxu0
        %v5630 = vadd.f32 0.0, %v5629
        %5631 = vmatprep.mubr.bf16.mxu0 0
        %5632 = vmatmul.mubr.bf16.gmra.mrb[0].mxu0 %v5503
        %v5633 = vpop.f32.mrb[0].mxu0
        %v5634 = vadd.f32 0.0, %v5633
        %v5635 = vpop.f32.mrb[0].mxu0
        %v5636 = vadd.f32 0.0, %v5635
        %v5637 = vpop.f32.mrb[0].mxu0
        %v5638 = vadd.f32 0.0, %v5637
        %v5639 = vpop.f32.mrb[0].mxu0
        %v5640 = vadd.f32 0.0, %v5639
        %5641 = vmatprep.mubr.bf16.mxu0 0
        %5642 = vmatmul.mubr.bf16.gmra.mrb[0].mxu0 %v5506
        %v5643 = vpop.f32.mrb[0].mxu0
        %v5644 = vadd.f32 0.0, %v5643
        %v5645 = vpop.f32.mrb[0].mxu0
        %v5646 = vadd.f32 0.0, %v5645
        %v5647 = vpop.f32.mrb[0].mxu0
        %v5648 = vadd.f32 0.0, %v5647
        %v5649 = vpop.f32.mrb[0].mxu0
        %v5650 = vadd.f32 0.0, %v5649
        %5651 = vmatprep.mubr.bf16.mxu0 0
        %5652 = vmatmul.mubr.bf16.gmra.mrb[0].mxu0 %v5509
        %v5653 = vpop.f32.mrb[0].mxu0
        %v5654 = vadd.f32 0.0, %v5653
        %v5655 = vpop.f32.mrb[0].mxu0
        %v5656 = vadd.f32 0.0, %v5655
        %v5657 = vpop.f32.mrb[0].mxu0
        %v5658 = vadd.f32 0.0, %v5657
        %v5659 = vpop.f32.mrb[0].mxu0
        %v5660 = vadd.f32 0.0, %v5659
        %5661 = vmatprep.mubr.bf16.mxu0 0
        %5662 = vmatmul.mubr.bf16.gmra.mrb[0].mxu0 %v5512
        %v5663 = vpop.f32.mrb[0].mxu0
        %v5664 = vadd.f32 0.0, %v5663
        %v5665 = vpop.f32.mrb[0].mxu0
        %v5666 = vadd.f32 0.0, %v5665
        %v5667 = vpop.f32.mrb[0].mxu0
        %v5668 = vadd.f32 0.0, %v5667
        %v5669 = vpop.f32.mrb[0].mxu0
        %v5670 = vadd.f32 0.0, %v5669
        %5671 = vmatprep.mubr.bf16.mxu0 0
        %5672 = vmatmul.mubr.bf16.gmra.mrb[0].mxu0 %v5515
        %v5673 = vpop.f32.mrb[0].mxu0
        %v5674 = vadd.f32 0.0, %v5673
        %v5675 = vpop.f32.mrb[0].mxu0
        %v5676 = vadd.f32 0.0, %v5675
        %v5677 = vpop.f32.mrb[0].mxu0
        %v5678 = vadd.f32 0.0, %v5677
        %v5679 = vpop.f32.mrb[0].mxu0
        %v5680 = vadd.f32 0.0, %v5679
        %5681 = vmatprep.mubr.bf16.mxu0 0
        %5682 = vmatmul.mubr.bf16.gmra.mrb[0].mxu0 %v5518
        %v5683 = vpop.f32.mrb[0].mxu0
        %v5684 = vadd.f32 0.0, %v5683
        %v5685 = vpop.f32.mrb[0].mxu0
        %v5686 = vadd.f32 0.0, %v5685
        %v5687 = vpop.f32.mrb[0].mxu0
        %v5688 = vadd.f32 0.0, %v5687
        %v5689 = vpop.f32.mrb[0].mxu0
        %v5690 = vadd.f32 0.0, %v5689
        %5691 = vmatprep.mubr.bf16.mxu0 0
        %5692 = vmatmul.mubr.bf16.gmra.mrb[0].mxu0 %v5521
        %v5693 = vpop.f32.mrb[0].mxu0
        %v5694 = vadd.f32 0.0, %v5693
        %v5695 = vpop.f32.mrb[0].mxu0
        %v5696 = vadd.f32 0.0, %v5695
        %v5697 = vpop.f32.mrb[0].mxu0
        %v5698 = vadd.f32 0.0, %v5697
        %v5699 = vpop.f32.mrb[0].mxu0
        %v5700 = vadd.f32 0.0, %v5699
        %5701 = vmatprep.mubr.bf16.mxu0 0
        %5702 = vmatmul.mubr.bf16.gmra.mrb[0].mxu0 %v5524
        %v5703 = vpop.f32.mrb[0].mxu0
        %v5704 = vadd.f32 0.0, %v5703
        %v5705 = vpop.f32.mrb[0].mxu0
        %v5706 = vadd.f32 0.0, %v5705
        %v5707 = vpop.f32.mrb[0].mxu0
        %v5708 = vadd.f32 0.0, %v5707
        %v5709 = vpop.f32.mrb[0].mxu0
        %v5710 = vadd.f32 0.0, %v5709
        %5711 = vmatprep.mubr.bf16.mxu0 0
        %5712 = vmatmul.mubr.bf16.gmra.mrb[0].mxu0 %v5527
        %v5713 = vpop.f32.mrb[0].mxu0
        %v5714 = vadd.f32 0.0, %v5713
        %v5715 = vpop.f32.mrb[0].mxu0
        %v5716 = vadd.f32 0.0, %v5715
        %v5717 = vpop.f32.mrb[0].mxu0
        %v5718 = vadd.f32 0.0, %v5717
        %v5719 = vpop.f32.mrb[0].mxu0
        %v5720 = vadd.f32 0.0, %v5719
        %5721 = vdwg.mxu0
        %5722 = vmatprep.subr.bf16.mxu0 0
        %5723 = vmatpush1.bf16.msra.mxu0 %v5477
        %5724 = vmatprep.subr.bf16.mxu0 0
        %5725 = vmatpush1.bf16.msra.mxu0 0
        %5726 = vmatprep.subr.bf16.mxu0 0
        %5727 = vmatpush1.bf16.msra.mxu0 0
        %5728 = vmatprep.subr.bf16.mxu0 0
        %5729 = vmatpush1.bf16.msra.mxu0 0
        %5730 = vmatprep.subr.bf16.mxu0 0
        %5731 = vmatpush1.bf16.msra.mxu0 0
        %5732 = vmatprep.subr.bf16.mxu0 0
        %5733 = vmatpush1.bf16.msra.mxu0 0
        %5734 = vmatprep.subr.bf16.mxu0 0
        %5735 = vmatpush1.bf16.msra.mxu0 0
        %5736 = vmatprep.subr.bf16.mxu0 0
        %5737 = vmatpush1.bf16.msra.mxu0 0
        %5738 = vmatprep.subr.bf16.mxu0 0
        %5739 = vmatpush1.bf16.msra.mxu0 0
        %5740 = vmatprep.subr.bf16.mxu0 0
        %5741 = vmatpush1.bf16.msra.mxu0 0
        %5742 = vmatprep.subr.bf16.mxu0 0
        %5743 = vmatpush1.bf16.msra.mxu0 0
        %5744 = vmatprep.subr.bf16.mxu0 0
        %5745 = vmatpush1.bf16.msra.mxu0 0
        %5746 = vmatprep.subr.bf16.mxu0 0
        %5747 = vmatpush1.bf16.msra.mxu0 0
        %5748 = vmatprep.subr.bf16.mxu0 0
        %5749 = vmatpush1.bf16.msra.mxu0 0
        %5750 = vmatprep.subr.bf16.mxu0 0
        %5751 = vmatpush1.bf16.msra.mxu0 0
        %5752 = vmatprep.subr.bf16.mxu0 0
        %5753 = vmatpush1.bf16.msra.mxu0 0
        %5754 = vmatprep.mubr.bf16.mxu0 0
        %5755 = vmatmul.mubr.bf16.gmra.mrb[0].mxu0 %v5482
        %v5756 = vpop.f32.mrb[0].mxu0
        %v5757 = vadd.f32 0.0, %v5756
        %v5758 = vpop.f32.mrb[0].mxu0
        %v5759 = vpop.f32.mrb[0].mxu0
        %v5760 = vadd.f32 0.0, %v5759
        %v5761 = vpop.f32.mrb[0].mxu0
        %5762 = vmatprep.mubr.bf16.mxu0 0
        %5763 = vmatmul.mubr.bf16.gmra.mrb[0].mxu0 %v5485
        %v5764 = vpop.f32.mrb[0].mxu0
        %v5765 = vadd.f32 0.0, %v5764
        %v5766 = vpop.f32.mrb[0].mxu0
        %v5767 = vpop.f32.mrb[0].mxu0
        %v5768 = vadd.f32 0.0, %v5767
        %v5769 = vpop.f32.mrb[0].mxu0
        %5770 = vmatprep.mubr.bf16.mxu0 0
        %5771 = vmatmul.mubr.bf16.gmra.mrb[0].mxu0 %v5488
        %v5772 = vpop.f32.mrb[0].mxu0
        %v5773 = vadd.f32 0.0, %v5772
        %v5774 = vpop.f32.mrb[0].mxu0
        %v5775 = vpop.f32.mrb[0].mxu0
        %v5776 = vadd.f32 0.0, %v5775
        %v5777 = vpop.f32.mrb[0].mxu0
        %5778 = vmatprep.mubr.bf16.mxu0 0
        %5779 = vmatmul.mubr.bf16.gmra.mrb[0].mxu0 %v5491
        %v5780 = vpop.f32.mrb[0].mxu0
        %v5781 = vadd.f32 0.0, %v5780
        %v5782 = vpop.f32.mrb[0].mxu0
        %v5783 = vpop.f32.mrb[0].mxu0
        %v5784 = vadd.f32 0.0, %v5783
        %v5785 = vpop.f32.mrb[0].mxu0
        %5786 = vmatprep.mubr.bf16.mxu0 0
        %5787 = vmatmul.mubr.bf16.gmra.mrb[0].mxu0 %v5494
        %v5788 = vpop.f32.mrb[0].mxu0
        %v5789 = vadd.f32 0.0, %v5788
        %v5790 = vpop.f32.mrb[0].mxu0
        %v5791 = vpop.f32.mrb[0].mxu0
        %v5792 = vadd.f32 0.0, %v5791
        %v5793 = vpop.f32.mrb[0].mxu0
        %5794 = vmatprep.mubr.bf16.mxu0 0
        %5795 = vmatmul.mubr.bf16.gmra.mrb[0].mxu0 %v5497
        %v5796 = vpop.f32.mrb[0].mxu0
        %v5797 = vadd.f32 0.0, %v5796
        %v5798 = vpop.f32.mrb[0].mxu0
        %v5799 = vpop.f32.mrb[0].mxu0
        %v5800 = vadd.f32 0.0, %v5799
        %v5801 = vpop.f32.mrb[0].mxu0
        %5802 = vmatprep.mubr.bf16.mxu0 0
        %5803 = vmatmul.mubr.bf16.gmra.mrb[0].mxu0 %v5500
        %v5804 = vpop.f32.mrb[0].mxu0
        %v5805 = vadd.f32 0.0, %v5804
        %v5806 = vpop.f32.mrb[0].mxu0
        %v5807 = vpop.f32.mrb[0].mxu0
        %v5808 = vadd.f32 0.0, %v5807
        %v5809 = vpop.f32.mrb[0].mxu0
        %5810 = vmatprep.mubr.bf16.mxu0 0
        %5811 = vmatmul.mubr.bf16.gmra.mrb[0].mxu0 %v5503
        %v5812 = vpop.f32.mrb[0].mxu0
        %v5813 = vadd.f32 0.0, %v5812
        %v5814 = vpop.f32.mrb[0].mxu0
        %v5815 = vpop.f32.mrb[0].mxu0
        %v5816 = vadd.f32 0.0, %v5815
        %v5817 = vpop.f32.mrb[0].mxu0
        %5818 = vmatprep.mubr.bf16.mxu0 0
        %5819 = vmatmul.mubr.bf16.gmra.mrb[0].mxu0 %v5506
        %v5820 = vpop.f32.mrb[0].mxu0
        %v5821 = vadd.f32 0.0, %v5820
        %v5822 = vpop.f32.mrb[0].mxu0
        %v5823 = vpop.f32.mrb[0].mxu0
        %v5824 = vadd.f32 0.0, %v5823
        %v5825 = vpop.f32.mrb[0].mxu0
        %5826 = vmatprep.mubr.bf16.mxu0 0
        %5827 = vmatmul.mubr.bf16.gmra.mrb[0].mxu0 %v5509
        %v5828 = vpop.f32.mrb[0].mxu0
        %v5829 = vadd.f32 0.0, %v5828
        %v5830 = vpop.f32.mrb[0].mxu0
        %v5831 = vpop.f32.mrb[0].mxu0
        %v5832 = vadd.f32 0.0, %v5831
        %v5833 = vpop.f32.mrb[0].mxu0
        %5834 = vmatprep.mubr.bf16.mxu0 0
        %5835 = vmatmul.mubr.bf16.gmra.mrb[0].mxu0 %v5512
        %v5836 = vpop.f32.mrb[0].mxu0
        %v5837 = vadd.f32 0.0, %v5836
        %v5838 = vpop.f32.mrb[0].mxu0
        %v5839 = vpop.f32.mrb[0].mxu0
        %v5840 = vadd.f32 0.0, %v5839
        %v5841 = vpop.f32.mrb[0].mxu0
        %5842 = vmatprep.mubr.bf16.mxu0 0
        %5843 = vmatmul.mubr.bf16.gmra.mrb[0].mxu0 %v5515
        %v5844 = vpop.f32.mrb[0].mxu0
        %v5845 = vadd.f32 0.0, %v5844
        %v5846 = vpop.f32.mrb[0].mxu0
        %v5847 = vpop.f32.mrb[0].mxu0
        %v5848 = vadd.f32 0.0, %v5847
        %v5849 = vpop.f32.mrb[0].mxu0
        %5850 = vmatprep.mubr.bf16.mxu0 0
        %5851 = vmatmul.mubr.bf16.gmra.mrb[0].mxu0 %v5518
        %v5852 = vpop.f32.mrb[0].mxu0
        %v5853 = vadd.f32 0.0, %v5852
        %v5854 = vpop.f32.mrb[0].mxu0
        %v5855 = vpop.f32.mrb[0].mxu0
        %v5856 = vadd.f32 0.0, %v5855
        %v5857 = vpop.f32.mrb[0].mxu0
        %5858 = vmatprep.mubr.bf16.mxu0 0
        %5859 = vmatmul.mubr.bf16.gmra.mrb[0].mxu0 %v5521
        %v5860 = vpop.f32.mrb[0].mxu0
        %v5861 = vadd.f32 0.0, %v5860
        %v5862 = vpop.f32.mrb[0].mxu0
        %v5863 = vpop.f32.mrb[0].mxu0
        %v5864 = vadd.f32 0.0, %v5863
        %v5865 = vpop.f32.mrb[0].mxu0
        %5866 = vmatprep.mubr.bf16.mxu0 0
        %5867 = vmatmul.mubr.bf16.gmra.mrb[0].mxu0 %v5524
        %v5868 = vpop.f32.mrb[0].mxu0
        %v5869 = vadd.f32 0.0, %v5868
        %v5870 = vpop.f32.mrb[0].mxu0
        %v5871 = vpop.f32.mrb[0].mxu0
        %v5872 = vadd.f32 0.0, %v5871
        %v5873 = vpop.f32.mrb[0].mxu0
        %5874 = vmatprep.mubr.bf16.mxu0 0
        %5875 = vmatmul.mubr.bf16.gmra.mrb[0].mxu0 %v5527
        %v5876 = vpop.f32.mrb[0].mxu0
        %v5877 = vadd.f32 0.0, %v5876
        %v5878 = vpop.f32.mrb[0].mxu0
        %v5879 = vpop.f32.mrb[0].mxu0
        %v5880 = vadd.f32 0.0, %v5879
        %v5881 = vpop.f32.mrb[0].mxu0
        %5882 = vdwg.mxu0
        %v5883 = vadd.f32 %v5285, %v5564
        %v5884 = vadd.f32 %v5286, %v5566
        %v5885 = vadd.f32 %v5287, %v5757
        %v5886 = vadd.f32 %v5288, %v5568
        %v5887 = vadd.f32 %v5289, %v5570
        %v5888 = vadd.f32 %v5290, %v5760
        %v5889 = vadd.f32 %v5291, %v5574
        %v5890 = vadd.f32 %v5292, %v5576
        %v5891 = vadd.f32 %v5293, %v5765
        %v5892 = vadd.f32 %v5294, %v5578
        %v5893 = vadd.f32 %v5295, %v5580
        %v5894 = vadd.f32 %v5296, %v5768
        %v5895 = vadd.f32 %v5297, %v5584
        %v5896 = vadd.f32 %v5298, %v5586
        %v5897 = vadd.f32 %v5299, %v5773
        %v5898 = vadd.f32 %v5300, %v5588
        %v5899 = vadd.f32 %v5301, %v5590
        %v5900 = vadd.f32 %v5302, %v5776
        %v5901 = vadd.f32 %v5303, %v5594
        %v5902 = vadd.f32 %v5304, %v5596
        %v5903 = vadd.f32 %v5305, %v5781
        %v5904 = vadd.f32 %v5306, %v5598
        %v5905 = vadd.f32 %v5307, %v5600
        %v5906 = vadd.f32 %v5308, %v5784
        %v5907 = vadd.f32 %v5309, %v5604
        %v5908 = vadd.f32 %v5310, %v5606
        %v5909 = vadd.f32 %v5311, %v5789
        %v5910 = vadd.f32 %v5312, %v5608
        %v5911 = vadd.f32 %v5313, %v5610
        %v5912 = vadd.f32 %v5314, %v5792
        %v5913 = vadd.f32 %v5315, %v5614
        %v5914 = vadd.f32 %v5316, %v5616
        %v5915 = vadd.f32 %v5317, %v5797
        %v5916 = vadd.f32 %v5318, %v5618
        %v5917 = vadd.f32 %v5319, %v5620
        %v5918 = vadd.f32 %v5320, %v5800
        %v5919 = vadd.f32 %v5321, %v5624
        %v5920 = vadd.f32 %v5322, %v5626
        %v5921 = vadd.f32 %v5323, %v5805
        %v5922 = vadd.f32 %v5324, %v5628
        %v5923 = vadd.f32 %v5325, %v5630
        %v5924 = vadd.f32 %v5326, %v5808
        %v5925 = vadd.f32 %v5327, %v5634
        %v5926 = vadd.f32 %v5328, %v5636
        %v5927 = vadd.f32 %v5329, %v5813
        %v5928 = vadd.f32 %v5330, %v5638
        %v5929 = vadd.f32 %v5331, %v5640
        %v5930 = vadd.f32 %v5332, %v5816
        %v5931 = vadd.f32 %v5333, %v5644
        %v5932 = vadd.f32 %v5334, %v5646
        %v5933 = vadd.f32 %v5335, %v5821
        %v5934 = vadd.f32 %v5336, %v5648
        %v5935 = vadd.f32 %v5337, %v5650
        %v5936 = vadd.f32 %v5338, %v5824
        %v5937 = vadd.f32 %v5339, %v5654
        %v5938 = vadd.f32 %v5340, %v5656
        %v5939 = vadd.f32 %v5341, %v5829
        %v5940 = vadd.f32 %v5342, %v5658
        %v5941 = vadd.f32 %v5343, %v5660
        %v5942 = vadd.f32 %v5344, %v5832
        %v5943 = vadd.f32 %v5345, %v5664
        %v5944 = vadd.f32 %v5346, %v5666
        %v5945 = vadd.f32 %v5347, %v5837
        %v5946 = vadd.f32 %v5348, %v5668
        %v5947 = vadd.f32 %v5349, %v5670
        %v5948 = vadd.f32 %v5350, %v5840
        %v5949 = vadd.f32 %v5351, %v5674
        %v5950 = vadd.f32 %v5352, %v5676
        %v5951 = vadd.f32 %v5353, %v5845
        %v5952 = vadd.f32 %v5354, %v5678
        %v5953 = vadd.f32 %v5355, %v5680
        %v5954 = vadd.f32 %v5356, %v5848
        %v5955 = vadd.f32 %v5357, %v5684
        %v5956 = vadd.f32 %v5358, %v5686
        %v5957 = vadd.f32 %v5359, %v5853
        %v5958 = vadd.f32 %v5360, %v5688
        %v5959 = vadd.f32 %v5361, %v5690
        %v5960 = vadd.f32 %v5362, %v5856
        %v5961 = vadd.f32 %v5363, %v5694
        %v5962 = vadd.f32 %v5364, %v5696
        %v5963 = vadd.f32 %v5365, %v5861
        %v5964 = vadd.f32 %v5366, %v5698
        %v5965 = vadd.f32 %v5367, %v5700
        %v5966 = vadd.f32 %v5368, %v5864
        %v5967 = vadd.f32 %v5369, %v5704
        %v5968 = vadd.f32 %v5370, %v5706
        %v5969 = vadd.f32 %v5371, %v5869
        %v5970 = vadd.f32 %v5372, %v5708
        %v5971 = vadd.f32 %v5373, %v5710
        %v5972 = vadd.f32 %v5374, %v5872
        %v5973 = vadd.f32 %v5375, %v5714
        %v5974 = vadd.f32 %v5376, %v5716
        %v5975 = vadd.f32 %v5377, %v5877
        %v5976 = vadd.f32 %v5378, %v5718
        %v5977 = vadd.f32 %v5379, %v5720
        %v5978 = vadd.f32 %v5380, %v5880
        %v5979 = vld [vmem:[%s2] sm:$0x7]
        %v5981 = vlaneseq
        %v5982 = vshrl.u32 %v5981, 7
        %v5983 = vsub.s32 0, %v5982
        %v5984 = vrot.slane %v5979, %v5983
        %v5985 = vlaneseq
        %v5986 = vshrl.u32 %v5985, 7
        %v5987 = vsub.s32 1, %v5986
        %v5988 = vrot.slane %v5979, %v5987
        %v5989 = vlaneseq
        %v5990 = vshrl.u32 %v5989, 7
        %v5991 = vsub.s32 2, %v5990
        %v5992 = vrot.slane %v5979, %v5991
        %v5996 = vadd.f32 %v5883, %v5984
        %v5997 = vadd.f32 %v5884, %v5988
        %v5998 = vadd.f32 %v5885, %v5992
        %v5999 = vadd.f32 %v5886, %v5984
        %v6000 = vadd.f32 %v5887, %v5988
        %v6001 = vadd.f32 %v5888, %v5992
        %v6002 = vadd.f32 %v5889, %v5984
        %v6003 = vadd.f32 %v5890, %v5988
        %v6004 = vadd.f32 %v5891, %v5992
        %v6005 = vadd.f32 %v5892, %v5984
        %v6006 = vadd.f32 %v5893, %v5988
        %v6007 = vadd.f32 %v5894, %v5992
        %v6008 = vadd.f32 %v5895, %v5984
        %v6009 = vadd.f32 %v5896, %v5988
        %v6010 = vadd.f32 %v5897, %v5992
        %v6011 = vadd.f32 %v5898, %v5984
        %v6012 = vadd.f32 %v5899, %v5988
        %v6013 = vadd.f32 %v5900, %v5992
        %v6014 = vadd.f32 %v5901, %v5984
        %v6015 = vadd.f32 %v5902, %v5988
        %v6016 = vadd.f32 %v5903, %v5992
        %v6017 = vadd.f32 %v5904, %v5984
        %v6018 = vadd.f32 %v5905, %v5988
        %v6019 = vadd.f32 %v5906, %v5992
        %v6020 = vadd.f32 %v5907, %v5984
        %v6021 = vadd.f32 %v5908, %v5988
        %v6022 = vadd.f32 %v5909, %v5992
        %v6023 = vadd.f32 %v5910, %v5984
        %v6024 = vadd.f32 %v5911, %v5988
        %v6025 = vadd.f32 %v5912, %v5992
        %v6026 = vadd.f32 %v5913, %v5984
        %v6027 = vadd.f32 %v5914, %v5988
        %v6028 = vadd.f32 %v5915, %v5992
        %v6029 = vadd.f32 %v5916, %v5984
        %v6030 = vadd.f32 %v5917, %v5988
        %v6031 = vadd.f32 %v5918, %v5992
        %v6032 = vadd.f32 %v5919, %v5984
        %v6033 = vadd.f32 %v5920, %v5988
        %v6034 = vadd.f32 %v5921, %v5992
        %v6035 = vadd.f32 %v5922, %v5984
        %v6036 = vadd.f32 %v5923, %v5988
        %v6037 = vadd.f32 %v5924, %v5992
        %v6038 = vadd.f32 %v5925, %v5984
        %v6039 = vadd.f32 %v5926, %v5988
        %v6040 = vadd.f32 %v5927, %v5992
        %v6041 = vadd.f32 %v5928, %v5984
        %v6042 = vadd.f32 %v5929, %v5988
        %v6043 = vadd.f32 %v5930, %v5992
        %v6044 = vadd.f32 %v5931, %v5984
        %v6045 = vadd.f32 %v5932, %v5988
        %v6046 = vadd.f32 %v5933, %v5992
        %v6047 = vadd.f32 %v5934, %v5984
        %v6048 = vadd.f32 %v5935, %v5988
        %v6049 = vadd.f32 %v5936, %v5992
        %v6050 = vadd.f32 %v5937, %v5984
        %v6051 = vadd.f32 %v5938, %v5988
        %v6052 = vadd.f32 %v5939, %v5992
        %v6053 = vadd.f32 %v5940, %v5984
        %v6054 = vadd.f32 %v5941, %v5988
        %v6055 = vadd.f32 %v5942, %v5992
        %v6056 = vadd.f32 %v5943, %v5984
        %v6057 = vadd.f32 %v5944, %v5988
        %v6058 = vadd.f32 %v5945, %v5992
        %v6059 = vadd.f32 %v5946, %v5984
        %v6060 = vadd.f32 %v5947, %v5988
        %v6061 = vadd.f32 %v5948, %v5992
        %v6062 = vadd.f32 %v5949, %v5984
        %v6063 = vadd.f32 %v5950, %v5988
        %v6064 = vadd.f32 %v5951, %v5992
        %v6065 = vadd.f32 %v5952, %v5984
        %v6066 = vadd.f32 %v5953, %v5988
        %v6067 = vadd.f32 %v5954, %v5992
        %v6068 = vadd.f32 %v5955, %v5984
        %v6069 = vadd.f32 %v5956, %v5988
        %v6070 = vadd.f32 %v5957, %v5992
        %v6071 = vadd.f32 %v5958, %v5984
        %v6072 = vadd.f32 %v5959, %v5988
        %v6073 = vadd.f32 %v5960, %v5992
        %v6074 = vadd.f32 %v5961, %v5984
        %v6075 = vadd.f32 %v5962, %v5988
        %v6076 = vadd.f32 %v5963, %v5992
        %v6077 = vadd.f32 %v5964, %v5984
        %v6078 = vadd.f32 %v5965, %v5988
        %v6079 = vadd.f32 %v5966, %v5992
        %v6080 = vadd.f32 %v5967, %v5984
        %v6081 = vadd.f32 %v5968, %v5988
        %v6082 = vadd.f32 %v5969, %v5992
        %v6083 = vadd.f32 %v5970, %v5984
        %v6084 = vadd.f32 %v5971, %v5988
        %v6085 = vadd.f32 %v5972, %v5992
        %v6086 = vadd.f32 %v5973, %v5984
        %v6087 = vadd.f32 %v5974, %v5988
        %v6088 = vadd.f32 %v5975, %v5992
        %v6089 = vadd.f32 %v5976, %v5984
        %v6090 = vadd.f32 %v5977, %v5988
        %v6091 = vadd.f32 %v5978, %v5992
        %v6092 = vmax.f32 %v5996, 0.0
        %v6093 = vmax.f32 %v5997, 0.0
        %v6094 = vmax.f32 %v5998, 0.0
        %v6095 = vmax.f32 %v5999, 0.0
        %v6096 = vmax.f32 %v6000, 0.0
        %v6097 = vmax.f32 %v6001, 0.0
        %v6098 = vmax.f32 %v6002, 0.0
        %v6099 = vmax.f32 %v6003, 0.0
        %v6100 = vmax.f32 %v6004, 0.0
        %v6101 = vmax.f32 %v6005, 0.0
        %v6102 = vmax.f32 %v6006, 0.0
        %v6103 = vmax.f32 %v6007, 0.0
        %v6104 = vmax.f32 %v6008, 0.0
        %v6105 = vmax.f32 %v6009, 0.0
        %v6106 = vmax.f32 %v6010, 0.0
        %v6107 = vmax.f32 %v6011, 0.0
        %v6108 = vmax.f32 %v6012, 0.0
        %v6109 = vmax.f32 %v6013, 0.0
        %v6110 = vmax.f32 %v6014, 0.0
        %v6111 = vmax.f32 %v6015, 0.0
        %v6112 = vmax.f32 %v6016, 0.0
        %v6113 = vmax.f32 %v6017, 0.0
        %v6114 = vmax.f32 %v6018, 0.0
        %v6115 = vmax.f32 %v6019, 0.0
        %v6116 = vmax.f32 %v6020, 0.0
        %v6117 = vmax.f32 %v6021, 0.0
        %v6118 = vmax.f32 %v6022, 0.0
        %v6119 = vmax.f32 %v6023, 0.0
        %v6120 = vmax.f32 %v6024, 0.0
        %v6121 = vmax.f32 %v6025, 0.0
        %v6122 = vmax.f32 %v6026, 0.0
        %v6123 = vmax.f32 %v6027, 0.0
        %v6124 = vmax.f32 %v6028, 0.0
        %v6125 = vmax.f32 %v6029, 0.0
        %v6126 = vmax.f32 %v6030, 0.0
        %v6127 = vmax.f32 %v6031, 0.0
        %v6128 = vmax.f32 %v6032, 0.0
        %v6129 = vmax.f32 %v6033, 0.0
        %v6130 = vmax.f32 %v6034, 0.0
        %v6131 = vmax.f32 %v6035, 0.0
        %v6132 = vmax.f32 %v6036, 0.0
        %v6133 = vmax.f32 %v6037, 0.0
        %v6134 = vmax.f32 %v6038, 0.0
        %v6135 = vmax.f32 %v6039, 0.0
        %v6136 = vmax.f32 %v6040, 0.0
        %v6137 = vmax.f32 %v6041, 0.0
        %v6138 = vmax.f32 %v6042, 0.0
        %v6139 = vmax.f32 %v6043, 0.0
        %v6140 = vmax.f32 %v6044, 0.0
        %v6141 = vmax.f32 %v6045, 0.0
        %v6142 = vmax.f32 %v6046, 0.0
        %v6143 = vmax.f32 %v6047, 0.0
        %v6144 = vmax.f32 %v6048, 0.0
        %v6145 = vmax.f32 %v6049, 0.0
        %v6146 = vmax.f32 %v6050, 0.0
        %v6147 = vmax.f32 %v6051, 0.0
        %v6148 = vmax.f32 %v6052, 0.0
        %v6149 = vmax.f32 %v6053, 0.0
        %v6150 = vmax.f32 %v6054, 0.0
        %v6151 = vmax.f32 %v6055, 0.0
        %v6152 = vmax.f32 %v6056, 0.0
        %v6153 = vmax.f32 %v6057, 0.0
        %v6154 = vmax.f32 %v6058, 0.0
        %v6155 = vmax.f32 %v6059, 0.0
        %v6156 = vmax.f32 %v6060, 0.0
        %v6157 = vmax.f32 %v6061, 0.0
        %v6158 = vmax.f32 %v6062, 0.0
        %v6159 = vmax.f32 %v6063, 0.0
        %v6160 = vmax.f32 %v6064, 0.0
        %v6161 = vmax.f32 %v6065, 0.0
        %v6162 = vmax.f32 %v6066, 0.0
        %v6163 = vmax.f32 %v6067, 0.0
        %v6164 = vmax.f32 %v6068, 0.0
        %v6165 = vmax.f32 %v6069, 0.0
        %v6166 = vmax.f32 %v6070, 0.0
        %v6167 = vmax.f32 %v6071, 0.0
        %v6168 = vmax.f32 %v6072, 0.0
        %v6169 = vmax.f32 %v6073, 0.0
        %v6170 = vmax.f32 %v6074, 0.0
        %v6171 = vmax.f32 %v6075, 0.0
        %v6172 = vmax.f32 %v6076, 0.0
        %v6173 = vmax.f32 %v6077, 0.0
        %v6174 = vmax.f32 %v6078, 0.0
        %v6175 = vmax.f32 %v6079, 0.0
        %v6176 = vmax.f32 %v6080, 0.0
        %v6177 = vmax.f32 %v6081, 0.0
        %v6178 = vmax.f32 %v6082, 0.0
        %v6179 = vmax.f32 %v6083, 0.0
        %v6180 = vmax.f32 %v6084, 0.0
        %v6181 = vmax.f32 %v6085, 0.0
        %v6182 = vmax.f32 %v6086, 0.0
        %v6183 = vmax.f32 %v6087, 0.0
        %v6184 = vmax.f32 %v6088, 0.0
        %v6185 = vmax.f32 %v6089, 0.0
        %v6186 = vmax.f32 %v6090, 0.0
        %v6187 = vmax.f32 %v6091, 0.0
        %v6188 = vpack.c.bf16 %v6095, %v6092
        %v6189 = vpack.c.bf16 %v6096, %v6093
        %v6190 = vpack.c.bf16 %v6097, %v6094
        %v6191 = vpack.c.bf16 %v6101, %v6098
        %v6192 = vpack.c.bf16 %v6102, %v6099
        %v6193 = vpack.c.bf16 %v6103, %v6100
        %v6194 = vpack.c.bf16 %v6107, %v6104
        %v6195 = vpack.c.bf16 %v6108, %v6105
        %v6196 = vpack.c.bf16 %v6109, %v6106
        %v6197 = vpack.c.bf16 %v6113, %v6110
        %v6198 = vpack.c.bf16 %v6114, %v6111
        %v6199 = vpack.c.bf16 %v6115, %v6112
        %v6200 = vpack.c.bf16 %v6119, %v6116
        %v6201 = vpack.c.bf16 %v6120, %v6117
        %v6202 = vpack.c.bf16 %v6121, %v6118
        %v6203 = vpack.c.bf16 %v6125, %v6122
        %v6204 = vpack.c.bf16 %v6126, %v6123
        %v6205 = vpack.c.bf16 %v6127, %v6124
        %v6206 = vpack.c.bf16 %v6131, %v6128
        %v6207 = vpack.c.bf16 %v6132, %v6129
        %v6208 = vpack.c.bf16 %v6133, %v6130
        %v6209 = vpack.c.bf16 %v6137, %v6134
        %v6210 = vpack.c.bf16 %v6138, %v6135
        %v6211 = vpack.c.bf16 %v6139, %v6136
        %v6212 = vpack.c.bf16 %v6143, %v6140
        %v6213 = vpack.c.bf16 %v6144, %v6141
        %v6214 = vpack.c.bf16 %v6145, %v6142
        %v6215 = vpack.c.bf16 %v6149, %v6146
        %v6216 = vpack.c.bf16 %v6150, %v6147
        %v6217 = vpack.c.bf16 %v6151, %v6148
        %v6218 = vpack.c.bf16 %v6155, %v6152
        %v6219 = vpack.c.bf16 %v6156, %v6153
        %v6220 = vpack.c.bf16 %v6157, %v6154
        %v6221 = vpack.c.bf16 %v6161, %v6158
        %v6222 = vpack.c.bf16 %v6162, %v6159
        %v6223 = vpack.c.bf16 %v6163, %v6160
        %v6224 = vpack.c.bf16 %v6167, %v6164
        %v6225 = vpack.c.bf16 %v6168, %v6165
        %v6226 = vpack.c.bf16 %v6169, %v6166
        %v6227 = vpack.c.bf16 %v6173, %v6170
        %v6228 = vpack.c.bf16 %v6174, %v6171
        %v6229 = vpack.c.bf16 %v6175, %v6172
        %v6230 = vpack.c.bf16 %v6179, %v6176
        %v6231 = vpack.c.bf16 %v6180, %v6177
        %v6232 = vpack.c.bf16 %v6181, %v6178
        %v6233 = vpack.c.bf16 %v6185, %v6182
        %v6234 = vpack.c.bf16 %v6186, %v6183
        %v6235 = vpack.c.bf16 %v6187, %v6184
        %v6284 = vunpack.c.l.b16 %v6188
        %v6285 = vunpack.c.l.b16 %v6189
        %v6286 = vunpack.c.l.b16 %v6190
        %v6287 = vunpack.c.h.b16 %v6188
        %v6288 = vunpack.c.h.b16 %v6189
        %v6289 = vunpack.c.h.b16 %v6190
        %v6290 = vunpack.c.l.b16 %v6191
        %v6291 = vunpack.c.l.b16 %v6192
        %v6292 = vunpack.c.l.b16 %v6193
        %v6293 = vunpack.c.h.b16 %v6191
        %v6294 = vunpack.c.h.b16 %v6192
        %v6295 = vunpack.c.h.b16 %v6193
        %v6296 = vunpack.c.l.b16 %v6194
        %v6297 = vunpack.c.l.b16 %v6195
        %v6298 = vunpack.c.l.b16 %v6196
        %v6299 = vunpack.c.h.b16 %v6194
        %v6300 = vunpack.c.h.b16 %v6195
        %v6301 = vunpack.c.h.b16 %v6196
        %v6302 = vunpack.c.l.b16 %v6197
        %v6303 = vunpack.c.l.b16 %v6198
        %v6304 = vunpack.c.l.b16 %v6199
        %v6305 = vunpack.c.h.b16 %v6197
        %v6306 = vunpack.c.h.b16 %v6198
        %v6307 = vunpack.c.h.b16 %v6199
        %v6308 = vunpack.c.l.b16 %v6200
        %v6309 = vunpack.c.l.b16 %v6201
        %v6310 = vunpack.c.l.b16 %v6202
        %v6311 = vunpack.c.h.b16 %v6200
        %v6312 = vunpack.c.h.b16 %v6201
        %v6313 = vunpack.c.h.b16 %v6202
        %v6314 = vunpack.c.l.b16 %v6203
        %v6315 = vunpack.c.l.b16 %v6204
        %v6316 = vunpack.c.l.b16 %v6205
        %v6317 = vunpack.c.h.b16 %v6203
        %v6318 = vunpack.c.h.b16 %v6204
        %v6319 = vunpack.c.h.b16 %v6205
        %v6320 = vunpack.c.l.b16 %v6206
        %v6321 = vunpack.c.l.b16 %v6207
        %v6322 = vunpack.c.l.b16 %v6208
        %v6323 = vunpack.c.h.b16 %v6206
        %v6324 = vunpack.c.h.b16 %v6207
        %v6325 = vunpack.c.h.b16 %v6208
        %v6326 = vunpack.c.l.b16 %v6209
        %v6327 = vunpack.c.l.b16 %v6210
        %v6328 = vunpack.c.l.b16 %v6211
        %v6329 = vunpack.c.h.b16 %v6209
        %v6330 = vunpack.c.h.b16 %v6210
        %v6331 = vunpack.c.h.b16 %v6211
        %v6332 = vunpack.c.l.b16 %v6212
        %v6333 = vunpack.c.l.b16 %v6213
        %v6334 = vunpack.c.l.b16 %v6214
        %v6335 = vunpack.c.h.b16 %v6212
        %v6336 = vunpack.c.h.b16 %v6213
        %v6337 = vunpack.c.h.b16 %v6214
        %v6338 = vunpack.c.l.b16 %v6215
        %v6339 = vunpack.c.l.b16 %v6216
        %v6340 = vunpack.c.l.b16 %v6217
        %v6341 = vunpack.c.h.b16 %v6215
        %v6342 = vunpack.c.h.b16 %v6216
        %v6343 = vunpack.c.h.b16 %v6217
        %v6344 = vunpack.c.l.b16 %v6218
        %v6345 = vunpack.c.l.b16 %v6219
        %v6346 = vunpack.c.l.b16 %v6220
        %v6347 = vunpack.c.h.b16 %v6218
        %v6348 = vunpack.c.h.b16 %v6219
        %v6349 = vunpack.c.h.b16 %v6220
        %v6350 = vunpack.c.l.b16 %v6221
        %v6351 = vunpack.c.l.b16 %v6222
        %v6352 = vunpack.c.l.b16 %v6223
        %v6353 = vunpack.c.h.b16 %v6221
        %v6354 = vunpack.c.h.b16 %v6222
        %v6355 = vunpack.c.h.b16 %v6223
        %v6356 = vunpack.c.l.b16 %v6224
        %v6357 = vunpack.c.l.b16 %v6225
        %v6358 = vunpack.c.l.b16 %v6226
        %v6359 = vunpack.c.h.b16 %v6224
        %v6360 = vunpack.c.h.b16 %v6225
        %v6361 = vunpack.c.h.b16 %v6226
        %v6362 = vunpack.c.l.b16 %v6227
        %v6363 = vunpack.c.l.b16 %v6228
        %v6364 = vunpack.c.l.b16 %v6229
        %v6365 = vunpack.c.h.b16 %v6227
        %v6366 = vunpack.c.h.b16 %v6228
        %v6367 = vunpack.c.h.b16 %v6229
        %v6368 = vunpack.c.l.b16 %v6230
        %v6369 = vunpack.c.l.b16 %v6231
        %v6370 = vunpack.c.l.b16 %v6232
        %v6371 = vunpack.c.h.b16 %v6230
        %v6372 = vunpack.c.h.b16 %v6231
        %v6373 = vunpack.c.h.b16 %v6232
        %v6374 = vunpack.c.l.b16 %v6233
        %v6375 = vunpack.c.l.b16 %v6234
        %v6376 = vunpack.c.l.b16 %v6235
        %v6377 = vunpack.c.h.b16 %v6233
        %v6378 = vunpack.c.h.b16 %v6234
        %v6379 = vunpack.c.h.b16 %v6235
        %v6380 = vpack.c.b16 %v6285, %v6284
        %v6381 = vpack.c.b16 %v6286, %v6286
        %v6382 = vpack.c.b16 %v6288, %v6287
        %v6383 = vpack.c.b16 %v6289, %v6289
        %v6384 = vpack.c.b16 %v6291, %v6290
        %v6385 = vpack.c.b16 %v6292, %v6292
        %v6386 = vpack.c.b16 %v6294, %v6293
        %v6387 = vpack.c.b16 %v6295, %v6295
        %v6388 = vpack.c.b16 %v6297, %v6296
        %v6389 = vpack.c.b16 %v6298, %v6298
        %v6390 = vpack.c.b16 %v6300, %v6299
        %v6391 = vpack.c.b16 %v6301, %v6301
        %v6392 = vpack.c.b16 %v6303, %v6302
        %v6393 = vpack.c.b16 %v6304, %v6304
        %v6394 = vpack.c.b16 %v6306, %v6305
        %v6395 = vpack.c.b16 %v6307, %v6307
        %v6396 = vpack.c.b16 %v6309, %v6308
        %v6397 = vpack.c.b16 %v6310, %v6310
        %v6398 = vpack.c.b16 %v6312, %v6311
        %v6399 = vpack.c.b16 %v6313, %v6313
        %v6400 = vpack.c.b16 %v6315, %v6314
        %v6401 = vpack.c.b16 %v6316, %v6316
        %v6402 = vpack.c.b16 %v6318, %v6317
        %v6403 = vpack.c.b16 %v6319, %v6319
        %v6404 = vpack.c.b16 %v6321, %v6320
        %v6405 = vpack.c.b16 %v6322, %v6322
        %v6406 = vpack.c.b16 %v6324, %v6323
        %v6407 = vpack.c.b16 %v6325, %v6325
        %v6408 = vpack.c.b16 %v6327, %v6326
        %v6409 = vpack.c.b16 %v6328, %v6328
        %v6410 = vpack.c.b16 %v6330, %v6329
        %v6411 = vpack.c.b16 %v6331, %v6331
        %v6412 = vpack.c.b16 %v6333, %v6332
        %v6413 = vpack.c.b16 %v6334, %v6334
        %v6414 = vpack.c.b16 %v6336, %v6335
        %v6415 = vpack.c.b16 %v6337, %v6337
        %v6416 = vpack.c.b16 %v6339, %v6338
        %v6417 = vpack.c.b16 %v6340, %v6340
        %v6418 = vpack.c.b16 %v6342, %v6341
        %v6419 = vpack.c.b16 %v6343, %v6343
        %v6420 = vpack.c.b16 %v6345, %v6344
        %v6421 = vpack.c.b16 %v6346, %v6346
        %v6422 = vpack.c.b16 %v6348, %v6347
        %v6423 = vpack.c.b16 %v6349, %v6349
        %v6424 = vpack.c.b16 %v6351, %v6350
        %v6425 = vpack.c.b16 %v6352, %v6352
        %v6426 = vpack.c.b16 %v6354, %v6353
        %v6427 = vpack.c.b16 %v6355, %v6355
        %v6428 = vpack.c.b16 %v6357, %v6356
        %v6429 = vpack.c.b16 %v6358, %v6358
        %v6430 = vpack.c.b16 %v6360, %v6359
        %v6431 = vpack.c.b16 %v6361, %v6361
        %v6432 = vpack.c.b16 %v6363, %v6362
        %v6433 = vpack.c.b16 %v6364, %v6364
        %v6434 = vpack.c.b16 %v6366, %v6365
        %v6435 = vpack.c.b16 %v6367, %v6367
        %v6436 = vpack.c.b16 %v6369, %v6368
        %v6437 = vpack.c.b16 %v6370, %v6370
        %v6438 = vpack.c.b16 %v6372, %v6371
        %v6439 = vpack.c.b16 %v6373, %v6373
        %v6440 = vpack.c.b16 %v6375, %v6374
        %v6441 = vpack.c.b16 %v6376, %v6376
        %v6442 = vpack.c.b16 %v6378, %v6377
        %v6443 = vpack.c.b16 %v6379, %v6379
        %6508 = vst [vmem:[%s203] sm:$0xff] %v6380
        %6509 = vst [vmem:[%s203 + $0x8] sm:$0xf] %v6381
        %6510 = vst [vmem:[%s203 + $0xc] sm:$0xff] %v6382
        %6511 = vst [vmem:[%s203 + $0x14] sm:$0xf] %v6383
        %6512 = vst [vmem:[%s203 + $0x18] sm:$0xff] %v6384
        %6513 = vst [vmem:[%s203 + $0x20] sm:$0xf] %v6385
        %6514 = vst [vmem:[%s203 + $0x24] sm:$0xff] %v6386
        %6515 = vst [vmem:[%s203 + $0x2c] sm:$0xf] %v6387
        %6516 = vst [vmem:[%s203 + $0x30] sm:$0xff] %v6388
        %6517 = vst [vmem:[%s203 + $0x38] sm:$0xf] %v6389
        %6518 = vst [vmem:[%s203 + $0x3c] sm:$0xff] %v6390
        %6519 = vst [vmem:[%s203 + $0x44] sm:$0xf] %v6391
        %6520 = vst [vmem:[%s203 + $0x48] sm:$0xff] %v6392
        %6521 = vst [vmem:[%s203 + $0x50] sm:$0xf] %v6393
        %6522 = vst [vmem:[%s203 + $0x54] sm:$0xff] %v6394
        %6523 = vst [vmem:[%s203 + $0x5c] sm:$0xf] %v6395
        %6524 = vst [vmem:[%s203 + $0x60] sm:$0xff] %v6396
        %6525 = vst [vmem:[%s203 + $0x68] sm:$0xf] %v6397
        %6526 = vst [vmem:[%s203 + $0x6c] sm:$0xff] %v6398
        %6527 = vst [vmem:[%s203 + $0x74] sm:$0xf] %v6399
        %6528 = vst [vmem:[%s203 + $0x78] sm:$0xff] %v6400
        %6529 = vst [vmem:[%s203 + $0x80] sm:$0xf] %v6401
        %6530 = vst [vmem:[%s203 + $0x84] sm:$0xff] %v6402
        %6531 = vst [vmem:[%s203 + $0x8c] sm:$0xf] %v6403
        %6532 = vst [vmem:[%s203 + $0x90] sm:$0xff] %v6404
        %6533 = vst [vmem:[%s203 + $0x98] sm:$0xf] %v6405
        %6534 = vst [vmem:[%s203 + $0x9c] sm:$0xff] %v6406
        %6535 = vst [vmem:[%s203 + $0xa4] sm:$0xf] %v6407
        %6536 = vst [vmem:[%s203 + $0xa8] sm:$0xff] %v6408
        %6537 = vst [vmem:[%s203 + $0xb0] sm:$0xf] %v6409
        %6538 = vst [vmem:[%s203 + $0xb4] sm:$0xff] %v6410
        %6539 = vst [vmem:[%s203 + $0xbc] sm:$0xf] %v6411
        %6540 = vst [vmem:[%s203 + $0xc0] sm:$0xff] %v6412
        %6541 = vst [vmem:[%s203 + $0xc8] sm:$0xf] %v6413
        %6542 = vst [vmem:[%s203 + $0xcc] sm:$0xff] %v6414
        %6543 = vst [vmem:[%s203 + $0xd4] sm:$0xf] %v6415
        %6544 = vst [vmem:[%s203 + $0xd8] sm:$0xff] %v6416
        %6545 = vst [vmem:[%s203 + $0xe0] sm:$0xf] %v6417
        %6546 = vst [vmem:[%s203 + $0xe4] sm:$0xff] %v6418
        %6547 = vst [vmem:[%s203 + $0xec] sm:$0xf] %v6419
        %6548 = vst [vmem:[%s203 + $0xf0] sm:$0xff] %v6420
        %6549 = vst [vmem:[%s203 + $0xf8] sm:$0xf] %v6421
        %6550 = vst [vmem:[%s203 + $0xfc] sm:$0xff] %v6422
        %6551 = vst [vmem:[%s203 + $0x104] sm:$0xf] %v6423
        %6552 = vst [vmem:[%s203 + $0x108] sm:$0xff] %v6424
        %6553 = vst [vmem:[%s203 + $0x110] sm:$0xf] %v6425
        %6554 = vst [vmem:[%s203 + $0x114] sm:$0xff] %v6426
        %6555 = vst [vmem:[%s203 + $0x11c] sm:$0xf] %v6427
        %6556 = vst [vmem:[%s203 + $0x120] sm:$0xff] %v6428
        %6557 = vst [vmem:[%s203 + $0x128] sm:$0xf] %v6429
        %6558 = vst [vmem:[%s203 + $0x12c] sm:$0xff] %v6430
        %6559 = vst [vmem:[%s203 + $0x134] sm:$0xf] %v6431
        %6560 = vst [vmem:[%s203 + $0x138] sm:$0xff] %v6432
        %6561 = vst [vmem:[%s203 + $0x140] sm:$0xf] %v6433
        %6562 = vst [vmem:[%s203 + $0x144] sm:$0xff] %v6434
        %6563 = vst [vmem:[%s203 + $0x14c] sm:$0xf] %v6435
        %6564 = vst [vmem:[%s203 + $0x150] sm:$0xff] %v6436
        %6565 = vst [vmem:[%s203 + $0x158] sm:$0xf] %v6437
        %6566 = vst [vmem:[%s203 + $0x15c] sm:$0xff] %v6438
        %6567 = vst [vmem:[%s203 + $0x164] sm:$0xf] %v6439
        %6568 = vst [vmem:[%s203 + $0x168] sm:$0xff] %v6440
        %6569 = vst [vmem:[%s203 + $0x170] sm:$0xf] %v6441
        %6570 = vst [vmem:[%s203 + $0x174] sm:$0xff] %v6442
        %6571 = vst [vmem:[%s203 + $0x17c] sm:$0xf] %v6443
        %s6572 = sand.u32 %s97, 1
        %s6573 = scalar_lea.sflag [#allocation5], %s6572
        %s6574 = sand.u32 %s97, 1
        %s6575 = smul.addr %s6574, 384
        %s6576 = scalar_lea.vmem [#allocation8], %s6575
        // Predicated region
        $region41: #{tpu_custom_call.1} parent=31 // pred_check
          %p6577 = pneg %p107
        $region42: #{tpu_custom_call.1} parent=31 // pred_check_branch
          %6579 = sbr.rel (%p6577) target = $region44
        $region43: #{tpu_custom_call.1} parent=31 // pred_region
          %s6581 = ssub.s32 6144, 6144
          %6582 = vsyncadd %s6573, %s6581
          %s6583 = smul.addr %s21, 96
          %s6584 = smul.addr %s6583, 64
          %s6585 = scalar_lea.hbm %s3, %s6584
          %s6586 = sshll.u32 %s6576, 4
          %s6587 = int_to_ptr.vmem [resolvable:$true] %s6586
          %6592 = dma.vmem_to_hbm [thread:$0]  %s6587, 6144, %s6585, %s6573, 192, 192, 12
        $region44: #{tpu_custom_call.1} parent=31 // pred_fallthru
          _
      $region32: #{tpu_custom_call.1} parent=5 // pred_fallthru
        _
      %p6593 = scmp.le.s32.totalorder 2, %s16
      // Predicated region
      $region45: #{tpu_custom_call.1} parent=5 // pred_check
        %p6594 = pneg %p6593
      $region46: #{tpu_custom_call.1} parent=5 // pred_check_branch
        %6596 = sbr.rel (%p6594) target = $region48
      $region47: #{tpu_custom_call.1} parent=5 // pred_region
        %s6597 = ssub.s32 %s16, 2
        // Predicated region
        $region49: #{tpu_custom_call.1} parent=47 // pred_check
          %p6598 = pneg %p113
        $region50: #{tpu_custom_call.1} parent=47 // pred_check_branch
          %6600 = sbr.rel (%p6598) target = $region52
        $region51: #{tpu_custom_call.1} parent=47 // pred_region
          %s6601 = sand.u32 %s98, 1
          %s6602 = scalar_lea.sflag [#allocation5], %s6601
          %s6603 = sand.u32 %s98, 1
          %s6604 = smul.addr %s6603, 384
          %s6605 = scalar_lea.vmem [#allocation8], %s6604
          %6606 = dma.done %s6602, 6144
        $region52: #{tpu_custom_call.1} parent=47 // pred_fallthru
          _
      $region48: #{tpu_custom_call.1} parent=5 // pred_fallthru
        _
    $region6: #{tpu_custom_call.1} parent=1 // loop_footer
      %s20 = sadd.s32 1, %s16
    $region7: #{tpu_custom_call.1} parent=1 // loop_footer_branch
      %15 = sbr.rel target = $region3
    $region8: #{tpu_custom_call.1} parent=1 // loop_exit
      _
    %6607 = vsyncpa [#allocation4], 1
    %s6608 = scalar_lea.sflag [#allocation4], 1
    %6609 = vsyncpa %s6608, 1
    %6610 = vsyncpa [#allocation7], 1
    %6611 = vsyncpa [#allocation5], 1
    %s6612 = scalar_lea.sflag [#allocation5], 1
    %6613 = vsyncpa %s6612, 1

</llo_original>
